<compile_context>
chip_gen: v5e
topology: v5e:2x2
jax: 0.10.0
libtpu: 0.0.40
codegen_flags: <defaults>
</compile_context>

<pallas_src>
import functools

import jax
import jax.numpy as jnp
from jax.experimental import pallas as pl
from jax.experimental.pallas import tpu as pltpu


OUT_LANES = 128  # lane-dense padded width of the final output block


def _round_up(x, m):
    return (x + m - 1) // m * m


# ---------------------------------------------------------------------------
# Fused Pallas kernel: one batch BLOCK (TB rows) per grid step
# ---------------------------------------------------------------------------
def _inversion_kernel(x_ref, w1_ref, b1_ref, w2_ref, b2_ref,
                      wl1_ref, wl_ref, bl_ref, wo_ref, bo_ref,
                      o_ref,
                      cg_ref, a1_ref, h1_ref, p1_ref, a2_ref, h2_ref, flat_ref,
                      *, scales, ksize, geom):
    ls_list, l1_list, p1_list, l2_list, p2_list = geom
    tb = x_ref.shape[1]                     # batch rows in this block (GEMM M dim)
    cin = x_ref.shape[2]
    c1 = w1_ref.shape[1]
    c2 = w2_ref.shape[1]
    l1_tot = sum(l1_list)
    l2_tot = sum(l2_list)
    mm_dtype = w1_ref.dtype                 # f32 by default, bf16 if requested

    # ---- CoarseGrain (materialized once per scale) + conv1 im2col for ALL scales ----
    r1 = 0
    for si, s in enumerate(scales):
        ls, l1 = ls_list[si], l1_list[si]
        if s == 1:
            src = x_ref                      # coarse-grain is the identity
        else:
            inv_s = 1.0 / float(s)
            for t in range(ls):              # ls <= nwl//2 : small static loop
                acc = x_ref[t * s]
                for j in range(1, s):
                    acc = acc + x_ref[t * s + j]
                cg_ref[t] = acc * inv_s
            src = cg_ref
        # im2col: a1[(r1+t), :, k*cin:(k+1)*cin] = cg[t+k, :, :]   (contiguous slabs)
        for k in range(ksize):
            a1_ref[r1:r1 + l1, :, k * cin:(k + 1) * cin] = src[k:k + l1]
        r1 += l1

    # ---- conv1: ONE GEMM over all scales and all TB batch rows ----
    a1 = a1_ref[...].reshape(l1_tot * tb, ksize * cin)
    h1 = jnp.dot(a1.astype(mm_dtype), w1_ref[...],
                 preferred_element_type=jnp.float32)
    h1 = jnp.maximum(h1 + b1_ref[...], 0.0)
    h1_ref[...] = h1.reshape(l1_tot, tb, c1)

    # ---- MaxPool1d(2) of conv1 (materialized once) + conv2 im2col for ALL scales ----
    r1 = 0
    pp = 0
    r2 = 0
    for si, _s in enumerate(scales):
        l1, p1n, l2 = l1_list[si], p1_list[si], l2_list[si]
        for t in range(p1n):
            p1_ref[pp + t] = jnp.maximum(h1_ref[r1 + 2 * t], h1_ref[r1 + 2 * t + 1])
        for k in range(ksize):
            a2_ref[r2:r2 + l2, :, k * c1:(k + 1) * c1] = p1_ref[pp + k:pp + k + l2]
        r1 += l1
        pp += p1n
        r2 += l2

    # ---- conv2: ONE GEMM ----
    a2 = a2_ref[...].reshape(l2_tot * tb, ksize * c1)
    h2 = jnp.dot(a2.astype(mm_dtype), w2_ref[...],
                 preferred_element_type=jnp.float32)
    h2 = jnp.maximum(h2 + b2_ref[...], 0.0)
    h2_ref[...] = h2.reshape(l2_tot, tb, c2)

    # ---- MaxPool1d(2) of conv2 + flatten (t-outer, c-inner) into lane-dense scratch ----
    r2 = 0
    toff = 0
    for si, _s in enumerate(scales):
        l2, p2n = l2_list[si], p2_list[si]
        for t in range(p2n):
            v = jnp.maximum(h2_ref[r2 + 2 * t], h2_ref[r2 + 2 * t + 1])   # (TB, c2)
            lo = (toff + t) * c2
            flat_ref[:, lo:lo + c2] = v
        r2 += l2
        toff += p2n

    # ---- MLP head: 4x the SAME (Linear+ReLU) then output Linear, as (TB,384) GEMMs ----
    bl = bl_ref[...]
    h = jnp.dot(flat_ref[...].astype(mm_dtype), wl1_ref[...],
                preferred_element_type=jnp.float32)
    h = jnp.maximum(h + bl, 0.0)
    for _ in range(3):
        h = jnp.dot(h.astype(mm_dtype), wl_ref[...],
                    preferred_element_type=jnp.float32)
        h = jnp.maximum(h + bl, 0.0)
    out = jnp.dot(h.astype(mm_dtype), wo_ref[...],
                  preferred_element_type=jnp.float32) + bo_ref[...]
    o_ref[...] = out.astype(o_ref.dtype)                                   # (TB, 128)


# ---------------------------------------------------------------------------
# Wrapper: host-side weight packing + single pallas_call
# ---------------------------------------------------------------------------
def inversion_model_forward(x_ncl, params, scales, ksize=5,
                            block_batch=128, matmul_dtype=jnp.float32):
    """x_ncl: (B, Cin, nwl) float input (PyTorch Conv1d layout). Returns (B, n_outputs)."""
    x = x_ncl.astype(jnp.float32)
    bsz, cin, nwl = x.shape

    # Length-major layout (L, B, Cin): all length ops are leading-dim slab ops and the
    # batch sits in the GEMM M dimension.
    x_lbc = jnp.transpose(x, (2, 0, 1))

    tb = _round_up(min(block_batch, _round_up(bsz, 8)), 8)
    bp = _round_up(bsz, tb)
    if bp != bsz:
        x_lbc = jnp.pad(x_lbc, ((0, 0), (0, bp - bsz), (0, 0)))
    grid = (bp // tb,)

    w1p = params["w1"].reshape(-1, params["w1"].shape[-1]).astype(matmul_dtype)  # (k*cin, c1)
    w2p = params["w2"].reshape(-1, params["w2"].shape[-1]).astype(matmul_dtype)  # (k*c1, c2)
    c1, c2 = w1p.shape[1], w2p.shape[1]
    b1 = params["b1"].astype(jnp.float32)
    b2 = params["b2"].astype(jnp.float32)
    w_lin, b_lin = params["w_lin"], params["b_lin"].astype(jnp.float32)
    w_out, b_out = params["w_out"], params["b_out"]
    flat_f = w_lin.shape[0]
    n_out = w_out.shape[1]

    # Static per-scale geometry (matches the PyTorch flatten_size computation).
    ls_list, l1_list, p1_list, l2_list, p2_list = [], [], [], [], []
    for s in scales:
        ls = nwl // s
        l1 = ls - ksize + 1
        p1n = l1 // 2
        l2 = p1n - ksize + 1
        p2n = l2 // 2
        ls_list.append(ls), l1_list.append(l1), p1_list.append(p1n)
        l2_list.append(l2), p2_list.append(p2n)
    l1_tot, p1_tot, l2_tot, t_tot = sum(l1_list), sum(p1_list), sum(l2_list), sum(p2_list)
    assert t_tot * c2 == flat_f, (t_tot, c2, flat_f)

    # Row-permute w_lin for the FIRST shared Linear so it consumes the kernel's
    # (t-outer, c-inner) flatten order; remaining 3 applications use w_lin unchanged.
    idx = jnp.arange(flat_f)
    perm = (idx % c2) * t_tot + (idx // c2)
    w_lin_first = w_lin[perm].astype(matmul_dtype)
    w_lin_c = w_lin.astype(matmul_dtype)

    # Lane-dense output: pad the output Linear to 128 lanes; slice back outside.
    assert n_out <= OUT_LANES
    w_out_p = jnp.zeros((flat_f, OUT_LANES), matmul_dtype).at[:, :n_out].set(
        w_out.astype(matmul_dtype))
    b_out_p = jnp.zeros((1, OUT_LANES), jnp.float32).at[:, :n_out].set(b_out)

    cg_rows = max([nwl // s for s in scales if s > 1] + [8])

    def full_spec(a):
        nd = a.ndim
        return pl.BlockSpec(a.shape, lambda i, _nd=nd: (0,) * _nd)

    geom = (tuple(ls_list), tuple(l1_list), tuple(p1_list),
            tuple(l2_list), tuple(p2_list))
    kernel = functools.partial(_inversion_kernel, scales=tuple(scales),
                               ksize=ksize, geom=geom)

    out = pl.pallas_call(
        kernel,
        out_shape=jax.ShapeDtypeStruct((bp, OUT_LANES), jnp.float32),
        grid=grid,
        in_specs=[
            pl.BlockSpec((nwl, tb, cin), lambda i: (0, i, 0)),   # per-block input slab
            full_spec(w1p), full_spec(b1),
            full_spec(w2p), full_spec(b2),
            full_spec(w_lin_first), full_spec(w_lin_c), full_spec(b_lin),
            full_spec(w_out_p), full_spec(b_out_p),
        ],
        out_specs=pl.BlockSpec((tb, OUT_LANES), lambda i: (i, 0)),
        scratch_shapes=[
            pltpu.VMEM((cg_rows, tb, cin), jnp.float32),          # coarse-grained signal
            pltpu.VMEM((l1_tot, tb, ksize * cin), jnp.float32),   # conv1 im2col (all scales)
            pltpu.VMEM((l1_tot, tb, c1), jnp.float32),            # conv1 output
            pltpu.VMEM((p1_tot, tb, c1), jnp.float32),            # pooled conv1
            pltpu.VMEM((l2_tot, tb, ksize * c1), jnp.float32),    # conv2 im2col (all scales)
            pltpu.VMEM((l2_tot, tb, c2), jnp.float32),            # conv2 output
            pltpu.VMEM((tb, flat_f), jnp.float32),                # flattened features
        ],
        compiler_params=pltpu.CompilerParams(
            dimension_semantics=("parallel",),
            vmem_limit_bytes=48 * 1024 * 1024,
        ),
    )(x_lbc, w1p, b1, w2p, b2, w_lin_first, w_lin_c, b_lin, w_out_p, b_out_p)

    return out[:bsz, :n_out]


# ---------------------------------------------------------------------------
# Parameters
# ---------------------------------------------------------------------------
def init_params(key, scales, nwl, in_channels=4, c1=16, c2=32, ksize=5, n_outputs=5):
    def after_block(v):
        for _ in range(2):
            v = (v - ksize + 1) // 2
        return v

    total_features = sum(after_block(nwl // s) for s in scales)
    flatten_size = total_features * c2

    ks = jax.random.split(key, 8)
    params = {
        "w1": 0.05 * jax.random.normal(ks[0], (ksize, in_channels, c1), jnp.float32),
        "b1": 0.05 * jax.random.normal(ks[1], (1, c1), jnp.float32),
        "w2": 0.05 * jax.random.normal(ks[2], (ksize, c1, c2), jnp.float32),
        "b2": 0.05 * jax.random.normal(ks[3], (1, c2), jnp.float32),
        "w_lin": 0.05 * jax.random.normal(ks[4], (flatten_size, flatten_size), jnp.float32),
        "b_lin": 0.05 * jax.random.normal(ks[5], (1, flatten_size), jnp.float32),
        "w_out": 0.05 * jax.random.normal(ks[6], (flatten_size, n_outputs), jnp.float32),
        "b_out": 0.05 * jax.random.normal(ks[7], (1, n_outputs), jnp.float32),
    }
    return params, flatten_size


# ---------------------------------------------------------------------------
# Pure-JAX reference (XLA, no Pallas) for correctness validation
# ---------------------------------------------------------------------------
def reference_forward(x_ncl, params, scales, ksize=5):
    hi = jax.lax.Precision.HIGHEST
    x = x_ncl.astype(jnp.float32)
    bsz, cin, nwl = x.shape
    w1, b1 = params["w1"], params["b1"]
    w2, b2 = params["w2"], params["b2"]
    feats = []
    for s in scales:
        ls = nwl // s
        cg = x[:, :, :ls * s].reshape(bsz, cin, ls, s).mean(-1)   # CoarseGrain
        cgl = jnp.transpose(cg, (0, 2, 1))                        # (B, ls, cin)
        l1 = ls - ksize + 1
        h = sum(jnp.einsum("blc,cf->blf", cgl[:, k:k + l1, :], w1[k], precision=hi)
                for k in range(ksize)) + b1
        h = jnp.maximum(h, 0.0)
        p1 = l1 // 2
        hp = jnp.maximum(h[:, 0:2 * p1:2, :], h[:, 1:2 * p1:2, :])
        l2 = p1 - ksize + 1
        g = sum(jnp.einsum("blc,cf->blf", hp[:, k:k + l2, :], w2[k], precision=hi)
                for k in range(ksize)) + b2
        g = jnp.maximum(g, 0.0)
        p2 = l2 // 2
        feats.append(jnp.maximum(g[:, 0:2 * p2:2, :], g[:, 1:2 * p2:2, :]))
    fm = jnp.concatenate(feats, axis=1)                           # (B, T, c2)
    flat = jnp.transpose(fm, (0, 2, 1)).reshape(bsz, -1)          # PyTorch nn.Flatten order
    h = flat
    for _ in range(4):                                            # 4x shared Linear+ReLU
        h = jnp.maximum(jnp.dot(h, params["w_lin"], precision=hi) + params["b_lin"], 0.0)
    return jnp.dot(h, params["w_out"], precision=hi) + params["b_out"]


if __name__ == "__main__":
    scales = [1, 2]
    nwl_points = 48
    batch, in_channels, n_outputs = 2, 4, 5

    key = jax.random.PRNGKey(0)
    kx, kp = jax.random.split(key)
    x = jax.random.normal(kx, (batch, in_channels, nwl_points), jnp.float32)  # NCL input

    params, flatten_size = init_params(kp, scales, nwl_points,
                                       in_channels=in_channels, n_outputs=n_outputs)

    y = inversion_model_forward(x, params, scales)
    y = jax.block_until_ready(y)

    assert y.shape == (batch, n_outputs), y.shape
    assert bool(jnp.all(jnp.isfinite(y)))

    y_ref = reference_forward(x, params, scales)
    err = float(jnp.max(jnp.abs(y - y_ref)))
    assert bool(jnp.allclose(y, y_ref, rtol=2e-3, atol=2e-4)), (
        "max abs diff vs reference: %e" % err)

    print("KERNEL_OK")
</pallas_src>

<mosaic_0001>
module attributes {stable_mosaic.version = 11 : i64} {
  func.func @_inversion_kernel(%arg0: i32, %arg1: memref<48x8x4xf32, #tpu.memory_space<vmem>>, %arg2: memref<20x16xf32, #tpu.memory_space<vmem>>, %arg3: memref<1x16xf32, #tpu.memory_space<vmem>>, %arg4: memref<80x32xf32, #tpu.memory_space<vmem>>, %arg5: memref<1x32xf32, #tpu.memory_space<vmem>>, %arg6: memref<384x384xf32, #tpu.memory_space<vmem>>, %arg7: memref<384x384xf32, #tpu.memory_space<vmem>>, %arg8: memref<1x384xf32, #tpu.memory_space<vmem>>, %arg9: memref<384x128xf32, #tpu.memory_space<vmem>>, %arg10: memref<1x128xf32, #tpu.memory_space<vmem>>, %arg11: memref<8x128xf32, #tpu.memory_space<vmem>>, %arg12: memref<24x8x4xf32, #tpu.memory_space<vmem>>, %arg13: memref<64x8x20xf32, #tpu.memory_space<vmem>>, %arg14: memref<64x8x16xf32, #tpu.memory_space<vmem>>, %arg15: memref<32x8x16xf32, #tpu.memory_space<vmem>>, %arg16: memref<24x8x80xf32, #tpu.memory_space<vmem>>, %arg17: memref<24x8x32xf32, #tpu.memory_space<vmem>>, %arg18: memref<8x384xf32, #tpu.memory_space<vmem>>) attributes {dimension_semantics = [#tpu.dimension_semantics<parallel>], iteration_bounds = array<i64: 1>, scalar_prefetch = 0 : i64, scratch_operands = 7 : i64, tpu.core_type = #tpu.core_type<tc>, window_params = [{transform_indices = @transform_0, window_bounds = array<i64: 48, 8, 4>}, {pipeline_mode = #tpu.pipeline_mode<synchronous>, transform_indices = @transform_1, window_bounds = array<i64: 20, 16>}, {pipeline_mode = #tpu.pipeline_mode<synchronous>, transform_indices = @transform_2, window_bounds = array<i64: 1, 16>}, {pipeline_mode = #tpu.pipeline_mode<synchronous>, transform_indices = @transform_3, window_bounds = array<i64: 80, 32>}, {pipeline_mode = #tpu.pipeline_mode<synchronous>, transform_indices = @transform_4, window_bounds = array<i64: 1, 32>}, {pipeline_mode = #tpu.pipeline_mode<synchronous>, transform_indices = @transform_5, window_bounds = array<i64: 384, 384>}, {pipeline_mode = #tpu.pipeline_mode<synchronous>, transform_indices = @transform_6, window_bounds = array<i64: 384, 384>}, {pipeline_mode = #tpu.pipeline_mode<synchronous>, transform_indices = @transform_7, window_bounds = array<i64: 1, 384>}, {pipeline_mode = #tpu.pipeline_mode<synchronous>, transform_indices = @transform_8, window_bounds = array<i64: 384, 128>}, {pipeline_mode = #tpu.pipeline_mode<synchronous>, transform_indices = @transform_9, window_bounds = array<i64: 1, 128>}, {transform_indices = @transform_10, window_bounds = array<i64: 8, 128>}]} {
    %c0 = arith.constant 0 : index
    %c0_0 = arith.constant 0 : index
    %c0_1 = arith.constant 0 : index
    %0 = vector.load %arg1[%c0, %c0_0, %c0_1] : memref<48x8x4xf32, #tpu.memory_space<vmem>>, vector<44x8x4xf32>
    %c0_2 = arith.constant 0 : index
    %c0_3 = arith.constant 0 : index
    %c0_4 = arith.constant 0 : index
    %1 = vector.load %arg13[%c0_2, %c0_3, %c0_4] : memref<64x8x20xf32, #tpu.memory_space<vmem>>, vector<44x8x4xf32>
    tpu.vector_store %arg13[%c0_2, %c0_3, %c0_4], %0 {strides = array<i32>} : memref<64x8x20xf32, #tpu.memory_space<vmem>>, vector<44x8x4xf32>,
    %c1 = arith.constant 1 : index
    %c0_5 = arith.constant 0 : index
    %c0_6 = arith.constant 0 : index
    %2 = vector.load %arg1[%c1, %c0_5, %c0_6] : memref<48x8x4xf32, #tpu.memory_space<vmem>>, vector<44x8x4xf32>
    %c0_7 = arith.constant 0 : index
    %c0_8 = arith.constant 0 : index
    %c4 = arith.constant 4 : index
    %3 = vector.load %arg13[%c0_7, %c0_8, %c4] : memref<64x8x20xf32, #tpu.memory_space<vmem>>, vector<44x8x4xf32>
    tpu.vector_store %arg13[%c0_7, %c0_8, %c4], %2 {strides = array<i32>} : memref<64x8x20xf32, #tpu.memory_space<vmem>>, vector<44x8x4xf32>,
    %c2 = arith.constant 2 : index
    %c0_9 = arith.constant 0 : index
    %c0_10 = arith.constant 0 : index
    %4 = vector.load %arg1[%c2, %c0_9, %c0_10] : memref<48x8x4xf32, #tpu.memory_space<vmem>>, vector<44x8x4xf32>
    %c0_11 = arith.constant 0 : index
    %c0_12 = arith.constant 0 : index
    %c8 = arith.constant 8 : index
    %5 = vector.load %arg13[%c0_11, %c0_12, %c8] : memref<64x8x20xf32, #tpu.memory_space<vmem>>, vector<44x8x4xf32>
    tpu.vector_store %arg13[%c0_11, %c0_12, %c8], %4 {strides = array<i32>} : memref<64x8x20xf32, #tpu.memory_space<vmem>>, vector<44x8x4xf32>,
    %c3 = arith.constant 3 : index
    %c0_13 = arith.constant 0 : index
    %c0_14 = arith.constant 0 : index
    %6 = vector.load %arg1[%c3, %c0_13, %c0_14] : memref<48x8x4xf32, #tpu.memory_space<vmem>>, vector<44x8x4xf32>
    %c0_15 = arith.constant 0 : index
    %c0_16 = arith.constant 0 : index
    %c12 = arith.constant 12 : index
    %7 = vector.load %arg13[%c0_15, %c0_16, %c12] : memref<64x8x20xf32, #tpu.memory_space<vmem>>, vector<44x8x4xf32>
    tpu.vector_store %arg13[%c0_15, %c0_16, %c12], %6 {strides = array<i32>} : memref<64x8x20xf32, #tpu.memory_space<vmem>>, vector<44x8x4xf32>,
    %c4_17 = arith.constant 4 : index
    %c0_18 = arith.constant 0 : index
    %c0_19 = arith.constant 0 : index
    %8 = vector.load %arg1[%c4_17, %c0_18, %c0_19] : memref<48x8x4xf32, #tpu.memory_space<vmem>>, vector<44x8x4xf32>
    %c0_20 = arith.constant 0 : index
    %c0_21 = arith.constant 0 : index
    %c16 = arith.constant 16 : index
    %9 = vector.load %arg13[%c0_20, %c0_21, %c16] : memref<64x8x20xf32, #tpu.memory_space<vmem>>, vector<44x8x4xf32>
    tpu.vector_store %arg13[%c0_20, %c0_21, %c16], %8 {strides = array<i32>} : memref<64x8x20xf32, #tpu.memory_space<vmem>>, vector<44x8x4xf32>,
    %c0_22 = arith.constant 0 : index
    %c0_23 = arith.constant 0 : index
    %c0_24 = arith.constant 0 : index
    %10 = vector.load %arg1[%c0_22, %c0_23, %c0_24] : memref<48x8x4xf32, #tpu.memory_space<vmem>>, vector<1x8x4xf32>
    %11 = vector.shape_cast %10 : vector<1x8x4xf32> to vector<8x4xf32>
    %c1_25 = arith.constant 1 : index
    %c0_26 = arith.constant 0 : index
    %c0_27 = arith.constant 0 : index
    %12 = vector.load %arg1[%c1_25, %c0_26, %c0_27] : memref<48x8x4xf32, #tpu.memory_space<vmem>>, vector<1x8x4xf32>
    %13 = vector.shape_cast %12 : vector<1x8x4xf32> to vector<8x4xf32>
    %14 = arith.addf %11, %13 : vector<8x4xf32>
    %cst = arith.constant 5.000000e-01 : f32
    %15 = vector.broadcast %cst : f32 to vector<8x4xf32>
    %16 = arith.mulf %14, %15 : vector<8x4xf32>
    %c0_28 = arith.constant 0 : index
    %c0_29 = arith.constant 0 : index
    %c0_30 = arith.constant 0 : index
    %17 = vector.load %arg12[%c0_28, %c0_29, %c0_30] : memref<24x8x4xf32, #tpu.memory_space<vmem>>, vector<1x8x4xf32>
    %18 = vector.shape_cast %17 : vector<1x8x4xf32> to vector<8x4xf32>
    %19 = vector.shape_cast %16 : vector<8x4xf32> to vector<1x8x4xf32>
    tpu.vector_store %arg12[%c0_28, %c0_29, %c0_30], %19 {strides = array<i32>} : memref<24x8x4xf32, #tpu.memory_space<vmem>>, vector<1x8x4xf32>,
    %c2_31 = arith.constant 2 : index
    %c0_32 = arith.constant 0 : index
    %c0_33 = arith.constant 0 : index
    %20 = vector.load %arg1[%c2_31, %c0_32, %c0_33] : memref<48x8x4xf32, #tpu.memory_space<vmem>>, vector<1x8x4xf32>
    %21 = vector.shape_cast %20 : vector<1x8x4xf32> to vector<8x4xf32>
    %c3_34 = arith.constant 3 : index
    %c0_35 = arith.constant 0 : index
    %c0_36 = arith.constant 0 : index
    %22 = vector.load %arg1[%c3_34, %c0_35, %c0_36] : memref<48x8x4xf32, #tpu.memory_space<vmem>>, vector<1x8x4xf32>
    %23 = vector.shape_cast %22 : vector<1x8x4xf32> to vector<8x4xf32>
    %24 = arith.addf %21, %23 : vector<8x4xf32>
    %cst_37 = arith.constant 5.000000e-01 : f32
    %25 = vector.broadcast %cst_37 : f32 to vector<8x4xf32>
    %26 = arith.mulf %24, %25 : vector<8x4xf32>
    %c1_38 = arith.constant 1 : index
    %c0_39 = arith.constant 0 : index
    %c0_40 = arith.constant 0 : index
    %27 = vector.load %arg12[%c1_38, %c0_39, %c0_40] : memref<24x8x4xf32, #tpu.memory_space<vmem>>, vector<1x8x4xf32>
    %28 = vector.shape_cast %27 : vector<1x8x4xf32> to vector<8x4xf32>
    %29 = vector.shape_cast %26 : vector<8x4xf32> to vector<1x8x4xf32>
    tpu.vector_store %arg12[%c1_38, %c0_39, %c0_40], %29 {strides = array<i32>} : memref<24x8x4xf32, #tpu.memory_space<vmem>>, vector<1x8x4xf32>,
    %c4_41 = arith.constant 4 : index
    %c0_42 = arith.constant 0 : index
    %c0_43 = arith.constant 0 : index
    %30 = vector.load %arg1[%c4_41, %c0_42, %c0_43] : memref<48x8x4xf32, #tpu.memory_space<vmem>>, vector<1x8x4xf32>
    %31 = vector.shape_cast %30 : vector<1x8x4xf32> to vector<8x4xf32>
    %c5 = arith.constant 5 : index
    %c0_44 = arith.constant 0 : index
    %c0_45 = arith.constant 0 : index
    %32 = vector.load %arg1[%c5, %c0_44, %c0_45] : memref<48x8x4xf32, #tpu.memory_space<vmem>>, vector<1x8x4xf32>
    %33 = vector.shape_cast %32 : vector<1x8x4xf32> to vector<8x4xf32>
    %34 = arith.addf %31, %33 : vector<8x4xf32>
    %cst_46 = arith.constant 5.000000e-01 : f32
    %35 = vector.broadcast %cst_46 : f32 to vector<8x4xf32>
    %36 = arith.mulf %34, %35 : vector<8x4xf32>
    %c2_47 = arith.constant 2 : index
    %c0_48 = arith.constant 0 : index
    %c0_49 = arith.constant 0 : index
    %37 = vector.load %arg12[%c2_47, %c0_48, %c0_49] : memref<24x8x4xf32, #tpu.memory_space<vmem>>, vector<1x8x4xf32>
    %38 = vector.shape_cast %37 : vector<1x8x4xf32> to vector<8x4xf32>
    %39 = vector.shape_cast %36 : vector<8x4xf32> to vector<1x8x4xf32>
    tpu.vector_store %arg12[%c2_47, %c0_48, %c0_49], %39 {strides = array<i32>} : memref<24x8x4xf32, #tpu.memory_space<vmem>>, vector<1x8x4xf32>,
    %c6 = arith.constant 6 : index
    %c0_50 = arith.constant 0 : index
    %c0_51 = arith.constant 0 : index
    %40 = vector.load %arg1[%c6, %c0_50, %c0_51] : memref<48x8x4xf32, #tpu.memory_space<vmem>>, vector<1x8x4xf32>
    %41 = vector.shape_cast %40 : vector<1x8x4xf32> to vector<8x4xf32>
    %c7 = arith.constant 7 : index
    %c0_52 = arith.constant 0 : index
    %c0_53 = arith.constant 0 : index
    %42 = vector.load %arg1[%c7, %c0_52, %c0_53] : memref<48x8x4xf32, #tpu.memory_space<vmem>>, vector<1x8x4xf32>
    %43 = vector.shape_cast %42 : vector<1x8x4xf32> to vector<8x4xf32>
    %44 = arith.addf %41, %43 : vector<8x4xf32>
    %cst_54 = arith.constant 5.000000e-01 : f32
    %45 = vector.broadcast %cst_54 : f32 to vector<8x4xf32>
    %46 = arith.mulf %44, %45 : vector<8x4xf32>
    %c3_55 = arith.constant 3 : index
    %c0_56 = arith.constant 0 : index
    %c0_57 = arith.constant 0 : index
    %47 = vector.load %arg12[%c3_55, %c0_56, %c0_57] : memref<24x8x4xf32, #tpu.memory_space<vmem>>, vector<1x8x4xf32>
    %48 = vector.shape_cast %47 : vector<1x8x4xf32> to vector<8x4xf32>
    %49 = vector.shape_cast %46 : vector<8x4xf32> to vector<1x8x4xf32>
    tpu.vector_store %arg12[%c3_55, %c0_56, %c0_57], %49 {strides = array<i32>} : memref<24x8x4xf32, #tpu.memory_space<vmem>>, vector<1x8x4xf32>,
    %c8_58 = arith.constant 8 : index
    %c0_59 = arith.constant 0 : index
    %c0_60 = arith.constant 0 : index
    %50 = vector.load %arg1[%c8_58, %c0_59, %c0_60] : memref<48x8x4xf32, #tpu.memory_space<vmem>>, vector<1x8x4xf32>
    %51 = vector.shape_cast %50 : vector<1x8x4xf32> to vector<8x4xf32>
    %c9 = arith.constant 9 : index
    %c0_61 = arith.constant 0 : index
    %c0_62 = arith.constant 0 : index
    %52 = vector.load %arg1[%c9, %c0_61, %c0_62] : memref<48x8x4xf32, #tpu.memory_space<vmem>>, vector<1x8x4xf32>
    %53 = vector.shape_cast %52 : vector<1x8x4xf32> to vector<8x4xf32>
    %54 = arith.addf %51, %53 : vector<8x4xf32>
    %cst_63 = arith.constant 5.000000e-01 : f32
    %55 = vector.broadcast %cst_63 : f32 to vector<8x4xf32>
    %56 = arith.mulf %54, %55 : vector<8x4xf32>
    %c4_64 = arith.constant 4 : index
    %c0_65 = arith.constant 0 : index
    %c0_66 = arith.constant 0 : index
    %57 = vector.load %arg12[%c4_64, %c0_65, %c0_66] : memref<24x8x4xf32, #tpu.memory_space<vmem>>, vector<1x8x4xf32>
    %58 = vector.shape_cast %57 : vector<1x8x4xf32> to vector<8x4xf32>
    %59 = vector.shape_cast %56 : vector<8x4xf32> to vector<1x8x4xf32>
    tpu.vector_store %arg12[%c4_64, %c0_65, %c0_66], %59 {strides = array<i32>} : memref<24x8x4xf32, #tpu.memory_space<vmem>>, vector<1x8x4xf32>,
    %c10 = arith.constant 10 : index
    %c0_67 = arith.constant 0 : index
    %c0_68 = arith.constant 0 : index
    %60 = vector.load %arg1[%c10, %c0_67, %c0_68] : memref<48x8x4xf32, #tpu.memory_space<vmem>>, vector<1x8x4xf32>
    %61 = vector.shape_cast %60 : vector<1x8x4xf32> to vector<8x4xf32>
    %c11 = arith.constant 11 : index
    %c0_69 = arith.constant 0 : index
    %c0_70 = arith.constant 0 : index
    %62 = vector.load %arg1[%c11, %c0_69, %c0_70] : memref<48x8x4xf32, #tpu.memory_space<vmem>>, vector<1x8x4xf32>
    %63 = vector.shape_cast %62 : vector<1x8x4xf32> to vector<8x4xf32>
    %64 = arith.addf %61, %63 : vector<8x4xf32>
    %cst_71 = arith.constant 5.000000e-01 : f32
    %65 = vector.broadcast %cst_71 : f32 to vector<8x4xf32>
    %66 = arith.mulf %64, %65 : vector<8x4xf32>
    %c5_72 = arith.constant 5 : index
    %c0_73 = arith.constant 0 : index
    %c0_74 = arith.constant 0 : index
    %67 = vector.load %arg12[%c5_72, %c0_73, %c0_74] : memref<24x8x4xf32, #tpu.memory_space<vmem>>, vector<1x8x4xf32>
    %68 = vector.shape_cast %67 : vector<1x8x4xf32> to vector<8x4xf32>
    %69 = vector.shape_cast %66 : vector<8x4xf32> to vector<1x8x4xf32>
    tpu.vector_store %arg12[%c5_72, %c0_73, %c0_74], %69 {strides = array<i32>} : memref<24x8x4xf32, #tpu.memory_space<vmem>>, vector<1x8x4xf32>,
    %c12_75 = arith.constant 12 : index
    %c0_76 = arith.constant 0 : index
    %c0_77 = arith.constant 0 : index
    %70 = vector.load %arg1[%c12_75, %c0_76, %c0_77] : memref<48x8x4xf32, #tpu.memory_space<vmem>>, vector<1x8x4xf32>
    %71 = vector.shape_cast %70 : vector<1x8x4xf32> to vector<8x4xf32>
    %c13 = arith.constant 13 : index
    %c0_78 = arith.constant 0 : index
    %c0_79 = arith.constant 0 : index
    %72 = vector.load %arg1[%c13, %c0_78, %c0_79] : memref<48x8x4xf32, #tpu.memory_space<vmem>>, vector<1x8x4xf32>
    %73 = vector.shape_cast %72 : vector<1x8x4xf32> to vector<8x4xf32>
    %74 = arith.addf %71, %73 : vector<8x4xf32>
    %cst_80 = arith.constant 5.000000e-01 : f32
    %75 = vector.broadcast %cst_80 : f32 to vector<8x4xf32>
    %76 = arith.mulf %74, %75 : vector<8x4xf32>
    %c6_81 = arith.constant 6 : index
    %c0_82 = arith.constant 0 : index
    %c0_83 = arith.constant 0 : index
    %77 = vector.load %arg12[%c6_81, %c0_82, %c0_83] : memref<24x8x4xf32, #tpu.memory_space<vmem>>, vector<1x8x4xf32>
    %78 = vector.shape_cast %77 : vector<1x8x4xf32> to vector<8x4xf32>
    %79 = vector.shape_cast %76 : vector<8x4xf32> to vector<1x8x4xf32>
    tpu.vector_store %arg12[%c6_81, %c0_82, %c0_83], %79 {strides = array<i32>} : memref<24x8x4xf32, #tpu.memory_space<vmem>>, vector<1x8x4xf32>,
    %c14 = arith.constant 14 : index
    %c0_84 = arith.constant 0 : index
    %c0_85 = arith.constant 0 : index
    %80 = vector.load %arg1[%c14, %c0_84, %c0_85] : memref<48x8x4xf32, #tpu.memory_space<vmem>>, vector<1x8x4xf32>
    %81 = vector.shape_cast %80 : vector<1x8x4xf32> to vector<8x4xf32>
    %c15 = arith.constant 15 : index
    %c0_86 = arith.constant 0 : index
    %c0_87 = arith.constant 0 : index
    %82 = vector.load %arg1[%c15, %c0_86, %c0_87] : memref<48x8x4xf32, #tpu.memory_space<vmem>>, vector<1x8x4xf32>
    %83 = vector.shape_cast %82 : vector<1x8x4xf32> to vector<8x4xf32>
    %84 = arith.addf %81, %83 : vector<8x4xf32>
    %cst_88 = arith.constant 5.000000e-01 : f32
    %85 = vector.broadcast %cst_88 : f32 to vector<8x4xf32>
    %86 = arith.mulf %84, %85 : vector<8x4xf32>
    %c7_89 = arith.constant 7 : index
    %c0_90 = arith.constant 0 : index
    %c0_91 = arith.constant 0 : index
    %87 = vector.load %arg12[%c7_89, %c0_90, %c0_91] : memref<24x8x4xf32, #tpu.memory_space<vmem>>, vector<1x8x4xf32>
    %88 = vector.shape_cast %87 : vector<1x8x4xf32> to vector<8x4xf32>
    %89 = vector.shape_cast %86 : vector<8x4xf32> to vector<1x8x4xf32>
    tpu.vector_store %arg12[%c7_89, %c0_90, %c0_91], %89 {strides = array<i32>} : memref<24x8x4xf32, #tpu.memory_space<vmem>>, vector<1x8x4xf32>,
    %c16_92 = arith.constant 16 : index
    %c0_93 = arith.constant 0 : index
    %c0_94 = arith.constant 0 : index
    %90 = vector.load %arg1[%c16_92, %c0_93, %c0_94] : memref<48x8x4xf32, #tpu.memory_space<vmem>>, vector<1x8x4xf32>
    %91 = vector.shape_cast %90 : vector<1x8x4xf32> to vector<8x4xf32>
    %c17 = arith.constant 17 : index
    %c0_95 = arith.constant 0 : index
    %c0_96 = arith.constant 0 : index
    %92 = vector.load %arg1[%c17, %c0_95, %c0_96] : memref<48x8x4xf32, #tpu.memory_space<vmem>>, vector<1x8x4xf32>
    %93 = vector.shape_cast %92 : vector<1x8x4xf32> to vector<8x4xf32>
    %94 = arith.addf %91, %93 : vector<8x4xf32>
    %cst_97 = arith.constant 5.000000e-01 : f32
    %95 = vector.broadcast %cst_97 : f32 to vector<8x4xf32>
    %96 = arith.mulf %94, %95 : vector<8x4xf32>
    %c8_98 = arith.constant 8 : index
    %c0_99 = arith.constant 0 : index
    %c0_100 = arith.constant 0 : index
    %97 = vector.load %arg12[%c8_98, %c0_99, %c0_100] : memref<24x8x4xf32, #tpu.memory_space<vmem>>, vector<1x8x4xf32>
    %98 = vector.shape_cast %97 : vector<1x8x4xf32> to vector<8x4xf32>
    %99 = vector.shape_cast %96 : vector<8x4xf32> to vector<1x8x4xf32>
    tpu.vector_store %arg12[%c8_98, %c0_99, %c0_100], %99 {strides = array<i32>} : memref<24x8x4xf32, #tpu.memory_space<vmem>>, vector<1x8x4xf32>,
    %c18 = arith.constant 18 : index
    %c0_101 = arith.constant 0 : index
    %c0_102 = arith.constant 0 : index
    %100 = vector.load %arg1[%c18, %c0_101, %c0_102] : memref<48x8x4xf32, #tpu.memory_space<vmem>>, vector<1x8x4xf32>
    %101 = vector.shape_cast %100 : vector<1x8x4xf32> to vector<8x4xf32>
    %c19 = arith.constant 19 : index
    %c0_103 = arith.constant 0 : index
    %c0_104 = arith.constant 0 : index
    %102 = vector.load %arg1[%c19, %c0_103, %c0_104] : memref<48x8x4xf32, #tpu.memory_space<vmem>>, vector<1x8x4xf32>
    %103 = vector.shape_cast %102 : vector<1x8x4xf32> to vector<8x4xf32>
    %104 = arith.addf %101, %103 : vector<8x4xf32>
    %cst_105 = arith.constant 5.000000e-01 : f32
    %105 = vector.broadcast %cst_105 : f32 to vector<8x4xf32>
    %106 = arith.mulf %104, %105 : vector<8x4xf32>
    %c9_106 = arith.constant 9 : index
    %c0_107 = arith.constant 0 : index
    %c0_108 = arith.constant 0 : index
    %107 = vector.load %arg12[%c9_106, %c0_107, %c0_108] : memref<24x8x4xf32, #tpu.memory_space<vmem>>, vector<1x8x4xf32>
    %108 = vector.shape_cast %107 : vector<1x8x4xf32> to vector<8x4xf32>
    %109 = vector.shape_cast %106 : vector<8x4xf32> to vector<1x8x4xf32>
    tpu.vector_store %arg12[%c9_106, %c0_107, %c0_108], %109 {strides = array<i32>} : memref<24x8x4xf32, #tpu.memory_space<vmem>>, vector<1x8x4xf32>,
    %c20 = arith.constant 20 : index
    %c0_109 = arith.constant 0 : index
    %c0_110 = arith.constant 0 : index
    %110 = vector.load %arg1[%c20, %c0_109, %c0_110] : memref<48x8x4xf32, #tpu.memory_space<vmem>>, vector<1x8x4xf32>
    %111 = vector.shape_cast %110 : vector<1x8x4xf32> to vector<8x4xf32>
    %c21 = arith.constant 21 : index
    %c0_111 = arith.constant 0 : index
    %c0_112 = arith.constant 0 : index
    %112 = vector.load %arg1[%c21, %c0_111, %c0_112] : memref<48x8x4xf32, #tpu.memory_space<vmem>>, vector<1x8x4xf32>
    %113 = vector.shape_cast %112 : vector<1x8x4xf32> to vector<8x4xf32>
    %114 = arith.addf %111, %113 : vector<8x4xf32>
    %cst_113 = arith.constant 5.000000e-01 : f32
    %115 = vector.broadcast %cst_113 : f32 to vector<8x4xf32>
    %116 = arith.mulf %114, %115 : vector<8x4xf32>
    %c10_114 = arith.constant 10 : index
    %c0_115 = arith.constant 0 : index
    %c0_116 = arith.constant 0 : index
    %117 = vector.load %arg12[%c10_114, %c0_115, %c0_116] : memref<24x8x4xf32, #tpu.memory_space<vmem>>, vector<1x8x4xf32>
    %118 = vector.shape_cast %117 : vector<1x8x4xf32> to vector<8x4xf32>
    %119 = vector.shape_cast %116 : vector<8x4xf32> to vector<1x8x4xf32>
    tpu.vector_store %arg12[%c10_114, %c0_115, %c0_116], %119 {strides = array<i32>} : memref<24x8x4xf32, #tpu.memory_space<vmem>>, vector<1x8x4xf32>,
    %c22 = arith.constant 22 : index
    %c0_117 = arith.constant 0 : index
    %c0_118 = arith.constant 0 : index
    %120 = vector.load %arg1[%c22, %c0_117, %c0_118] : memref<48x8x4xf32, #tpu.memory_space<vmem>>, vector<1x8x4xf32>
    %121 = vector.shape_cast %120 : vector<1x8x4xf32> to vector<8x4xf32>
    %c23 = arith.constant 23 : index
    %c0_119 = arith.constant 0 : index
    %c0_120 = arith.constant 0 : index
    %122 = vector.load %arg1[%c23, %c0_119, %c0_120] : memref<48x8x4xf32, #tpu.memory_space<vmem>>, vector<1x8x4xf32>
    %123 = vector.shape_cast %122 : vector<1x8x4xf32> to vector<8x4xf32>
    %124 = arith.addf %121, %123 : vector<8x4xf32>
    %cst_121 = arith.constant 5.000000e-01 : f32
    %125 = vector.broadcast %cst_121 : f32 to vector<8x4xf32>
    %126 = arith.mulf %124, %125 : vector<8x4xf32>
    %c11_122 = arith.constant 11 : index
    %c0_123 = arith.constant 0 : index
    %c0_124 = arith.constant 0 : index
    %127 = vector.load %arg12[%c11_122, %c0_123, %c0_124] : memref<24x8x4xf32, #tpu.memory_space<vmem>>, vector<1x8x4xf32>
    %128 = vector.shape_cast %127 : vector<1x8x4xf32> to vector<8x4xf32>
    %129 = vector.shape_cast %126 : vector<8x4xf32> to vector<1x8x4xf32>
    tpu.vector_store %arg12[%c11_122, %c0_123, %c0_124], %129 {strides = array<i32>} : memref<24x8x4xf32, #tpu.memory_space<vmem>>, vector<1x8x4xf32>,
    %c24 = arith.constant 24 : index
    %c0_125 = arith.constant 0 : index
    %c0_126 = arith.constant 0 : index
    %130 = vector.load %arg1[%c24, %c0_125, %c0_126] : memref<48x8x4xf32, #tpu.memory_space<vmem>>, vector<1x8x4xf32>
    %131 = vector.shape_cast %130 : vector<1x8x4xf32> to vector<8x4xf32>
    %c25 = arith.constant 25 : index
    %c0_127 = arith.constant 0 : index
    %c0_128 = arith.constant 0 : index
    %132 = vector.load %arg1[%c25, %c0_127, %c0_128] : memref<48x8x4xf32, #tpu.memory_space<vmem>>, vector<1x8x4xf32>
    %133 = vector.shape_cast %132 : vector<1x8x4xf32> to vector<8x4xf32>
    %134 = arith.addf %131, %133 : vector<8x4xf32>
    %cst_129 = arith.constant 5.000000e-01 : f32
    %135 = vector.broadcast %cst_129 : f32 to vector<8x4xf32>
    %136 = arith.mulf %134, %135 : vector<8x4xf32>
    %c12_130 = arith.constant 12 : index
    %c0_131 = arith.constant 0 : index
    %c0_132 = arith.constant 0 : index
    %137 = vector.load %arg12[%c12_130, %c0_131, %c0_132] : memref<24x8x4xf32, #tpu.memory_space<vmem>>, vector<1x8x4xf32>
    %138 = vector.shape_cast %137 : vector<1x8x4xf32> to vector<8x4xf32>
    %139 = vector.shape_cast %136 : vector<8x4xf32> to vector<1x8x4xf32>
    tpu.vector_store %arg12[%c12_130, %c0_131, %c0_132], %139 {strides = array<i32>} : memref<24x8x4xf32, #tpu.memory_space<vmem>>, vector<1x8x4xf32>,
    %c26 = arith.constant 26 : index
    %c0_133 = arith.constant 0 : index
    %c0_134 = arith.constant 0 : index
    %140 = vector.load %arg1[%c26, %c0_133, %c0_134] : memref<48x8x4xf32, #tpu.memory_space<vmem>>, vector<1x8x4xf32>
    %141 = vector.shape_cast %140 : vector<1x8x4xf32> to vector<8x4xf32>
    %c27 = arith.constant 27 : index
    %c0_135 = arith.constant 0 : index
    %c0_136 = arith.constant 0 : index
    %142 = vector.load %arg1[%c27, %c0_135, %c0_136] : memref<48x8x4xf32, #tpu.memory_space<vmem>>, vector<1x8x4xf32>
    %143 = vector.shape_cast %142 : vector<1x8x4xf32> to vector<8x4xf32>
    %144 = arith.addf %141, %143 : vector<8x4xf32>
    %cst_137 = arith.constant 5.000000e-01 : f32
    %145 = vector.broadcast %cst_137 : f32 to vector<8x4xf32>
    %146 = arith.mulf %144, %145 : vector<8x4xf32>
    %c13_138 = arith.constant 13 : index
    %c0_139 = arith.constant 0 : index
    %c0_140 = arith.constant 0 : index
    %147 = vector.load %arg12[%c13_138, %c0_139, %c0_140] : memref<24x8x4xf32, #tpu.memory_space<vmem>>, vector<1x8x4xf32>
    %148 = vector.shape_cast %147 : vector<1x8x4xf32> to vector<8x4xf32>
    %149 = vector.shape_cast %146 : vector<8x4xf32> to vector<1x8x4xf32>
    tpu.vector_store %arg12[%c13_138, %c0_139, %c0_140], %149 {strides = array<i32>} : memref<24x8x4xf32, #tpu.memory_space<vmem>>, vector<1x8x4xf32>,
    %c28 = arith.constant 28 : index
    %c0_141 = arith.constant 0 : index
    %c0_142 = arith.constant 0 : index
    %150 = vector.load %arg1[%c28, %c0_141, %c0_142] : memref<48x8x4xf32, #tpu.memory_space<vmem>>, vector<1x8x4xf32>
    %151 = vector.shape_cast %150 : vector<1x8x4xf32> to vector<8x4xf32>
    %c29 = arith.constant 29 : index
    %c0_143 = arith.constant 0 : index
    %c0_144 = arith.constant 0 : index
    %152 = vector.load %arg1[%c29, %c0_143, %c0_144] : memref<48x8x4xf32, #tpu.memory_space<vmem>>, vector<1x8x4xf32>
    %153 = vector.shape_cast %152 : vector<1x8x4xf32> to vector<8x4xf32>
    %154 = arith.addf %151, %153 : vector<8x4xf32>
    %cst_145 = arith.constant 5.000000e-01 : f32
    %155 = vector.broadcast %cst_145 : f32 to vector<8x4xf32>
    %156 = arith.mulf %154, %155 : vector<8x4xf32>
    %c14_146 = arith.constant 14 : index
    %c0_147 = arith.constant 0 : index
    %c0_148 = arith.constant 0 : index
    %157 = vector.load %arg12[%c14_146, %c0_147, %c0_148] : memref<24x8x4xf32, #tpu.memory_space<vmem>>, vector<1x8x4xf32>
    %158 = vector.shape_cast %157 : vector<1x8x4xf32> to vector<8x4xf32>
    %159 = vector.shape_cast %156 : vector<8x4xf32> to vector<1x8x4xf32>
    tpu.vector_store %arg12[%c14_146, %c0_147, %c0_148], %159 {strides = array<i32>} : memref<24x8x4xf32, #tpu.memory_space<vmem>>, vector<1x8x4xf32>,
    %c30 = arith.constant 30 : index
    %c0_149 = arith.constant 0 : index
    %c0_150 = arith.constant 0 : index
    %160 = vector.load %arg1[%c30, %c0_149, %c0_150] : memref<48x8x4xf32, #tpu.memory_space<vmem>>, vector<1x8x4xf32>
    %161 = vector.shape_cast %160 : vector<1x8x4xf32> to vector<8x4xf32>
    %c31 = arith.constant 31 : index
    %c0_151 = arith.constant 0 : index
    %c0_152 = arith.constant 0 : index
    %162 = vector.load %arg1[%c31, %c0_151, %c0_152] : memref<48x8x4xf32, #tpu.memory_space<vmem>>, vector<1x8x4xf32>
    %163 = vector.shape_cast %162 : vector<1x8x4xf32> to vector<8x4xf32>
    %164 = arith.addf %161, %163 : vector<8x4xf32>
    %cst_153 = arith.constant 5.000000e-01 : f32
    %165 = vector.broadcast %cst_153 : f32 to vector<8x4xf32>
    %166 = arith.mulf %164, %165 : vector<8x4xf32>
    %c15_154 = arith.constant 15 : index
    %c0_155 = arith.constant 0 : index
    %c0_156 = arith.constant 0 : index
    %167 = vector.load %arg12[%c15_154, %c0_155, %c0_156] : memref<24x8x4xf32, #tpu.memory_space<vmem>>, vector<1x8x4xf32>
    %168 = vector.shape_cast %167 : vector<1x8x4xf32> to vector<8x4xf32>
    %169 = vector.shape_cast %166 : vector<8x4xf32> to vector<1x8x4xf32>
    tpu.vector_store %arg12[%c15_154, %c0_155, %c0_156], %169 {strides = array<i32>} : memref<24x8x4xf32, #tpu.memory_space<vmem>>, vector<1x8x4xf32>,
    %c32 = arith.constant 32 : index
    %c0_157 = arith.constant 0 : index
    %c0_158 = arith.constant 0 : index
    %170 = vector.load %arg1[%c32, %c0_157, %c0_158] : memref<48x8x4xf32, #tpu.memory_space<vmem>>, vector<1x8x4xf32>
    %171 = vector.shape_cast %170 : vector<1x8x4xf32> to vector<8x4xf32>
    %c33 = arith.constant 33 : index
    %c0_159 = arith.constant 0 : index
    %c0_160 = arith.constant 0 : index
    %172 = vector.load %arg1[%c33, %c0_159, %c0_160] : memref<48x8x4xf32, #tpu.memory_space<vmem>>, vector<1x8x4xf32>
    %173 = vector.shape_cast %172 : vector<1x8x4xf32> to vector<8x4xf32>
    %174 = arith.addf %171, %173 : vector<8x4xf32>
    %cst_161 = arith.constant 5.000000e-01 : f32
    %175 = vector.broadcast %cst_161 : f32 to vector<8x4xf32>
    %176 = arith.mulf %174, %175 : vector<8x4xf32>
    %c16_162 = arith.constant 16 : index
    %c0_163 = arith.constant 0 : index
    %c0_164 = arith.constant 0 : index
    %177 = vector.load %arg12[%c16_162, %c0_163, %c0_164] : memref<24x8x4xf32, #tpu.memory_space<vmem>>, vector<1x8x4xf32>
    %178 = vector.shape_cast %177 : vector<1x8x4xf32> to vector<8x4xf32>
    %179 = vector.shape_cast %176 : vector<8x4xf32> to vector<1x8x4xf32>
    tpu.vector_store %arg12[%c16_162, %c0_163, %c0_164], %179 {strides = array<i32>} : memref<24x8x4xf32, #tpu.memory_space<vmem>>, vector<1x8x4xf32>,
    %c34 = arith.constant 34 : index
    %c0_165 = arith.constant 0 : index
    %c0_166 = arith.constant 0 : index
    %180 = vector.load %arg1[%c34, %c0_165, %c0_166] : memref<48x8x4xf32, #tpu.memory_space<vmem>>, vector<1x8x4xf32>
    %181 = vector.shape_cast %180 : vector<1x8x4xf32> to vector<8x4xf32>
    %c35 = arith.constant 35 : index
    %c0_167 = arith.constant 0 : index
    %c0_168 = arith.constant 0 : index
    %182 = vector.load %arg1[%c35, %c0_167, %c0_168] : memref<48x8x4xf32, #tpu.memory_space<vmem>>, vector<1x8x4xf32>
    %183 = vector.shape_cast %182 : vector<1x8x4xf32> to vector<8x4xf32>
    %184 = arith.addf %181, %183 : vector<8x4xf32>
    %cst_169 = arith.constant 5.000000e-01 : f32
    %185 = vector.broadcast %cst_169 : f32 to vector<8x4xf32>
    %186 = arith.mulf %184, %185 : vector<8x4xf32>
    %c17_170 = arith.constant 17 : index
    %c0_171 = arith.constant 0 : index
    %c0_172 = arith.constant 0 : index
    %187 = vector.load %arg12[%c17_170, %c0_171, %c0_172] : memref<24x8x4xf32, #tpu.memory_space<vmem>>, vector<1x8x4xf32>
    %188 = vector.shape_cast %187 : vector<1x8x4xf32> to vector<8x4xf32>
    %189 = vector.shape_cast %186 : vector<8x4xf32> to vector<1x8x4xf32>
    tpu.vector_store %arg12[%c17_170, %c0_171, %c0_172], %189 {strides = array<i32>} : memref<24x8x4xf32, #tpu.memory_space<vmem>>, vector<1x8x4xf32>,
    %c36 = arith.constant 36 : index
    %c0_173 = arith.constant 0 : index
    %c0_174 = arith.constant 0 : index
    %190 = vector.load %arg1[%c36, %c0_173, %c0_174] : memref<48x8x4xf32, #tpu.memory_space<vmem>>, vector<1x8x4xf32>
    %191 = vector.shape_cast %190 : vector<1x8x4xf32> to vector<8x4xf32>
    %c37 = arith.constant 37 : index
    %c0_175 = arith.constant 0 : index
    %c0_176 = arith.constant 0 : index
    %192 = vector.load %arg1[%c37, %c0_175, %c0_176] : memref<48x8x4xf32, #tpu.memory_space<vmem>>, vector<1x8x4xf32>
    %193 = vector.shape_cast %192 : vector<1x8x4xf32> to vector<8x4xf32>
    %194 = arith.addf %191, %193 : vector<8x4xf32>
    %cst_177 = arith.constant 5.000000e-01 : f32
    %195 = vector.broadcast %cst_177 : f32 to vector<8x4xf32>
    %196 = arith.mulf %194, %195 : vector<8x4xf32>
    %c18_178 = arith.constant 18 : index
    %c0_179 = arith.constant 0 : index
    %c0_180 = arith.constant 0 : index
    %197 = vector.load %arg12[%c18_178, %c0_179, %c0_180] : memref<24x8x4xf32, #tpu.memory_space<vmem>>, vector<1x8x4xf32>
    %198 = vector.shape_cast %197 : vector<1x8x4xf32> to vector<8x4xf32>
    %199 = vector.shape_cast %196 : vector<8x4xf32> to vector<1x8x4xf32>
    tpu.vector_store %arg12[%c18_178, %c0_179, %c0_180], %199 {strides = array<i32>} : memref<24x8x4xf32, #tpu.memory_space<vmem>>, vector<1x8x4xf32>,
    %c38 = arith.constant 38 : index
    %c0_181 = arith.constant 0 : index
    %c0_182 = arith.constant 0 : index
    %200 = vector.load %arg1[%c38, %c0_181, %c0_182] : memref<48x8x4xf32, #tpu.memory_space<vmem>>, vector<1x8x4xf32>
    %201 = vector.shape_cast %200 : vector<1x8x4xf32> to vector<8x4xf32>
    %c39 = arith.constant 39 : index
    %c0_183 = arith.constant 0 : index
    %c0_184 = arith.constant 0 : index
    %202 = vector.load %arg1[%c39, %c0_183, %c0_184] : memref<48x8x4xf32, #tpu.memory_space<vmem>>, vector<1x8x4xf32>
    %203 = vector.shape_cast %202 : vector<1x8x4xf32> to vector<8x4xf32>
    %204 = arith.addf %201, %203 : vector<8x4xf32>
    %cst_185 = arith.constant 5.000000e-01 : f32
    %205 = vector.broadcast %cst_185 : f32 to vector<8x4xf32>
    %206 = arith.mulf %204, %205 : vector<8x4xf32>
    %c19_186 = arith.constant 19 : index
    %c0_187 = arith.constant 0 : index
    %c0_188 = arith.constant 0 : index
    %207 = vector.load %arg12[%c19_186, %c0_187, %c0_188] : memref<24x8x4xf32, #tpu.memory_space<vmem>>, vector<1x8x4xf32>
    %208 = vector.shape_cast %207 : vector<1x8x4xf32> to vector<8x4xf32>
    %209 = vector.shape_cast %206 : vector<8x4xf32> to vector<1x8x4xf32>
    tpu.vector_store %arg12[%c19_186, %c0_187, %c0_188], %209 {strides = array<i32>} : memref<24x8x4xf32, #tpu.memory_space<vmem>>, vector<1x8x4xf32>,
    %c40 = arith.constant 40 : index
    %c0_189 = arith.constant 0 : index
    %c0_190 = arith.constant 0 : index
    %210 = vector.load %arg1[%c40, %c0_189, %c0_190] : memref<48x8x4xf32, #tpu.memory_space<vmem>>, vector<1x8x4xf32>
    %211 = vector.shape_cast %210 : vector<1x8x4xf32> to vector<8x4xf32>
    %c41 = arith.constant 41 : index
    %c0_191 = arith.constant 0 : index
    %c0_192 = arith.constant 0 : index
    %212 = vector.load %arg1[%c41, %c0_191, %c0_192] : memref<48x8x4xf32, #tpu.memory_space<vmem>>, vector<1x8x4xf32>
    %213 = vector.shape_cast %212 : vector<1x8x4xf32> to vector<8x4xf32>
    %214 = arith.addf %211, %213 : vector<8x4xf32>
    %cst_193 = arith.constant 5.000000e-01 : f32
    %215 = vector.broadcast %cst_193 : f32 to vector<8x4xf32>
    %216 = arith.mulf %214, %215 : vector<8x4xf32>
    %c20_194 = arith.constant 20 : index
    %c0_195 = arith.constant 0 : index
    %c0_196 = arith.constant 0 : index
    %217 = vector.load %arg12[%c20_194, %c0_195, %c0_196] : memref<24x8x4xf32, #tpu.memory_space<vmem>>, vector<1x8x4xf32>
    %218 = vector.shape_cast %217 : vector<1x8x4xf32> to vector<8x4xf32>
    %219 = vector.shape_cast %216 : vector<8x4xf32> to vector<1x8x4xf32>
    tpu.vector_store %arg12[%c20_194, %c0_195, %c0_196], %219 {strides = array<i32>} : memref<24x8x4xf32, #tpu.memory_space<vmem>>, vector<1x8x4xf32>,
    %c42 = arith.constant 42 : index
    %c0_197 = arith.constant 0 : index
    %c0_198 = arith.constant 0 : index
    %220 = vector.load %arg1[%c42, %c0_197, %c0_198] : memref<48x8x4xf32, #tpu.memory_space<vmem>>, vector<1x8x4xf32>
    %221 = vector.shape_cast %220 : vector<1x8x4xf32> to vector<8x4xf32>
    %c43 = arith.constant 43 : index
    %c0_199 = arith.constant 0 : index
    %c0_200 = arith.constant 0 : index
    %222 = vector.load %arg1[%c43, %c0_199, %c0_200] : memref<48x8x4xf32, #tpu.memory_space<vmem>>, vector<1x8x4xf32>
    %223 = vector.shape_cast %222 : vector<1x8x4xf32> to vector<8x4xf32>
    %224 = arith.addf %221, %223 : vector<8x4xf32>
    %cst_201 = arith.constant 5.000000e-01 : f32
    %225 = vector.broadcast %cst_201 : f32 to vector<8x4xf32>
    %226 = arith.mulf %224, %225 : vector<8x4xf32>
    %c21_202 = arith.constant 21 : index
    %c0_203 = arith.constant 0 : index
    %c0_204 = arith.constant 0 : index
    %227 = vector.load %arg12[%c21_202, %c0_203, %c0_204] : memref<24x8x4xf32, #tpu.memory_space<vmem>>, vector<1x8x4xf32>
    %228 = vector.shape_cast %227 : vector<1x8x4xf32> to vector<8x4xf32>
    %229 = vector.shape_cast %226 : vector<8x4xf32> to vector<1x8x4xf32>
    tpu.vector_store %arg12[%c21_202, %c0_203, %c0_204], %229 {strides = array<i32>} : memref<24x8x4xf32, #tpu.memory_space<vmem>>, vector<1x8x4xf32>,
    %c44 = arith.constant 44 : index
    %c0_205 = arith.constant 0 : index
    %c0_206 = arith.constant 0 : index
    %230 = vector.load %arg1[%c44, %c0_205, %c0_206] : memref<48x8x4xf32, #tpu.memory_space<vmem>>, vector<1x8x4xf32>
    %231 = vector.shape_cast %230 : vector<1x8x4xf32> to vector<8x4xf32>
    %c45 = arith.constant 45 : index
    %c0_207 = arith.constant 0 : index
    %c0_208 = arith.constant 0 : index
    %232 = vector.load %arg1[%c45, %c0_207, %c0_208] : memref<48x8x4xf32, #tpu.memory_space<vmem>>, vector<1x8x4xf32>
    %233 = vector.shape_cast %232 : vector<1x8x4xf32> to vector<8x4xf32>
    %234 = arith.addf %231, %233 : vector<8x4xf32>
    %cst_209 = arith.constant 5.000000e-01 : f32
    %235 = vector.broadcast %cst_209 : f32 to vector<8x4xf32>
    %236 = arith.mulf %234, %235 : vector<8x4xf32>
    %c22_210 = arith.constant 22 : index
    %c0_211 = arith.constant 0 : index
    %c0_212 = arith.constant 0 : index
    %237 = vector.load %arg12[%c22_210, %c0_211, %c0_212] : memref<24x8x4xf32, #tpu.memory_space<vmem>>, vector<1x8x4xf32>
    %238 = vector.shape_cast %237 : vector<1x8x4xf32> to vector<8x4xf32>
    %239 = vector.shape_cast %236 : vector<8x4xf32> to vector<1x8x4xf32>
    tpu.vector_store %arg12[%c22_210, %c0_211, %c0_212], %239 {strides = array<i32>} : memref<24x8x4xf32, #tpu.memory_space<vmem>>, vector<1x8x4xf32>,
    %c46 = arith.constant 46 : index
    %c0_213 = arith.constant 0 : index
    %c0_214 = arith.constant 0 : index
    %240 = vector.load %arg1[%c46, %c0_213, %c0_214] : memref<48x8x4xf32, #tpu.memory_space<vmem>>, vector<1x8x4xf32>
    %241 = vector.shape_cast %240 : vector<1x8x4xf32> to vector<8x4xf32>
    %c47 = arith.constant 47 : index
    %c0_215 = arith.constant 0 : index
    %c0_216 = arith.constant 0 : index
    %242 = vector.load %arg1[%c47, %c0_215, %c0_216] : memref<48x8x4xf32, #tpu.memory_space<vmem>>, vector<1x8x4xf32>
    %243 = vector.shape_cast %242 : vector<1x8x4xf32> to vector<8x4xf32>
    %244 = arith.addf %241, %243 : vector<8x4xf32>
    %cst_217 = arith.constant 5.000000e-01 : f32
    %245 = vector.broadcast %cst_217 : f32 to vector<8x4xf32>
    %246 = arith.mulf %244, %245 : vector<8x4xf32>
    %c23_218 = arith.constant 23 : index
    %c0_219 = arith.constant 0 : index
    %c0_220 = arith.constant 0 : index
    %247 = vector.load %arg12[%c23_218, %c0_219, %c0_220] : memref<24x8x4xf32, #tpu.memory_space<vmem>>, vector<1x8x4xf32>
    %248 = vector.shape_cast %247 : vector<1x8x4xf32> to vector<8x4xf32>
    %249 = vector.shape_cast %246 : vector<8x4xf32> to vector<1x8x4xf32>
    tpu.vector_store %arg12[%c23_218, %c0_219, %c0_220], %249 {strides = array<i32>} : memref<24x8x4xf32, #tpu.memory_space<vmem>>, vector<1x8x4xf32>,
    %c0_221 = arith.constant 0 : index
    %c0_222 = arith.constant 0 : index
    %c0_223 = arith.constant 0 : index
    %250 = vector.load %arg12[%c0_221, %c0_222, %c0_223] : memref<24x8x4xf32, #tpu.memory_space<vmem>>, vector<20x8x4xf32>
    %c44_224 = arith.constant 44 : index
    %c0_225 = arith.constant 0 : index
    %c0_226 = arith.constant 0 : index
    %251 = vector.load %arg13[%c44_224, %c0_225, %c0_226] : memref<64x8x20xf32, #tpu.memory_space<vmem>>, vector<20x8x4xf32>
    tpu.vector_store %arg13[%c44_224, %c0_225, %c0_226], %250 {strides = array<i32>} : memref<64x8x20xf32, #tpu.memory_space<vmem>>, vector<20x8x4xf32>,
    %c1_227 = arith.constant 1 : index
    %c0_228 = arith.constant 0 : index
    %c0_229 = arith.constant 0 : index
    %252 = vector.load %arg12[%c1_227, %c0_228, %c0_229] : memref<24x8x4xf32, #tpu.memory_space<vmem>>, vector<20x8x4xf32>
    %c44_230 = arith.constant 44 : index
    %c0_231 = arith.constant 0 : index
    %c4_232 = arith.constant 4 : index
    %253 = vector.load %arg13[%c44_230, %c0_231, %c4_232] : memref<64x8x20xf32, #tpu.memory_space<vmem>>, vector<20x8x4xf32>
    tpu.vector_store %arg13[%c44_230, %c0_231, %c4_232], %252 {strides = array<i32>} : memref<64x8x20xf32, #tpu.memory_space<vmem>>, vector<20x8x4xf32>,
    %c2_233 = arith.constant 2 : index
    %c0_234 = arith.constant 0 : index
    %c0_235 = arith.constant 0 : index
    %254 = vector.load %arg12[%c2_233, %c0_234, %c0_235] : memref<24x8x4xf32, #tpu.memory_space<vmem>>, vector<20x8x4xf32>
    %c44_236 = arith.constant 44 : index
    %c0_237 = arith.constant 0 : index
    %c8_238 = arith.constant 8 : index
    %255 = vector.load %arg13[%c44_236, %c0_237, %c8_238] : memref<64x8x20xf32, #tpu.memory_space<vmem>>, vector<20x8x4xf32>
    tpu.vector_store %arg13[%c44_236, %c0_237, %c8_238], %254 {strides = array<i32>} : memref<64x8x20xf32, #tpu.memory_space<vmem>>, vector<20x8x4xf32>,
    %c3_239 = arith.constant 3 : index
    %c0_240 = arith.constant 0 : index
    %c0_241 = arith.constant 0 : index
    %256 = vector.load %arg12[%c3_239, %c0_240, %c0_241] : memref<24x8x4xf32, #tpu.memory_space<vmem>>, vector<20x8x4xf32>
    %c44_242 = arith.constant 44 : index
    %c0_243 = arith.constant 0 : index
    %c12_244 = arith.constant 12 : index
    %257 = vector.load %arg13[%c44_242, %c0_243, %c12_244] : memref<64x8x20xf32, #tpu.memory_space<vmem>>, vector<20x8x4xf32>
    tpu.vector_store %arg13[%c44_242, %c0_243, %c12_244], %256 {strides = array<i32>} : memref<64x8x20xf32, #tpu.memory_space<vmem>>, vector<20x8x4xf32>,
    %c4_245 = arith.constant 4 : index
    %c0_246 = arith.constant 0 : index
    %c0_247 = arith.constant 0 : index
    %258 = vector.load %arg12[%c4_245, %c0_246, %c0_247] : memref<24x8x4xf32, #tpu.memory_space<vmem>>, vector<20x8x4xf32>
    %c44_248 = arith.constant 44 : index
    %c0_249 = arith.constant 0 : index
    %c16_250 = arith.constant 16 : index
    %259 = vector.load %arg13[%c44_248, %c0_249, %c16_250] : memref<64x8x20xf32, #tpu.memory_space<vmem>>, vector<20x8x4xf32>
    tpu.vector_store %arg13[%c44_248, %c0_249, %c16_250], %258 {strides = array<i32>} : memref<64x8x20xf32, #tpu.memory_space<vmem>>, vector<20x8x4xf32>,
    %c0_251 = arith.constant 0 : index
    %c0_252 = arith.constant 0 : index
    %c0_253 = arith.constant 0 : index
    %260 = vector.load %arg13[%c0_251, %c0_252, %c0_253] : memref<64x8x20xf32, #tpu.memory_space<vmem>>, vector<64x8x20xf32>
    %261 = vector.shape_cast %260 : vector<64x8x20xf32> to vector<512x20xf32>
    %c0_254 = arith.constant 0 : index
    %c0_255 = arith.constant 0 : index
    %262 = vector.load %arg2[%c0_254, %c0_255] : memref<20x16xf32, #tpu.memory_space<vmem>>, vector<20x16xf32>
    %cst_256 = arith.constant dense<0.000000e+00> : vector<512x16xf32>
    %263 = tpu.matmul %261, %262, %cst_256 {dimension_numbers = #tpu.dot_dimension_numbers<[1], [0], [0], [1], [0, 0, 1, 1], [], []>} : vector<512x20xf32>, vector<20x16xf32>, vector<512x16xf32> -> vector<512x16xf32>
    %c0_257 = arith.constant 0 : index
    %c0_258 = arith.constant 0 : index
    %264 = vector.load %arg3[%c0_257, %c0_258] : memref<1x16xf32, #tpu.memory_space<vmem>>, vector<1x16xf32>
    %265 = vector.broadcast %264 : vector<1x16xf32> to vector<512x16xf32>
    %266 = arith.addf %263, %265 : vector<512x16xf32>
    %cst_259 = arith.constant 0.000000e+00 : f32
    %267 = vector.broadcast %cst_259 : f32 to vector<512x16xf32>
    %268 = arith.maximumf %266, %267 : vector<512x16xf32>
    %269 = vector.shape_cast %268 : vector<512x16xf32> to vector<64x8x16xf32>
    %c0_260 = arith.constant 0 : index
    %c0_261 = arith.constant 0 : index
    %c0_262 = arith.constant 0 : index
    %270 = vector.load %arg14[%c0_260, %c0_261, %c0_262] : memref<64x8x16xf32, #tpu.memory_space<vmem>>, vector<64x8x16xf32>
    tpu.vector_store %arg14[%c0_260, %c0_261, %c0_262], %269 {strides = array<i32>} : memref<64x8x16xf32, #tpu.memory_space<vmem>>, vector<64x8x16xf32>,
    %c0_263 = arith.constant 0 : index
    %c0_264 = arith.constant 0 : index
    %c0_265 = arith.constant 0 : index
    %271 = vector.load %arg14[%c0_263, %c0_264, %c0_265] : memref<64x8x16xf32, #tpu.memory_space<vmem>>, vector<1x8x16xf32>
    %272 = vector.shape_cast %271 : vector<1x8x16xf32> to vector<8x16xf32>
    %c1_266 = arith.constant 1 : index
    %c0_267 = arith.constant 0 : index
    %c0_268 = arith.constant 0 : index
    %273 = vector.load %arg14[%c1_266, %c0_267, %c0_268] : memref<64x8x16xf32, #tpu.memory_space<vmem>>, vector<1x8x16xf32>
    %274 = vector.shape_cast %273 : vector<1x8x16xf32> to vector<8x16xf32>
    %275 = arith.maximumf %272, %274 : vector<8x16xf32>
    %c0_269 = arith.constant 0 : index
    %c0_270 = arith.constant 0 : index
    %c0_271 = arith.constant 0 : index
    %276 = vector.load %arg15[%c0_269, %c0_270, %c0_271] : memref<32x8x16xf32, #tpu.memory_space<vmem>>, vector<1x8x16xf32>
    %277 = vector.shape_cast %276 : vector<1x8x16xf32> to vector<8x16xf32>
    %278 = vector.shape_cast %275 : vector<8x16xf32> to vector<1x8x16xf32>
    tpu.vector_store %arg15[%c0_269, %c0_270, %c0_271], %278 {strides = array<i32>} : memref<32x8x16xf32, #tpu.memory_space<vmem>>, vector<1x8x16xf32>,
    %c2_272 = arith.constant 2 : index
    %c0_273 = arith.constant 0 : index
    %c0_274 = arith.constant 0 : index
    %279 = vector.load %arg14[%c2_272, %c0_273, %c0_274] : memref<64x8x16xf32, #tpu.memory_space<vmem>>, vector<1x8x16xf32>
    %280 = vector.shape_cast %279 : vector<1x8x16xf32> to vector<8x16xf32>
    %c3_275 = arith.constant 3 : index
    %c0_276 = arith.constant 0 : index
    %c0_277 = arith.constant 0 : index
    %281 = vector.load %arg14[%c3_275, %c0_276, %c0_277] : memref<64x8x16xf32, #tpu.memory_space<vmem>>, vector<1x8x16xf32>
    %282 = vector.shape_cast %281 : vector<1x8x16xf32> to vector<8x16xf32>
    %283 = arith.maximumf %280, %282 : vector<8x16xf32>
    %c1_278 = arith.constant 1 : index
    %c0_279 = arith.constant 0 : index
    %c0_280 = arith.constant 0 : index
    %284 = vector.load %arg15[%c1_278, %c0_279, %c0_280] : memref<32x8x16xf32, #tpu.memory_space<vmem>>, vector<1x8x16xf32>
    %285 = vector.shape_cast %284 : vector<1x8x16xf32> to vector<8x16xf32>
    %286 = vector.shape_cast %283 : vector<8x16xf32> to vector<1x8x16xf32>
    tpu.vector_store %arg15[%c1_278, %c0_279, %c0_280], %286 {strides = array<i32>} : memref<32x8x16xf32, #tpu.memory_space<vmem>>, vector<1x8x16xf32>,
    %c4_281 = arith.constant 4 : index
    %c0_282 = arith.constant 0 : index
    %c0_283 = arith.constant 0 : index
    %287 = vector.load %arg14[%c4_281, %c0_282, %c0_283] : memref<64x8x16xf32, #tpu.memory_space<vmem>>, vector<1x8x16xf32>
    %288 = vector.shape_cast %287 : vector<1x8x16xf32> to vector<8x16xf32>
    %c5_284 = arith.constant 5 : index
    %c0_285 = arith.constant 0 : index
    %c0_286 = arith.constant 0 : index
    %289 = vector.load %arg14[%c5_284, %c0_285, %c0_286] : memref<64x8x16xf32, #tpu.memory_space<vmem>>, vector<1x8x16xf32>
    %290 = vector.shape_cast %289 : vector<1x8x16xf32> to vector<8x16xf32>
    %291 = arith.maximumf %288, %290 : vector<8x16xf32>
    %c2_287 = arith.constant 2 : index
    %c0_288 = arith.constant 0 : index
    %c0_289 = arith.constant 0 : index
    %292 = vector.load %arg15[%c2_287, %c0_288, %c0_289] : memref<32x8x16xf32, #tpu.memory_space<vmem>>, vector<1x8x16xf32>
    %293 = vector.shape_cast %292 : vector<1x8x16xf32> to vector<8x16xf32>
    %294 = vector.shape_cast %291 : vector<8x16xf32> to vector<1x8x16xf32>
    tpu.vector_store %arg15[%c2_287, %c0_288, %c0_289], %294 {strides = array<i32>} : memref<32x8x16xf32, #tpu.memory_space<vmem>>, vector<1x8x16xf32>,
    %c6_290 = arith.constant 6 : index
    %c0_291 = arith.constant 0 : index
    %c0_292 = arith.constant 0 : index
    %295 = vector.load %arg14[%c6_290, %c0_291, %c0_292] : memref<64x8x16xf32, #tpu.memory_space<vmem>>, vector<1x8x16xf32>
    %296 = vector.shape_cast %295 : vector<1x8x16xf32> to vector<8x16xf32>
    %c7_293 = arith.constant 7 : index
    %c0_294 = arith.constant 0 : index
    %c0_295 = arith.constant 0 : index
    %297 = vector.load %arg14[%c7_293, %c0_294, %c0_295] : memref<64x8x16xf32, #tpu.memory_space<vmem>>, vector<1x8x16xf32>
    %298 = vector.shape_cast %297 : vector<1x8x16xf32> to vector<8x16xf32>
    %299 = arith.maximumf %296, %298 : vector<8x16xf32>
    %c3_296 = arith.constant 3 : index
    %c0_297 = arith.constant 0 : index
    %c0_298 = arith.constant 0 : index
    %300 = vector.load %arg15[%c3_296, %c0_297, %c0_298] : memref<32x8x16xf32, #tpu.memory_space<vmem>>, vector<1x8x16xf32>
    %301 = vector.shape_cast %300 : vector<1x8x16xf32> to vector<8x16xf32>
    %302 = vector.shape_cast %299 : vector<8x16xf32> to vector<1x8x16xf32>
    tpu.vector_store %arg15[%c3_296, %c0_297, %c0_298], %302 {strides = array<i32>} : memref<32x8x16xf32, #tpu.memory_space<vmem>>, vector<1x8x16xf32>,
    %c8_299 = arith.constant 8 : index
    %c0_300 = arith.constant 0 : index
    %c0_301 = arith.constant 0 : index
    %303 = vector.load %arg14[%c8_299, %c0_300, %c0_301] : memref<64x8x16xf32, #tpu.memory_space<vmem>>, vector<1x8x16xf32>
    %304 = vector.shape_cast %303 : vector<1x8x16xf32> to vector<8x16xf32>
    %c9_302 = arith.constant 9 : index
    %c0_303 = arith.constant 0 : index
    %c0_304 = arith.constant 0 : index
    %305 = vector.load %arg14[%c9_302, %c0_303, %c0_304] : memref<64x8x16xf32, #tpu.memory_space<vmem>>, vector<1x8x16xf32>
    %306 = vector.shape_cast %305 : vector<1x8x16xf32> to vector<8x16xf32>
    %307 = arith.maximumf %304, %306 : vector<8x16xf32>
    %c4_305 = arith.constant 4 : index
    %c0_306 = arith.constant 0 : index
    %c0_307 = arith.constant 0 : index
    %308 = vector.load %arg15[%c4_305, %c0_306, %c0_307] : memref<32x8x16xf32, #tpu.memory_space<vmem>>, vector<1x8x16xf32>
    %309 = vector.shape_cast %308 : vector<1x8x16xf32> to vector<8x16xf32>
    %310 = vector.shape_cast %307 : vector<8x16xf32> to vector<1x8x16xf32>
    tpu.vector_store %arg15[%c4_305, %c0_306, %c0_307], %310 {strides = array<i32>} : memref<32x8x16xf32, #tpu.memory_space<vmem>>, vector<1x8x16xf32>,
    %c10_308 = arith.constant 10 : index
    %c0_309 = arith.constant 0 : index
    %c0_310 = arith.constant 0 : index
    %311 = vector.load %arg14[%c10_308, %c0_309, %c0_310] : memref<64x8x16xf32, #tpu.memory_space<vmem>>, vector<1x8x16xf32>
    %312 = vector.shape_cast %311 : vector<1x8x16xf32> to vector<8x16xf32>
    %c11_311 = arith.constant 11 : index
    %c0_312 = arith.constant 0 : index
    %c0_313 = arith.constant 0 : index
    %313 = vector.load %arg14[%c11_311, %c0_312, %c0_313] : memref<64x8x16xf32, #tpu.memory_space<vmem>>, vector<1x8x16xf32>
    %314 = vector.shape_cast %313 : vector<1x8x16xf32> to vector<8x16xf32>
    %315 = arith.maximumf %312, %314 : vector<8x16xf32>
    %c5_314 = arith.constant 5 : index
    %c0_315 = arith.constant 0 : index
    %c0_316 = arith.constant 0 : index
    %316 = vector.load %arg15[%c5_314, %c0_315, %c0_316] : memref<32x8x16xf32, #tpu.memory_space<vmem>>, vector<1x8x16xf32>
    %317 = vector.shape_cast %316 : vector<1x8x16xf32> to vector<8x16xf32>
    %318 = vector.shape_cast %315 : vector<8x16xf32> to vector<1x8x16xf32>
    tpu.vector_store %arg15[%c5_314, %c0_315, %c0_316], %318 {strides = array<i32>} : memref<32x8x16xf32, #tpu.memory_space<vmem>>, vector<1x8x16xf32>,
    %c12_317 = arith.constant 12 : index
    %c0_318 = arith.constant 0 : index
    %c0_319 = arith.constant 0 : index
    %319 = vector.load %arg14[%c12_317, %c0_318, %c0_319] : memref<64x8x16xf32, #tpu.memory_space<vmem>>, vector<1x8x16xf32>
    %320 = vector.shape_cast %319 : vector<1x8x16xf32> to vector<8x16xf32>
    %c13_320 = arith.constant 13 : index
    %c0_321 = arith.constant 0 : index
    %c0_322 = arith.constant 0 : index
    %321 = vector.load %arg14[%c13_320, %c0_321, %c0_322] : memref<64x8x16xf32, #tpu.memory_space<vmem>>, vector<1x8x16xf32>
    %322 = vector.shape_cast %321 : vector<1x8x16xf32> to vector<8x16xf32>
    %323 = arith.maximumf %320, %322 : vector<8x16xf32>
    %c6_323 = arith.constant 6 : index
    %c0_324 = arith.constant 0 : index
    %c0_325 = arith.constant 0 : index
    %324 = vector.load %arg15[%c6_323, %c0_324, %c0_325] : memref<32x8x16xf32, #tpu.memory_space<vmem>>, vector<1x8x16xf32>
    %325 = vector.shape_cast %324 : vector<1x8x16xf32> to vector<8x16xf32>
    %326 = vector.shape_cast %323 : vector<8x16xf32> to vector<1x8x16xf32>
    tpu.vector_store %arg15[%c6_323, %c0_324, %c0_325], %326 {strides = array<i32>} : memref<32x8x16xf32, #tpu.memory_space<vmem>>, vector<1x8x16xf32>,
    %c14_326 = arith.constant 14 : index
    %c0_327 = arith.constant 0 : index
    %c0_328 = arith.constant 0 : index
    %327 = vector.load %arg14[%c14_326, %c0_327, %c0_328] : memref<64x8x16xf32, #tpu.memory_space<vmem>>, vector<1x8x16xf32>
    %328 = vector.shape_cast %327 : vector<1x8x16xf32> to vector<8x16xf32>
    %c15_329 = arith.constant 15 : index
    %c0_330 = arith.constant 0 : index
    %c0_331 = arith.constant 0 : index
    %329 = vector.load %arg14[%c15_329, %c0_330, %c0_331] : memref<64x8x16xf32, #tpu.memory_space<vmem>>, vector<1x8x16xf32>
    %330 = vector.shape_cast %329 : vector<1x8x16xf32> to vector<8x16xf32>
    %331 = arith.maximumf %328, %330 : vector<8x16xf32>
    %c7_332 = arith.constant 7 : index
    %c0_333 = arith.constant 0 : index
    %c0_334 = arith.constant 0 : index
    %332 = vector.load %arg15[%c7_332, %c0_333, %c0_334] : memref<32x8x16xf32, #tpu.memory_space<vmem>>, vector<1x8x16xf32>
    %333 = vector.shape_cast %332 : vector<1x8x16xf32> to vector<8x16xf32>
    %334 = vector.shape_cast %331 : vector<8x16xf32> to vector<1x8x16xf32>
    tpu.vector_store %arg15[%c7_332, %c0_333, %c0_334], %334 {strides = array<i32>} : memref<32x8x16xf32, #tpu.memory_space<vmem>>, vector<1x8x16xf32>,
    %c16_335 = arith.constant 16 : index
    %c0_336 = arith.constant 0 : index
    %c0_337 = arith.constant 0 : index
    %335 = vector.load %arg14[%c16_335, %c0_336, %c0_337] : memref<64x8x16xf32, #tpu.memory_space<vmem>>, vector<1x8x16xf32>
    %336 = vector.shape_cast %335 : vector<1x8x16xf32> to vector<8x16xf32>
    %c17_338 = arith.constant 17 : index
    %c0_339 = arith.constant 0 : index
    %c0_340 = arith.constant 0 : index
    %337 = vector.load %arg14[%c17_338, %c0_339, %c0_340] : memref<64x8x16xf32, #tpu.memory_space<vmem>>, vector<1x8x16xf32>
    %338 = vector.shape_cast %337 : vector<1x8x16xf32> to vector<8x16xf32>
    %339 = arith.maximumf %336, %338 : vector<8x16xf32>
    %c8_341 = arith.constant 8 : index
    %c0_342 = arith.constant 0 : index
    %c0_343 = arith.constant 0 : index
    %340 = vector.load %arg15[%c8_341, %c0_342, %c0_343] : memref<32x8x16xf32, #tpu.memory_space<vmem>>, vector<1x8x16xf32>
    %341 = vector.shape_cast %340 : vector<1x8x16xf32> to vector<8x16xf32>
    %342 = vector.shape_cast %339 : vector<8x16xf32> to vector<1x8x16xf32>
    tpu.vector_store %arg15[%c8_341, %c0_342, %c0_343], %342 {strides = array<i32>} : memref<32x8x16xf32, #tpu.memory_space<vmem>>, vector<1x8x16xf32>,
    %c18_344 = arith.constant 18 : index
    %c0_345 = arith.constant 0 : index
    %c0_346 = arith.constant 0 : index
    %343 = vector.load %arg14[%c18_344, %c0_345, %c0_346] : memref<64x8x16xf32, #tpu.memory_space<vmem>>, vector<1x8x16xf32>
    %344 = vector.shape_cast %343 : vector<1x8x16xf32> to vector<8x16xf32>
    %c19_347 = arith.constant 19 : index
    %c0_348 = arith.constant 0 : index
    %c0_349 = arith.constant 0 : index
    %345 = vector.load %arg14[%c19_347, %c0_348, %c0_349] : memref<64x8x16xf32, #tpu.memory_space<vmem>>, vector<1x8x16xf32>
    %346 = vector.shape_cast %345 : vector<1x8x16xf32> to vector<8x16xf32>
    %347 = arith.maximumf %344, %346 : vector<8x16xf32>
    %c9_350 = arith.constant 9 : index
    %c0_351 = arith.constant 0 : index
    %c0_352 = arith.constant 0 : index
    %348 = vector.load %arg15[%c9_350, %c0_351, %c0_352] : memref<32x8x16xf32, #tpu.memory_space<vmem>>, vector<1x8x16xf32>
    %349 = vector.shape_cast %348 : vector<1x8x16xf32> to vector<8x16xf32>
    %350 = vector.shape_cast %347 : vector<8x16xf32> to vector<1x8x16xf32>
    tpu.vector_store %arg15[%c9_350, %c0_351, %c0_352], %350 {strides = array<i32>} : memref<32x8x16xf32, #tpu.memory_space<vmem>>, vector<1x8x16xf32>,
    %c20_353 = arith.constant 20 : index
    %c0_354 = arith.constant 0 : index
    %c0_355 = arith.constant 0 : index
    %351 = vector.load %arg14[%c20_353, %c0_354, %c0_355] : memref<64x8x16xf32, #tpu.memory_space<vmem>>, vector<1x8x16xf32>
    %352 = vector.shape_cast %351 : vector<1x8x16xf32> to vector<8x16xf32>
    %c21_356 = arith.constant 21 : index
    %c0_357 = arith.constant 0 : index
    %c0_358 = arith.constant 0 : index
    %353 = vector.load %arg14[%c21_356, %c0_357, %c0_358] : memref<64x8x16xf32, #tpu.memory_space<vmem>>, vector<1x8x16xf32>
    %354 = vector.shape_cast %353 : vector<1x8x16xf32> to vector<8x16xf32>
    %355 = arith.maximumf %352, %354 : vector<8x16xf32>
    %c10_359 = arith.constant 10 : index
    %c0_360 = arith.constant 0 : index
    %c0_361 = arith.constant 0 : index
    %356 = vector.load %arg15[%c10_359, %c0_360, %c0_361] : memref<32x8x16xf32, #tpu.memory_space<vmem>>, vector<1x8x16xf32>
    %357 = vector.shape_cast %356 : vector<1x8x16xf32> to vector<8x16xf32>
    %358 = vector.shape_cast %355 : vector<8x16xf32> to vector<1x8x16xf32>
    tpu.vector_store %arg15[%c10_359, %c0_360, %c0_361], %358 {strides = array<i32>} : memref<32x8x16xf32, #tpu.memory_space<vmem>>, vector<1x8x16xf32>,
    %c22_362 = arith.constant 22 : index
    %c0_363 = arith.constant 0 : index
    %c0_364 = arith.constant 0 : index
    %359 = vector.load %arg14[%c22_362, %c0_363, %c0_364] : memref<64x8x16xf32, #tpu.memory_space<vmem>>, vector<1x8x16xf32>
    %360 = vector.shape_cast %359 : vector<1x8x16xf32> to vector<8x16xf32>
    %c23_365 = arith.constant 23 : index
    %c0_366 = arith.constant 0 : index
    %c0_367 = arith.constant 0 : index
    %361 = vector.load %arg14[%c23_365, %c0_366, %c0_367] : memref<64x8x16xf32, #tpu.memory_space<vmem>>, vector<1x8x16xf32>
    %362 = vector.shape_cast %361 : vector<1x8x16xf32> to vector<8x16xf32>
    %363 = arith.maximumf %360, %362 : vector<8x16xf32>
    %c11_368 = arith.constant 11 : index
    %c0_369 = arith.constant 0 : index
    %c0_370 = arith.constant 0 : index
    %364 = vector.load %arg15[%c11_368, %c0_369, %c0_370] : memref<32x8x16xf32, #tpu.memory_space<vmem>>, vector<1x8x16xf32>
    %365 = vector.shape_cast %364 : vector<1x8x16xf32> to vector<8x16xf32>
    %366 = vector.shape_cast %363 : vector<8x16xf32> to vector<1x8x16xf32>
    tpu.vector_store %arg15[%c11_368, %c0_369, %c0_370], %366 {strides = array<i32>} : memref<32x8x16xf32, #tpu.memory_space<vmem>>, vector<1x8x16xf32>,
    %c24_371 = arith.constant 24 : index
    %c0_372 = arith.constant 0 : index
    %c0_373 = arith.constant 0 : index
    %367 = vector.load %arg14[%c24_371, %c0_372, %c0_373] : memref<64x8x16xf32, #tpu.memory_space<vmem>>, vector<1x8x16xf32>
    %368 = vector.shape_cast %367 : vector<1x8x16xf32> to vector<8x16xf32>
    %c25_374 = arith.constant 25 : index
    %c0_375 = arith.constant 0 : index
    %c0_376 = arith.constant 0 : index
    %369 = vector.load %arg14[%c25_374, %c0_375, %c0_376] : memref<64x8x16xf32, #tpu.memory_space<vmem>>, vector<1x8x16xf32>
    %370 = vector.shape_cast %369 : vector<1x8x16xf32> to vector<8x16xf32>
    %371 = arith.maximumf %368, %370 : vector<8x16xf32>
    %c12_377 = arith.constant 12 : index
    %c0_378 = arith.constant 0 : index
    %c0_379 = arith.constant 0 : index
    %372 = vector.load %arg15[%c12_377, %c0_378, %c0_379] : memref<32x8x16xf32, #tpu.memory_space<vmem>>, vector<1x8x16xf32>
    %373 = vector.shape_cast %372 : vector<1x8x16xf32> to vector<8x16xf32>
    %374 = vector.shape_cast %371 : vector<8x16xf32> to vector<1x8x16xf32>
    tpu.vector_store %arg15[%c12_377, %c0_378, %c0_379], %374 {strides = array<i32>} : memref<32x8x16xf32, #tpu.memory_space<vmem>>, vector<1x8x16xf32>,
    %c26_380 = arith.constant 26 : index
    %c0_381 = arith.constant 0 : index
    %c0_382 = arith.constant 0 : index
    %375 = vector.load %arg14[%c26_380, %c0_381, %c0_382] : memref<64x8x16xf32, #tpu.memory_space<vmem>>, vector<1x8x16xf32>
    %376 = vector.shape_cast %375 : vector<1x8x16xf32> to vector<8x16xf32>
    %c27_383 = arith.constant 27 : index
    %c0_384 = arith.constant 0 : index
    %c0_385 = arith.constant 0 : index
    %377 = vector.load %arg14[%c27_383, %c0_384, %c0_385] : memref<64x8x16xf32, #tpu.memory_space<vmem>>, vector<1x8x16xf32>
    %378 = vector.shape_cast %377 : vector<1x8x16xf32> to vector<8x16xf32>
    %379 = arith.maximumf %376, %378 : vector<8x16xf32>
    %c13_386 = arith.constant 13 : index
    %c0_387 = arith.constant 0 : index
    %c0_388 = arith.constant 0 : index
    %380 = vector.load %arg15[%c13_386, %c0_387, %c0_388] : memref<32x8x16xf32, #tpu.memory_space<vmem>>, vector<1x8x16xf32>
    %381 = vector.shape_cast %380 : vector<1x8x16xf32> to vector<8x16xf32>
    %382 = vector.shape_cast %379 : vector<8x16xf32> to vector<1x8x16xf32>
    tpu.vector_store %arg15[%c13_386, %c0_387, %c0_388], %382 {strides = array<i32>} : memref<32x8x16xf32, #tpu.memory_space<vmem>>, vector<1x8x16xf32>,
    %c28_389 = arith.constant 28 : index
    %c0_390 = arith.constant 0 : index
    %c0_391 = arith.constant 0 : index
    %383 = vector.load %arg14[%c28_389, %c0_390, %c0_391] : memref<64x8x16xf32, #tpu.memory_space<vmem>>, vector<1x8x16xf32>
    %384 = vector.shape_cast %383 : vector<1x8x16xf32> to vector<8x16xf32>
    %c29_392 = arith.constant 29 : index
    %c0_393 = arith.constant 0 : index
    %c0_394 = arith.constant 0 : index
    %385 = vector.load %arg14[%c29_392, %c0_393, %c0_394] : memref<64x8x16xf32, #tpu.memory_space<vmem>>, vector<1x8x16xf32>
    %386 = vector.shape_cast %385 : vector<1x8x16xf32> to vector<8x16xf32>
    %387 = arith.maximumf %384, %386 : vector<8x16xf32>
    %c14_395 = arith.constant 14 : index
    %c0_396 = arith.constant 0 : index
    %c0_397 = arith.constant 0 : index
    %388 = vector.load %arg15[%c14_395, %c0_396, %c0_397] : memref<32x8x16xf32, #tpu.memory_space<vmem>>, vector<1x8x16xf32>
    %389 = vector.shape_cast %388 : vector<1x8x16xf32> to vector<8x16xf32>
    %390 = vector.shape_cast %387 : vector<8x16xf32> to vector<1x8x16xf32>
    tpu.vector_store %arg15[%c14_395, %c0_396, %c0_397], %390 {strides = array<i32>} : memref<32x8x16xf32, #tpu.memory_space<vmem>>, vector<1x8x16xf32>,
    %c30_398 = arith.constant 30 : index
    %c0_399 = arith.constant 0 : index
    %c0_400 = arith.constant 0 : index
    %391 = vector.load %arg14[%c30_398, %c0_399, %c0_400] : memref<64x8x16xf32, #tpu.memory_space<vmem>>, vector<1x8x16xf32>
    %392 = vector.shape_cast %391 : vector<1x8x16xf32> to vector<8x16xf32>
    %c31_401 = arith.constant 31 : index
    %c0_402 = arith.constant 0 : index
    %c0_403 = arith.constant 0 : index
    %393 = vector.load %arg14[%c31_401, %c0_402, %c0_403] : memref<64x8x16xf32, #tpu.memory_space<vmem>>, vector<1x8x16xf32>
    %394 = vector.shape_cast %393 : vector<1x8x16xf32> to vector<8x16xf32>
    %395 = arith.maximumf %392, %394 : vector<8x16xf32>
    %c15_404 = arith.constant 15 : index
    %c0_405 = arith.constant 0 : index
    %c0_406 = arith.constant 0 : index
    %396 = vector.load %arg15[%c15_404, %c0_405, %c0_406] : memref<32x8x16xf32, #tpu.memory_space<vmem>>, vector<1x8x16xf32>
    %397 = vector.shape_cast %396 : vector<1x8x16xf32> to vector<8x16xf32>
    %398 = vector.shape_cast %395 : vector<8x16xf32> to vector<1x8x16xf32>
    tpu.vector_store %arg15[%c15_404, %c0_405, %c0_406], %398 {strides = array<i32>} : memref<32x8x16xf32, #tpu.memory_space<vmem>>, vector<1x8x16xf32>,
    %c32_407 = arith.constant 32 : index
    %c0_408 = arith.constant 0 : index
    %c0_409 = arith.constant 0 : index
    %399 = vector.load %arg14[%c32_407, %c0_408, %c0_409] : memref<64x8x16xf32, #tpu.memory_space<vmem>>, vector<1x8x16xf32>
    %400 = vector.shape_cast %399 : vector<1x8x16xf32> to vector<8x16xf32>
    %c33_410 = arith.constant 33 : index
    %c0_411 = arith.constant 0 : index
    %c0_412 = arith.constant 0 : index
    %401 = vector.load %arg14[%c33_410, %c0_411, %c0_412] : memref<64x8x16xf32, #tpu.memory_space<vmem>>, vector<1x8x16xf32>
    %402 = vector.shape_cast %401 : vector<1x8x16xf32> to vector<8x16xf32>
    %403 = arith.maximumf %400, %402 : vector<8x16xf32>
    %c16_413 = arith.constant 16 : index
    %c0_414 = arith.constant 0 : index
    %c0_415 = arith.constant 0 : index
    %404 = vector.load %arg15[%c16_413, %c0_414, %c0_415] : memref<32x8x16xf32, #tpu.memory_space<vmem>>, vector<1x8x16xf32>
    %405 = vector.shape_cast %404 : vector<1x8x16xf32> to vector<8x16xf32>
    %406 = vector.shape_cast %403 : vector<8x16xf32> to vector<1x8x16xf32>
    tpu.vector_store %arg15[%c16_413, %c0_414, %c0_415], %406 {strides = array<i32>} : memref<32x8x16xf32, #tpu.memory_space<vmem>>, vector<1x8x16xf32>,
    %c34_416 = arith.constant 34 : index
    %c0_417 = arith.constant 0 : index
    %c0_418 = arith.constant 0 : index
    %407 = vector.load %arg14[%c34_416, %c0_417, %c0_418] : memref<64x8x16xf32, #tpu.memory_space<vmem>>, vector<1x8x16xf32>
    %408 = vector.shape_cast %407 : vector<1x8x16xf32> to vector<8x16xf32>
    %c35_419 = arith.constant 35 : index
    %c0_420 = arith.constant 0 : index
    %c0_421 = arith.constant 0 : index
    %409 = vector.load %arg14[%c35_419, %c0_420, %c0_421] : memref<64x8x16xf32, #tpu.memory_space<vmem>>, vector<1x8x16xf32>
    %410 = vector.shape_cast %409 : vector<1x8x16xf32> to vector<8x16xf32>
    %411 = arith.maximumf %408, %410 : vector<8x16xf32>
    %c17_422 = arith.constant 17 : index
    %c0_423 = arith.constant 0 : index
    %c0_424 = arith.constant 0 : index
    %412 = vector.load %arg15[%c17_422, %c0_423, %c0_424] : memref<32x8x16xf32, #tpu.memory_space<vmem>>, vector<1x8x16xf32>
    %413 = vector.shape_cast %412 : vector<1x8x16xf32> to vector<8x16xf32>
    %414 = vector.shape_cast %411 : vector<8x16xf32> to vector<1x8x16xf32>
    tpu.vector_store %arg15[%c17_422, %c0_423, %c0_424], %414 {strides = array<i32>} : memref<32x8x16xf32, #tpu.memory_space<vmem>>, vector<1x8x16xf32>,
    %c36_425 = arith.constant 36 : index
    %c0_426 = arith.constant 0 : index
    %c0_427 = arith.constant 0 : index
    %415 = vector.load %arg14[%c36_425, %c0_426, %c0_427] : memref<64x8x16xf32, #tpu.memory_space<vmem>>, vector<1x8x16xf32>
    %416 = vector.shape_cast %415 : vector<1x8x16xf32> to vector<8x16xf32>
    %c37_428 = arith.constant 37 : index
    %c0_429 = arith.constant 0 : index
    %c0_430 = arith.constant 0 : index
    %417 = vector.load %arg14[%c37_428, %c0_429, %c0_430] : memref<64x8x16xf32, #tpu.memory_space<vmem>>, vector<1x8x16xf32>
    %418 = vector.shape_cast %417 : vector<1x8x16xf32> to vector<8x16xf32>
    %419 = arith.maximumf %416, %418 : vector<8x16xf32>
    %c18_431 = arith.constant 18 : index
    %c0_432 = arith.constant 0 : index
    %c0_433 = arith.constant 0 : index
    %420 = vector.load %arg15[%c18_431, %c0_432, %c0_433] : memref<32x8x16xf32, #tpu.memory_space<vmem>>, vector<1x8x16xf32>
    %421 = vector.shape_cast %420 : vector<1x8x16xf32> to vector<8x16xf32>
    %422 = vector.shape_cast %419 : vector<8x16xf32> to vector<1x8x16xf32>
    tpu.vector_store %arg15[%c18_431, %c0_432, %c0_433], %422 {strides = array<i32>} : memref<32x8x16xf32, #tpu.memory_space<vmem>>, vector<1x8x16xf32>,
    %c38_434 = arith.constant 38 : index
    %c0_435 = arith.constant 0 : index
    %c0_436 = arith.constant 0 : index
    %423 = vector.load %arg14[%c38_434, %c0_435, %c0_436] : memref<64x8x16xf32, #tpu.memory_space<vmem>>, vector<1x8x16xf32>
    %424 = vector.shape_cast %423 : vector<1x8x16xf32> to vector<8x16xf32>
    %c39_437 = arith.constant 39 : index
    %c0_438 = arith.constant 0 : index
    %c0_439 = arith.constant 0 : index
    %425 = vector.load %arg14[%c39_437, %c0_438, %c0_439] : memref<64x8x16xf32, #tpu.memory_space<vmem>>, vector<1x8x16xf32>
    %426 = vector.shape_cast %425 : vector<1x8x16xf32> to vector<8x16xf32>
    %427 = arith.maximumf %424, %426 : vector<8x16xf32>
    %c19_440 = arith.constant 19 : index
    %c0_441 = arith.constant 0 : index
    %c0_442 = arith.constant 0 : index
    %428 = vector.load %arg15[%c19_440, %c0_441, %c0_442] : memref<32x8x16xf32, #tpu.memory_space<vmem>>, vector<1x8x16xf32>
    %429 = vector.shape_cast %428 : vector<1x8x16xf32> to vector<8x16xf32>
    %430 = vector.shape_cast %427 : vector<8x16xf32> to vector<1x8x16xf32>
    tpu.vector_store %arg15[%c19_440, %c0_441, %c0_442], %430 {strides = array<i32>} : memref<32x8x16xf32, #tpu.memory_space<vmem>>, vector<1x8x16xf32>,
    %c40_443 = arith.constant 40 : index
    %c0_444 = arith.constant 0 : index
    %c0_445 = arith.constant 0 : index
    %431 = vector.load %arg14[%c40_443, %c0_444, %c0_445] : memref<64x8x16xf32, #tpu.memory_space<vmem>>, vector<1x8x16xf32>
    %432 = vector.shape_cast %431 : vector<1x8x16xf32> to vector<8x16xf32>
    %c41_446 = arith.constant 41 : index
    %c0_447 = arith.constant 0 : index
    %c0_448 = arith.constant 0 : index
    %433 = vector.load %arg14[%c41_446, %c0_447, %c0_448] : memref<64x8x16xf32, #tpu.memory_space<vmem>>, vector<1x8x16xf32>
    %434 = vector.shape_cast %433 : vector<1x8x16xf32> to vector<8x16xf32>
    %435 = arith.maximumf %432, %434 : vector<8x16xf32>
    %c20_449 = arith.constant 20 : index
    %c0_450 = arith.constant 0 : index
    %c0_451 = arith.constant 0 : index
    %436 = vector.load %arg15[%c20_449, %c0_450, %c0_451] : memref<32x8x16xf32, #tpu.memory_space<vmem>>, vector<1x8x16xf32>
    %437 = vector.shape_cast %436 : vector<1x8x16xf32> to vector<8x16xf32>
    %438 = vector.shape_cast %435 : vector<8x16xf32> to vector<1x8x16xf32>
    tpu.vector_store %arg15[%c20_449, %c0_450, %c0_451], %438 {strides = array<i32>} : memref<32x8x16xf32, #tpu.memory_space<vmem>>, vector<1x8x16xf32>,
    %c42_452 = arith.constant 42 : index
    %c0_453 = arith.constant 0 : index
    %c0_454 = arith.constant 0 : index
    %439 = vector.load %arg14[%c42_452, %c0_453, %c0_454] : memref<64x8x16xf32, #tpu.memory_space<vmem>>, vector<1x8x16xf32>
    %440 = vector.shape_cast %439 : vector<1x8x16xf32> to vector<8x16xf32>
    %c43_455 = arith.constant 43 : index
    %c0_456 = arith.constant 0 : index
    %c0_457 = arith.constant 0 : index
    %441 = vector.load %arg14[%c43_455, %c0_456, %c0_457] : memref<64x8x16xf32, #tpu.memory_space<vmem>>, vector<1x8x16xf32>
    %442 = vector.shape_cast %441 : vector<1x8x16xf32> to vector<8x16xf32>
    %443 = arith.maximumf %440, %442 : vector<8x16xf32>
    %c21_458 = arith.constant 21 : index
    %c0_459 = arith.constant 0 : index
    %c0_460 = arith.constant 0 : index
    %444 = vector.load %arg15[%c21_458, %c0_459, %c0_460] : memref<32x8x16xf32, #tpu.memory_space<vmem>>, vector<1x8x16xf32>
    %445 = vector.shape_cast %444 : vector<1x8x16xf32> to vector<8x16xf32>
    %446 = vector.shape_cast %443 : vector<8x16xf32> to vector<1x8x16xf32>
    tpu.vector_store %arg15[%c21_458, %c0_459, %c0_460], %446 {strides = array<i32>} : memref<32x8x16xf32, #tpu.memory_space<vmem>>, vector<1x8x16xf32>,
    %c0_461 = arith.constant 0 : index
    %c0_462 = arith.constant 0 : index
    %c0_463 = arith.constant 0 : index
    %447 = vector.load %arg15[%c0_461, %c0_462, %c0_463] : memref<32x8x16xf32, #tpu.memory_space<vmem>>, vector<18x8x16xf32>
    %c0_464 = arith.constant 0 : index
    %c0_465 = arith.constant 0 : index
    %c0_466 = arith.constant 0 : index
    %448 = vector.load %arg16[%c0_464, %c0_465, %c0_466] : memref<24x8x80xf32, #tpu.memory_space<vmem>>, vector<18x8x16xf32>
    tpu.vector_store %arg16[%c0_464, %c0_465, %c0_466], %447 {strides = array<i32>} : memref<24x8x80xf32, #tpu.memory_space<vmem>>, vector<18x8x16xf32>,
    %c1_467 = arith.constant 1 : index
    %c0_468 = arith.constant 0 : index
    %c0_469 = arith.constant 0 : index
    %449 = vector.load %arg15[%c1_467, %c0_468, %c0_469] : memref<32x8x16xf32, #tpu.memory_space<vmem>>, vector<18x8x16xf32>
    %c0_470 = arith.constant 0 : index
    %c0_471 = arith.constant 0 : index
    %c16_472 = arith.constant 16 : index
    %450 = vector.load %arg16[%c0_470, %c0_471, %c16_472] : memref<24x8x80xf32, #tpu.memory_space<vmem>>, vector<18x8x16xf32>
    tpu.vector_store %arg16[%c0_470, %c0_471, %c16_472], %449 {strides = array<i32>} : memref<24x8x80xf32, #tpu.memory_space<vmem>>, vector<18x8x16xf32>,
    %c2_473 = arith.constant 2 : index
    %c0_474 = arith.constant 0 : index
    %c0_475 = arith.constant 0 : index
    %451 = vector.load %arg15[%c2_473, %c0_474, %c0_475] : memref<32x8x16xf32, #tpu.memory_space<vmem>>, vector<18x8x16xf32>
    %c0_476 = arith.constant 0 : index
    %c0_477 = arith.constant 0 : index
    %c32_478 = arith.constant 32 : index
    %452 = vector.load %arg16[%c0_476, %c0_477, %c32_478] : memref<24x8x80xf32, #tpu.memory_space<vmem>>, vector<18x8x16xf32>
    tpu.vector_store %arg16[%c0_476, %c0_477, %c32_478], %451 {strides = array<i32>} : memref<24x8x80xf32, #tpu.memory_space<vmem>>, vector<18x8x16xf32>,
    %c3_479 = arith.constant 3 : index
    %c0_480 = arith.constant 0 : index
    %c0_481 = arith.constant 0 : index
    %453 = vector.load %arg15[%c3_479, %c0_480, %c0_481] : memref<32x8x16xf32, #tpu.memory_space<vmem>>, vector<18x8x16xf32>
    %c0_482 = arith.constant 0 : index
    %c0_483 = arith.constant 0 : index
    %c48 = arith.constant 48 : index
    %454 = vector.load %arg16[%c0_482, %c0_483, %c48] : memref<24x8x80xf32, #tpu.memory_space<vmem>>, vector<18x8x16xf32>
    tpu.vector_store %arg16[%c0_482, %c0_483, %c48], %453 {strides = array<i32>} : memref<24x8x80xf32, #tpu.memory_space<vmem>>, vector<18x8x16xf32>,
    %c4_484 = arith.constant 4 : index
    %c0_485 = arith.constant 0 : index
    %c0_486 = arith.constant 0 : index
    %455 = vector.load %arg15[%c4_484, %c0_485, %c0_486] : memref<32x8x16xf32, #tpu.memory_space<vmem>>, vector<18x8x16xf32>
    %c0_487 = arith.constant 0 : index
    %c0_488 = arith.constant 0 : index
    %c64 = arith.constant 64 : index
    %456 = vector.load %arg16[%c0_487, %c0_488, %c64] : memref<24x8x80xf32, #tpu.memory_space<vmem>>, vector<18x8x16xf32>
    tpu.vector_store %arg16[%c0_487, %c0_488, %c64], %455 {strides = array<i32>} : memref<24x8x80xf32, #tpu.memory_space<vmem>>, vector<18x8x16xf32>,
    %c44_489 = arith.constant 44 : index
    %c0_490 = arith.constant 0 : index
    %c0_491 = arith.constant 0 : index
    %457 = vector.load %arg14[%c44_489, %c0_490, %c0_491] : memref<64x8x16xf32, #tpu.memory_space<vmem>>, vector<1x8x16xf32>
    %458 = vector.shape_cast %457 : vector<1x8x16xf32> to vector<8x16xf32>
    %c45_492 = arith.constant 45 : index
    %c0_493 = arith.constant 0 : index
    %c0_494 = arith.constant 0 : index
    %459 = vector.load %arg14[%c45_492, %c0_493, %c0_494] : memref<64x8x16xf32, #tpu.memory_space<vmem>>, vector<1x8x16xf32>
    %460 = vector.shape_cast %459 : vector<1x8x16xf32> to vector<8x16xf32>
    %461 = arith.maximumf %458, %460 : vector<8x16xf32>
    %c22_495 = arith.constant 22 : index
    %c0_496 = arith.constant 0 : index
    %c0_497 = arith.constant 0 : index
    %462 = vector.load %arg15[%c22_495, %c0_496, %c0_497] : memref<32x8x16xf32, #tpu.memory_space<vmem>>, vector<1x8x16xf32>
    %463 = vector.shape_cast %462 : vector<1x8x16xf32> to vector<8x16xf32>
    %464 = vector.shape_cast %461 : vector<8x16xf32> to vector<1x8x16xf32>
    tpu.vector_store %arg15[%c22_495, %c0_496, %c0_497], %464 {strides = array<i32>} : memref<32x8x16xf32, #tpu.memory_space<vmem>>, vector<1x8x16xf32>,
    %c46_498 = arith.constant 46 : index
    %c0_499 = arith.constant 0 : index
    %c0_500 = arith.constant 0 : index
    %465 = vector.load %arg14[%c46_498, %c0_499, %c0_500] : memref<64x8x16xf32, #tpu.memory_space<vmem>>, vector<1x8x16xf32>
    %466 = vector.shape_cast %465 : vector<1x8x16xf32> to vector<8x16xf32>
    %c47_501 = arith.constant 47 : index
    %c0_502 = arith.constant 0 : index
    %c0_503 = arith.constant 0 : index
    %467 = vector.load %arg14[%c47_501, %c0_502, %c0_503] : memref<64x8x16xf32, #tpu.memory_space<vmem>>, vector<1x8x16xf32>
    %468 = vector.shape_cast %467 : vector<1x8x16xf32> to vector<8x16xf32>
    %469 = arith.maximumf %466, %468 : vector<8x16xf32>
    %c23_504 = arith.constant 23 : index
    %c0_505 = arith.constant 0 : index
    %c0_506 = arith.constant 0 : index
    %470 = vector.load %arg15[%c23_504, %c0_505, %c0_506] : memref<32x8x16xf32, #tpu.memory_space<vmem>>, vector<1x8x16xf32>
    %471 = vector.shape_cast %470 : vector<1x8x16xf32> to vector<8x16xf32>
    %472 = vector.shape_cast %469 : vector<8x16xf32> to vector<1x8x16xf32>
    tpu.vector_store %arg15[%c23_504, %c0_505, %c0_506], %472 {strides = array<i32>} : memref<32x8x16xf32, #tpu.memory_space<vmem>>, vector<1x8x16xf32>,
    %c48_507 = arith.constant 48 : index
    %c0_508 = arith.constant 0 : index
    %c0_509 = arith.constant 0 : index
    %473 = vector.load %arg14[%c48_507, %c0_508, %c0_509] : memref<64x8x16xf32, #tpu.memory_space<vmem>>, vector<1x8x16xf32>
    %474 = vector.shape_cast %473 : vector<1x8x16xf32> to vector<8x16xf32>
    %c49 = arith.constant 49 : index
    %c0_510 = arith.constant 0 : index
    %c0_511 = arith.constant 0 : index
    %475 = vector.load %arg14[%c49, %c0_510, %c0_511] : memref<64x8x16xf32, #tpu.memory_space<vmem>>, vector<1x8x16xf32>
    %476 = vector.shape_cast %475 : vector<1x8x16xf32> to vector<8x16xf32>
    %477 = arith.maximumf %474, %476 : vector<8x16xf32>
    %c24_512 = arith.constant 24 : index
    %c0_513 = arith.constant 0 : index
    %c0_514 = arith.constant 0 : index
    %478 = vector.load %arg15[%c24_512, %c0_513, %c0_514] : memref<32x8x16xf32, #tpu.memory_space<vmem>>, vector<1x8x16xf32>
    %479 = vector.shape_cast %478 : vector<1x8x16xf32> to vector<8x16xf32>
    %480 = vector.shape_cast %477 : vector<8x16xf32> to vector<1x8x16xf32>
    tpu.vector_store %arg15[%c24_512, %c0_513, %c0_514], %480 {strides = array<i32>} : memref<32x8x16xf32, #tpu.memory_space<vmem>>, vector<1x8x16xf32>,
    %c50 = arith.constant 50 : index
    %c0_515 = arith.constant 0 : index
    %c0_516 = arith.constant 0 : index
    %481 = vector.load %arg14[%c50, %c0_515, %c0_516] : memref<64x8x16xf32, #tpu.memory_space<vmem>>, vector<1x8x16xf32>
    %482 = vector.shape_cast %481 : vector<1x8x16xf32> to vector<8x16xf32>
    %c51 = arith.constant 51 : index
    %c0_517 = arith.constant 0 : index
    %c0_518 = arith.constant 0 : index
    %483 = vector.load %arg14[%c51, %c0_517, %c0_518] : memref<64x8x16xf32, #tpu.memory_space<vmem>>, vector<1x8x16xf32>
    %484 = vector.shape_cast %483 : vector<1x8x16xf32> to vector<8x16xf32>
    %485 = arith.maximumf %482, %484 : vector<8x16xf32>
    %c25_519 = arith.constant 25 : index
    %c0_520 = arith.constant 0 : index
    %c0_521 = arith.constant 0 : index
    %486 = vector.load %arg15[%c25_519, %c0_520, %c0_521] : memref<32x8x16xf32, #tpu.memory_space<vmem>>, vector<1x8x16xf32>
    %487 = vector.shape_cast %486 : vector<1x8x16xf32> to vector<8x16xf32>
    %488 = vector.shape_cast %485 : vector<8x16xf32> to vector<1x8x16xf32>
    tpu.vector_store %arg15[%c25_519, %c0_520, %c0_521], %488 {strides = array<i32>} : memref<32x8x16xf32, #tpu.memory_space<vmem>>, vector<1x8x16xf32>,
    %c52 = arith.constant 52 : index
    %c0_522 = arith.constant 0 : index
    %c0_523 = arith.constant 0 : index
    %489 = vector.load %arg14[%c52, %c0_522, %c0_523] : memref<64x8x16xf32, #tpu.memory_space<vmem>>, vector<1x8x16xf32>
    %490 = vector.shape_cast %489 : vector<1x8x16xf32> to vector<8x16xf32>
    %c53 = arith.constant 53 : index
    %c0_524 = arith.constant 0 : index
    %c0_525 = arith.constant 0 : index
    %491 = vector.load %arg14[%c53, %c0_524, %c0_525] : memref<64x8x16xf32, #tpu.memory_space<vmem>>, vector<1x8x16xf32>
    %492 = vector.shape_cast %491 : vector<1x8x16xf32> to vector<8x16xf32>
    %493 = arith.maximumf %490, %492 : vector<8x16xf32>
    %c26_526 = arith.constant 26 : index
    %c0_527 = arith.constant 0 : index
    %c0_528 = arith.constant 0 : index
    %494 = vector.load %arg15[%c26_526, %c0_527, %c0_528] : memref<32x8x16xf32, #tpu.memory_space<vmem>>, vector<1x8x16xf32>
    %495 = vector.shape_cast %494 : vector<1x8x16xf32> to vector<8x16xf32>
    %496 = vector.shape_cast %493 : vector<8x16xf32> to vector<1x8x16xf32>
    tpu.vector_store %arg15[%c26_526, %c0_527, %c0_528], %496 {strides = array<i32>} : memref<32x8x16xf32, #tpu.memory_space<vmem>>, vector<1x8x16xf32>,
    %c54 = arith.constant 54 : index
    %c0_529 = arith.constant 0 : index
    %c0_530 = arith.constant 0 : index
    %497 = vector.load %arg14[%c54, %c0_529, %c0_530] : memref<64x8x16xf32, #tpu.memory_space<vmem>>, vector<1x8x16xf32>
    %498 = vector.shape_cast %497 : vector<1x8x16xf32> to vector<8x16xf32>
    %c55 = arith.constant 55 : index
    %c0_531 = arith.constant 0 : index
    %c0_532 = arith.constant 0 : index
    %499 = vector.load %arg14[%c55, %c0_531, %c0_532] : memref<64x8x16xf32, #tpu.memory_space<vmem>>, vector<1x8x16xf32>
    %500 = vector.shape_cast %499 : vector<1x8x16xf32> to vector<8x16xf32>
    %501 = arith.maximumf %498, %500 : vector<8x16xf32>
    %c27_533 = arith.constant 27 : index
    %c0_534 = arith.constant 0 : index
    %c0_535 = arith.constant 0 : index
    %502 = vector.load %arg15[%c27_533, %c0_534, %c0_535] : memref<32x8x16xf32, #tpu.memory_space<vmem>>, vector<1x8x16xf32>
    %503 = vector.shape_cast %502 : vector<1x8x16xf32> to vector<8x16xf32>
    %504 = vector.shape_cast %501 : vector<8x16xf32> to vector<1x8x16xf32>
    tpu.vector_store %arg15[%c27_533, %c0_534, %c0_535], %504 {strides = array<i32>} : memref<32x8x16xf32, #tpu.memory_space<vmem>>, vector<1x8x16xf32>,
    %c56 = arith.constant 56 : index
    %c0_536 = arith.constant 0 : index
    %c0_537 = arith.constant 0 : index
    %505 = vector.load %arg14[%c56, %c0_536, %c0_537] : memref<64x8x16xf32, #tpu.memory_space<vmem>>, vector<1x8x16xf32>
    %506 = vector.shape_cast %505 : vector<1x8x16xf32> to vector<8x16xf32>
    %c57 = arith.constant 57 : index
    %c0_538 = arith.constant 0 : index
    %c0_539 = arith.constant 0 : index
    %507 = vector.load %arg14[%c57, %c0_538, %c0_539] : memref<64x8x16xf32, #tpu.memory_space<vmem>>, vector<1x8x16xf32>
    %508 = vector.shape_cast %507 : vector<1x8x16xf32> to vector<8x16xf32>
    %509 = arith.maximumf %506, %508 : vector<8x16xf32>
    %c28_540 = arith.constant 28 : index
    %c0_541 = arith.constant 0 : index
    %c0_542 = arith.constant 0 : index
    %510 = vector.load %arg15[%c28_540, %c0_541, %c0_542] : memref<32x8x16xf32, #tpu.memory_space<vmem>>, vector<1x8x16xf32>
    %511 = vector.shape_cast %510 : vector<1x8x16xf32> to vector<8x16xf32>
    %512 = vector.shape_cast %509 : vector<8x16xf32> to vector<1x8x16xf32>
    tpu.vector_store %arg15[%c28_540, %c0_541, %c0_542], %512 {strides = array<i32>} : memref<32x8x16xf32, #tpu.memory_space<vmem>>, vector<1x8x16xf32>,
    %c58 = arith.constant 58 : index
    %c0_543 = arith.constant 0 : index
    %c0_544 = arith.constant 0 : index
    %513 = vector.load %arg14[%c58, %c0_543, %c0_544] : memref<64x8x16xf32, #tpu.memory_space<vmem>>, vector<1x8x16xf32>
    %514 = vector.shape_cast %513 : vector<1x8x16xf32> to vector<8x16xf32>
    %c59 = arith.constant 59 : index
    %c0_545 = arith.constant 0 : index
    %c0_546 = arith.constant 0 : index
    %515 = vector.load %arg14[%c59, %c0_545, %c0_546] : memref<64x8x16xf32, #tpu.memory_space<vmem>>, vector<1x8x16xf32>
    %516 = vector.shape_cast %515 : vector<1x8x16xf32> to vector<8x16xf32>
    %517 = arith.maximumf %514, %516 : vector<8x16xf32>
    %c29_547 = arith.constant 29 : index
    %c0_548 = arith.constant 0 : index
    %c0_549 = arith.constant 0 : index
    %518 = vector.load %arg15[%c29_547, %c0_548, %c0_549] : memref<32x8x16xf32, #tpu.memory_space<vmem>>, vector<1x8x16xf32>
    %519 = vector.shape_cast %518 : vector<1x8x16xf32> to vector<8x16xf32>
    %520 = vector.shape_cast %517 : vector<8x16xf32> to vector<1x8x16xf32>
    tpu.vector_store %arg15[%c29_547, %c0_548, %c0_549], %520 {strides = array<i32>} : memref<32x8x16xf32, #tpu.memory_space<vmem>>, vector<1x8x16xf32>,
    %c60 = arith.constant 60 : index
    %c0_550 = arith.constant 0 : index
    %c0_551 = arith.constant 0 : index
    %521 = vector.load %arg14[%c60, %c0_550, %c0_551] : memref<64x8x16xf32, #tpu.memory_space<vmem>>, vector<1x8x16xf32>
    %522 = vector.shape_cast %521 : vector<1x8x16xf32> to vector<8x16xf32>
    %c61 = arith.constant 61 : index
    %c0_552 = arith.constant 0 : index
    %c0_553 = arith.constant 0 : index
    %523 = vector.load %arg14[%c61, %c0_552, %c0_553] : memref<64x8x16xf32, #tpu.memory_space<vmem>>, vector<1x8x16xf32>
    %524 = vector.shape_cast %523 : vector<1x8x16xf32> to vector<8x16xf32>
    %525 = arith.maximumf %522, %524 : vector<8x16xf32>
    %c30_554 = arith.constant 30 : index
    %c0_555 = arith.constant 0 : index
    %c0_556 = arith.constant 0 : index
    %526 = vector.load %arg15[%c30_554, %c0_555, %c0_556] : memref<32x8x16xf32, #tpu.memory_space<vmem>>, vector<1x8x16xf32>
    %527 = vector.shape_cast %526 : vector<1x8x16xf32> to vector<8x16xf32>
    %528 = vector.shape_cast %525 : vector<8x16xf32> to vector<1x8x16xf32>
    tpu.vector_store %arg15[%c30_554, %c0_555, %c0_556], %528 {strides = array<i32>} : memref<32x8x16xf32, #tpu.memory_space<vmem>>, vector<1x8x16xf32>,
    %c62 = arith.constant 62 : index
    %c0_557 = arith.constant 0 : index
    %c0_558 = arith.constant 0 : index
    %529 = vector.load %arg14[%c62, %c0_557, %c0_558] : memref<64x8x16xf32, #tpu.memory_space<vmem>>, vector<1x8x16xf32>
    %530 = vector.shape_cast %529 : vector<1x8x16xf32> to vector<8x16xf32>
    %c63 = arith.constant 63 : index
    %c0_559 = arith.constant 0 : index
    %c0_560 = arith.constant 0 : index
    %531 = vector.load %arg14[%c63, %c0_559, %c0_560] : memref<64x8x16xf32, #tpu.memory_space<vmem>>, vector<1x8x16xf32>
    %532 = vector.shape_cast %531 : vector<1x8x16xf32> to vector<8x16xf32>
    %533 = arith.maximumf %530, %532 : vector<8x16xf32>
    %c31_561 = arith.constant 31 : index
    %c0_562 = arith.constant 0 : index
    %c0_563 = arith.constant 0 : index
    %534 = vector.load %arg15[%c31_561, %c0_562, %c0_563] : memref<32x8x16xf32, #tpu.memory_space<vmem>>, vector<1x8x16xf32>
    %535 = vector.shape_cast %534 : vector<1x8x16xf32> to vector<8x16xf32>
    %536 = vector.shape_cast %533 : vector<8x16xf32> to vector<1x8x16xf32>
    tpu.vector_store %arg15[%c31_561, %c0_562, %c0_563], %536 {strides = array<i32>} : memref<32x8x16xf32, #tpu.memory_space<vmem>>, vector<1x8x16xf32>,
    %c22_564 = arith.constant 22 : index
    %c0_565 = arith.constant 0 : index
    %c0_566 = arith.constant 0 : index
    %537 = vector.load %arg15[%c22_564, %c0_565, %c0_566] : memref<32x8x16xf32, #tpu.memory_space<vmem>>, vector<6x8x16xf32>
    %c18_567 = arith.constant 18 : index
    %c0_568 = arith.constant 0 : index
    %c0_569 = arith.constant 0 : index
    %538 = vector.load %arg16[%c18_567, %c0_568, %c0_569] : memref<24x8x80xf32, #tpu.memory_space<vmem>>, vector<6x8x16xf32>
    tpu.vector_store %arg16[%c18_567, %c0_568, %c0_569], %537 {strides = array<i32>} : memref<24x8x80xf32, #tpu.memory_space<vmem>>, vector<6x8x16xf32>,
    %c23_570 = arith.constant 23 : index
    %c0_571 = arith.constant 0 : index
    %c0_572 = arith.constant 0 : index
    %539 = vector.load %arg15[%c23_570, %c0_571, %c0_572] : memref<32x8x16xf32, #tpu.memory_space<vmem>>, vector<6x8x16xf32>
    %c18_573 = arith.constant 18 : index
    %c0_574 = arith.constant 0 : index
    %c16_575 = arith.constant 16 : index
    %540 = vector.load %arg16[%c18_573, %c0_574, %c16_575] : memref<24x8x80xf32, #tpu.memory_space<vmem>>, vector<6x8x16xf32>
    tpu.vector_store %arg16[%c18_573, %c0_574, %c16_575], %539 {strides = array<i32>} : memref<24x8x80xf32, #tpu.memory_space<vmem>>, vector<6x8x16xf32>,
    %c24_576 = arith.constant 24 : index
    %c0_577 = arith.constant 0 : index
    %c0_578 = arith.constant 0 : index
    %541 = vector.load %arg15[%c24_576, %c0_577, %c0_578] : memref<32x8x16xf32, #tpu.memory_space<vmem>>, vector<6x8x16xf32>
    %c18_579 = arith.constant 18 : index
    %c0_580 = arith.constant 0 : index
    %c32_581 = arith.constant 32 : index
    %542 = vector.load %arg16[%c18_579, %c0_580, %c32_581] : memref<24x8x80xf32, #tpu.memory_space<vmem>>, vector<6x8x16xf32>
    tpu.vector_store %arg16[%c18_579, %c0_580, %c32_581], %541 {strides = array<i32>} : memref<24x8x80xf32, #tpu.memory_space<vmem>>, vector<6x8x16xf32>,
    %c25_582 = arith.constant 25 : index
    %c0_583 = arith.constant 0 : index
    %c0_584 = arith.constant 0 : index
    %543 = vector.load %arg15[%c25_582, %c0_583, %c0_584] : memref<32x8x16xf32, #tpu.memory_space<vmem>>, vector<6x8x16xf32>
    %c18_585 = arith.constant 18 : index
    %c0_586 = arith.constant 0 : index
    %c48_587 = arith.constant 48 : index
    %544 = vector.load %arg16[%c18_585, %c0_586, %c48_587] : memref<24x8x80xf32, #tpu.memory_space<vmem>>, vector<6x8x16xf32>
    tpu.vector_store %arg16[%c18_585, %c0_586, %c48_587], %543 {strides = array<i32>} : memref<24x8x80xf32, #tpu.memory_space<vmem>>, vector<6x8x16xf32>,
    %c26_588 = arith.constant 26 : index
    %c0_589 = arith.constant 0 : index
    %c0_590 = arith.constant 0 : index
    %545 = vector.load %arg15[%c26_588, %c0_589, %c0_590] : memref<32x8x16xf32, #tpu.memory_space<vmem>>, vector<6x8x16xf32>
    %c18_591 = arith.constant 18 : index
    %c0_592 = arith.constant 0 : index
    %c64_593 = arith.constant 64 : index
    %546 = vector.load %arg16[%c18_591, %c0_592, %c64_593] : memref<24x8x80xf32, #tpu.memory_space<vmem>>, vector<6x8x16xf32>
    tpu.vector_store %arg16[%c18_591, %c0_592, %c64_593], %545 {strides = array<i32>} : memref<24x8x80xf32, #tpu.memory_space<vmem>>, vector<6x8x16xf32>,
    %c0_594 = arith.constant 0 : index
    %c0_595 = arith.constant 0 : index
    %c0_596 = arith.constant 0 : index
    %547 = vector.load %arg16[%c0_594, %c0_595, %c0_596] : memref<24x8x80xf32, #tpu.memory_space<vmem>>, vector<24x8x80xf32>
    %548 = vector.shape_cast %547 : vector<24x8x80xf32> to vector<192x80xf32>
    %c0_597 = arith.constant 0 : index
    %c0_598 = arith.constant 0 : index
    %549 = vector.load %arg4[%c0_597, %c0_598] : memref<80x32xf32, #tpu.memory_space<vmem>>, vector<80x32xf32>
    %cst_599 = arith.constant dense<0.000000e+00> : vector<192x32xf32>
    %550 = tpu.matmul %548, %549, %cst_599 {dimension_numbers = #tpu.dot_dimension_numbers<[1], [0], [0], [1], [0, 0, 1, 1], [], []>} : vector<192x80xf32>, vector<80x32xf32>, vector<192x32xf32> -> vector<192x32xf32>
    %c0_600 = arith.constant 0 : index
    %c0_601 = arith.constant 0 : index
    %551 = vector.load %arg5[%c0_600, %c0_601] : memref<1x32xf32, #tpu.memory_space<vmem>>, vector<1x32xf32>
    %552 = vector.broadcast %551 : vector<1x32xf32> to vector<192x32xf32>
    %553 = arith.addf %550, %552 : vector<192x32xf32>
    %cst_602 = arith.constant 0.000000e+00 : f32
    %554 = vector.broadcast %cst_602 : f32 to vector<192x32xf32>
    %555 = arith.maximumf %553, %554 : vector<192x32xf32>
    %556 = vector.shape_cast %555 : vector<192x32xf32> to vector<24x8x32xf32>
    %c0_603 = arith.constant 0 : index
    %c0_604 = arith.constant 0 : index
    %c0_605 = arith.constant 0 : index
    %557 = vector.load %arg17[%c0_603, %c0_604, %c0_605] : memref<24x8x32xf32, #tpu.memory_space<vmem>>, vector<24x8x32xf32>
    tpu.vector_store %arg17[%c0_603, %c0_604, %c0_605], %556 {strides = array<i32>} : memref<24x8x32xf32, #tpu.memory_space<vmem>>, vector<24x8x32xf32>,
    %c0_606 = arith.constant 0 : index
    %c0_607 = arith.constant 0 : index
    %c0_608 = arith.constant 0 : index
    %558 = vector.load %arg17[%c0_606, %c0_607, %c0_608] : memref<24x8x32xf32, #tpu.memory_space<vmem>>, vector<1x8x32xf32>
    %559 = vector.shape_cast %558 : vector<1x8x32xf32> to vector<8x32xf32>
    %c1_609 = arith.constant 1 : index
    %c0_610 = arith.constant 0 : index
    %c0_611 = arith.constant 0 : index
    %560 = vector.load %arg17[%c1_609, %c0_610, %c0_611] : memref<24x8x32xf32, #tpu.memory_space<vmem>>, vector<1x8x32xf32>
    %561 = vector.shape_cast %560 : vector<1x8x32xf32> to vector<8x32xf32>
    %562 = arith.maximumf %559, %561 : vector<8x32xf32>
    %c0_612 = arith.constant 0 : index
    %c0_613 = arith.constant 0 : index
    %563 = vector.load %arg18[%c0_612, %c0_613] : memref<8x384xf32, #tpu.memory_space<vmem>>, vector<8x32xf32>
    tpu.vector_store %arg18[%c0_612, %c0_613], %562 {strides = array<i32>} : memref<8x384xf32, #tpu.memory_space<vmem>>, vector<8x32xf32>,
    %c2_614 = arith.constant 2 : index
    %c0_615 = arith.constant 0 : index
    %c0_616 = arith.constant 0 : index
    %564 = vector.load %arg17[%c2_614, %c0_615, %c0_616] : memref<24x8x32xf32, #tpu.memory_space<vmem>>, vector<1x8x32xf32>
    %565 = vector.shape_cast %564 : vector<1x8x32xf32> to vector<8x32xf32>
    %c3_617 = arith.constant 3 : index
    %c0_618 = arith.constant 0 : index
    %c0_619 = arith.constant 0 : index
    %566 = vector.load %arg17[%c3_617, %c0_618, %c0_619] : memref<24x8x32xf32, #tpu.memory_space<vmem>>, vector<1x8x32xf32>
    %567 = vector.shape_cast %566 : vector<1x8x32xf32> to vector<8x32xf32>
    %568 = arith.maximumf %565, %567 : vector<8x32xf32>
    %c0_620 = arith.constant 0 : index
    %c32_621 = arith.constant 32 : index
    %569 = vector.load %arg18[%c0_620, %c32_621] : memref<8x384xf32, #tpu.memory_space<vmem>>, vector<8x32xf32>
    tpu.vector_store %arg18[%c0_620, %c32_621], %568 {strides = array<i32>} : memref<8x384xf32, #tpu.memory_space<vmem>>, vector<8x32xf32>,
    %c4_622 = arith.constant 4 : index
    %c0_623 = arith.constant 0 : index
    %c0_624 = arith.constant 0 : index
    %570 = vector.load %arg17[%c4_622, %c0_623, %c0_624] : memref<24x8x32xf32, #tpu.memory_space<vmem>>, vector<1x8x32xf32>
    %571 = vector.shape_cast %570 : vector<1x8x32xf32> to vector<8x32xf32>
    %c5_625 = arith.constant 5 : index
    %c0_626 = arith.constant 0 : index
    %c0_627 = arith.constant 0 : index
    %572 = vector.load %arg17[%c5_625, %c0_626, %c0_627] : memref<24x8x32xf32, #tpu.memory_space<vmem>>, vector<1x8x32xf32>
    %573 = vector.shape_cast %572 : vector<1x8x32xf32> to vector<8x32xf32>
    %574 = arith.maximumf %571, %573 : vector<8x32xf32>
    %c0_628 = arith.constant 0 : index
    %c64_629 = arith.constant 64 : index
    %575 = vector.load %arg18[%c0_628, %c64_629] : memref<8x384xf32, #tpu.memory_space<vmem>>, vector<8x32xf32>
    tpu.vector_store %arg18[%c0_628, %c64_629], %574 {strides = array<i32>} : memref<8x384xf32, #tpu.memory_space<vmem>>, vector<8x32xf32>,
    %c6_630 = arith.constant 6 : index
    %c0_631 = arith.constant 0 : index
    %c0_632 = arith.constant 0 : index
    %576 = vector.load %arg17[%c6_630, %c0_631, %c0_632] : memref<24x8x32xf32, #tpu.memory_space<vmem>>, vector<1x8x32xf32>
    %577 = vector.shape_cast %576 : vector<1x8x32xf32> to vector<8x32xf32>
    %c7_633 = arith.constant 7 : index
    %c0_634 = arith.constant 0 : index
    %c0_635 = arith.constant 0 : index
    %578 = vector.load %arg17[%c7_633, %c0_634, %c0_635] : memref<24x8x32xf32, #tpu.memory_space<vmem>>, vector<1x8x32xf32>
    %579 = vector.shape_cast %578 : vector<1x8x32xf32> to vector<8x32xf32>
    %580 = arith.maximumf %577, %579 : vector<8x32xf32>
    %c0_636 = arith.constant 0 : index
    %c96 = arith.constant 96 : index
    %581 = vector.load %arg18[%c0_636, %c96] : memref<8x384xf32, #tpu.memory_space<vmem>>, vector<8x32xf32>
    tpu.vector_store %arg18[%c0_636, %c96], %580 {strides = array<i32>} : memref<8x384xf32, #tpu.memory_space<vmem>>, vector<8x32xf32>,
    %c8_637 = arith.constant 8 : index
    %c0_638 = arith.constant 0 : index
    %c0_639 = arith.constant 0 : index
    %582 = vector.load %arg17[%c8_637, %c0_638, %c0_639] : memref<24x8x32xf32, #tpu.memory_space<vmem>>, vector<1x8x32xf32>
    %583 = vector.shape_cast %582 : vector<1x8x32xf32> to vector<8x32xf32>
    %c9_640 = arith.constant 9 : index
    %c0_641 = arith.constant 0 : index
    %c0_642 = arith.constant 0 : index
    %584 = vector.load %arg17[%c9_640, %c0_641, %c0_642] : memref<24x8x32xf32, #tpu.memory_space<vmem>>, vector<1x8x32xf32>
    %585 = vector.shape_cast %584 : vector<1x8x32xf32> to vector<8x32xf32>
    %586 = arith.maximumf %583, %585 : vector<8x32xf32>
    %c0_643 = arith.constant 0 : index
    %c128 = arith.constant 128 : index
    %587 = vector.load %arg18[%c0_643, %c128] : memref<8x384xf32, #tpu.memory_space<vmem>>, vector<8x32xf32>
    tpu.vector_store %arg18[%c0_643, %c128], %586 {strides = array<i32>} : memref<8x384xf32, #tpu.memory_space<vmem>>, vector<8x32xf32>,
    %c10_644 = arith.constant 10 : index
    %c0_645 = arith.constant 0 : index
    %c0_646 = arith.constant 0 : index
    %588 = vector.load %arg17[%c10_644, %c0_645, %c0_646] : memref<24x8x32xf32, #tpu.memory_space<vmem>>, vector<1x8x32xf32>
    %589 = vector.shape_cast %588 : vector<1x8x32xf32> to vector<8x32xf32>
    %c11_647 = arith.constant 11 : index
    %c0_648 = arith.constant 0 : index
    %c0_649 = arith.constant 0 : index
    %590 = vector.load %arg17[%c11_647, %c0_648, %c0_649] : memref<24x8x32xf32, #tpu.memory_space<vmem>>, vector<1x8x32xf32>
    %591 = vector.shape_cast %590 : vector<1x8x32xf32> to vector<8x32xf32>
    %592 = arith.maximumf %589, %591 : vector<8x32xf32>
    %c0_650 = arith.constant 0 : index
    %c160 = arith.constant 160 : index
    %593 = vector.load %arg18[%c0_650, %c160] : memref<8x384xf32, #tpu.memory_space<vmem>>, vector<8x32xf32>
    tpu.vector_store %arg18[%c0_650, %c160], %592 {strides = array<i32>} : memref<8x384xf32, #tpu.memory_space<vmem>>, vector<8x32xf32>,
    %c12_651 = arith.constant 12 : index
    %c0_652 = arith.constant 0 : index
    %c0_653 = arith.constant 0 : index
    %594 = vector.load %arg17[%c12_651, %c0_652, %c0_653] : memref<24x8x32xf32, #tpu.memory_space<vmem>>, vector<1x8x32xf32>
    %595 = vector.shape_cast %594 : vector<1x8x32xf32> to vector<8x32xf32>
    %c13_654 = arith.constant 13 : index
    %c0_655 = arith.constant 0 : index
    %c0_656 = arith.constant 0 : index
    %596 = vector.load %arg17[%c13_654, %c0_655, %c0_656] : memref<24x8x32xf32, #tpu.memory_space<vmem>>, vector<1x8x32xf32>
    %597 = vector.shape_cast %596 : vector<1x8x32xf32> to vector<8x32xf32>
    %598 = arith.maximumf %595, %597 : vector<8x32xf32>
    %c0_657 = arith.constant 0 : index
    %c192 = arith.constant 192 : index
    %599 = vector.load %arg18[%c0_657, %c192] : memref<8x384xf32, #tpu.memory_space<vmem>>, vector<8x32xf32>
    tpu.vector_store %arg18[%c0_657, %c192], %598 {strides = array<i32>} : memref<8x384xf32, #tpu.memory_space<vmem>>, vector<8x32xf32>,
    %c14_658 = arith.constant 14 : index
    %c0_659 = arith.constant 0 : index
    %c0_660 = arith.constant 0 : index
    %600 = vector.load %arg17[%c14_658, %c0_659, %c0_660] : memref<24x8x32xf32, #tpu.memory_space<vmem>>, vector<1x8x32xf32>
    %601 = vector.shape_cast %600 : vector<1x8x32xf32> to vector<8x32xf32>
    %c15_661 = arith.constant 15 : index
    %c0_662 = arith.constant 0 : index
    %c0_663 = arith.constant 0 : index
    %602 = vector.load %arg17[%c15_661, %c0_662, %c0_663] : memref<24x8x32xf32, #tpu.memory_space<vmem>>, vector<1x8x32xf32>
    %603 = vector.shape_cast %602 : vector<1x8x32xf32> to vector<8x32xf32>
    %604 = arith.maximumf %601, %603 : vector<8x32xf32>
    %c0_664 = arith.constant 0 : index
    %c224 = arith.constant 224 : index
    %605 = vector.load %arg18[%c0_664, %c224] : memref<8x384xf32, #tpu.memory_space<vmem>>, vector<8x32xf32>
    tpu.vector_store %arg18[%c0_664, %c224], %604 {strides = array<i32>} : memref<8x384xf32, #tpu.memory_space<vmem>>, vector<8x32xf32>,
    %c16_665 = arith.constant 16 : index
    %c0_666 = arith.constant 0 : index
    %c0_667 = arith.constant 0 : index
    %606 = vector.load %arg17[%c16_665, %c0_666, %c0_667] : memref<24x8x32xf32, #tpu.memory_space<vmem>>, vector<1x8x32xf32>
    %607 = vector.shape_cast %606 : vector<1x8x32xf32> to vector<8x32xf32>
    %c17_668 = arith.constant 17 : index
    %c0_669 = arith.constant 0 : index
    %c0_670 = arith.constant 0 : index
    %608 = vector.load %arg17[%c17_668, %c0_669, %c0_670] : memref<24x8x32xf32, #tpu.memory_space<vmem>>, vector<1x8x32xf32>
    %609 = vector.shape_cast %608 : vector<1x8x32xf32> to vector<8x32xf32>
    %610 = arith.maximumf %607, %609 : vector<8x32xf32>
    %c0_671 = arith.constant 0 : index
    %c256 = arith.constant 256 : index
    %611 = vector.load %arg18[%c0_671, %c256] : memref<8x384xf32, #tpu.memory_space<vmem>>, vector<8x32xf32>
    tpu.vector_store %arg18[%c0_671, %c256], %610 {strides = array<i32>} : memref<8x384xf32, #tpu.memory_space<vmem>>, vector<8x32xf32>,
    %c18_672 = arith.constant 18 : index
    %c0_673 = arith.constant 0 : index
    %c0_674 = arith.constant 0 : index
    %612 = vector.load %arg17[%c18_672, %c0_673, %c0_674] : memref<24x8x32xf32, #tpu.memory_space<vmem>>, vector<1x8x32xf32>
    %613 = vector.shape_cast %612 : vector<1x8x32xf32> to vector<8x32xf32>
    %c19_675 = arith.constant 19 : index
    %c0_676 = arith.constant 0 : index
    %c0_677 = arith.constant 0 : index
    %614 = vector.load %arg17[%c19_675, %c0_676, %c0_677] : memref<24x8x32xf32, #tpu.memory_space<vmem>>, vector<1x8x32xf32>
    %615 = vector.shape_cast %614 : vector<1x8x32xf32> to vector<8x32xf32>
    %616 = arith.maximumf %613, %615 : vector<8x32xf32>
    %c0_678 = arith.constant 0 : index
    %c288 = arith.constant 288 : index
    %617 = vector.load %arg18[%c0_678, %c288] : memref<8x384xf32, #tpu.memory_space<vmem>>, vector<8x32xf32>
    tpu.vector_store %arg18[%c0_678, %c288], %616 {strides = array<i32>} : memref<8x384xf32, #tpu.memory_space<vmem>>, vector<8x32xf32>,
    %c20_679 = arith.constant 20 : index
    %c0_680 = arith.constant 0 : index
    %c0_681 = arith.constant 0 : index
    %618 = vector.load %arg17[%c20_679, %c0_680, %c0_681] : memref<24x8x32xf32, #tpu.memory_space<vmem>>, vector<1x8x32xf32>
    %619 = vector.shape_cast %618 : vector<1x8x32xf32> to vector<8x32xf32>
    %c21_682 = arith.constant 21 : index
    %c0_683 = arith.constant 0 : index
    %c0_684 = arith.constant 0 : index
    %620 = vector.load %arg17[%c21_682, %c0_683, %c0_684] : memref<24x8x32xf32, #tpu.memory_space<vmem>>, vector<1x8x32xf32>
    %621 = vector.shape_cast %620 : vector<1x8x32xf32> to vector<8x32xf32>
    %622 = arith.maximumf %619, %621 : vector<8x32xf32>
    %c0_685 = arith.constant 0 : index
    %c320 = arith.constant 320 : index
    %623 = vector.load %arg18[%c0_685, %c320] : memref<8x384xf32, #tpu.memory_space<vmem>>, vector<8x32xf32>
    tpu.vector_store %arg18[%c0_685, %c320], %622 {strides = array<i32>} : memref<8x384xf32, #tpu.memory_space<vmem>>, vector<8x32xf32>,
    %c22_686 = arith.constant 22 : index
    %c0_687 = arith.constant 0 : index
    %c0_688 = arith.constant 0 : index
    %624 = vector.load %arg17[%c22_686, %c0_687, %c0_688] : memref<24x8x32xf32, #tpu.memory_space<vmem>>, vector<1x8x32xf32>
    %625 = vector.shape_cast %624 : vector<1x8x32xf32> to vector<8x32xf32>
    %c23_689 = arith.constant 23 : index
    %c0_690 = arith.constant 0 : index
    %c0_691 = arith.constant 0 : index
    %626 = vector.load %arg17[%c23_689, %c0_690, %c0_691] : memref<24x8x32xf32, #tpu.memory_space<vmem>>, vector<1x8x32xf32>
    %627 = vector.shape_cast %626 : vector<1x8x32xf32> to vector<8x32xf32>
    %628 = arith.maximumf %625, %627 : vector<8x32xf32>
    %c0_692 = arith.constant 0 : index
    %c352 = arith.constant 352 : index
    %629 = vector.load %arg18[%c0_692, %c352] : memref<8x384xf32, #tpu.memory_space<vmem>>, vector<8x32xf32>
    tpu.vector_store %arg18[%c0_692, %c352], %628 {strides = array<i32>} : memref<8x384xf32, #tpu.memory_space<vmem>>, vector<8x32xf32>,
    %c0_693 = arith.constant 0 : index
    %c0_694 = arith.constant 0 : index
    %630 = vector.load %arg8[%c0_693, %c0_694] : memref<1x384xf32, #tpu.memory_space<vmem>>, vector<1x384xf32>
    %c0_695 = arith.constant 0 : index
    %c0_696 = arith.constant 0 : index
    %631 = vector.load %arg18[%c0_695, %c0_696] : memref<8x384xf32, #tpu.memory_space<vmem>>, vector<8x384xf32>
    %c0_697 = arith.constant 0 : index
    %c0_698 = arith.constant 0 : index
    %632 = vector.load %arg6[%c0_697, %c0_698] : memref<384x384xf32, #tpu.memory_space<vmem>>, vector<384x384xf32>
    %cst_699 = arith.constant dense<0.000000e+00> : vector<8x384xf32>
    %633 = tpu.matmul %631, %632, %cst_699 {dimension_numbers = #tpu.dot_dimension_numbers<[1], [0], [0], [1], [0, 0, 1, 1], [], []>} : vector<8x384xf32>, vector<384x384xf32>, vector<8x384xf32> -> vector<8x384xf32>
    %634 = vector.broadcast %630 : vector<1x384xf32> to vector<8x384xf32>
    %635 = arith.addf %633, %634 : vector<8x384xf32>
    %cst_700 = arith.constant 0.000000e+00 : f32
    %636 = vector.broadcast %cst_700 : f32 to vector<8x384xf32>
    %637 = arith.maximumf %635, %636 : vector<8x384xf32>
    %c0_701 = arith.constant 0 : index
    %c0_702 = arith.constant 0 : index
    %638 = vector.load %arg7[%c0_701, %c0_702] : memref<384x384xf32, #tpu.memory_space<vmem>>, vector<384x384xf32>
    %cst_703 = arith.constant dense<0.000000e+00> : vector<8x384xf32>
    %639 = tpu.matmul %637, %638, %cst_703 {dimension_numbers = #tpu.dot_dimension_numbers<[1], [0], [0], [1], [0, 0, 1, 1], [], []>} : vector<8x384xf32>, vector<384x384xf32>, vector<8x384xf32> -> vector<8x384xf32>
    %640 = vector.broadcast %630 : vector<1x384xf32> to vector<8x384xf32>
    %641 = arith.addf %639, %640 : vector<8x384xf32>
    %cst_704 = arith.constant 0.000000e+00 : f32
    %642 = vector.broadcast %cst_704 : f32 to vector<8x384xf32>
    %643 = arith.maximumf %641, %642 : vector<8x384xf32>
    %c0_705 = arith.constant 0 : index
    %c0_706 = arith.constant 0 : index
    %644 = vector.load %arg7[%c0_705, %c0_706] : memref<384x384xf32, #tpu.memory_space<vmem>>, vector<384x384xf32>
    %cst_707 = arith.constant dense<0.000000e+00> : vector<8x384xf32>
    %645 = tpu.matmul %643, %644, %cst_707 {dimension_numbers = #tpu.dot_dimension_numbers<[1], [0], [0], [1], [0, 0, 1, 1], [], []>} : vector<8x384xf32>, vector<384x384xf32>, vector<8x384xf32> -> vector<8x384xf32>
    %646 = vector.broadcast %630 : vector<1x384xf32> to vector<8x384xf32>
    %647 = arith.addf %645, %646 : vector<8x384xf32>
    %cst_708 = arith.constant 0.000000e+00 : f32
    %648 = vector.broadcast %cst_708 : f32 to vector<8x384xf32>
    %649 = arith.maximumf %647, %648 : vector<8x384xf32>
    %c0_709 = arith.constant 0 : index
    %c0_710 = arith.constant 0 : index
    %650 = vector.load %arg7[%c0_709, %c0_710] : memref<384x384xf32, #tpu.memory_space<vmem>>, vector<384x384xf32>
    %cst_711 = arith.constant dense<0.000000e+00> : vector<8x384xf32>
    %651 = tpu.matmul %649, %650, %cst_711 {dimension_numbers = #tpu.dot_dimension_numbers<[1], [0], [0], [1], [0, 0, 1, 1], [], []>} : vector<8x384xf32>, vector<384x384xf32>, vector<8x384xf32> -> vector<8x384xf32>
    %652 = vector.broadcast %630 : vector<1x384xf32> to vector<8x384xf32>
    %653 = arith.addf %651, %652 : vector<8x384xf32>
    %cst_712 = arith.constant 0.000000e+00 : f32
    %654 = vector.broadcast %cst_712 : f32 to vector<8x384xf32>
    %655 = arith.maximumf %653, %654 : vector<8x384xf32>
    %c0_713 = arith.constant 0 : index
    %c0_714 = arith.constant 0 : index
    %656 = vector.load %arg9[%c0_713, %c0_714] : memref<384x128xf32, #tpu.memory_space<vmem>>, vector<384x128xf32>
    %cst_715 = arith.constant dense<0.000000e+00> : vector<8x128xf32>
    %657 = tpu.matmul %655, %656, %cst_715 {dimension_numbers = #tpu.dot_dimension_numbers<[1], [0], [0], [1], [0, 0, 1, 1], [], []>} : vector<8x384xf32>, vector<384x128xf32>, vector<8x128xf32> -> vector<8x128xf32>
    %c0_716 = arith.constant 0 : index
    %c0_717 = arith.constant 0 : index
    %658 = vector.load %arg10[%c0_716, %c0_717] : memref<1x128xf32, #tpu.memory_space<vmem>>, vector<1x128xf32>
    %659 = vector.broadcast %658 : vector<1x128xf32> to vector<8x128xf32>
    %660 = arith.addf %657, %659 : vector<8x128xf32>
    %c0_718 = arith.constant 0 : index
    %c0_719 = arith.constant 0 : index
    %661 = vector.load %arg11[%c0_718, %c0_719] : memref<8x128xf32, #tpu.memory_space<vmem>>, vector<8x128xf32>
    tpu.vector_store %arg11[%c0_718, %c0_719], %660 {strides = array<i32>} : memref<8x128xf32, #tpu.memory_space<vmem>>, vector<8x128xf32>,
    return
  }
  func.func @transform_0(%arg0: i32) -> (i32, i32, i32) {
    %c0_i32 = arith.constant 0 : i32
    %c0_i32_0 = arith.constant 0 : i32
    %c0_i32_1 = arith.constant 0 : i32
    return %c0_i32, %arg0, %c0_i32_0 : i32, i32, i32
  }
  func.func @transform_1(%arg0: i32) -> (i32, i32) {
    %c0_i32 = arith.constant 0 : i32
    %c0_i32_0 = arith.constant 0 : i32
    %c0_i32_1 = arith.constant 0 : i32
    return %c0_i32, %c0_i32_0 : i32, i32
  }
  func.func @transform_2(%arg0: i32) -> (i32, i32) {
    %c0_i32 = arith.constant 0 : i32
    %c0_i32_0 = arith.constant 0 : i32
    %c0_i32_1 = arith.constant 0 : i32
    return %c0_i32, %c0_i32_0 : i32, i32
  }
  func.func @transform_3(%arg0: i32) -> (i32, i32) {
    %c0_i32 = arith.constant 0 : i32
    %c0_i32_0 = arith.constant 0 : i32
    %c0_i32_1 = arith.constant 0 : i32
    return %c0_i32, %c0_i32_0 : i32, i32
  }
  func.func @transform_4(%arg0: i32) -> (i32, i32) {
    %c0_i32 = arith.constant 0 : i32
    %c0_i32_0 = arith.constant 0 : i32
    %c0_i32_1 = arith.constant 0 : i32
    return %c0_i32, %c0_i32_0 : i32, i32
  }
  func.func @transform_5(%arg0: i32) -> (i32, i32) {
    %c0_i32 = arith.constant 0 : i32
    %c0_i32_0 = arith.constant 0 : i32
    %c0_i32_1 = arith.constant 0 : i32
    return %c0_i32, %c0_i32_0 : i32, i32
  }
  func.func @transform_6(%arg0: i32) -> (i32, i32) {
    %c0_i32 = arith.constant 0 : i32
    %c0_i32_0 = arith.constant 0 : i32
    %c0_i32_1 = arith.constant 0 : i32
    return %c0_i32, %c0_i32_0 : i32, i32
  }
  func.func @transform_7(%arg0: i32) -> (i32, i32) {
    %c0_i32 = arith.constant 0 : i32
    %c0_i32_0 = arith.constant 0 : i32
    %c0_i32_1 = arith.constant 0 : i32
    return %c0_i32, %c0_i32_0 : i32, i32
  }
  func.func @transform_8(%arg0: i32) -> (i32, i32) {
    %c0_i32 = arith.constant 0 : i32
    %c0_i32_0 = arith.constant 0 : i32
    %c0_i32_1 = arith.constant 0 : i32
    return %c0_i32, %c0_i32_0 : i32, i32
  }
  func.func @transform_9(%arg0: i32) -> (i32, i32) {
    %c0_i32 = arith.constant 0 : i32
    %c0_i32_0 = arith.constant 0 : i32
    %c0_i32_1 = arith.constant 0 : i32
    return %c0_i32, %c0_i32_0 : i32, i32
  }
  func.func @transform_10(%arg0: i32) -> (i32, i32) {
    %c0_i32 = arith.constant 0 : i32
    %c0_i32_0 = arith.constant 0 : i32
    return %arg0, %c0_i32 : i32, i32
  }
}

</mosaic_0001>

<llo_original>
// kernel: tpu_custom_call.1
$region0: #{tpu_custom_call.1}
  #allocation0 [shape = 'u32[]', space=smem, size = 0x4, offset = 0x4, fixed_abs, tag = 'smem constant byte address 0x4 - core index']
  #allocation1 [shape = 'u32[72,128]{1,0:T(1,128)}', space=vmem, size = 0x9000, scoped, tag = 'internal scratch']
  #allocation2 [shape = 'f32[24,8,4]{2,1,0:T(8,128)}', space=vmem, size = 0x18000, scoped, tag = 'scratch operand']
  #allocation3 [shape = 'f32[64,8,20]{2,1,0:T(8,128)}', space=vmem, size = 0x40000, scoped, tag = 'scratch operand']
  #allocation4 [shape = 'f32[64,8,16]{2,1,0:T(8,128)}', space=vmem, size = 0x40000, scoped, tag = 'scratch operand']
  #allocation5 [shape = 'f32[32,8,16]{2,1,0:T(8,128)}', space=vmem, size = 0x20000, scoped, tag = 'scratch operand']
  #allocation6 [shape = 'f32[24,8,80]{2,1,0:T(8,128)}', space=vmem, size = 0x18000, scoped, tag = 'scratch operand']
  #allocation7 [shape = 'f32[24,8,32]{2,1,0:T(8,128)}', space=vmem, size = 0x18000, scoped, tag = 'scratch operand']
  #allocation8 [shape = 'f32[8,384]{1,0:T(8,128)}', space=vmem, size = 0x3000, scoped, tag = 'scratch operand']
  %s0 = inlined_call_operand.vmem [shape: f32[48,8,4], index: 0, kind: input, shape index: {}]
  %s1 = inlined_call_operand.vmem [shape: f32[20,16], index: 1, kind: input, shape index: {}]
  %s2 = inlined_call_operand.vmem [shape: f32[1,16], index: 2, kind: input, shape index: {}]
  %s3 = inlined_call_operand.vmem [shape: f32[80,32], index: 3, kind: input, shape index: {}]
  %s4 = inlined_call_operand.vmem [shape: f32[1,32], index: 4, kind: input, shape index: {}]
  %s5 = inlined_call_operand.hbm [shape: f32[384,384], index: 5, kind: input, shape index: {}]
  %s6 = inlined_call_operand.hbm [shape: f32[384,384], index: 6, kind: input, shape index: {}]
  %s7 = inlined_call_operand.vmem [shape: f32[1,384], index: 7, kind: input, shape index: {}]
  %s8 = inlined_call_operand.vmem [shape: f32[384,128], index: 8, kind: input, shape index: {}]
  %s9 = inlined_call_operand.vmem [shape: f32[1,128], index: 9, kind: input, shape index: {}]
  %s10 = inlined_call_operand.hbm [shape: f32[8,128], index: 10, kind: output, shape index: {}]
  %s11 = sld [smem:[#allocation0]]
  $region58: #{tpu_custom_call.1} parent=0
    _
  %s13 = ssub.s32 1, %s11
  %s14 = scalar_select 0, %s13, %s11
  $region1: #{tpu_custom_call.1} parent=0
    #allocation9 [shape = 'u8[589824]{0}', space=vmem, size = 0x90000, scoped, tag = 'input window, operand 5, single buffered']
    #allocation10 [shape = 's32[1]{0}', space=sflag, size = 0x4, scoped, tag = 'scoped memory for tpu_custom_call.1']
    #allocation11 [shape = 's32[1]{0}', space=sflag, size = 0x4, scoped, tag = 'scoped memory for tpu_custom_call.1']
    #allocation12 [shape = 'u8[589824]{0}', space=vmem, size = 0x90000, scoped, tag = 'input window, operand 6, single buffered']
    #allocation13 [shape = 's32[1]{0}', space=sflag, size = 0x4, scoped, tag = 'scoped memory for tpu_custom_call.1']
    #allocation14 [shape = 'u8[4096]{0}', space=vmem, size = 0x1000, scoped, tag = 'output window, operand 0, single buffered']
    %15 = vsyncpa [#allocation10], 0
    %16 = vsyncpa [#allocation13], 0
    %17 = vsyncpa [#allocation11], 0
    // Predicated region
    $region2: #{tpu_custom_call.1} parent=1 // pred_check
      _
    $region3: #{tpu_custom_call.1} parent=1 // pred_check_branch
      %19 = sbr.rel (0) target = $region5
    $region4: #{tpu_custom_call.1} parent=1 // pred_region
      _
    $region5: #{tpu_custom_call.1} parent=1 // pred_fallthru
      _
    // Predicated region
    $region6: #{tpu_custom_call.1} parent=1 // pred_check
      _
    $region7: #{tpu_custom_call.1} parent=1 // pred_check_branch
      %21 = sbr.rel (0) target = $region9
    $region8: #{tpu_custom_call.1} parent=1 // pred_region
      _
    $region9: #{tpu_custom_call.1} parent=1 // pred_fallthru
      _
    // Predicated region
    $region10: #{tpu_custom_call.1} parent=1 // pred_check
      _
    $region11: #{tpu_custom_call.1} parent=1 // pred_check_branch
      %23 = sbr.rel (0) target = $region13
    $region12: #{tpu_custom_call.1} parent=1 // pred_region
      _
    $region13: #{tpu_custom_call.1} parent=1 // pred_fallthru
      _
    // Predicated region
    $region14: #{tpu_custom_call.1} parent=1 // pred_check
      _
    $region15: #{tpu_custom_call.1} parent=1 // pred_check_branch
      %25 = sbr.rel (0) target = $region17
    $region16: #{tpu_custom_call.1} parent=1 // pred_region
      _
    $region17: #{tpu_custom_call.1} parent=1 // pred_fallthru
      _
    // Predicated region
    $region18: #{tpu_custom_call.1} parent=1 // pred_check
      _
    $region19: #{tpu_custom_call.1} parent=1 // pred_check_branch
      %27 = sbr.rel (0) target = $region21
    $region20: #{tpu_custom_call.1} parent=1 // pred_region
      _
    $region21: #{tpu_custom_call.1} parent=1 // pred_fallthru
      _
    // Predicated region
    $region22: #{tpu_custom_call.1} parent=1 // pred_check
      _
    $region23: #{tpu_custom_call.1} parent=1 // pred_check_branch
      %29 = sbr.rel (0) target = $region25
    $region24: #{tpu_custom_call.1} parent=1 // pred_region
      %31 = vsyncadd [#allocation10], 0
      %s32 = sshll.u32 %s5, 4
      %s33 = int_to_ptr.hbm [resolvable:$true] %s32
      %s34 = sshll.u32 [#allocation9], 4
      %s35 = int_to_ptr.vmem [resolvable:$true] %s34
      %40 = dma.hbm_to_vmem [thread:$0]  %s33, 18432, %s35, [#allocation10], 384, 384, 24
    $region25: #{tpu_custom_call.1} parent=1 // pred_fallthru
      _
    // Predicated region
    $region26: #{tpu_custom_call.1} parent=1 // pred_check
      _
    $region27: #{tpu_custom_call.1} parent=1 // pred_check_branch
      %42 = sbr.rel (0) target = $region29
    $region28: #{tpu_custom_call.1} parent=1 // pred_region
      %44 = vsyncadd [#allocation13], 0
      %s45 = sshll.u32 %s6, 4
      %s46 = int_to_ptr.hbm [resolvable:$true] %s45
      %s47 = sshll.u32 [#allocation12], 4
      %s48 = int_to_ptr.vmem [resolvable:$true] %s47
      %53 = dma.hbm_to_vmem [thread:$0]  %s46, 18432, %s48, [#allocation13], 384, 384, 24
    $region29: #{tpu_custom_call.1} parent=1 // pred_fallthru
      _
    // Predicated region
    $region30: #{tpu_custom_call.1} parent=1 // pred_check
      _
    $region31: #{tpu_custom_call.1} parent=1 // pred_check_branch
      %55 = sbr.rel (0) target = $region33
    $region32: #{tpu_custom_call.1} parent=1 // pred_region
      _
    $region33: #{tpu_custom_call.1} parent=1 // pred_fallthru
      _
    // Predicated region
    $region34: #{tpu_custom_call.1} parent=1 // pred_check
      _
    $region35: #{tpu_custom_call.1} parent=1 // pred_check_branch
      %57 = sbr.rel (0) target = $region37
    $region36: #{tpu_custom_call.1} parent=1 // pred_region
      _
    $region37: #{tpu_custom_call.1} parent=1 // pred_fallthru
      _
    // Predicated region
    $region38: #{tpu_custom_call.1} parent=1 // pred_check
      _
    $region39: #{tpu_custom_call.1} parent=1 // pred_check_branch
      %59 = sbr.rel (0) target = $region41
    $region40: #{tpu_custom_call.1} parent=1 // pred_region
      _
    $region41: #{tpu_custom_call.1} parent=1 // pred_fallthru
      _
    // Predicated region
    $region42: #{tpu_custom_call.1} parent=1 // pred_check
      _
    $region43: #{tpu_custom_call.1} parent=1 // pred_check_branch
      %61 = sbr.rel (0) target = $region45
    $region44: #{tpu_custom_call.1} parent=1 // pred_region
      %63 = dma.done [#allocation10], 18432
    $region45: #{tpu_custom_call.1} parent=1 // pred_fallthru
      _
    // Predicated region
    $region46: #{tpu_custom_call.1} parent=1 // pred_check
      _
    $region47: #{tpu_custom_call.1} parent=1 // pred_check_branch
      %65 = sbr.rel (0) target = $region49
    $region48: #{tpu_custom_call.1} parent=1 // pred_region
      %67 = dma.done [#allocation13], 18432
    $region49: #{tpu_custom_call.1} parent=1 // pred_fallthru
      _
    %v68 = vld [vmem:[%s0] sm:$0xff]
    %v69 = vld [vmem:[%s0 + $0x8] sm:$0xff]
    %v70 = vld [vmem:[%s0 + $0x10] sm:$0xff]
    %v71 = vld [vmem:[%s0 + $0x18] sm:$0xff]
    %v72 = vld [vmem:[%s0 + $0x20] sm:$0xff]
    %v73 = vld [vmem:[%s0 + $0x28] sm:$0xff]
    %v74 = vld [vmem:[%s0 + $0x30] sm:$0xff]
    %v75 = vld [vmem:[%s0 + $0x38] sm:$0xff]
    %v76 = vld [vmem:[%s0 + $0x40] sm:$0xff]
    %v77 = vld [vmem:[%s0 + $0x48] sm:$0xff]
    %v78 = vld [vmem:[%s0 + $0x50] sm:$0xff]
    %v79 = vld [vmem:[%s0 + $0x58] sm:$0xff]
    %v80 = vld [vmem:[%s0 + $0x60] sm:$0xff]
    %v81 = vld [vmem:[%s0 + $0x68] sm:$0xff]
    %v82 = vld [vmem:[%s0 + $0x70] sm:$0xff]
    %v83 = vld [vmem:[%s0 + $0x78] sm:$0xff]
    %v84 = vld [vmem:[%s0 + $0x80] sm:$0xff]
    %v85 = vld [vmem:[%s0 + $0x88] sm:$0xff]
    %v86 = vld [vmem:[%s0 + $0x90] sm:$0xff]
    %v87 = vld [vmem:[%s0 + $0x98] sm:$0xff]
    %v88 = vld [vmem:[%s0 + $0xa0] sm:$0xff]
    %v89 = vld [vmem:[%s0 + $0xa8] sm:$0xff]
    %v90 = vld [vmem:[%s0 + $0xb0] sm:$0xff]
    %v91 = vld [vmem:[%s0 + $0xb8] sm:$0xff]
    %v92 = vld [vmem:[%s0 + $0xc0] sm:$0xff]
    %v93 = vld [vmem:[%s0 + $0xc8] sm:$0xff]
    %v94 = vld [vmem:[%s0 + $0xd0] sm:$0xff]
    %v95 = vld [vmem:[%s0 + $0xd8] sm:$0xff]
    %v96 = vld [vmem:[%s0 + $0xe0] sm:$0xff]
    %v97 = vld [vmem:[%s0 + $0xe8] sm:$0xff]
    %v98 = vld [vmem:[%s0 + $0xf0] sm:$0xff]
    %v99 = vld [vmem:[%s0 + $0xf8] sm:$0xff]
    %v100 = vld [vmem:[%s0 + $0x100] sm:$0xff]
    %v101 = vld [vmem:[%s0 + $0x108] sm:$0xff]
    %v102 = vld [vmem:[%s0 + $0x110] sm:$0xff]
    %v103 = vld [vmem:[%s0 + $0x118] sm:$0xff]
    %v104 = vld [vmem:[%s0 + $0x120] sm:$0xff]
    %v105 = vld [vmem:[%s0 + $0x128] sm:$0xff]
    %v106 = vld [vmem:[%s0 + $0x130] sm:$0xff]
    %v107 = vld [vmem:[%s0 + $0x138] sm:$0xff]
    %v108 = vld [vmem:[%s0 + $0x140] sm:$0xff]
    %v109 = vld [vmem:[%s0 + $0x148] sm:$0xff]
    %v110 = vld [vmem:[%s0 + $0x150] sm:$0xff]
    %v111 = vld [vmem:[%s0 + $0x158] sm:$0xff]
    %vm112 = vcmask 31744
    %113 = vst.msk [vmem:[#allocation3] sm:$0xff] %vm112, %v68
    %114 = vst.msk [vmem:[#allocation3 + $0x8] sm:$0xff] %vm112, %v69
    %115 = vst.msk [vmem:[#allocation3 + $0x10] sm:$0xff] %vm112, %v70
    %116 = vst.msk [vmem:[#allocation3 + $0x18] sm:$0xff] %vm112, %v71
    %117 = vst.msk [vmem:[#allocation3 + $0x20] sm:$0xff] %vm112, %v72
    %118 = vst.msk [vmem:[#allocation3 + $0x28] sm:$0xff] %vm112, %v73
    %119 = vst.msk [vmem:[#allocation3 + $0x30] sm:$0xff] %vm112, %v74
    %120 = vst.msk [vmem:[#allocation3 + $0x38] sm:$0xff] %vm112, %v75
    %121 = vst.msk [vmem:[#allocation3 + $0x40] sm:$0xff] %vm112, %v76
    %122 = vst.msk [vmem:[#allocation3 + $0x48] sm:$0xff] %vm112, %v77
    %123 = vst.msk [vmem:[#allocation3 + $0x50] sm:$0xff] %vm112, %v78
    %124 = vst.msk [vmem:[#allocation3 + $0x58] sm:$0xff] %vm112, %v79
    %125 = vst.msk [vmem:[#allocation3 + $0x60] sm:$0xff] %vm112, %v80
    %126 = vst.msk [vmem:[#allocation3 + $0x68] sm:$0xff] %vm112, %v81
    %127 = vst.msk [vmem:[#allocation3 + $0x70] sm:$0xff] %vm112, %v82
    %128 = vst.msk [vmem:[#allocation3 + $0x78] sm:$0xff] %vm112, %v83
    %129 = vst.msk [vmem:[#allocation3 + $0x80] sm:$0xff] %vm112, %v84
    %130 = vst.msk [vmem:[#allocation3 + $0x88] sm:$0xff] %vm112, %v85
    %131 = vst.msk [vmem:[#allocation3 + $0x90] sm:$0xff] %vm112, %v86
    %132 = vst.msk [vmem:[#allocation3 + $0x98] sm:$0xff] %vm112, %v87
    %133 = vst.msk [vmem:[#allocation3 + $0xa0] sm:$0xff] %vm112, %v88
    %134 = vst.msk [vmem:[#allocation3 + $0xa8] sm:$0xff] %vm112, %v89
    %135 = vst.msk [vmem:[#allocation3 + $0xb0] sm:$0xff] %vm112, %v90
    %136 = vst.msk [vmem:[#allocation3 + $0xb8] sm:$0xff] %vm112, %v91
    %137 = vst.msk [vmem:[#allocation3 + $0xc0] sm:$0xff] %vm112, %v92
    %138 = vst.msk [vmem:[#allocation3 + $0xc8] sm:$0xff] %vm112, %v93
    %139 = vst.msk [vmem:[#allocation3 + $0xd0] sm:$0xff] %vm112, %v94
    %140 = vst.msk [vmem:[#allocation3 + $0xd8] sm:$0xff] %vm112, %v95
    %141 = vst.msk [vmem:[#allocation3 + $0xe0] sm:$0xff] %vm112, %v96
    %142 = vst.msk [vmem:[#allocation3 + $0xe8] sm:$0xff] %vm112, %v97
    %143 = vst.msk [vmem:[#allocation3 + $0xf0] sm:$0xff] %vm112, %v98
    %144 = vst.msk [vmem:[#allocation3 + $0xf8] sm:$0xff] %vm112, %v99
    %145 = vst.msk [vmem:[#allocation3 + $0x100] sm:$0xff] %vm112, %v100
    %146 = vst.msk [vmem:[#allocation3 + $0x108] sm:$0xff] %vm112, %v101
    %147 = vst.msk [vmem:[#allocation3 + $0x110] sm:$0xff] %vm112, %v102
    %148 = vst.msk [vmem:[#allocation3 + $0x118] sm:$0xff] %vm112, %v103
    %149 = vst.msk [vmem:[#allocation3 + $0x120] sm:$0xff] %vm112, %v104
    %150 = vst.msk [vmem:[#allocation3 + $0x128] sm:$0xff] %vm112, %v105
    %151 = vst.msk [vmem:[#allocation3 + $0x130] sm:$0xff] %vm112, %v106
    %152 = vst.msk [vmem:[#allocation3 + $0x138] sm:$0xff] %vm112, %v107
    %153 = vst.msk [vmem:[#allocation3 + $0x140] sm:$0xff] %vm112, %v108
    %154 = vst.msk [vmem:[#allocation3 + $0x148] sm:$0xff] %vm112, %v109
    %155 = vst.msk [vmem:[#allocation3 + $0x150] sm:$0xff] %vm112, %v110
    %156 = vst.msk [vmem:[#allocation3 + $0x158] sm:$0xff] %vm112, %v111
    %s157 = scalar_lea.vmem %s0, 8
    %v158 = vld [vmem:[%s157] sm:$0xff]
    %v159 = vld [vmem:[%s157 + $0x8] sm:$0xff]
    %v160 = vld [vmem:[%s157 + $0x10] sm:$0xff]
    %v161 = vld [vmem:[%s157 + $0x18] sm:$0xff]
    %v162 = vld [vmem:[%s157 + $0x20] sm:$0xff]
    %v163 = vld [vmem:[%s157 + $0x28] sm:$0xff]
    %v164 = vld [vmem:[%s157 + $0x30] sm:$0xff]
    %v165 = vld [vmem:[%s157 + $0x38] sm:$0xff]
    %v166 = vld [vmem:[%s157 + $0x40] sm:$0xff]
    %v167 = vld [vmem:[%s157 + $0x48] sm:$0xff]
    %v168 = vld [vmem:[%s157 + $0x50] sm:$0xff]
    %v169 = vld [vmem:[%s157 + $0x58] sm:$0xff]
    %v170 = vld [vmem:[%s157 + $0x60] sm:$0xff]
    %v171 = vld [vmem:[%s157 + $0x68] sm:$0xff]
    %v172 = vld [vmem:[%s157 + $0x70] sm:$0xff]
    %v173 = vld [vmem:[%s157 + $0x78] sm:$0xff]
    %v174 = vld [vmem:[%s157 + $0x80] sm:$0xff]
    %v175 = vld [vmem:[%s157 + $0x88] sm:$0xff]
    %v176 = vld [vmem:[%s157 + $0x90] sm:$0xff]
    %v177 = vld [vmem:[%s157 + $0x98] sm:$0xff]
    %v178 = vld [vmem:[%s157 + $0xa0] sm:$0xff]
    %v179 = vld [vmem:[%s157 + $0xa8] sm:$0xff]
    %v180 = vld [vmem:[%s157 + $0xb0] sm:$0xff]
    %v181 = vld [vmem:[%s157 + $0xb8] sm:$0xff]
    %v182 = vld [vmem:[%s157 + $0xc0] sm:$0xff]
    %v183 = vld [vmem:[%s157 + $0xc8] sm:$0xff]
    %v184 = vld [vmem:[%s157 + $0xd0] sm:$0xff]
    %v185 = vld [vmem:[%s157 + $0xd8] sm:$0xff]
    %v186 = vld [vmem:[%s157 + $0xe0] sm:$0xff]
    %v187 = vld [vmem:[%s157 + $0xe8] sm:$0xff]
    %v188 = vld [vmem:[%s157 + $0xf0] sm:$0xff]
    %v189 = vld [vmem:[%s157 + $0xf8] sm:$0xff]
    %v190 = vld [vmem:[%s157 + $0x100] sm:$0xff]
    %v191 = vld [vmem:[%s157 + $0x108] sm:$0xff]
    %v192 = vld [vmem:[%s157 + $0x110] sm:$0xff]
    %v193 = vld [vmem:[%s157 + $0x118] sm:$0xff]
    %v194 = vld [vmem:[%s157 + $0x120] sm:$0xff]
    %v195 = vld [vmem:[%s157 + $0x128] sm:$0xff]
    %v196 = vld [vmem:[%s157 + $0x130] sm:$0xff]
    %v197 = vld [vmem:[%s157 + $0x138] sm:$0xff]
    %v198 = vld [vmem:[%s157 + $0x140] sm:$0xff]
    %v199 = vld [vmem:[%s157 + $0x148] sm:$0xff]
    %v200 = vld [vmem:[%s157 + $0x150] sm:$0xff]
    %v201 = vld [vmem:[%s157 + $0x158] sm:$0xff]
    %246 = vrot.lane.b32.xlu0 %v158, 4
    %v247 = vpop.permute.xlu0 %246
    %248 = vrot.lane.b32.xlu0 %v159, 4
    %v249 = vpop.permute.xlu0 %248
    %250 = vrot.lane.b32.xlu0 %v160, 4
    %v251 = vpop.permute.xlu0 %250
    %252 = vrot.lane.b32.xlu0 %v161, 4
    %v253 = vpop.permute.xlu0 %252
    %254 = vrot.lane.b32.xlu0 %v162, 4
    %v255 = vpop.permute.xlu0 %254
    %256 = vrot.lane.b32.xlu0 %v163, 4
    %v257 = vpop.permute.xlu0 %256
    %258 = vrot.lane.b32.xlu0 %v164, 4
    %v259 = vpop.permute.xlu0 %258
    %260 = vrot.lane.b32.xlu0 %v165, 4
    %v261 = vpop.permute.xlu0 %260
    %262 = vrot.lane.b32.xlu0 %v166, 4
    %v263 = vpop.permute.xlu0 %262
    %264 = vrot.lane.b32.xlu0 %v167, 4
    %v265 = vpop.permute.xlu0 %264
    %266 = vrot.lane.b32.xlu0 %v168, 4
    %v267 = vpop.permute.xlu0 %266
    %268 = vrot.lane.b32.xlu0 %v169, 4
    %v269 = vpop.permute.xlu0 %268
    %270 = vrot.lane.b32.xlu0 %v170, 4
    %v271 = vpop.permute.xlu0 %270
    %272 = vrot.lane.b32.xlu0 %v171, 4
    %v273 = vpop.permute.xlu0 %272
    %274 = vrot.lane.b32.xlu0 %v172, 4
    %v275 = vpop.permute.xlu0 %274
    %276 = vrot.lane.b32.xlu0 %v173, 4
    %v277 = vpop.permute.xlu0 %276
    %278 = vrot.lane.b32.xlu0 %v174, 4
    %v279 = vpop.permute.xlu0 %278
    %280 = vrot.lane.b32.xlu0 %v175, 4
    %v281 = vpop.permute.xlu0 %280
    %282 = vrot.lane.b32.xlu0 %v176, 4
    %v283 = vpop.permute.xlu0 %282
    %284 = vrot.lane.b32.xlu0 %v177, 4
    %v285 = vpop.permute.xlu0 %284
    %286 = vrot.lane.b32.xlu0 %v178, 4
    %v287 = vpop.permute.xlu0 %286
    %288 = vrot.lane.b32.xlu0 %v179, 4
    %v289 = vpop.permute.xlu0 %288
    %290 = vrot.lane.b32.xlu0 %v180, 4
    %v291 = vpop.permute.xlu0 %290
    %292 = vrot.lane.b32.xlu0 %v181, 4
    %v293 = vpop.permute.xlu0 %292
    %294 = vrot.lane.b32.xlu0 %v182, 4
    %v295 = vpop.permute.xlu0 %294
    %296 = vrot.lane.b32.xlu0 %v183, 4
    %v297 = vpop.permute.xlu0 %296
    %298 = vrot.lane.b32.xlu0 %v184, 4
    %v299 = vpop.permute.xlu0 %298
    %300 = vrot.lane.b32.xlu0 %v185, 4
    %v301 = vpop.permute.xlu0 %300
    %302 = vrot.lane.b32.xlu0 %v186, 4
    %v303 = vpop.permute.xlu0 %302
    %304 = vrot.lane.b32.xlu0 %v187, 4
    %v305 = vpop.permute.xlu0 %304
    %306 = vrot.lane.b32.xlu0 %v188, 4
    %v307 = vpop.permute.xlu0 %306
    %308 = vrot.lane.b32.xlu0 %v189, 4
    %v309 = vpop.permute.xlu0 %308
    %310 = vrot.lane.b32.xlu0 %v190, 4
    %v311 = vpop.permute.xlu0 %310
    %312 = vrot.lane.b32.xlu0 %v191, 4
    %v313 = vpop.permute.xlu0 %312
    %314 = vrot.lane.b32.xlu0 %v192, 4
    %v315 = vpop.permute.xlu0 %314
    %316 = vrot.lane.b32.xlu0 %v193, 4
    %v317 = vpop.permute.xlu0 %316
    %318 = vrot.lane.b32.xlu0 %v194, 4
    %v319 = vpop.permute.xlu0 %318
    %320 = vrot.lane.b32.xlu0 %v195, 4
    %v321 = vpop.permute.xlu0 %320
    %322 = vrot.lane.b32.xlu0 %v196, 4
    %v323 = vpop.permute.xlu0 %322
    %324 = vrot.lane.b32.xlu0 %v197, 4
    %v325 = vpop.permute.xlu0 %324
    %326 = vrot.lane.b32.xlu0 %v198, 4
    %v327 = vpop.permute.xlu0 %326
    %328 = vrot.lane.b32.xlu0 %v199, 4
    %v329 = vpop.permute.xlu0 %328
    %330 = vrot.lane.b32.xlu0 %v200, 4
    %v331 = vpop.permute.xlu0 %330
    %332 = vrot.lane.b32.xlu0 %v201, 4
    %v333 = vpop.permute.xlu0 %332
    %vm378 = vcmask 64544
    %379 = vst.msk [vmem:[#allocation3] sm:$0xff] %vm378, %v247
    %380 = vst.msk [vmem:[#allocation3 + $0x8] sm:$0xff] %vm378, %v249
    %381 = vst.msk [vmem:[#allocation3 + $0x10] sm:$0xff] %vm378, %v251
    %382 = vst.msk [vmem:[#allocation3 + $0x18] sm:$0xff] %vm378, %v253
    %383 = vst.msk [vmem:[#allocation3 + $0x20] sm:$0xff] %vm378, %v255
    %384 = vst.msk [vmem:[#allocation3 + $0x28] sm:$0xff] %vm378, %v257
    %385 = vst.msk [vmem:[#allocation3 + $0x30] sm:$0xff] %vm378, %v259
    %386 = vst.msk [vmem:[#allocation3 + $0x38] sm:$0xff] %vm378, %v261
    %387 = vst.msk [vmem:[#allocation3 + $0x40] sm:$0xff] %vm378, %v263
    %388 = vst.msk [vmem:[#allocation3 + $0x48] sm:$0xff] %vm378, %v265
    %389 = vst.msk [vmem:[#allocation3 + $0x50] sm:$0xff] %vm378, %v267
    %390 = vst.msk [vmem:[#allocation3 + $0x58] sm:$0xff] %vm378, %v269
    %391 = vst.msk [vmem:[#allocation3 + $0x60] sm:$0xff] %vm378, %v271
    %392 = vst.msk [vmem:[#allocation3 + $0x68] sm:$0xff] %vm378, %v273
    %393 = vst.msk [vmem:[#allocation3 + $0x70] sm:$0xff] %vm378, %v275
    %394 = vst.msk [vmem:[#allocation3 + $0x78] sm:$0xff] %vm378, %v277
    %395 = vst.msk [vmem:[#allocation3 + $0x80] sm:$0xff] %vm378, %v279
    %396 = vst.msk [vmem:[#allocation3 + $0x88] sm:$0xff] %vm378, %v281
    %397 = vst.msk [vmem:[#allocation3 + $0x90] sm:$0xff] %vm378, %v283
    %398 = vst.msk [vmem:[#allocation3 + $0x98] sm:$0xff] %vm378, %v285
    %399 = vst.msk [vmem:[#allocation3 + $0xa0] sm:$0xff] %vm378, %v287
    %400 = vst.msk [vmem:[#allocation3 + $0xa8] sm:$0xff] %vm378, %v289
    %401 = vst.msk [vmem:[#allocation3 + $0xb0] sm:$0xff] %vm378, %v291
    %402 = vst.msk [vmem:[#allocation3 + $0xb8] sm:$0xff] %vm378, %v293
    %403 = vst.msk [vmem:[#allocation3 + $0xc0] sm:$0xff] %vm378, %v295
    %404 = vst.msk [vmem:[#allocation3 + $0xc8] sm:$0xff] %vm378, %v297
    %405 = vst.msk [vmem:[#allocation3 + $0xd0] sm:$0xff] %vm378, %v299
    %406 = vst.msk [vmem:[#allocation3 + $0xd8] sm:$0xff] %vm378, %v301
    %407 = vst.msk [vmem:[#allocation3 + $0xe0] sm:$0xff] %vm378, %v303
    %408 = vst.msk [vmem:[#allocation3 + $0xe8] sm:$0xff] %vm378, %v305
    %409 = vst.msk [vmem:[#allocation3 + $0xf0] sm:$0xff] %vm378, %v307
    %410 = vst.msk [vmem:[#allocation3 + $0xf8] sm:$0xff] %vm378, %v309
    %411 = vst.msk [vmem:[#allocation3 + $0x100] sm:$0xff] %vm378, %v311
    %412 = vst.msk [vmem:[#allocation3 + $0x108] sm:$0xff] %vm378, %v313
    %413 = vst.msk [vmem:[#allocation3 + $0x110] sm:$0xff] %vm378, %v315
    %414 = vst.msk [vmem:[#allocation3 + $0x118] sm:$0xff] %vm378, %v317
    %415 = vst.msk [vmem:[#allocation3 + $0x120] sm:$0xff] %vm378, %v319
    %416 = vst.msk [vmem:[#allocation3 + $0x128] sm:$0xff] %vm378, %v321
    %417 = vst.msk [vmem:[#allocation3 + $0x130] sm:$0xff] %vm378, %v323
    %418 = vst.msk [vmem:[#allocation3 + $0x138] sm:$0xff] %vm378, %v325
    %419 = vst.msk [vmem:[#allocation3 + $0x140] sm:$0xff] %vm378, %v327
    %420 = vst.msk [vmem:[#allocation3 + $0x148] sm:$0xff] %vm378, %v329
    %421 = vst.msk [vmem:[#allocation3 + $0x150] sm:$0xff] %vm378, %v331
    %422 = vst.msk [vmem:[#allocation3 + $0x158] sm:$0xff] %vm378, %v333
    %s423 = scalar_lea.vmem %s0, 16
    %v424 = vld [vmem:[%s423] sm:$0xff]
    %v425 = vld [vmem:[%s423 + $0x8] sm:$0xff]
    %v426 = vld [vmem:[%s423 + $0x10] sm:$0xff]
    %v427 = vld [vmem:[%s423 + $0x18] sm:$0xff]
    %v428 = vld [vmem:[%s423 + $0x20] sm:$0xff]
    %v429 = vld [vmem:[%s423 + $0x28] sm:$0xff]
    %v430 = vld [vmem:[%s423 + $0x30] sm:$0xff]
    %v431 = vld [vmem:[%s423 + $0x38] sm:$0xff]
    %v432 = vld [vmem:[%s423 + $0x40] sm:$0xff]
    %v433 = vld [vmem:[%s423 + $0x48] sm:$0xff]
    %v434 = vld [vmem:[%s423 + $0x50] sm:$0xff]
    %v435 = vld [vmem:[%s423 + $0x58] sm:$0xff]
    %v436 = vld [vmem:[%s423 + $0x60] sm:$0xff]
    %v437 = vld [vmem:[%s423 + $0x68] sm:$0xff]
    %v438 = vld [vmem:[%s423 + $0x70] sm:$0xff]
    %v439 = vld [vmem:[%s423 + $0x78] sm:$0xff]
    %v440 = vld [vmem:[%s423 + $0x80] sm:$0xff]
    %v441 = vld [vmem:[%s423 + $0x88] sm:$0xff]
    %v442 = vld [vmem:[%s423 + $0x90] sm:$0xff]
    %v443 = vld [vmem:[%s423 + $0x98] sm:$0xff]
    %v444 = vld [vmem:[%s423 + $0xa0] sm:$0xff]
    %v445 = vld [vmem:[%s423 + $0xa8] sm:$0xff]
    %v446 = vld [vmem:[%s423 + $0xb0] sm:$0xff]
    %v447 = vld [vmem:[%s423 + $0xb8] sm:$0xff]
    %v448 = vld [vmem:[%s423 + $0xc0] sm:$0xff]
    %v449 = vld [vmem:[%s423 + $0xc8] sm:$0xff]
    %v450 = vld [vmem:[%s423 + $0xd0] sm:$0xff]
    %v451 = vld [vmem:[%s423 + $0xd8] sm:$0xff]
    %v452 = vld [vmem:[%s423 + $0xe0] sm:$0xff]
    %v453 = vld [vmem:[%s423 + $0xe8] sm:$0xff]
    %v454 = vld [vmem:[%s423 + $0xf0] sm:$0xff]
    %v455 = vld [vmem:[%s423 + $0xf8] sm:$0xff]
    %v456 = vld [vmem:[%s423 + $0x100] sm:$0xff]
    %v457 = vld [vmem:[%s423 + $0x108] sm:$0xff]
    %v458 = vld [vmem:[%s423 + $0x110] sm:$0xff]
    %v459 = vld [vmem:[%s423 + $0x118] sm:$0xff]
    %v460 = vld [vmem:[%s423 + $0x120] sm:$0xff]
    %v461 = vld [vmem:[%s423 + $0x128] sm:$0xff]
    %v462 = vld [vmem:[%s423 + $0x130] sm:$0xff]
    %v463 = vld [vmem:[%s423 + $0x138] sm:$0xff]
    %v464 = vld [vmem:[%s423 + $0x140] sm:$0xff]
    %v465 = vld [vmem:[%s423 + $0x148] sm:$0xff]
    %v466 = vld [vmem:[%s423 + $0x150] sm:$0xff]
    %v467 = vld [vmem:[%s423 + $0x158] sm:$0xff]
    %512 = vrot.lane.b32.xlu0 %v424, 8
    %v513 = vpop.permute.xlu0 %512
    %514 = vrot.lane.b32.xlu0 %v425, 8
    %v515 = vpop.permute.xlu0 %514
    %516 = vrot.lane.b32.xlu0 %v426, 8
    %v517 = vpop.permute.xlu0 %516
    %518 = vrot.lane.b32.xlu0 %v427, 8
    %v519 = vpop.permute.xlu0 %518
    %520 = vrot.lane.b32.xlu0 %v428, 8
    %v521 = vpop.permute.xlu0 %520
    %522 = vrot.lane.b32.xlu0 %v429, 8
    %v523 = vpop.permute.xlu0 %522
    %524 = vrot.lane.b32.xlu0 %v430, 8
    %v525 = vpop.permute.xlu0 %524
    %526 = vrot.lane.b32.xlu0 %v431, 8
    %v527 = vpop.permute.xlu0 %526
    %528 = vrot.lane.b32.xlu0 %v432, 8
    %v529 = vpop.permute.xlu0 %528
    %530 = vrot.lane.b32.xlu0 %v433, 8
    %v531 = vpop.permute.xlu0 %530
    %532 = vrot.lane.b32.xlu0 %v434, 8
    %v533 = vpop.permute.xlu0 %532
    %534 = vrot.lane.b32.xlu0 %v435, 8
    %v535 = vpop.permute.xlu0 %534
    %536 = vrot.lane.b32.xlu0 %v436, 8
    %v537 = vpop.permute.xlu0 %536
    %538 = vrot.lane.b32.xlu0 %v437, 8
    %v539 = vpop.permute.xlu0 %538
    %540 = vrot.lane.b32.xlu0 %v438, 8
    %v541 = vpop.permute.xlu0 %540
    %542 = vrot.lane.b32.xlu0 %v439, 8
    %v543 = vpop.permute.xlu0 %542
    %544 = vrot.lane.b32.xlu0 %v440, 8
    %v545 = vpop.permute.xlu0 %544
    %546 = vrot.lane.b32.xlu0 %v441, 8
    %v547 = vpop.permute.xlu0 %546
    %548 = vrot.lane.b32.xlu0 %v442, 8
    %v549 = vpop.permute.xlu0 %548
    %550 = vrot.lane.b32.xlu0 %v443, 8
    %v551 = vpop.permute.xlu0 %550
    %552 = vrot.lane.b32.xlu0 %v444, 8
    %v553 = vpop.permute.xlu0 %552
    %554 = vrot.lane.b32.xlu0 %v445, 8
    %v555 = vpop.permute.xlu0 %554
    %556 = vrot.lane.b32.xlu0 %v446, 8
    %v557 = vpop.permute.xlu0 %556
    %558 = vrot.lane.b32.xlu0 %v447, 8
    %v559 = vpop.permute.xlu0 %558
    %560 = vrot.lane.b32.xlu0 %v448, 8
    %v561 = vpop.permute.xlu0 %560
    %562 = vrot.lane.b32.xlu0 %v449, 8
    %v563 = vpop.permute.xlu0 %562
    %564 = vrot.lane.b32.xlu0 %v450, 8
    %v565 = vpop.permute.xlu0 %564
    %566 = vrot.lane.b32.xlu0 %v451, 8
    %v567 = vpop.permute.xlu0 %566
    %568 = vrot.lane.b32.xlu0 %v452, 8
    %v569 = vpop.permute.xlu0 %568
    %570 = vrot.lane.b32.xlu0 %v453, 8
    %v571 = vpop.permute.xlu0 %570
    %572 = vrot.lane.b32.xlu0 %v454, 8
    %v573 = vpop.permute.xlu0 %572
    %574 = vrot.lane.b32.xlu0 %v455, 8
    %v575 = vpop.permute.xlu0 %574
    %576 = vrot.lane.b32.xlu0 %v456, 8
    %v577 = vpop.permute.xlu0 %576
    %578 = vrot.lane.b32.xlu0 %v457, 8
    %v579 = vpop.permute.xlu0 %578
    %580 = vrot.lane.b32.xlu0 %v458, 8
    %v581 = vpop.permute.xlu0 %580
    %582 = vrot.lane.b32.xlu0 %v459, 8
    %v583 = vpop.permute.xlu0 %582
    %584 = vrot.lane.b32.xlu0 %v460, 8
    %v585 = vpop.permute.xlu0 %584
    %586 = vrot.lane.b32.xlu0 %v461, 8
    %v587 = vpop.permute.xlu0 %586
    %588 = vrot.lane.b32.xlu0 %v462, 8
    %v589 = vpop.permute.xlu0 %588
    %590 = vrot.lane.b32.xlu0 %v463, 8
    %v591 = vpop.permute.xlu0 %590
    %592 = vrot.lane.b32.xlu0 %v464, 8
    %v593 = vpop.permute.xlu0 %592
    %594 = vrot.lane.b32.xlu0 %v465, 8
    %v595 = vpop.permute.xlu0 %594
    %596 = vrot.lane.b32.xlu0 %v466, 8
    %v597 = vpop.permute.xlu0 %596
    %598 = vrot.lane.b32.xlu0 %v467, 8
    %v599 = vpop.permute.xlu0 %598
    %vm644 = vcmask 97344
    %645 = vst.msk [vmem:[#allocation3] sm:$0xff] %vm644, %v513
    %646 = vst.msk [vmem:[#allocation3 + $0x8] sm:$0xff] %vm644, %v515
    %647 = vst.msk [vmem:[#allocation3 + $0x10] sm:$0xff] %vm644, %v517
    %648 = vst.msk [vmem:[#allocation3 + $0x18] sm:$0xff] %vm644, %v519
    %649 = vst.msk [vmem:[#allocation3 + $0x20] sm:$0xff] %vm644, %v521
    %650 = vst.msk [vmem:[#allocation3 + $0x28] sm:$0xff] %vm644, %v523
    %651 = vst.msk [vmem:[#allocation3 + $0x30] sm:$0xff] %vm644, %v525
    %652 = vst.msk [vmem:[#allocation3 + $0x38] sm:$0xff] %vm644, %v527
    %653 = vst.msk [vmem:[#allocation3 + $0x40] sm:$0xff] %vm644, %v529
    %654 = vst.msk [vmem:[#allocation3 + $0x48] sm:$0xff] %vm644, %v531
    %655 = vst.msk [vmem:[#allocation3 + $0x50] sm:$0xff] %vm644, %v533
    %656 = vst.msk [vmem:[#allocation3 + $0x58] sm:$0xff] %vm644, %v535
    %657 = vst.msk [vmem:[#allocation3 + $0x60] sm:$0xff] %vm644, %v537
    %658 = vst.msk [vmem:[#allocation3 + $0x68] sm:$0xff] %vm644, %v539
    %659 = vst.msk [vmem:[#allocation3 + $0x70] sm:$0xff] %vm644, %v541
    %660 = vst.msk [vmem:[#allocation3 + $0x78] sm:$0xff] %vm644, %v543
    %661 = vst.msk [vmem:[#allocation3 + $0x80] sm:$0xff] %vm644, %v545
    %662 = vst.msk [vmem:[#allocation3 + $0x88] sm:$0xff] %vm644, %v547
    %663 = vst.msk [vmem:[#allocation3 + $0x90] sm:$0xff] %vm644, %v549
    %664 = vst.msk [vmem:[#allocation3 + $0x98] sm:$0xff] %vm644, %v551
    %665 = vst.msk [vmem:[#allocation3 + $0xa0] sm:$0xff] %vm644, %v553
    %666 = vst.msk [vmem:[#allocation3 + $0xa8] sm:$0xff] %vm644, %v555
    %667 = vst.msk [vmem:[#allocation3 + $0xb0] sm:$0xff] %vm644, %v557
    %668 = vst.msk [vmem:[#allocation3 + $0xb8] sm:$0xff] %vm644, %v559
    %669 = vst.msk [vmem:[#allocation3 + $0xc0] sm:$0xff] %vm644, %v561
    %670 = vst.msk [vmem:[#allocation3 + $0xc8] sm:$0xff] %vm644, %v563
    %671 = vst.msk [vmem:[#allocation3 + $0xd0] sm:$0xff] %vm644, %v565
    %672 = vst.msk [vmem:[#allocation3 + $0xd8] sm:$0xff] %vm644, %v567
    %673 = vst.msk [vmem:[#allocation3 + $0xe0] sm:$0xff] %vm644, %v569
    %674 = vst.msk [vmem:[#allocation3 + $0xe8] sm:$0xff] %vm644, %v571
    %675 = vst.msk [vmem:[#allocation3 + $0xf0] sm:$0xff] %vm644, %v573
    %676 = vst.msk [vmem:[#allocation3 + $0xf8] sm:$0xff] %vm644, %v575
    %677 = vst.msk [vmem:[#allocation3 + $0x100] sm:$0xff] %vm644, %v577
    %678 = vst.msk [vmem:[#allocation3 + $0x108] sm:$0xff] %vm644, %v579
    %679 = vst.msk [vmem:[#allocation3 + $0x110] sm:$0xff] %vm644, %v581
    %680 = vst.msk [vmem:[#allocation3 + $0x118] sm:$0xff] %vm644, %v583
    %681 = vst.msk [vmem:[#allocation3 + $0x120] sm:$0xff] %vm644, %v585
    %682 = vst.msk [vmem:[#allocation3 + $0x128] sm:$0xff] %vm644, %v587
    %683 = vst.msk [vmem:[#allocation3 + $0x130] sm:$0xff] %vm644, %v589
    %684 = vst.msk [vmem:[#allocation3 + $0x138] sm:$0xff] %vm644, %v591
    %685 = vst.msk [vmem:[#allocation3 + $0x140] sm:$0xff] %vm644, %v593
    %686 = vst.msk [vmem:[#allocation3 + $0x148] sm:$0xff] %vm644, %v595
    %687 = vst.msk [vmem:[#allocation3 + $0x150] sm:$0xff] %vm644, %v597
    %688 = vst.msk [vmem:[#allocation3 + $0x158] sm:$0xff] %vm644, %v599
    %s689 = scalar_lea.vmem %s0, 24
    %v690 = vld [vmem:[%s689] sm:$0xff]
    %v691 = vld [vmem:[%s689 + $0x8] sm:$0xff]
    %v692 = vld [vmem:[%s689 + $0x10] sm:$0xff]
    %v693 = vld [vmem:[%s689 + $0x18] sm:$0xff]
    %v694 = vld [vmem:[%s689 + $0x20] sm:$0xff]
    %v695 = vld [vmem:[%s689 + $0x28] sm:$0xff]
    %v696 = vld [vmem:[%s689 + $0x30] sm:$0xff]
    %v697 = vld [vmem:[%s689 + $0x38] sm:$0xff]
    %v698 = vld [vmem:[%s689 + $0x40] sm:$0xff]
    %v699 = vld [vmem:[%s689 + $0x48] sm:$0xff]
    %v700 = vld [vmem:[%s689 + $0x50] sm:$0xff]
    %v701 = vld [vmem:[%s689 + $0x58] sm:$0xff]
    %v702 = vld [vmem:[%s689 + $0x60] sm:$0xff]
    %v703 = vld [vmem:[%s689 + $0x68] sm:$0xff]
    %v704 = vld [vmem:[%s689 + $0x70] sm:$0xff]
    %v705 = vld [vmem:[%s689 + $0x78] sm:$0xff]
    %v706 = vld [vmem:[%s689 + $0x80] sm:$0xff]
    %v707 = vld [vmem:[%s689 + $0x88] sm:$0xff]
    %v708 = vld [vmem:[%s689 + $0x90] sm:$0xff]
    %v709 = vld [vmem:[%s689 + $0x98] sm:$0xff]
    %v710 = vld [vmem:[%s689 + $0xa0] sm:$0xff]
    %v711 = vld [vmem:[%s689 + $0xa8] sm:$0xff]
    %v712 = vld [vmem:[%s689 + $0xb0] sm:$0xff]
    %v713 = vld [vmem:[%s689 + $0xb8] sm:$0xff]
    %v714 = vld [vmem:[%s689 + $0xc0] sm:$0xff]
    %v715 = vld [vmem:[%s689 + $0xc8] sm:$0xff]
    %v716 = vld [vmem:[%s689 + $0xd0] sm:$0xff]
    %v717 = vld [vmem:[%s689 + $0xd8] sm:$0xff]
    %v718 = vld [vmem:[%s689 + $0xe0] sm:$0xff]
    %v719 = vld [vmem:[%s689 + $0xe8] sm:$0xff]
    %v720 = vld [vmem:[%s689 + $0xf0] sm:$0xff]
    %v721 = vld [vmem:[%s689 + $0xf8] sm:$0xff]
    %v722 = vld [vmem:[%s689 + $0x100] sm:$0xff]
    %v723 = vld [vmem:[%s689 + $0x108] sm:$0xff]
    %v724 = vld [vmem:[%s689 + $0x110] sm:$0xff]
    %v725 = vld [vmem:[%s689 + $0x118] sm:$0xff]
    %v726 = vld [vmem:[%s689 + $0x120] sm:$0xff]
    %v727 = vld [vmem:[%s689 + $0x128] sm:$0xff]
    %v728 = vld [vmem:[%s689 + $0x130] sm:$0xff]
    %v729 = vld [vmem:[%s689 + $0x138] sm:$0xff]
    %v730 = vld [vmem:[%s689 + $0x140] sm:$0xff]
    %v731 = vld [vmem:[%s689 + $0x148] sm:$0xff]
    %v732 = vld [vmem:[%s689 + $0x150] sm:$0xff]
    %v733 = vld [vmem:[%s689 + $0x158] sm:$0xff]
    %778 = vrot.lane.b32.xlu0 %v690, 12
    %v779 = vpop.permute.xlu0 %778
    %780 = vrot.lane.b32.xlu0 %v691, 12
    %v781 = vpop.permute.xlu0 %780
    %782 = vrot.lane.b32.xlu0 %v692, 12
    %v783 = vpop.permute.xlu0 %782
    %784 = vrot.lane.b32.xlu0 %v693, 12
    %v785 = vpop.permute.xlu0 %784
    %786 = vrot.lane.b32.xlu0 %v694, 12
    %v787 = vpop.permute.xlu0 %786
    %788 = vrot.lane.b32.xlu0 %v695, 12
    %v789 = vpop.permute.xlu0 %788
    %790 = vrot.lane.b32.xlu0 %v696, 12
    %v791 = vpop.permute.xlu0 %790
    %792 = vrot.lane.b32.xlu0 %v697, 12
    %v793 = vpop.permute.xlu0 %792
    %794 = vrot.lane.b32.xlu0 %v698, 12
    %v795 = vpop.permute.xlu0 %794
    %796 = vrot.lane.b32.xlu0 %v699, 12
    %v797 = vpop.permute.xlu0 %796
    %798 = vrot.lane.b32.xlu0 %v700, 12
    %v799 = vpop.permute.xlu0 %798
    %800 = vrot.lane.b32.xlu0 %v701, 12
    %v801 = vpop.permute.xlu0 %800
    %802 = vrot.lane.b32.xlu0 %v702, 12
    %v803 = vpop.permute.xlu0 %802
    %804 = vrot.lane.b32.xlu0 %v703, 12
    %v805 = vpop.permute.xlu0 %804
    %806 = vrot.lane.b32.xlu0 %v704, 12
    %v807 = vpop.permute.xlu0 %806
    %808 = vrot.lane.b32.xlu0 %v705, 12
    %v809 = vpop.permute.xlu0 %808
    %810 = vrot.lane.b32.xlu0 %v706, 12
    %v811 = vpop.permute.xlu0 %810
    %812 = vrot.lane.b32.xlu0 %v707, 12
    %v813 = vpop.permute.xlu0 %812
    %814 = vrot.lane.b32.xlu0 %v708, 12
    %v815 = vpop.permute.xlu0 %814
    %816 = vrot.lane.b32.xlu0 %v709, 12
    %v817 = vpop.permute.xlu0 %816
    %818 = vrot.lane.b32.xlu0 %v710, 12
    %v819 = vpop.permute.xlu0 %818
    %820 = vrot.lane.b32.xlu0 %v711, 12
    %v821 = vpop.permute.xlu0 %820
    %822 = vrot.lane.b32.xlu0 %v712, 12
    %v823 = vpop.permute.xlu0 %822
    %824 = vrot.lane.b32.xlu0 %v713, 12
    %v825 = vpop.permute.xlu0 %824
    %826 = vrot.lane.b32.xlu0 %v714, 12
    %v827 = vpop.permute.xlu0 %826
    %828 = vrot.lane.b32.xlu0 %v715, 12
    %v829 = vpop.permute.xlu0 %828
    %830 = vrot.lane.b32.xlu0 %v716, 12
    %v831 = vpop.permute.xlu0 %830
    %832 = vrot.lane.b32.xlu0 %v717, 12
    %v833 = vpop.permute.xlu0 %832
    %834 = vrot.lane.b32.xlu0 %v718, 12
    %v835 = vpop.permute.xlu0 %834
    %836 = vrot.lane.b32.xlu0 %v719, 12
    %v837 = vpop.permute.xlu0 %836
    %838 = vrot.lane.b32.xlu0 %v720, 12
    %v839 = vpop.permute.xlu0 %838
    %840 = vrot.lane.b32.xlu0 %v721, 12
    %v841 = vpop.permute.xlu0 %840
    %842 = vrot.lane.b32.xlu0 %v722, 12
    %v843 = vpop.permute.xlu0 %842
    %844 = vrot.lane.b32.xlu0 %v723, 12
    %v845 = vpop.permute.xlu0 %844
    %846 = vrot.lane.b32.xlu0 %v724, 12
    %v847 = vpop.permute.xlu0 %846
    %848 = vrot.lane.b32.xlu0 %v725, 12
    %v849 = vpop.permute.xlu0 %848
    %850 = vrot.lane.b32.xlu0 %v726, 12
    %v851 = vpop.permute.xlu0 %850
    %852 = vrot.lane.b32.xlu0 %v727, 12
    %v853 = vpop.permute.xlu0 %852
    %854 = vrot.lane.b32.xlu0 %v728, 12
    %v855 = vpop.permute.xlu0 %854
    %856 = vrot.lane.b32.xlu0 %v729, 12
    %v857 = vpop.permute.xlu0 %856
    %858 = vrot.lane.b32.xlu0 %v730, 12
    %v859 = vpop.permute.xlu0 %858
    %860 = vrot.lane.b32.xlu0 %v731, 12
    %v861 = vpop.permute.xlu0 %860
    %862 = vrot.lane.b32.xlu0 %v732, 12
    %v863 = vpop.permute.xlu0 %862
    %864 = vrot.lane.b32.xlu0 %v733, 12
    %v865 = vpop.permute.xlu0 %864
    %vm910 = vcmask 130144
    %911 = vst.msk [vmem:[#allocation3] sm:$0xff] %vm910, %v779
    %912 = vst.msk [vmem:[#allocation3 + $0x8] sm:$0xff] %vm910, %v781
    %913 = vst.msk [vmem:[#allocation3 + $0x10] sm:$0xff] %vm910, %v783
    %914 = vst.msk [vmem:[#allocation3 + $0x18] sm:$0xff] %vm910, %v785
    %915 = vst.msk [vmem:[#allocation3 + $0x20] sm:$0xff] %vm910, %v787
    %916 = vst.msk [vmem:[#allocation3 + $0x28] sm:$0xff] %vm910, %v789
    %917 = vst.msk [vmem:[#allocation3 + $0x30] sm:$0xff] %vm910, %v791
    %918 = vst.msk [vmem:[#allocation3 + $0x38] sm:$0xff] %vm910, %v793
    %919 = vst.msk [vmem:[#allocation3 + $0x40] sm:$0xff] %vm910, %v795
    %920 = vst.msk [vmem:[#allocation3 + $0x48] sm:$0xff] %vm910, %v797
    %921 = vst.msk [vmem:[#allocation3 + $0x50] sm:$0xff] %vm910, %v799
    %922 = vst.msk [vmem:[#allocation3 + $0x58] sm:$0xff] %vm910, %v801
    %923 = vst.msk [vmem:[#allocation3 + $0x60] sm:$0xff] %vm910, %v803
    %924 = vst.msk [vmem:[#allocation3 + $0x68] sm:$0xff] %vm910, %v805
    %925 = vst.msk [vmem:[#allocation3 + $0x70] sm:$0xff] %vm910, %v807
    %926 = vst.msk [vmem:[#allocation3 + $0x78] sm:$0xff] %vm910, %v809
    %927 = vst.msk [vmem:[#allocation3 + $0x80] sm:$0xff] %vm910, %v811
    %928 = vst.msk [vmem:[#allocation3 + $0x88] sm:$0xff] %vm910, %v813
    %929 = vst.msk [vmem:[#allocation3 + $0x90] sm:$0xff] %vm910, %v815
    %930 = vst.msk [vmem:[#allocation3 + $0x98] sm:$0xff] %vm910, %v817
    %931 = vst.msk [vmem:[#allocation3 + $0xa0] sm:$0xff] %vm910, %v819
    %932 = vst.msk [vmem:[#allocation3 + $0xa8] sm:$0xff] %vm910, %v821
    %933 = vst.msk [vmem:[#allocation3 + $0xb0] sm:$0xff] %vm910, %v823
    %934 = vst.msk [vmem:[#allocation3 + $0xb8] sm:$0xff] %vm910, %v825
    %935 = vst.msk [vmem:[#allocation3 + $0xc0] sm:$0xff] %vm910, %v827
    %936 = vst.msk [vmem:[#allocation3 + $0xc8] sm:$0xff] %vm910, %v829
    %937 = vst.msk [vmem:[#allocation3 + $0xd0] sm:$0xff] %vm910, %v831
    %938 = vst.msk [vmem:[#allocation3 + $0xd8] sm:$0xff] %vm910, %v833
    %939 = vst.msk [vmem:[#allocation3 + $0xe0] sm:$0xff] %vm910, %v835
    %940 = vst.msk [vmem:[#allocation3 + $0xe8] sm:$0xff] %vm910, %v837
    %941 = vst.msk [vmem:[#allocation3 + $0xf0] sm:$0xff] %vm910, %v839
    %942 = vst.msk [vmem:[#allocation3 + $0xf8] sm:$0xff] %vm910, %v841
    %943 = vst.msk [vmem:[#allocation3 + $0x100] sm:$0xff] %vm910, %v843
    %944 = vst.msk [vmem:[#allocation3 + $0x108] sm:$0xff] %vm910, %v845
    %945 = vst.msk [vmem:[#allocation3 + $0x110] sm:$0xff] %vm910, %v847
    %946 = vst.msk [vmem:[#allocation3 + $0x118] sm:$0xff] %vm910, %v849
    %947 = vst.msk [vmem:[#allocation3 + $0x120] sm:$0xff] %vm910, %v851
    %948 = vst.msk [vmem:[#allocation3 + $0x128] sm:$0xff] %vm910, %v853
    %949 = vst.msk [vmem:[#allocation3 + $0x130] sm:$0xff] %vm910, %v855
    %950 = vst.msk [vmem:[#allocation3 + $0x138] sm:$0xff] %vm910, %v857
    %951 = vst.msk [vmem:[#allocation3 + $0x140] sm:$0xff] %vm910, %v859
    %952 = vst.msk [vmem:[#allocation3 + $0x148] sm:$0xff] %vm910, %v861
    %953 = vst.msk [vmem:[#allocation3 + $0x150] sm:$0xff] %vm910, %v863
    %954 = vst.msk [vmem:[#allocation3 + $0x158] sm:$0xff] %vm910, %v865
    %s955 = scalar_lea.vmem %s0, 32
    %v956 = vld [vmem:[%s955] sm:$0xff]
    %v957 = vld [vmem:[%s955 + $0x8] sm:$0xff]
    %v958 = vld [vmem:[%s955 + $0x10] sm:$0xff]
    %v959 = vld [vmem:[%s955 + $0x18] sm:$0xff]
    %v960 = vld [vmem:[%s955 + $0x20] sm:$0xff]
    %v961 = vld [vmem:[%s955 + $0x28] sm:$0xff]
    %v962 = vld [vmem:[%s955 + $0x30] sm:$0xff]
    %v963 = vld [vmem:[%s955 + $0x38] sm:$0xff]
    %v964 = vld [vmem:[%s955 + $0x40] sm:$0xff]
    %v965 = vld [vmem:[%s955 + $0x48] sm:$0xff]
    %v966 = vld [vmem:[%s955 + $0x50] sm:$0xff]
    %v967 = vld [vmem:[%s955 + $0x58] sm:$0xff]
    %v968 = vld [vmem:[%s955 + $0x60] sm:$0xff]
    %v969 = vld [vmem:[%s955 + $0x68] sm:$0xff]
    %v970 = vld [vmem:[%s955 + $0x70] sm:$0xff]
    %v971 = vld [vmem:[%s955 + $0x78] sm:$0xff]
    %v972 = vld [vmem:[%s955 + $0x80] sm:$0xff]
    %v973 = vld [vmem:[%s955 + $0x88] sm:$0xff]
    %v974 = vld [vmem:[%s955 + $0x90] sm:$0xff]
    %v975 = vld [vmem:[%s955 + $0x98] sm:$0xff]
    %v976 = vld [vmem:[%s955 + $0xa0] sm:$0xff]
    %v977 = vld [vmem:[%s955 + $0xa8] sm:$0xff]
    %v978 = vld [vmem:[%s955 + $0xb0] sm:$0xff]
    %v979 = vld [vmem:[%s955 + $0xb8] sm:$0xff]
    %v980 = vld [vmem:[%s955 + $0xc0] sm:$0xff]
    %v981 = vld [vmem:[%s955 + $0xc8] sm:$0xff]
    %v982 = vld [vmem:[%s955 + $0xd0] sm:$0xff]
    %v983 = vld [vmem:[%s955 + $0xd8] sm:$0xff]
    %v984 = vld [vmem:[%s955 + $0xe0] sm:$0xff]
    %v985 = vld [vmem:[%s955 + $0xe8] sm:$0xff]
    %v986 = vld [vmem:[%s955 + $0xf0] sm:$0xff]
    %v987 = vld [vmem:[%s955 + $0xf8] sm:$0xff]
    %v988 = vld [vmem:[%s955 + $0x100] sm:$0xff]
    %v989 = vld [vmem:[%s955 + $0x108] sm:$0xff]
    %v990 = vld [vmem:[%s955 + $0x110] sm:$0xff]
    %v991 = vld [vmem:[%s955 + $0x118] sm:$0xff]
    %v992 = vld [vmem:[%s955 + $0x120] sm:$0xff]
    %v993 = vld [vmem:[%s955 + $0x128] sm:$0xff]
    %v994 = vld [vmem:[%s955 + $0x130] sm:$0xff]
    %v995 = vld [vmem:[%s955 + $0x138] sm:$0xff]
    %v996 = vld [vmem:[%s955 + $0x140] sm:$0xff]
    %v997 = vld [vmem:[%s955 + $0x148] sm:$0xff]
    %v998 = vld [vmem:[%s955 + $0x150] sm:$0xff]
    %v999 = vld [vmem:[%s955 + $0x158] sm:$0xff]
    %1044 = vrot.lane.b32.xlu0 %v956, 16
    %v1045 = vpop.permute.xlu0 %1044
    %1046 = vrot.lane.b32.xlu0 %v957, 16
    %v1047 = vpop.permute.xlu0 %1046
    %1048 = vrot.lane.b32.xlu0 %v958, 16
    %v1049 = vpop.permute.xlu0 %1048
    %1050 = vrot.lane.b32.xlu0 %v959, 16
    %v1051 = vpop.permute.xlu0 %1050
    %1052 = vrot.lane.b32.xlu0 %v960, 16
    %v1053 = vpop.permute.xlu0 %1052
    %1054 = vrot.lane.b32.xlu0 %v961, 16
    %v1055 = vpop.permute.xlu0 %1054
    %1056 = vrot.lane.b32.xlu0 %v962, 16
    %v1057 = vpop.permute.xlu0 %1056
    %1058 = vrot.lane.b32.xlu0 %v963, 16
    %v1059 = vpop.permute.xlu0 %1058
    %1060 = vrot.lane.b32.xlu0 %v964, 16
    %v1061 = vpop.permute.xlu0 %1060
    %1062 = vrot.lane.b32.xlu0 %v965, 16
    %v1063 = vpop.permute.xlu0 %1062
    %1064 = vrot.lane.b32.xlu0 %v966, 16
    %v1065 = vpop.permute.xlu0 %1064
    %1066 = vrot.lane.b32.xlu0 %v967, 16
    %v1067 = vpop.permute.xlu0 %1066
    %1068 = vrot.lane.b32.xlu0 %v968, 16
    %v1069 = vpop.permute.xlu0 %1068
    %1070 = vrot.lane.b32.xlu0 %v969, 16
    %v1071 = vpop.permute.xlu0 %1070
    %1072 = vrot.lane.b32.xlu0 %v970, 16
    %v1073 = vpop.permute.xlu0 %1072
    %1074 = vrot.lane.b32.xlu0 %v971, 16
    %v1075 = vpop.permute.xlu0 %1074
    %1076 = vrot.lane.b32.xlu0 %v972, 16
    %v1077 = vpop.permute.xlu0 %1076
    %1078 = vrot.lane.b32.xlu0 %v973, 16
    %v1079 = vpop.permute.xlu0 %1078
    %1080 = vrot.lane.b32.xlu0 %v974, 16
    %v1081 = vpop.permute.xlu0 %1080
    %1082 = vrot.lane.b32.xlu0 %v975, 16
    %v1083 = vpop.permute.xlu0 %1082
    %1084 = vrot.lane.b32.xlu0 %v976, 16
    %v1085 = vpop.permute.xlu0 %1084
    %1086 = vrot.lane.b32.xlu0 %v977, 16
    %v1087 = vpop.permute.xlu0 %1086
    %1088 = vrot.lane.b32.xlu0 %v978, 16
    %v1089 = vpop.permute.xlu0 %1088
    %1090 = vrot.lane.b32.xlu0 %v979, 16
    %v1091 = vpop.permute.xlu0 %1090
    %1092 = vrot.lane.b32.xlu0 %v980, 16
    %v1093 = vpop.permute.xlu0 %1092
    %1094 = vrot.lane.b32.xlu0 %v981, 16
    %v1095 = vpop.permute.xlu0 %1094
    %1096 = vrot.lane.b32.xlu0 %v982, 16
    %v1097 = vpop.permute.xlu0 %1096
    %1098 = vrot.lane.b32.xlu0 %v983, 16
    %v1099 = vpop.permute.xlu0 %1098
    %1100 = vrot.lane.b32.xlu0 %v984, 16
    %v1101 = vpop.permute.xlu0 %1100
    %1102 = vrot.lane.b32.xlu0 %v985, 16
    %v1103 = vpop.permute.xlu0 %1102
    %1104 = vrot.lane.b32.xlu0 %v986, 16
    %v1105 = vpop.permute.xlu0 %1104
    %1106 = vrot.lane.b32.xlu0 %v987, 16
    %v1107 = vpop.permute.xlu0 %1106
    %1108 = vrot.lane.b32.xlu0 %v988, 16
    %v1109 = vpop.permute.xlu0 %1108
    %1110 = vrot.lane.b32.xlu0 %v989, 16
    %v1111 = vpop.permute.xlu0 %1110
    %1112 = vrot.lane.b32.xlu0 %v990, 16
    %v1113 = vpop.permute.xlu0 %1112
    %1114 = vrot.lane.b32.xlu0 %v991, 16
    %v1115 = vpop.permute.xlu0 %1114
    %1116 = vrot.lane.b32.xlu0 %v992, 16
    %v1117 = vpop.permute.xlu0 %1116
    %1118 = vrot.lane.b32.xlu0 %v993, 16
    %v1119 = vpop.permute.xlu0 %1118
    %1120 = vrot.lane.b32.xlu0 %v994, 16
    %v1121 = vpop.permute.xlu0 %1120
    %1122 = vrot.lane.b32.xlu0 %v995, 16
    %v1123 = vpop.permute.xlu0 %1122
    %1124 = vrot.lane.b32.xlu0 %v996, 16
    %v1125 = vpop.permute.xlu0 %1124
    %1126 = vrot.lane.b32.xlu0 %v997, 16
    %v1127 = vpop.permute.xlu0 %1126
    %1128 = vrot.lane.b32.xlu0 %v998, 16
    %v1129 = vpop.permute.xlu0 %1128
    %1130 = vrot.lane.b32.xlu0 %v999, 16
    %v1131 = vpop.permute.xlu0 %1130
    %vm1176 = vcmask 162944
    %1177 = vst.msk [vmem:[#allocation3] sm:$0xff] %vm1176, %v1045
    %1178 = vst.msk [vmem:[#allocation3 + $0x8] sm:$0xff] %vm1176, %v1047
    %1179 = vst.msk [vmem:[#allocation3 + $0x10] sm:$0xff] %vm1176, %v1049
    %1180 = vst.msk [vmem:[#allocation3 + $0x18] sm:$0xff] %vm1176, %v1051
    %1181 = vst.msk [vmem:[#allocation3 + $0x20] sm:$0xff] %vm1176, %v1053
    %1182 = vst.msk [vmem:[#allocation3 + $0x28] sm:$0xff] %vm1176, %v1055
    %1183 = vst.msk [vmem:[#allocation3 + $0x30] sm:$0xff] %vm1176, %v1057
    %1184 = vst.msk [vmem:[#allocation3 + $0x38] sm:$0xff] %vm1176, %v1059
    %1185 = vst.msk [vmem:[#allocation3 + $0x40] sm:$0xff] %vm1176, %v1061
    %1186 = vst.msk [vmem:[#allocation3 + $0x48] sm:$0xff] %vm1176, %v1063
    %1187 = vst.msk [vmem:[#allocation3 + $0x50] sm:$0xff] %vm1176, %v1065
    %1188 = vst.msk [vmem:[#allocation3 + $0x58] sm:$0xff] %vm1176, %v1067
    %1189 = vst.msk [vmem:[#allocation3 + $0x60] sm:$0xff] %vm1176, %v1069
    %1190 = vst.msk [vmem:[#allocation3 + $0x68] sm:$0xff] %vm1176, %v1071
    %1191 = vst.msk [vmem:[#allocation3 + $0x70] sm:$0xff] %vm1176, %v1073
    %1192 = vst.msk [vmem:[#allocation3 + $0x78] sm:$0xff] %vm1176, %v1075
    %1193 = vst.msk [vmem:[#allocation3 + $0x80] sm:$0xff] %vm1176, %v1077
    %1194 = vst.msk [vmem:[#allocation3 + $0x88] sm:$0xff] %vm1176, %v1079
    %1195 = vst.msk [vmem:[#allocation3 + $0x90] sm:$0xff] %vm1176, %v1081
    %1196 = vst.msk [vmem:[#allocation3 + $0x98] sm:$0xff] %vm1176, %v1083
    %1197 = vst.msk [vmem:[#allocation3 + $0xa0] sm:$0xff] %vm1176, %v1085
    %1198 = vst.msk [vmem:[#allocation3 + $0xa8] sm:$0xff] %vm1176, %v1087
    %1199 = vst.msk [vmem:[#allocation3 + $0xb0] sm:$0xff] %vm1176, %v1089
    %1200 = vst.msk [vmem:[#allocation3 + $0xb8] sm:$0xff] %vm1176, %v1091
    %1201 = vst.msk [vmem:[#allocation3 + $0xc0] sm:$0xff] %vm1176, %v1093
    %1202 = vst.msk [vmem:[#allocation3 + $0xc8] sm:$0xff] %vm1176, %v1095
    %1203 = vst.msk [vmem:[#allocation3 + $0xd0] sm:$0xff] %vm1176, %v1097
    %1204 = vst.msk [vmem:[#allocation3 + $0xd8] sm:$0xff] %vm1176, %v1099
    %1205 = vst.msk [vmem:[#allocation3 + $0xe0] sm:$0xff] %vm1176, %v1101
    %1206 = vst.msk [vmem:[#allocation3 + $0xe8] sm:$0xff] %vm1176, %v1103
    %1207 = vst.msk [vmem:[#allocation3 + $0xf0] sm:$0xff] %vm1176, %v1105
    %1208 = vst.msk [vmem:[#allocation3 + $0xf8] sm:$0xff] %vm1176, %v1107
    %1209 = vst.msk [vmem:[#allocation3 + $0x100] sm:$0xff] %vm1176, %v1109
    %1210 = vst.msk [vmem:[#allocation3 + $0x108] sm:$0xff] %vm1176, %v1111
    %1211 = vst.msk [vmem:[#allocation3 + $0x110] sm:$0xff] %vm1176, %v1113
    %1212 = vst.msk [vmem:[#allocation3 + $0x118] sm:$0xff] %vm1176, %v1115
    %1213 = vst.msk [vmem:[#allocation3 + $0x120] sm:$0xff] %vm1176, %v1117
    %1214 = vst.msk [vmem:[#allocation3 + $0x128] sm:$0xff] %vm1176, %v1119
    %1215 = vst.msk [vmem:[#allocation3 + $0x130] sm:$0xff] %vm1176, %v1121
    %1216 = vst.msk [vmem:[#allocation3 + $0x138] sm:$0xff] %vm1176, %v1123
    %1217 = vst.msk [vmem:[#allocation3 + $0x140] sm:$0xff] %vm1176, %v1125
    %1218 = vst.msk [vmem:[#allocation3 + $0x148] sm:$0xff] %vm1176, %v1127
    %1219 = vst.msk [vmem:[#allocation3 + $0x150] sm:$0xff] %vm1176, %v1129
    %1220 = vst.msk [vmem:[#allocation3 + $0x158] sm:$0xff] %vm1176, %v1131
    %v1221 = vld [vmem:[%s0] sm:$0xff]
    %v1222 = vld [vmem:[%s157] sm:$0xff]
    %v1223 = vadd.f32 %v1221, %v1222
    %v1224 = vmul.f32 %v1223, 0.5
    %1225 = vst.msk [vmem:[#allocation2] sm:$0xff] %vm112, %v1224
    %v1226 = vld [vmem:[%s423] sm:$0xff]
    %v1227 = vld [vmem:[%s689] sm:$0xff]
    %v1228 = vadd.f32 %v1226, %v1227
    %v1229 = vmul.f32 %v1228, 0.5
    %s1230 = scalar_lea.vmem [#allocation2], 8
    %1231 = vst.msk [vmem:[%s1230] sm:$0xff] %vm112, %v1229
    %v1232 = vld [vmem:[%s955] sm:$0xff]
    %s1233 = scalar_lea.vmem %s0, 40
    %v1234 = vld [vmem:[%s1233] sm:$0xff]
    %v1235 = vadd.f32 %v1232, %v1234
    %v1236 = vmul.f32 %v1235, 0.5
    %s1237 = scalar_lea.vmem [#allocation2], 16
    %1238 = vst.msk [vmem:[%s1237] sm:$0xff] %vm112, %v1236
    %s1239 = scalar_lea.vmem %s0, 48
    %v1240 = vld [vmem:[%s1239] sm:$0xff]
    %s1241 = scalar_lea.vmem %s0, 56
    %v1242 = vld [vmem:[%s1241] sm:$0xff]
    %v1243 = vadd.f32 %v1240, %v1242
    %v1244 = vmul.f32 %v1243, 0.5
    %s1245 = scalar_lea.vmem [#allocation2], 24
    %1246 = vst.msk [vmem:[%s1245] sm:$0xff] %vm112, %v1244
    %s1247 = scalar_lea.vmem %s0, 64
    %v1248 = vld [vmem:[%s1247] sm:$0xff]
    %s1249 = scalar_lea.vmem %s0, 72
    %v1250 = vld [vmem:[%s1249] sm:$0xff]
    %v1251 = vadd.f32 %v1248, %v1250
    %v1252 = vmul.f32 %v1251, 0.5
    %s1253 = scalar_lea.vmem [#allocation2], 32
    %1254 = vst.msk [vmem:[%s1253] sm:$0xff] %vm112, %v1252
    %s1255 = scalar_lea.vmem %s0, 80
    %v1256 = vld [vmem:[%s1255] sm:$0xff]
    %s1257 = scalar_lea.vmem %s0, 88
    %v1258 = vld [vmem:[%s1257] sm:$0xff]
    %v1259 = vadd.f32 %v1256, %v1258
    %v1260 = vmul.f32 %v1259, 0.5
    %s1261 = scalar_lea.vmem [#allocation2], 40
    %1262 = vst.msk [vmem:[%s1261] sm:$0xff] %vm112, %v1260
    %s1263 = scalar_lea.vmem %s0, 96
    %v1264 = vld [vmem:[%s1263] sm:$0xff]
    %s1265 = scalar_lea.vmem %s0, 104
    %v1266 = vld [vmem:[%s1265] sm:$0xff]
    %v1267 = vadd.f32 %v1264, %v1266
    %v1268 = vmul.f32 %v1267, 0.5
    %s1269 = scalar_lea.vmem [#allocation2], 48
    %1270 = vst.msk [vmem:[%s1269] sm:$0xff] %vm112, %v1268
    %s1271 = scalar_lea.vmem %s0, 112
    %v1272 = vld [vmem:[%s1271] sm:$0xff]
    %s1273 = scalar_lea.vmem %s0, 120
    %v1274 = vld [vmem:[%s1273] sm:$0xff]
    %v1275 = vadd.f32 %v1272, %v1274
    %v1276 = vmul.f32 %v1275, 0.5
    %s1277 = scalar_lea.vmem [#allocation2], 56
    %1278 = vst.msk [vmem:[%s1277] sm:$0xff] %vm112, %v1276
    %s1279 = scalar_lea.vmem %s0, 128
    %v1280 = vld [vmem:[%s1279] sm:$0xff]
    %s1281 = scalar_lea.vmem %s0, 136
    %v1282 = vld [vmem:[%s1281] sm:$0xff]
    %v1283 = vadd.f32 %v1280, %v1282
    %v1284 = vmul.f32 %v1283, 0.5
    %s1285 = scalar_lea.vmem [#allocation2], 64
    %1286 = vst.msk [vmem:[%s1285] sm:$0xff] %vm112, %v1284
    %s1287 = scalar_lea.vmem %s0, 144
    %v1288 = vld [vmem:[%s1287] sm:$0xff]
    %s1289 = scalar_lea.vmem %s0, 152
    %v1290 = vld [vmem:[%s1289] sm:$0xff]
    %v1291 = vadd.f32 %v1288, %v1290
    %v1292 = vmul.f32 %v1291, 0.5
    %s1293 = scalar_lea.vmem [#allocation2], 72
    %1294 = vst.msk [vmem:[%s1293] sm:$0xff] %vm112, %v1292
    %s1295 = scalar_lea.vmem %s0, 160
    %v1296 = vld [vmem:[%s1295] sm:$0xff]
    %s1297 = scalar_lea.vmem %s0, 168
    %v1298 = vld [vmem:[%s1297] sm:$0xff]
    %v1299 = vadd.f32 %v1296, %v1298
    %v1300 = vmul.f32 %v1299, 0.5
    %s1301 = scalar_lea.vmem [#allocation2], 80
    %1302 = vst.msk [vmem:[%s1301] sm:$0xff] %vm112, %v1300
    %s1303 = scalar_lea.vmem %s0, 176
    %v1304 = vld [vmem:[%s1303] sm:$0xff]
    %s1305 = scalar_lea.vmem %s0, 184
    %v1306 = vld [vmem:[%s1305] sm:$0xff]
    %v1307 = vadd.f32 %v1304, %v1306
    %v1308 = vmul.f32 %v1307, 0.5
    %s1309 = scalar_lea.vmem [#allocation2], 88
    %1310 = vst.msk [vmem:[%s1309] sm:$0xff] %vm112, %v1308
    %s1311 = scalar_lea.vmem %s0, 192
    %v1312 = vld [vmem:[%s1311] sm:$0xff]
    %s1313 = scalar_lea.vmem %s0, 200
    %v1314 = vld [vmem:[%s1313] sm:$0xff]
    %v1315 = vadd.f32 %v1312, %v1314
    %v1316 = vmul.f32 %v1315, 0.5
    %s1317 = scalar_lea.vmem [#allocation2], 96
    %1318 = vst.msk [vmem:[%s1317] sm:$0xff] %vm112, %v1316
    %s1319 = scalar_lea.vmem %s0, 208
    %v1320 = vld [vmem:[%s1319] sm:$0xff]
    %s1321 = scalar_lea.vmem %s0, 216
    %v1322 = vld [vmem:[%s1321] sm:$0xff]
    %v1323 = vadd.f32 %v1320, %v1322
    %v1324 = vmul.f32 %v1323, 0.5
    %s1325 = scalar_lea.vmem [#allocation2], 104
    %1326 = vst.msk [vmem:[%s1325] sm:$0xff] %vm112, %v1324
    %s1327 = scalar_lea.vmem %s0, 224
    %v1328 = vld [vmem:[%s1327] sm:$0xff]
    %s1329 = scalar_lea.vmem %s0, 232
    %v1330 = vld [vmem:[%s1329] sm:$0xff]
    %v1331 = vadd.f32 %v1328, %v1330
    %v1332 = vmul.f32 %v1331, 0.5
    %s1333 = scalar_lea.vmem [#allocation2], 112
    %1334 = vst.msk [vmem:[%s1333] sm:$0xff] %vm112, %v1332
    %s1335 = scalar_lea.vmem %s0, 240
    %v1336 = vld [vmem:[%s1335] sm:$0xff]
    %s1337 = scalar_lea.vmem %s0, 248
    %v1338 = vld [vmem:[%s1337] sm:$0xff]
    %v1339 = vadd.f32 %v1336, %v1338
    %v1340 = vmul.f32 %v1339, 0.5
    %s1341 = scalar_lea.vmem [#allocation2], 120
    %1342 = vst.msk [vmem:[%s1341] sm:$0xff] %vm112, %v1340
    %s1343 = scalar_lea.vmem %s0, 256
    %v1344 = vld [vmem:[%s1343] sm:$0xff]
    %s1345 = scalar_lea.vmem %s0, 264
    %v1346 = vld [vmem:[%s1345] sm:$0xff]
    %v1347 = vadd.f32 %v1344, %v1346
    %v1348 = vmul.f32 %v1347, 0.5
    %s1349 = scalar_lea.vmem [#allocation2], 128
    %1350 = vst.msk [vmem:[%s1349] sm:$0xff] %vm112, %v1348
    %s1351 = scalar_lea.vmem %s0, 272
    %v1352 = vld [vmem:[%s1351] sm:$0xff]
    %s1353 = scalar_lea.vmem %s0, 280
    %v1354 = vld [vmem:[%s1353] sm:$0xff]
    %v1355 = vadd.f32 %v1352, %v1354
    %v1356 = vmul.f32 %v1355, 0.5
    %s1357 = scalar_lea.vmem [#allocation2], 136
    %1358 = vst.msk [vmem:[%s1357] sm:$0xff] %vm112, %v1356
    %s1359 = scalar_lea.vmem %s0, 288
    %v1360 = vld [vmem:[%s1359] sm:$0xff]
    %s1361 = scalar_lea.vmem %s0, 296
    %v1362 = vld [vmem:[%s1361] sm:$0xff]
    %v1363 = vadd.f32 %v1360, %v1362
    %v1364 = vmul.f32 %v1363, 0.5
    %s1365 = scalar_lea.vmem [#allocation2], 144
    %1366 = vst.msk [vmem:[%s1365] sm:$0xff] %vm112, %v1364
    %s1367 = scalar_lea.vmem %s0, 304
    %v1368 = vld [vmem:[%s1367] sm:$0xff]
    %s1369 = scalar_lea.vmem %s0, 312
    %v1370 = vld [vmem:[%s1369] sm:$0xff]
    %v1371 = vadd.f32 %v1368, %v1370
    %v1372 = vmul.f32 %v1371, 0.5
    %s1373 = scalar_lea.vmem [#allocation2], 152
    %1374 = vst.msk [vmem:[%s1373] sm:$0xff] %vm112, %v1372
    %s1375 = scalar_lea.vmem %s0, 320
    %v1376 = vld [vmem:[%s1375] sm:$0xff]
    %s1377 = scalar_lea.vmem %s0, 328
    %v1378 = vld [vmem:[%s1377] sm:$0xff]
    %v1379 = vadd.f32 %v1376, %v1378
    %v1380 = vmul.f32 %v1379, 0.5
    %s1381 = scalar_lea.vmem [#allocation2], 160
    %1382 = vst.msk [vmem:[%s1381] sm:$0xff] %vm112, %v1380
    %s1383 = scalar_lea.vmem %s0, 336
    %v1384 = vld [vmem:[%s1383] sm:$0xff]
    %s1385 = scalar_lea.vmem %s0, 344
    %v1386 = vld [vmem:[%s1385] sm:$0xff]
    %v1387 = vadd.f32 %v1384, %v1386
    %v1388 = vmul.f32 %v1387, 0.5
    %s1389 = scalar_lea.vmem [#allocation2], 168
    %1390 = vst.msk [vmem:[%s1389] sm:$0xff] %vm112, %v1388
    %s1391 = scalar_lea.vmem %s0, 352
    %v1392 = vld [vmem:[%s1391] sm:$0xff]
    %s1393 = scalar_lea.vmem %s0, 360
    %v1394 = vld [vmem:[%s1393] sm:$0xff]
    %v1395 = vadd.f32 %v1392, %v1394
    %v1396 = vmul.f32 %v1395, 0.5
    %s1397 = scalar_lea.vmem [#allocation2], 176
    %1398 = vst.msk [vmem:[%s1397] sm:$0xff] %vm112, %v1396
    %s1399 = scalar_lea.vmem %s0, 368
    %v1400 = vld [vmem:[%s1399] sm:$0xff]
    %s1401 = scalar_lea.vmem %s0, 376
    %v1402 = vld [vmem:[%s1401] sm:$0xff]
    %v1403 = vadd.f32 %v1400, %v1402
    %v1404 = vmul.f32 %v1403, 0.5
    %s1405 = scalar_lea.vmem [#allocation2], 184
    %1406 = vst.msk [vmem:[%s1405] sm:$0xff] %vm112, %v1404
    %v1407 = vld [vmem:[#allocation2] sm:$0xff]
    %v1408 = vld [vmem:[#allocation2 + $0x8] sm:$0xff]
    %v1409 = vld [vmem:[#allocation2 + $0x10] sm:$0xff]
    %v1410 = vld [vmem:[#allocation2 + $0x18] sm:$0xff]
    %v1411 = vld [vmem:[#allocation2 + $0x20] sm:$0xff]
    %v1412 = vld [vmem:[#allocation2 + $0x28] sm:$0xff]
    %v1413 = vld [vmem:[#allocation2 + $0x30] sm:$0xff]
    %v1414 = vld [vmem:[#allocation2 + $0x38] sm:$0xff]
    %v1415 = vld [vmem:[#allocation2 + $0x40] sm:$0xff]
    %v1416 = vld [vmem:[#allocation2 + $0x48] sm:$0xff]
    %v1417 = vld [vmem:[#allocation2 + $0x50] sm:$0xff]
    %v1418 = vld [vmem:[#allocation2 + $0x58] sm:$0xff]
    %v1419 = vld [vmem:[#allocation2 + $0x60] sm:$0xff]
    %v1420 = vld [vmem:[#allocation2 + $0x68] sm:$0xff]
    %v1421 = vld [vmem:[#allocation2 + $0x70] sm:$0xff]
    %v1422 = vld [vmem:[#allocation2 + $0x78] sm:$0xff]
    %v1423 = vld [vmem:[#allocation2 + $0x80] sm:$0xff]
    %v1424 = vld [vmem:[#allocation2 + $0x88] sm:$0xff]
    %v1425 = vld [vmem:[#allocation2 + $0x90] sm:$0xff]
    %v1426 = vld [vmem:[#allocation2 + $0x98] sm:$0xff]
    %s1427 = scalar_lea.vmem [#allocation3], 352
    %1428 = vst.msk [vmem:[%s1427] sm:$0xff] %vm112, %v1407
    %1429 = vst.msk [vmem:[%s1427 + $0x8] sm:$0xff] %vm112, %v1408
    %1430 = vst.msk [vmem:[%s1427 + $0x10] sm:$0xff] %vm112, %v1409
    %1431 = vst.msk [vmem:[%s1427 + $0x18] sm:$0xff] %vm112, %v1410
    %1432 = vst.msk [vmem:[%s1427 + $0x20] sm:$0xff] %vm112, %v1411
    %1433 = vst.msk [vmem:[%s1427 + $0x28] sm:$0xff] %vm112, %v1412
    %1434 = vst.msk [vmem:[%s1427 + $0x30] sm:$0xff] %vm112, %v1413
    %1435 = vst.msk [vmem:[%s1427 + $0x38] sm:$0xff] %vm112, %v1414
    %1436 = vst.msk [vmem:[%s1427 + $0x40] sm:$0xff] %vm112, %v1415
    %1437 = vst.msk [vmem:[%s1427 + $0x48] sm:$0xff] %vm112, %v1416
    %1438 = vst.msk [vmem:[%s1427 + $0x50] sm:$0xff] %vm112, %v1417
    %1439 = vst.msk [vmem:[%s1427 + $0x58] sm:$0xff] %vm112, %v1418
    %1440 = vst.msk [vmem:[%s1427 + $0x60] sm:$0xff] %vm112, %v1419
    %1441 = vst.msk [vmem:[%s1427 + $0x68] sm:$0xff] %vm112, %v1420
    %1442 = vst.msk [vmem:[%s1427 + $0x70] sm:$0xff] %vm112, %v1421
    %1443 = vst.msk [vmem:[%s1427 + $0x78] sm:$0xff] %vm112, %v1422
    %1444 = vst.msk [vmem:[%s1427 + $0x80] sm:$0xff] %vm112, %v1423
    %1445 = vst.msk [vmem:[%s1427 + $0x88] sm:$0xff] %vm112, %v1424
    %1446 = vst.msk [vmem:[%s1427 + $0x90] sm:$0xff] %vm112, %v1425
    %1447 = vst.msk [vmem:[%s1427 + $0x98] sm:$0xff] %vm112, %v1426
    %v1448 = vld [vmem:[%s1230] sm:$0xff]
    %v1449 = vld [vmem:[%s1230 + $0x8] sm:$0xff]
    %v1450 = vld [vmem:[%s1230 + $0x10] sm:$0xff]
    %v1451 = vld [vmem:[%s1230 + $0x18] sm:$0xff]
    %v1452 = vld [vmem:[%s1230 + $0x20] sm:$0xff]
    %v1453 = vld [vmem:[%s1230 + $0x28] sm:$0xff]
    %v1454 = vld [vmem:[%s1230 + $0x30] sm:$0xff]
    %v1455 = vld [vmem:[%s1230 + $0x38] sm:$0xff]
    %v1456 = vld [vmem:[%s1230 + $0x40] sm:$0xff]
    %v1457 = vld [vmem:[%s1230 + $0x48] sm:$0xff]
    %v1458 = vld [vmem:[%s1230 + $0x50] sm:$0xff]
    %v1459 = vld [vmem:[%s1230 + $0x58] sm:$0xff]
    %v1460 = vld [vmem:[%s1230 + $0x60] sm:$0xff]
    %v1461 = vld [vmem:[%s1230 + $0x68] sm:$0xff]
    %v1462 = vld [vmem:[%s1230 + $0x70] sm:$0xff]
    %v1463 = vld [vmem:[%s1230 + $0x78] sm:$0xff]
    %v1464 = vld [vmem:[%s1230 + $0x80] sm:$0xff]
    %v1465 = vld [vmem:[%s1230 + $0x88] sm:$0xff]
    %v1466 = vld [vmem:[%s1230 + $0x90] sm:$0xff]
    %v1467 = vld [vmem:[%s1230 + $0x98] sm:$0xff]
    %1488 = vrot.lane.b32.xlu0 %v1448, 4
    %v1489 = vpop.permute.xlu0 %1488
    %1490 = vrot.lane.b32.xlu0 %v1449, 4
    %v1491 = vpop.permute.xlu0 %1490
    %1492 = vrot.lane.b32.xlu0 %v1450, 4
    %v1493 = vpop.permute.xlu0 %1492
    %1494 = vrot.lane.b32.xlu0 %v1451, 4
    %v1495 = vpop.permute.xlu0 %1494
    %1496 = vrot.lane.b32.xlu0 %v1452, 4
    %v1497 = vpop.permute.xlu0 %1496
    %1498 = vrot.lane.b32.xlu0 %v1453, 4
    %v1499 = vpop.permute.xlu0 %1498
    %1500 = vrot.lane.b32.xlu0 %v1454, 4
    %v1501 = vpop.permute.xlu0 %1500
    %1502 = vrot.lane.b32.xlu0 %v1455, 4
    %v1503 = vpop.permute.xlu0 %1502
    %1504 = vrot.lane.b32.xlu0 %v1456, 4
    %v1505 = vpop.permute.xlu0 %1504
    %1506 = vrot.lane.b32.xlu0 %v1457, 4
    %v1507 = vpop.permute.xlu0 %1506
    %1508 = vrot.lane.b32.xlu0 %v1458, 4
    %v1509 = vpop.permute.xlu0 %1508
    %1510 = vrot.lane.b32.xlu0 %v1459, 4
    %v1511 = vpop.permute.xlu0 %1510
    %1512 = vrot.lane.b32.xlu0 %v1460, 4
    %v1513 = vpop.permute.xlu0 %1512
    %1514 = vrot.lane.b32.xlu0 %v1461, 4
    %v1515 = vpop.permute.xlu0 %1514
    %1516 = vrot.lane.b32.xlu0 %v1462, 4
    %v1517 = vpop.permute.xlu0 %1516
    %1518 = vrot.lane.b32.xlu0 %v1463, 4
    %v1519 = vpop.permute.xlu0 %1518
    %1520 = vrot.lane.b32.xlu0 %v1464, 4
    %v1521 = vpop.permute.xlu0 %1520
    %1522 = vrot.lane.b32.xlu0 %v1465, 4
    %v1523 = vpop.permute.xlu0 %1522
    %1524 = vrot.lane.b32.xlu0 %v1466, 4
    %v1525 = vpop.permute.xlu0 %1524
    %1526 = vrot.lane.b32.xlu0 %v1467, 4
    %v1527 = vpop.permute.xlu0 %1526
    %1548 = vst.msk [vmem:[%s1427] sm:$0xff] %vm378, %v1489
    %1549 = vst.msk [vmem:[%s1427 + $0x8] sm:$0xff] %vm378, %v1491
    %1550 = vst.msk [vmem:[%s1427 + $0x10] sm:$0xff] %vm378, %v1493
    %1551 = vst.msk [vmem:[%s1427 + $0x18] sm:$0xff] %vm378, %v1495
    %1552 = vst.msk [vmem:[%s1427 + $0x20] sm:$0xff] %vm378, %v1497
    %1553 = vst.msk [vmem:[%s1427 + $0x28] sm:$0xff] %vm378, %v1499
    %1554 = vst.msk [vmem:[%s1427 + $0x30] sm:$0xff] %vm378, %v1501
    %1555 = vst.msk [vmem:[%s1427 + $0x38] sm:$0xff] %vm378, %v1503
    %1556 = vst.msk [vmem:[%s1427 + $0x40] sm:$0xff] %vm378, %v1505
    %1557 = vst.msk [vmem:[%s1427 + $0x48] sm:$0xff] %vm378, %v1507
    %1558 = vst.msk [vmem:[%s1427 + $0x50] sm:$0xff] %vm378, %v1509
    %1559 = vst.msk [vmem:[%s1427 + $0x58] sm:$0xff] %vm378, %v1511
    %1560 = vst.msk [vmem:[%s1427 + $0x60] sm:$0xff] %vm378, %v1513
    %1561 = vst.msk [vmem:[%s1427 + $0x68] sm:$0xff] %vm378, %v1515
    %1562 = vst.msk [vmem:[%s1427 + $0x70] sm:$0xff] %vm378, %v1517
    %1563 = vst.msk [vmem:[%s1427 + $0x78] sm:$0xff] %vm378, %v1519
    %1564 = vst.msk [vmem:[%s1427 + $0x80] sm:$0xff] %vm378, %v1521
    %1565 = vst.msk [vmem:[%s1427 + $0x88] sm:$0xff] %vm378, %v1523
    %1566 = vst.msk [vmem:[%s1427 + $0x90] sm:$0xff] %vm378, %v1525
    %1567 = vst.msk [vmem:[%s1427 + $0x98] sm:$0xff] %vm378, %v1527
    %v1568 = vld [vmem:[%s1237] sm:$0xff]
    %v1569 = vld [vmem:[%s1237 + $0x8] sm:$0xff]
    %v1570 = vld [vmem:[%s1237 + $0x10] sm:$0xff]
    %v1571 = vld [vmem:[%s1237 + $0x18] sm:$0xff]
    %v1572 = vld [vmem:[%s1237 + $0x20] sm:$0xff]
    %v1573 = vld [vmem:[%s1237 + $0x28] sm:$0xff]
    %v1574 = vld [vmem:[%s1237 + $0x30] sm:$0xff]
    %v1575 = vld [vmem:[%s1237 + $0x38] sm:$0xff]
    %v1576 = vld [vmem:[%s1237 + $0x40] sm:$0xff]
    %v1577 = vld [vmem:[%s1237 + $0x48] sm:$0xff]
    %v1578 = vld [vmem:[%s1237 + $0x50] sm:$0xff]
    %v1579 = vld [vmem:[%s1237 + $0x58] sm:$0xff]
    %v1580 = vld [vmem:[%s1237 + $0x60] sm:$0xff]
    %v1581 = vld [vmem:[%s1237 + $0x68] sm:$0xff]
    %v1582 = vld [vmem:[%s1237 + $0x70] sm:$0xff]
    %v1583 = vld [vmem:[%s1237 + $0x78] sm:$0xff]
    %v1584 = vld [vmem:[%s1237 + $0x80] sm:$0xff]
    %v1585 = vld [vmem:[%s1237 + $0x88] sm:$0xff]
    %v1586 = vld [vmem:[%s1237 + $0x90] sm:$0xff]
    %v1587 = vld [vmem:[%s1237 + $0x98] sm:$0xff]
    %1608 = vrot.lane.b32.xlu0 %v1568, 8
    %v1609 = vpop.permute.xlu0 %1608
    %1610 = vrot.lane.b32.xlu0 %v1569, 8
    %v1611 = vpop.permute.xlu0 %1610
    %1612 = vrot.lane.b32.xlu0 %v1570, 8
    %v1613 = vpop.permute.xlu0 %1612
    %1614 = vrot.lane.b32.xlu0 %v1571, 8
    %v1615 = vpop.permute.xlu0 %1614
    %1616 = vrot.lane.b32.xlu0 %v1572, 8
    %v1617 = vpop.permute.xlu0 %1616
    %1618 = vrot.lane.b32.xlu0 %v1573, 8
    %v1619 = vpop.permute.xlu0 %1618
    %1620 = vrot.lane.b32.xlu0 %v1574, 8
    %v1621 = vpop.permute.xlu0 %1620
    %1622 = vrot.lane.b32.xlu0 %v1575, 8
    %v1623 = vpop.permute.xlu0 %1622
    %1624 = vrot.lane.b32.xlu0 %v1576, 8
    %v1625 = vpop.permute.xlu0 %1624
    %1626 = vrot.lane.b32.xlu0 %v1577, 8
    %v1627 = vpop.permute.xlu0 %1626
    %1628 = vrot.lane.b32.xlu0 %v1578, 8
    %v1629 = vpop.permute.xlu0 %1628
    %1630 = vrot.lane.b32.xlu0 %v1579, 8
    %v1631 = vpop.permute.xlu0 %1630
    %1632 = vrot.lane.b32.xlu0 %v1580, 8
    %v1633 = vpop.permute.xlu0 %1632
    %1634 = vrot.lane.b32.xlu0 %v1581, 8
    %v1635 = vpop.permute.xlu0 %1634
    %1636 = vrot.lane.b32.xlu0 %v1582, 8
    %v1637 = vpop.permute.xlu0 %1636
    %1638 = vrot.lane.b32.xlu0 %v1583, 8
    %v1639 = vpop.permute.xlu0 %1638
    %1640 = vrot.lane.b32.xlu0 %v1584, 8
    %v1641 = vpop.permute.xlu0 %1640
    %1642 = vrot.lane.b32.xlu0 %v1585, 8
    %v1643 = vpop.permute.xlu0 %1642
    %1644 = vrot.lane.b32.xlu0 %v1586, 8
    %v1645 = vpop.permute.xlu0 %1644
    %1646 = vrot.lane.b32.xlu0 %v1587, 8
    %v1647 = vpop.permute.xlu0 %1646
    %1668 = vst.msk [vmem:[%s1427] sm:$0xff] %vm644, %v1609
    %1669 = vst.msk [vmem:[%s1427 + $0x8] sm:$0xff] %vm644, %v1611
    %1670 = vst.msk [vmem:[%s1427 + $0x10] sm:$0xff] %vm644, %v1613
    %1671 = vst.msk [vmem:[%s1427 + $0x18] sm:$0xff] %vm644, %v1615
    %1672 = vst.msk [vmem:[%s1427 + $0x20] sm:$0xff] %vm644, %v1617
    %1673 = vst.msk [vmem:[%s1427 + $0x28] sm:$0xff] %vm644, %v1619
    %1674 = vst.msk [vmem:[%s1427 + $0x30] sm:$0xff] %vm644, %v1621
    %1675 = vst.msk [vmem:[%s1427 + $0x38] sm:$0xff] %vm644, %v1623
    %1676 = vst.msk [vmem:[%s1427 + $0x40] sm:$0xff] %vm644, %v1625
    %1677 = vst.msk [vmem:[%s1427 + $0x48] sm:$0xff] %vm644, %v1627
    %1678 = vst.msk [vmem:[%s1427 + $0x50] sm:$0xff] %vm644, %v1629
    %1679 = vst.msk [vmem:[%s1427 + $0x58] sm:$0xff] %vm644, %v1631
    %1680 = vst.msk [vmem:[%s1427 + $0x60] sm:$0xff] %vm644, %v1633
    %1681 = vst.msk [vmem:[%s1427 + $0x68] sm:$0xff] %vm644, %v1635
    %1682 = vst.msk [vmem:[%s1427 + $0x70] sm:$0xff] %vm644, %v1637
    %1683 = vst.msk [vmem:[%s1427 + $0x78] sm:$0xff] %vm644, %v1639
    %1684 = vst.msk [vmem:[%s1427 + $0x80] sm:$0xff] %vm644, %v1641
    %1685 = vst.msk [vmem:[%s1427 + $0x88] sm:$0xff] %vm644, %v1643
    %1686 = vst.msk [vmem:[%s1427 + $0x90] sm:$0xff] %vm644, %v1645
    %1687 = vst.msk [vmem:[%s1427 + $0x98] sm:$0xff] %vm644, %v1647
    %v1688 = vld [vmem:[%s1245] sm:$0xff]
    %v1689 = vld [vmem:[%s1245 + $0x8] sm:$0xff]
    %v1690 = vld [vmem:[%s1245 + $0x10] sm:$0xff]
    %v1691 = vld [vmem:[%s1245 + $0x18] sm:$0xff]
    %v1692 = vld [vmem:[%s1245 + $0x20] sm:$0xff]
    %v1693 = vld [vmem:[%s1245 + $0x28] sm:$0xff]
    %v1694 = vld [vmem:[%s1245 + $0x30] sm:$0xff]
    %v1695 = vld [vmem:[%s1245 + $0x38] sm:$0xff]
    %v1696 = vld [vmem:[%s1245 + $0x40] sm:$0xff]
    %v1697 = vld [vmem:[%s1245 + $0x48] sm:$0xff]
    %v1698 = vld [vmem:[%s1245 + $0x50] sm:$0xff]
    %v1699 = vld [vmem:[%s1245 + $0x58] sm:$0xff]
    %v1700 = vld [vmem:[%s1245 + $0x60] sm:$0xff]
    %v1701 = vld [vmem:[%s1245 + $0x68] sm:$0xff]
    %v1702 = vld [vmem:[%s1245 + $0x70] sm:$0xff]
    %v1703 = vld [vmem:[%s1245 + $0x78] sm:$0xff]
    %v1704 = vld [vmem:[%s1245 + $0x80] sm:$0xff]
    %v1705 = vld [vmem:[%s1245 + $0x88] sm:$0xff]
    %v1706 = vld [vmem:[%s1245 + $0x90] sm:$0xff]
    %v1707 = vld [vmem:[%s1245 + $0x98] sm:$0xff]
    %1728 = vrot.lane.b32.xlu0 %v1688, 12
    %v1729 = vpop.permute.xlu0 %1728
    %1730 = vrot.lane.b32.xlu0 %v1689, 12
    %v1731 = vpop.permute.xlu0 %1730
    %1732 = vrot.lane.b32.xlu0 %v1690, 12
    %v1733 = vpop.permute.xlu0 %1732
    %1734 = vrot.lane.b32.xlu0 %v1691, 12
    %v1735 = vpop.permute.xlu0 %1734
    %1736 = vrot.lane.b32.xlu0 %v1692, 12
    %v1737 = vpop.permute.xlu0 %1736
    %1738 = vrot.lane.b32.xlu0 %v1693, 12
    %v1739 = vpop.permute.xlu0 %1738
    %1740 = vrot.lane.b32.xlu0 %v1694, 12
    %v1741 = vpop.permute.xlu0 %1740
    %1742 = vrot.lane.b32.xlu0 %v1695, 12
    %v1743 = vpop.permute.xlu0 %1742
    %1744 = vrot.lane.b32.xlu0 %v1696, 12
    %v1745 = vpop.permute.xlu0 %1744
    %1746 = vrot.lane.b32.xlu0 %v1697, 12
    %v1747 = vpop.permute.xlu0 %1746
    %1748 = vrot.lane.b32.xlu0 %v1698, 12
    %v1749 = vpop.permute.xlu0 %1748
    %1750 = vrot.lane.b32.xlu0 %v1699, 12
    %v1751 = vpop.permute.xlu0 %1750
    %1752 = vrot.lane.b32.xlu0 %v1700, 12
    %v1753 = vpop.permute.xlu0 %1752
    %1754 = vrot.lane.b32.xlu0 %v1701, 12
    %v1755 = vpop.permute.xlu0 %1754
    %1756 = vrot.lane.b32.xlu0 %v1702, 12
    %v1757 = vpop.permute.xlu0 %1756
    %1758 = vrot.lane.b32.xlu0 %v1703, 12
    %v1759 = vpop.permute.xlu0 %1758
    %1760 = vrot.lane.b32.xlu0 %v1704, 12
    %v1761 = vpop.permute.xlu0 %1760
    %1762 = vrot.lane.b32.xlu0 %v1705, 12
    %v1763 = vpop.permute.xlu0 %1762
    %1764 = vrot.lane.b32.xlu0 %v1706, 12
    %v1765 = vpop.permute.xlu0 %1764
    %1766 = vrot.lane.b32.xlu0 %v1707, 12
    %v1767 = vpop.permute.xlu0 %1766
    %1788 = vst.msk [vmem:[%s1427] sm:$0xff] %vm910, %v1729
    %1789 = vst.msk [vmem:[%s1427 + $0x8] sm:$0xff] %vm910, %v1731
    %1790 = vst.msk [vmem:[%s1427 + $0x10] sm:$0xff] %vm910, %v1733
    %1791 = vst.msk [vmem:[%s1427 + $0x18] sm:$0xff] %vm910, %v1735
    %1792 = vst.msk [vmem:[%s1427 + $0x20] sm:$0xff] %vm910, %v1737
    %1793 = vst.msk [vmem:[%s1427 + $0x28] sm:$0xff] %vm910, %v1739
    %1794 = vst.msk [vmem:[%s1427 + $0x30] sm:$0xff] %vm910, %v1741
    %1795 = vst.msk [vmem:[%s1427 + $0x38] sm:$0xff] %vm910, %v1743
    %1796 = vst.msk [vmem:[%s1427 + $0x40] sm:$0xff] %vm910, %v1745
    %1797 = vst.msk [vmem:[%s1427 + $0x48] sm:$0xff] %vm910, %v1747
    %1798 = vst.msk [vmem:[%s1427 + $0x50] sm:$0xff] %vm910, %v1749
    %1799 = vst.msk [vmem:[%s1427 + $0x58] sm:$0xff] %vm910, %v1751
    %1800 = vst.msk [vmem:[%s1427 + $0x60] sm:$0xff] %vm910, %v1753
    %1801 = vst.msk [vmem:[%s1427 + $0x68] sm:$0xff] %vm910, %v1755
    %1802 = vst.msk [vmem:[%s1427 + $0x70] sm:$0xff] %vm910, %v1757
    %1803 = vst.msk [vmem:[%s1427 + $0x78] sm:$0xff] %vm910, %v1759
    %1804 = vst.msk [vmem:[%s1427 + $0x80] sm:$0xff] %vm910, %v1761
    %1805 = vst.msk [vmem:[%s1427 + $0x88] sm:$0xff] %vm910, %v1763
    %1806 = vst.msk [vmem:[%s1427 + $0x90] sm:$0xff] %vm910, %v1765
    %1807 = vst.msk [vmem:[%s1427 + $0x98] sm:$0xff] %vm910, %v1767
    %v1808 = vld [vmem:[%s1253] sm:$0xff]
    %v1809 = vld [vmem:[%s1253 + $0x8] sm:$0xff]
    %v1810 = vld [vmem:[%s1253 + $0x10] sm:$0xff]
    %v1811 = vld [vmem:[%s1253 + $0x18] sm:$0xff]
    %v1812 = vld [vmem:[%s1253 + $0x20] sm:$0xff]
    %v1813 = vld [vmem:[%s1253 + $0x28] sm:$0xff]
    %v1814 = vld [vmem:[%s1253 + $0x30] sm:$0xff]
    %v1815 = vld [vmem:[%s1253 + $0x38] sm:$0xff]
    %v1816 = vld [vmem:[%s1253 + $0x40] sm:$0xff]
    %v1817 = vld [vmem:[%s1253 + $0x48] sm:$0xff]
    %v1818 = vld [vmem:[%s1253 + $0x50] sm:$0xff]
    %v1819 = vld [vmem:[%s1253 + $0x58] sm:$0xff]
    %v1820 = vld [vmem:[%s1253 + $0x60] sm:$0xff]
    %v1821 = vld [vmem:[%s1253 + $0x68] sm:$0xff]
    %v1822 = vld [vmem:[%s1253 + $0x70] sm:$0xff]
    %v1823 = vld [vmem:[%s1253 + $0x78] sm:$0xff]
    %v1824 = vld [vmem:[%s1253 + $0x80] sm:$0xff]
    %v1825 = vld [vmem:[%s1253 + $0x88] sm:$0xff]
    %v1826 = vld [vmem:[%s1253 + $0x90] sm:$0xff]
    %v1827 = vld [vmem:[%s1253 + $0x98] sm:$0xff]
    %1848 = vrot.lane.b32.xlu0 %v1808, 16
    %v1849 = vpop.permute.xlu0 %1848
    %1850 = vrot.lane.b32.xlu0 %v1809, 16
    %v1851 = vpop.permute.xlu0 %1850
    %1852 = vrot.lane.b32.xlu0 %v1810, 16
    %v1853 = vpop.permute.xlu0 %1852
    %1854 = vrot.lane.b32.xlu0 %v1811, 16
    %v1855 = vpop.permute.xlu0 %1854
    %1856 = vrot.lane.b32.xlu0 %v1812, 16
    %v1857 = vpop.permute.xlu0 %1856
    %1858 = vrot.lane.b32.xlu0 %v1813, 16
    %v1859 = vpop.permute.xlu0 %1858
    %1860 = vrot.lane.b32.xlu0 %v1814, 16
    %v1861 = vpop.permute.xlu0 %1860
    %1862 = vrot.lane.b32.xlu0 %v1815, 16
    %v1863 = vpop.permute.xlu0 %1862
    %1864 = vrot.lane.b32.xlu0 %v1816, 16
    %v1865 = vpop.permute.xlu0 %1864
    %1866 = vrot.lane.b32.xlu0 %v1817, 16
    %v1867 = vpop.permute.xlu0 %1866
    %1868 = vrot.lane.b32.xlu0 %v1818, 16
    %v1869 = vpop.permute.xlu0 %1868
    %1870 = vrot.lane.b32.xlu0 %v1819, 16
    %v1871 = vpop.permute.xlu0 %1870
    %1872 = vrot.lane.b32.xlu0 %v1820, 16
    %v1873 = vpop.permute.xlu0 %1872
    %1874 = vrot.lane.b32.xlu0 %v1821, 16
    %v1875 = vpop.permute.xlu0 %1874
    %1876 = vrot.lane.b32.xlu0 %v1822, 16
    %v1877 = vpop.permute.xlu0 %1876
    %1878 = vrot.lane.b32.xlu0 %v1823, 16
    %v1879 = vpop.permute.xlu0 %1878
    %1880 = vrot.lane.b32.xlu0 %v1824, 16
    %v1881 = vpop.permute.xlu0 %1880
    %1882 = vrot.lane.b32.xlu0 %v1825, 16
    %v1883 = vpop.permute.xlu0 %1882
    %1884 = vrot.lane.b32.xlu0 %v1826, 16
    %v1885 = vpop.permute.xlu0 %1884
    %1886 = vrot.lane.b32.xlu0 %v1827, 16
    %v1887 = vpop.permute.xlu0 %1886
    %1908 = vst.msk [vmem:[%s1427] sm:$0xff] %vm1176, %v1849
    %1909 = vst.msk [vmem:[%s1427 + $0x8] sm:$0xff] %vm1176, %v1851
    %1910 = vst.msk [vmem:[%s1427 + $0x10] sm:$0xff] %vm1176, %v1853
    %1911 = vst.msk [vmem:[%s1427 + $0x18] sm:$0xff] %vm1176, %v1855
    %1912 = vst.msk [vmem:[%s1427 + $0x20] sm:$0xff] %vm1176, %v1857
    %1913 = vst.msk [vmem:[%s1427 + $0x28] sm:$0xff] %vm1176, %v1859
    %1914 = vst.msk [vmem:[%s1427 + $0x30] sm:$0xff] %vm1176, %v1861
    %1915 = vst.msk [vmem:[%s1427 + $0x38] sm:$0xff] %vm1176, %v1863
    %1916 = vst.msk [vmem:[%s1427 + $0x40] sm:$0xff] %vm1176, %v1865
    %1917 = vst.msk [vmem:[%s1427 + $0x48] sm:$0xff] %vm1176, %v1867
    %1918 = vst.msk [vmem:[%s1427 + $0x50] sm:$0xff] %vm1176, %v1869
    %1919 = vst.msk [vmem:[%s1427 + $0x58] sm:$0xff] %vm1176, %v1871
    %1920 = vst.msk [vmem:[%s1427 + $0x60] sm:$0xff] %vm1176, %v1873
    %1921 = vst.msk [vmem:[%s1427 + $0x68] sm:$0xff] %vm1176, %v1875
    %1922 = vst.msk [vmem:[%s1427 + $0x70] sm:$0xff] %vm1176, %v1877
    %1923 = vst.msk [vmem:[%s1427 + $0x78] sm:$0xff] %vm1176, %v1879
    %1924 = vst.msk [vmem:[%s1427 + $0x80] sm:$0xff] %vm1176, %v1881
    %1925 = vst.msk [vmem:[%s1427 + $0x88] sm:$0xff] %vm1176, %v1883
    %1926 = vst.msk [vmem:[%s1427 + $0x90] sm:$0xff] %vm1176, %v1885
    %1927 = vst.msk [vmem:[%s1427 + $0x98] sm:$0xff] %vm1176, %v1887
    %v1928 = vld [vmem:[#allocation3] sm:$0xff]
    %v1929 = vld [vmem:[#allocation3 + $0x8] sm:$0xff]
    %v1930 = vld [vmem:[#allocation3 + $0x10] sm:$0xff]
    %v1931 = vld [vmem:[#allocation3 + $0x18] sm:$0xff]
    %v1932 = vld [vmem:[#allocation3 + $0x20] sm:$0xff]
    %v1933 = vld [vmem:[#allocation3 + $0x28] sm:$0xff]
    %v1934 = vld [vmem:[#allocation3 + $0x30] sm:$0xff]
    %v1935 = vld [vmem:[#allocation3 + $0x38] sm:$0xff]
    %v1936 = vld [vmem:[#allocation3 + $0x40] sm:$0xff]
    %v1937 = vld [vmem:[#allocation3 + $0x48] sm:$0xff]
    %v1938 = vld [vmem:[#allocation3 + $0x50] sm:$0xff]
    %v1939 = vld [vmem:[#allocation3 + $0x58] sm:$0xff]
    %v1940 = vld [vmem:[#allocation3 + $0x60] sm:$0xff]
    %v1941 = vld [vmem:[#allocation3 + $0x68] sm:$0xff]
    %v1942 = vld [vmem:[#allocation3 + $0x70] sm:$0xff]
    %v1943 = vld [vmem:[#allocation3 + $0x78] sm:$0xff]
    %v1944 = vld [vmem:[#allocation3 + $0x80] sm:$0xff]
    %v1945 = vld [vmem:[#allocation3 + $0x88] sm:$0xff]
    %v1946 = vld [vmem:[#allocation3 + $0x90] sm:$0xff]
    %v1947 = vld [vmem:[#allocation3 + $0x98] sm:$0xff]
    %v1948 = vld [vmem:[#allocation3 + $0xa0] sm:$0xff]
    %v1949 = vld [vmem:[#allocation3 + $0xa8] sm:$0xff]
    %v1950 = vld [vmem:[#allocation3 + $0xb0] sm:$0xff]
    %v1951 = vld [vmem:[#allocation3 + $0xb8] sm:$0xff]
    %v1952 = vld [vmem:[#allocation3 + $0xc0] sm:$0xff]
    %v1953 = vld [vmem:[#allocation3 + $0xc8] sm:$0xff]
    %v1954 = vld [vmem:[#allocation3 + $0xd0] sm:$0xff]
    %v1955 = vld [vmem:[#allocation3 + $0xd8] sm:$0xff]
    %v1956 = vld [vmem:[#allocation3 + $0xe0] sm:$0xff]
    %v1957 = vld [vmem:[#allocation3 + $0xe8] sm:$0xff]
    %v1958 = vld [vmem:[#allocation3 + $0xf0] sm:$0xff]
    %v1959 = vld [vmem:[#allocation3 + $0xf8] sm:$0xff]
    %v1960 = vld [vmem:[#allocation3 + $0x100] sm:$0xff]
    %v1961 = vld [vmem:[#allocation3 + $0x108] sm:$0xff]
    %v1962 = vld [vmem:[#allocation3 + $0x110] sm:$0xff]
    %v1963 = vld [vmem:[#allocation3 + $0x118] sm:$0xff]
    %v1964 = vld [vmem:[#allocation3 + $0x120] sm:$0xff]
    %v1965 = vld [vmem:[#allocation3 + $0x128] sm:$0xff]
    %v1966 = vld [vmem:[#allocation3 + $0x130] sm:$0xff]
    %v1967 = vld [vmem:[#allocation3 + $0x138] sm:$0xff]
    %v1968 = vld [vmem:[#allocation3 + $0x140] sm:$0xff]
    %v1969 = vld [vmem:[#allocation3 + $0x148] sm:$0xff]
    %v1970 = vld [vmem:[#allocation3 + $0x150] sm:$0xff]
    %v1971 = vld [vmem:[#allocation3 + $0x158] sm:$0xff]
    %v1972 = vld [vmem:[#allocation3 + $0x160] sm:$0xff]
    %v1973 = vld [vmem:[#allocation3 + $0x168] sm:$0xff]
    %v1974 = vld [vmem:[#allocation3 + $0x170] sm:$0xff]
    %v1975 = vld [vmem:[#allocation3 + $0x178] sm:$0xff]
    %v1976 = vld [vmem:[#allocation3 + $0x180] sm:$0xff]
    %v1977 = vld [vmem:[#allocation3 + $0x188] sm:$0xff]
    %v1978 = vld [vmem:[#allocation3 + $0x190] sm:$0xff]
    %v1979 = vld [vmem:[#allocation3 + $0x198] sm:$0xff]
    %v1980 = vld [vmem:[#allocation3 + $0x1a0] sm:$0xff]
    %v1981 = vld [vmem:[#allocation3 + $0x1a8] sm:$0xff]
    %v1982 = vld [vmem:[#allocation3 + $0x1b0] sm:$0xff]
    %v1983 = vld [vmem:[#allocation3 + $0x1b8] sm:$0xff]
    %v1984 = vld [vmem:[#allocation3 + $0x1c0] sm:$0xff]
    %v1985 = vld [vmem:[#allocation3 + $0x1c8] sm:$0xff]
    %v1986 = vld [vmem:[#allocation3 + $0x1d0] sm:$0xff]
    %v1987 = vld [vmem:[#allocation3 + $0x1d8] sm:$0xff]
    %v1988 = vld [vmem:[#allocation3 + $0x1e0] sm:$0xff]
    %v1989 = vld [vmem:[#allocation3 + $0x1e8] sm:$0xff]
    %v1990 = vld [vmem:[#allocation3 + $0x1f0] sm:$0xff]
    %v1991 = vld [vmem:[#allocation3 + $0x1f8] sm:$0xff]
    %v1992 = vld [vmem:[%s1] sm:$0xff]
    %v1993 = vld [vmem:[%s1 + $0x8] sm:$0xff]
    %v1994 = vld [vmem:[%s1 + $0x10] sm:$0xf]
    %v1995 = vld [vmem:[%s2] sm:$0x1]
    %v1997 = vperm.slane %v1995, 0
    %vm1999 = vcmask 162816
    %v2001 = vsel %vm1999, %v1928, 0
    %v2004 = vsel %vm1999, %v1929, 0
    %v2007 = vsel %vm1999, %v1930, 0
    %v2010 = vsel %vm1999, %v1931, 0
    %v2013 = vsel %vm1999, %v1932, 0
    %v2016 = vsel %vm1999, %v1933, 0
    %v2019 = vsel %vm1999, %v1934, 0
    %v2022 = vsel %vm1999, %v1935, 0
    %v2025 = vsel %vm1999, %v1936, 0
    %v2028 = vsel %vm1999, %v1937, 0
    %v2031 = vsel %vm1999, %v1938, 0
    %v2034 = vsel %vm1999, %v1939, 0
    %v2037 = vsel %vm1999, %v1940, 0
    %v2040 = vsel %vm1999, %v1941, 0
    %v2043 = vsel %vm1999, %v1942, 0
    %v2046 = vsel %vm1999, %v1943, 0
    %v2049 = vsel %vm1999, %v1944, 0
    %v2052 = vsel %vm1999, %v1945, 0
    %v2055 = vsel %vm1999, %v1946, 0
    %v2058 = vsel %vm1999, %v1947, 0
    %v2061 = vsel %vm1999, %v1948, 0
    %v2064 = vsel %vm1999, %v1949, 0
    %v2067 = vsel %vm1999, %v1950, 0
    %v2070 = vsel %vm1999, %v1951, 0
    %v2073 = vsel %vm1999, %v1952, 0
    %v2076 = vsel %vm1999, %v1953, 0
    %v2079 = vsel %vm1999, %v1954, 0
    %v2082 = vsel %vm1999, %v1955, 0
    %v2085 = vsel %vm1999, %v1956, 0
    %v2088 = vsel %vm1999, %v1957, 0
    %v2091 = vsel %vm1999, %v1958, 0
    %v2094 = vsel %vm1999, %v1959, 0
    %v2097 = vsel %vm1999, %v1960, 0
    %v2100 = vsel %vm1999, %v1961, 0
    %v2103 = vsel %vm1999, %v1962, 0
    %v2106 = vsel %vm1999, %v1963, 0
    %v2109 = vsel %vm1999, %v1964, 0
    %v2112 = vsel %vm1999, %v1965, 0
    %v2115 = vsel %vm1999, %v1966, 0
    %v2118 = vsel %vm1999, %v1967, 0
    %v2121 = vsel %vm1999, %v1968, 0
    %v2124 = vsel %vm1999, %v1969, 0
    %v2127 = vsel %vm1999, %v1970, 0
    %v2130 = vsel %vm1999, %v1971, 0
    %v2133 = vsel %vm1999, %v1972, 0
    %v2136 = vsel %vm1999, %v1973, 0
    %v2139 = vsel %vm1999, %v1974, 0
    %v2142 = vsel %vm1999, %v1975, 0
    %v2145 = vsel %vm1999, %v1976, 0
    %v2148 = vsel %vm1999, %v1977, 0
    %v2151 = vsel %vm1999, %v1978, 0
    %v2154 = vsel %vm1999, %v1979, 0
    %v2157 = vsel %vm1999, %v1980, 0
    %v2160 = vsel %vm1999, %v1981, 0
    %v2163 = vsel %vm1999, %v1982, 0
    %v2166 = vsel %vm1999, %v1983, 0
    %v2169 = vsel %vm1999, %v1984, 0
    %v2172 = vsel %vm1999, %v1985, 0
    %v2175 = vsel %vm1999, %v1986, 0
    %v2178 = vsel %vm1999, %v1987, 0
    %v2181 = vsel %vm1999, %v1988, 0
    %v2184 = vsel %vm1999, %v1989, 0
    %v2187 = vsel %vm1999, %v1990, 0
    %v2190 = vsel %vm1999, %v1991, 0
    %vm2192 = vcmask 1043456
    %v2194 = vsel %vm2192, %v1994, 0
    %2196 = vmatpush.msra.mxu0 0.0
    %2197 = vmatpush.msra.mxu0 0.0
    %2198 = vmatpush.msra.mxu0 0.0
    %2199 = vmatpush.msra.mxu0 0.0
    %2200 = vmatpush.msra.mxu0 0.0
    %2201 = vmatpush.msra.mxu0 0.0
    %2202 = vmatpush.msra.mxu0 0.0
    %2203 = vmatpush.msra.mxu0 0.0
    %2204 = vmatpush.msra.mxu0 0.0
    %2205 = vmatpush.msra.mxu0 0.0
    %2206 = vmatpush.msra.mxu0 0.0
    %2207 = vmatpush.msra.mxu0 0.0
    %2208 = vmatpush.msra.mxu0 0.0
    %2209 = vmatpush.msra.mxu0 %v2194
    %2210 = vmatpush.msra.mxu0 %v1993
    %2211 = vmatpush.msra.mxu0 %v1992
    %2212 = vmatmul.f32.gmra.mxu0 %v2001
    %v2213 = vpop.f32.mrf.mxu0
    %v2214 = vadd.f32 %v1997, %v2213
    %2215 = vmatmul.f32.gmra.mxu0 %v2004
    %v2216 = vpop.f32.mrf.mxu0
    %v2217 = vadd.f32 %v1997, %v2216
    %2218 = vmatmul.f32.gmra.mxu0 %v2007
    %v2219 = vpop.f32.mrf.mxu0
    %v2220 = vadd.f32 %v1997, %v2219
    %2221 = vmatmul.f32.gmra.mxu0 %v2010
    %v2222 = vpop.f32.mrf.mxu0
    %v2223 = vadd.f32 %v1997, %v2222
    %2224 = vmatmul.f32.gmra.mxu0 %v2013
    %v2225 = vpop.f32.mrf.mxu0
    %v2226 = vadd.f32 %v1997, %v2225
    %2227 = vmatmul.f32.gmra.mxu0 %v2016
    %v2228 = vpop.f32.mrf.mxu0
    %v2229 = vadd.f32 %v1997, %v2228
    %2230 = vmatmul.f32.gmra.mxu0 %v2019
    %v2231 = vpop.f32.mrf.mxu0
    %v2232 = vadd.f32 %v1997, %v2231
    %2233 = vmatmul.f32.gmra.mxu0 %v2022
    %v2234 = vpop.f32.mrf.mxu0
    %v2235 = vadd.f32 %v1997, %v2234
    %2236 = vmatmul.f32.gmra.mxu0 %v2025
    %v2237 = vpop.f32.mrf.mxu0
    %v2238 = vadd.f32 %v1997, %v2237
    %2239 = vmatmul.f32.gmra.mxu0 %v2028
    %v2240 = vpop.f32.mrf.mxu0
    %v2241 = vadd.f32 %v1997, %v2240
    %2242 = vmatmul.f32.gmra.mxu0 %v2031
    %v2243 = vpop.f32.mrf.mxu0
    %v2244 = vadd.f32 %v1997, %v2243
    %2245 = vmatmul.f32.gmra.mxu0 %v2034
    %v2246 = vpop.f32.mrf.mxu0
    %v2247 = vadd.f32 %v1997, %v2246
    %2248 = vmatmul.f32.gmra.mxu0 %v2037
    %v2249 = vpop.f32.mrf.mxu0
    %v2250 = vadd.f32 %v1997, %v2249
    %2251 = vmatmul.f32.gmra.mxu0 %v2040
    %v2252 = vpop.f32.mrf.mxu0
    %v2253 = vadd.f32 %v1997, %v2252
    %2254 = vmatmul.f32.gmra.mxu0 %v2043
    %v2255 = vpop.f32.mrf.mxu0
    %v2256 = vadd.f32 %v1997, %v2255
    %2257 = vmatmul.f32.gmra.mxu0 %v2046
    %v2258 = vpop.f32.mrf.mxu0
    %v2259 = vadd.f32 %v1997, %v2258
    %2260 = vmatmul.f32.gmra.mxu0 %v2049
    %v2261 = vpop.f32.mrf.mxu0
    %v2262 = vadd.f32 %v1997, %v2261
    %2263 = vmatmul.f32.gmra.mxu0 %v2052
    %v2264 = vpop.f32.mrf.mxu0
    %v2265 = vadd.f32 %v1997, %v2264
    %2266 = vmatmul.f32.gmra.mxu0 %v2055
    %v2267 = vpop.f32.mrf.mxu0
    %v2268 = vadd.f32 %v1997, %v2267
    %2269 = vmatmul.f32.gmra.mxu0 %v2058
    %v2270 = vpop.f32.mrf.mxu0
    %v2271 = vadd.f32 %v1997, %v2270
    %2272 = vmatmul.f32.gmra.mxu0 %v2061
    %v2273 = vpop.f32.mrf.mxu0
    %v2274 = vadd.f32 %v1997, %v2273
    %2275 = vmatmul.f32.gmra.mxu0 %v2064
    %v2276 = vpop.f32.mrf.mxu0
    %v2277 = vadd.f32 %v1997, %v2276
    %2278 = vmatmul.f32.gmra.mxu0 %v2067
    %v2279 = vpop.f32.mrf.mxu0
    %v2280 = vadd.f32 %v1997, %v2279
    %2281 = vmatmul.f32.gmra.mxu0 %v2070
    %v2282 = vpop.f32.mrf.mxu0
    %v2283 = vadd.f32 %v1997, %v2282
    %2284 = vmatmul.f32.gmra.mxu0 %v2073
    %v2285 = vpop.f32.mrf.mxu0
    %v2286 = vadd.f32 %v1997, %v2285
    %2287 = vmatmul.f32.gmra.mxu0 %v2076
    %v2288 = vpop.f32.mrf.mxu0
    %v2289 = vadd.f32 %v1997, %v2288
    %2290 = vmatmul.f32.gmra.mxu0 %v2079
    %v2291 = vpop.f32.mrf.mxu0
    %v2292 = vadd.f32 %v1997, %v2291
    %2293 = vmatmul.f32.gmra.mxu0 %v2082
    %v2294 = vpop.f32.mrf.mxu0
    %v2295 = vadd.f32 %v1997, %v2294
    %2296 = vmatmul.f32.gmra.mxu0 %v2085
    %v2297 = vpop.f32.mrf.mxu0
    %v2298 = vadd.f32 %v1997, %v2297
    %2299 = vmatmul.f32.gmra.mxu0 %v2088
    %v2300 = vpop.f32.mrf.mxu0
    %v2301 = vadd.f32 %v1997, %v2300
    %2302 = vmatmul.f32.gmra.mxu0 %v2091
    %v2303 = vpop.f32.mrf.mxu0
    %v2304 = vadd.f32 %v1997, %v2303
    %2305 = vmatmul.f32.gmra.mxu0 %v2094
    %v2306 = vpop.f32.mrf.mxu0
    %v2307 = vadd.f32 %v1997, %v2306
    %2308 = vmatmul.f32.gmra.mxu0 %v2097
    %v2309 = vpop.f32.mrf.mxu0
    %v2310 = vadd.f32 %v1997, %v2309
    %2311 = vmatmul.f32.gmra.mxu0 %v2100
    %v2312 = vpop.f32.mrf.mxu0
    %v2313 = vadd.f32 %v1997, %v2312
    %2314 = vmatmul.f32.gmra.mxu0 %v2103
    %v2315 = vpop.f32.mrf.mxu0
    %v2316 = vadd.f32 %v1997, %v2315
    %2317 = vmatmul.f32.gmra.mxu0 %v2106
    %v2318 = vpop.f32.mrf.mxu0
    %v2319 = vadd.f32 %v1997, %v2318
    %2320 = vmatmul.f32.gmra.mxu0 %v2109
    %v2321 = vpop.f32.mrf.mxu0
    %v2322 = vadd.f32 %v1997, %v2321
    %2323 = vmatmul.f32.gmra.mxu0 %v2112
    %v2324 = vpop.f32.mrf.mxu0
    %v2325 = vadd.f32 %v1997, %v2324
    %2326 = vmatmul.f32.gmra.mxu0 %v2115
    %v2327 = vpop.f32.mrf.mxu0
    %v2328 = vadd.f32 %v1997, %v2327
    %2329 = vmatmul.f32.gmra.mxu0 %v2118
    %v2330 = vpop.f32.mrf.mxu0
    %v2331 = vadd.f32 %v1997, %v2330
    %2332 = vmatmul.f32.gmra.mxu0 %v2121
    %v2333 = vpop.f32.mrf.mxu0
    %v2334 = vadd.f32 %v1997, %v2333
    %2335 = vmatmul.f32.gmra.mxu0 %v2124
    %v2336 = vpop.f32.mrf.mxu0
    %v2337 = vadd.f32 %v1997, %v2336
    %2338 = vmatmul.f32.gmra.mxu0 %v2127
    %v2339 = vpop.f32.mrf.mxu0
    %v2340 = vadd.f32 %v1997, %v2339
    %2341 = vmatmul.f32.gmra.mxu0 %v2130
    %v2342 = vpop.f32.mrf.mxu0
    %v2343 = vadd.f32 %v1997, %v2342
    %2344 = vmatmul.f32.gmra.mxu0 %v2133
    %v2345 = vpop.f32.mrf.mxu0
    %v2346 = vadd.f32 %v1997, %v2345
    %2347 = vmatmul.f32.gmra.mxu0 %v2136
    %v2348 = vpop.f32.mrf.mxu0
    %v2349 = vadd.f32 %v1997, %v2348
    %2350 = vmatmul.f32.gmra.mxu0 %v2139
    %v2351 = vpop.f32.mrf.mxu0
    %v2352 = vadd.f32 %v1997, %v2351
    %2353 = vmatmul.f32.gmra.mxu0 %v2142
    %v2354 = vpop.f32.mrf.mxu0
    %v2355 = vadd.f32 %v1997, %v2354
    %2356 = vmatmul.f32.gmra.mxu0 %v2145
    %v2357 = vpop.f32.mrf.mxu0
    %v2358 = vadd.f32 %v1997, %v2357
    %2359 = vmatmul.f32.gmra.mxu0 %v2148
    %v2360 = vpop.f32.mrf.mxu0
    %v2361 = vadd.f32 %v1997, %v2360
    %2362 = vmatmul.f32.gmra.mxu0 %v2151
    %v2363 = vpop.f32.mrf.mxu0
    %v2364 = vadd.f32 %v1997, %v2363
    %2365 = vmatmul.f32.gmra.mxu0 %v2154
    %v2366 = vpop.f32.mrf.mxu0
    %v2367 = vadd.f32 %v1997, %v2366
    %2368 = vmatmul.f32.gmra.mxu0 %v2157
    %v2369 = vpop.f32.mrf.mxu0
    %v2370 = vadd.f32 %v1997, %v2369
    %2371 = vmatmul.f32.gmra.mxu0 %v2160
    %v2372 = vpop.f32.mrf.mxu0
    %v2373 = vadd.f32 %v1997, %v2372
    %2374 = vmatmul.f32.gmra.mxu0 %v2163
    %v2375 = vpop.f32.mrf.mxu0
    %v2376 = vadd.f32 %v1997, %v2375
    %2377 = vmatmul.f32.gmra.mxu0 %v2166
    %v2378 = vpop.f32.mrf.mxu0
    %v2379 = vadd.f32 %v1997, %v2378
    %2380 = vmatmul.f32.gmra.mxu0 %v2169
    %v2381 = vpop.f32.mrf.mxu0
    %v2382 = vadd.f32 %v1997, %v2381
    %2383 = vmatmul.f32.gmra.mxu0 %v2172
    %v2384 = vpop.f32.mrf.mxu0
    %v2385 = vadd.f32 %v1997, %v2384
    %2386 = vmatmul.f32.gmra.mxu0 %v2175
    %v2387 = vpop.f32.mrf.mxu0
    %v2388 = vadd.f32 %v1997, %v2387
    %2389 = vmatmul.f32.gmra.mxu0 %v2178
    %v2390 = vpop.f32.mrf.mxu0
    %v2391 = vadd.f32 %v1997, %v2390
    %2392 = vmatmul.f32.gmra.mxu0 %v2181
    %v2393 = vpop.f32.mrf.mxu0
    %v2394 = vadd.f32 %v1997, %v2393
    %2395 = vmatmul.f32.gmra.mxu0 %v2184
    %v2396 = vpop.f32.mrf.mxu0
    %v2397 = vadd.f32 %v1997, %v2396
    %2398 = vmatmul.f32.gmra.mxu0 %v2187
    %v2399 = vpop.f32.mrf.mxu0
    %v2400 = vadd.f32 %v1997, %v2399
    %2401 = vmatmul.f32.gmra.mxu0 %v2190
    %v2402 = vpop.f32.mrf.mxu0
    %v2403 = vadd.f32 %v1997, %v2402
    %2404 = vdwg.mxu0
    %v2405 = vmax.f32 %v2214, 0.0
    %v2406 = vmax.f32 %v2217, 0.0
    %v2407 = vmax.f32 %v2220, 0.0
    %v2408 = vmax.f32 %v2223, 0.0
    %v2409 = vmax.f32 %v2226, 0.0
    %v2410 = vmax.f32 %v2229, 0.0
    %v2411 = vmax.f32 %v2232, 0.0
    %v2412 = vmax.f32 %v2235, 0.0
    %v2413 = vmax.f32 %v2238, 0.0
    %v2414 = vmax.f32 %v2241, 0.0
    %v2415 = vmax.f32 %v2244, 0.0
    %v2416 = vmax.f32 %v2247, 0.0
    %v2417 = vmax.f32 %v2250, 0.0
    %v2418 = vmax.f32 %v2253, 0.0
    %v2419 = vmax.f32 %v2256, 0.0
    %v2420 = vmax.f32 %v2259, 0.0
    %v2421 = vmax.f32 %v2262, 0.0
    %v2422 = vmax.f32 %v2265, 0.0
    %v2423 = vmax.f32 %v2268, 0.0
    %v2424 = vmax.f32 %v2271, 0.0
    %v2425 = vmax.f32 %v2274, 0.0
    %v2426 = vmax.f32 %v2277, 0.0
    %v2427 = vmax.f32 %v2280, 0.0
    %v2428 = vmax.f32 %v2283, 0.0
    %v2429 = vmax.f32 %v2286, 0.0
    %v2430 = vmax.f32 %v2289, 0.0
    %v2431 = vmax.f32 %v2292, 0.0
    %v2432 = vmax.f32 %v2295, 0.0
    %v2433 = vmax.f32 %v2298, 0.0
    %v2434 = vmax.f32 %v2301, 0.0
    %v2435 = vmax.f32 %v2304, 0.0
    %v2436 = vmax.f32 %v2307, 0.0
    %v2437 = vmax.f32 %v2310, 0.0
    %v2438 = vmax.f32 %v2313, 0.0
    %v2439 = vmax.f32 %v2316, 0.0
    %v2440 = vmax.f32 %v2319, 0.0
    %v2441 = vmax.f32 %v2322, 0.0
    %v2442 = vmax.f32 %v2325, 0.0
    %v2443 = vmax.f32 %v2328, 0.0
    %v2444 = vmax.f32 %v2331, 0.0
    %v2445 = vmax.f32 %v2334, 0.0
    %v2446 = vmax.f32 %v2337, 0.0
    %v2447 = vmax.f32 %v2340, 0.0
    %v2448 = vmax.f32 %v2343, 0.0
    %v2449 = vmax.f32 %v2346, 0.0
    %v2450 = vmax.f32 %v2349, 0.0
    %v2451 = vmax.f32 %v2352, 0.0
    %v2452 = vmax.f32 %v2355, 0.0
    %v2453 = vmax.f32 %v2358, 0.0
    %v2454 = vmax.f32 %v2361, 0.0
    %v2455 = vmax.f32 %v2364, 0.0
    %v2456 = vmax.f32 %v2367, 0.0
    %v2457 = vmax.f32 %v2370, 0.0
    %v2458 = vmax.f32 %v2373, 0.0
    %v2459 = vmax.f32 %v2376, 0.0
    %v2460 = vmax.f32 %v2379, 0.0
    %v2461 = vmax.f32 %v2382, 0.0
    %v2462 = vmax.f32 %v2385, 0.0
    %v2463 = vmax.f32 %v2388, 0.0
    %v2464 = vmax.f32 %v2391, 0.0
    %v2465 = vmax.f32 %v2394, 0.0
    %v2466 = vmax.f32 %v2397, 0.0
    %v2467 = vmax.f32 %v2400, 0.0
    %v2468 = vmax.f32 %v2403, 0.0
    %vm2469 = vcmask 130048
    %2470 = vst.msk [vmem:[#allocation4] sm:$0xff] %vm2469, %v2405
    %2471 = vst.msk [vmem:[#allocation4 + $0x8] sm:$0xff] %vm2469, %v2406
    %2472 = vst.msk [vmem:[#allocation4 + $0x10] sm:$0xff] %vm2469, %v2407
    %2473 = vst.msk [vmem:[#allocation4 + $0x18] sm:$0xff] %vm2469, %v2408
    %2474 = vst.msk [vmem:[#allocation4 + $0x20] sm:$0xff] %vm2469, %v2409
    %2475 = vst.msk [vmem:[#allocation4 + $0x28] sm:$0xff] %vm2469, %v2410
    %2476 = vst.msk [vmem:[#allocation4 + $0x30] sm:$0xff] %vm2469, %v2411
    %2477 = vst.msk [vmem:[#allocation4 + $0x38] sm:$0xff] %vm2469, %v2412
    %2478 = vst.msk [vmem:[#allocation4 + $0x40] sm:$0xff] %vm2469, %v2413
    %2479 = vst.msk [vmem:[#allocation4 + $0x48] sm:$0xff] %vm2469, %v2414
    %2480 = vst.msk [vmem:[#allocation4 + $0x50] sm:$0xff] %vm2469, %v2415
    %2481 = vst.msk [vmem:[#allocation4 + $0x58] sm:$0xff] %vm2469, %v2416
    %2482 = vst.msk [vmem:[#allocation4 + $0x60] sm:$0xff] %vm2469, %v2417
    %2483 = vst.msk [vmem:[#allocation4 + $0x68] sm:$0xff] %vm2469, %v2418
    %2484 = vst.msk [vmem:[#allocation4 + $0x70] sm:$0xff] %vm2469, %v2419
    %2485 = vst.msk [vmem:[#allocation4 + $0x78] sm:$0xff] %vm2469, %v2420
    %2486 = vst.msk [vmem:[#allocation4 + $0x80] sm:$0xff] %vm2469, %v2421
    %2487 = vst.msk [vmem:[#allocation4 + $0x88] sm:$0xff] %vm2469, %v2422
    %2488 = vst.msk [vmem:[#allocation4 + $0x90] sm:$0xff] %vm2469, %v2423
    %2489 = vst.msk [vmem:[#allocation4 + $0x98] sm:$0xff] %vm2469, %v2424
    %2490 = vst.msk [vmem:[#allocation4 + $0xa0] sm:$0xff] %vm2469, %v2425
    %2491 = vst.msk [vmem:[#allocation4 + $0xa8] sm:$0xff] %vm2469, %v2426
    %2492 = vst.msk [vmem:[#allocation4 + $0xb0] sm:$0xff] %vm2469, %v2427
    %2493 = vst.msk [vmem:[#allocation4 + $0xb8] sm:$0xff] %vm2469, %v2428
    %2494 = vst.msk [vmem:[#allocation4 + $0xc0] sm:$0xff] %vm2469, %v2429
    %2495 = vst.msk [vmem:[#allocation4 + $0xc8] sm:$0xff] %vm2469, %v2430
    %2496 = vst.msk [vmem:[#allocation4 + $0xd0] sm:$0xff] %vm2469, %v2431
    %2497 = vst.msk [vmem:[#allocation4 + $0xd8] sm:$0xff] %vm2469, %v2432
    %2498 = vst.msk [vmem:[#allocation4 + $0xe0] sm:$0xff] %vm2469, %v2433
    %2499 = vst.msk [vmem:[#allocation4 + $0xe8] sm:$0xff] %vm2469, %v2434
    %2500 = vst.msk [vmem:[#allocation4 + $0xf0] sm:$0xff] %vm2469, %v2435
    %2501 = vst.msk [vmem:[#allocation4 + $0xf8] sm:$0xff] %vm2469, %v2436
    %2502 = vst.msk [vmem:[#allocation4 + $0x100] sm:$0xff] %vm2469, %v2437
    %2503 = vst.msk [vmem:[#allocation4 + $0x108] sm:$0xff] %vm2469, %v2438
    %2504 = vst.msk [vmem:[#allocation4 + $0x110] sm:$0xff] %vm2469, %v2439
    %2505 = vst.msk [vmem:[#allocation4 + $0x118] sm:$0xff] %vm2469, %v2440
    %2506 = vst.msk [vmem:[#allocation4 + $0x120] sm:$0xff] %vm2469, %v2441
    %2507 = vst.msk [vmem:[#allocation4 + $0x128] sm:$0xff] %vm2469, %v2442
    %2508 = vst.msk [vmem:[#allocation4 + $0x130] sm:$0xff] %vm2469, %v2443
    %2509 = vst.msk [vmem:[#allocation4 + $0x138] sm:$0xff] %vm2469, %v2444
    %2510 = vst.msk [vmem:[#allocation4 + $0x140] sm:$0xff] %vm2469, %v2445
    %2511 = vst.msk [vmem:[#allocation4 + $0x148] sm:$0xff] %vm2469, %v2446
    %2512 = vst.msk [vmem:[#allocation4 + $0x150] sm:$0xff] %vm2469, %v2447
    %2513 = vst.msk [vmem:[#allocation4 + $0x158] sm:$0xff] %vm2469, %v2448
    %2514 = vst.msk [vmem:[#allocation4 + $0x160] sm:$0xff] %vm2469, %v2449
    %2515 = vst.msk [vmem:[#allocation4 + $0x168] sm:$0xff] %vm2469, %v2450
    %2516 = vst.msk [vmem:[#allocation4 + $0x170] sm:$0xff] %vm2469, %v2451
    %2517 = vst.msk [vmem:[#allocation4 + $0x178] sm:$0xff] %vm2469, %v2452
    %2518 = vst.msk [vmem:[#allocation4 + $0x180] sm:$0xff] %vm2469, %v2453
    %2519 = vst.msk [vmem:[#allocation4 + $0x188] sm:$0xff] %vm2469, %v2454
    %2520 = vst.msk [vmem:[#allocation4 + $0x190] sm:$0xff] %vm2469, %v2455
    %2521 = vst.msk [vmem:[#allocation4 + $0x198] sm:$0xff] %vm2469, %v2456
    %2522 = vst.msk [vmem:[#allocation4 + $0x1a0] sm:$0xff] %vm2469, %v2457
    %2523 = vst.msk [vmem:[#allocation4 + $0x1a8] sm:$0xff] %vm2469, %v2458
    %2524 = vst.msk [vmem:[#allocation4 + $0x1b0] sm:$0xff] %vm2469, %v2459
    %2525 = vst.msk [vmem:[#allocation4 + $0x1b8] sm:$0xff] %vm2469, %v2460
    %2526 = vst.msk [vmem:[#allocation4 + $0x1c0] sm:$0xff] %vm2469, %v2461
    %2527 = vst.msk [vmem:[#allocation4 + $0x1c8] sm:$0xff] %vm2469, %v2462
    %2528 = vst.msk [vmem:[#allocation4 + $0x1d0] sm:$0xff] %vm2469, %v2463
    %2529 = vst.msk [vmem:[#allocation4 + $0x1d8] sm:$0xff] %vm2469, %v2464
    %2530 = vst.msk [vmem:[#allocation4 + $0x1e0] sm:$0xff] %vm2469, %v2465
    %2531 = vst.msk [vmem:[#allocation4 + $0x1e8] sm:$0xff] %vm2469, %v2466
    %2532 = vst.msk [vmem:[#allocation4 + $0x1f0] sm:$0xff] %vm2469, %v2467
    %2533 = vst.msk [vmem:[#allocation4 + $0x1f8] sm:$0xff] %vm2469, %v2468
    %v2534 = vld [vmem:[#allocation4] sm:$0xff]
    %s2535 = scalar_lea.vmem [#allocation4], 8
    %v2536 = vld [vmem:[%s2535] sm:$0xff]
    %v2537 = vmax.f32 %v2534, %v2536
    %2538 = vst.msk [vmem:[#allocation5] sm:$0xff] %vm2469, %v2537
    %s2539 = scalar_lea.vmem [#allocation4], 16
    %v2540 = vld [vmem:[%s2539] sm:$0xff]
    %s2541 = scalar_lea.vmem [#allocation4], 24
    %v2542 = vld [vmem:[%s2541] sm:$0xff]
    %v2543 = vmax.f32 %v2540, %v2542
    %s2544 = scalar_lea.vmem [#allocation5], 8
    %2545 = vst.msk [vmem:[%s2544] sm:$0xff] %vm2469, %v2543
    %s2546 = scalar_lea.vmem [#allocation4], 32
    %v2547 = vld [vmem:[%s2546] sm:$0xff]
    %s2548 = scalar_lea.vmem [#allocation4], 40
    %v2549 = vld [vmem:[%s2548] sm:$0xff]
    %v2550 = vmax.f32 %v2547, %v2549
    %s2551 = scalar_lea.vmem [#allocation5], 16
    %2552 = vst.msk [vmem:[%s2551] sm:$0xff] %vm2469, %v2550
    %s2553 = scalar_lea.vmem [#allocation4], 48
    %v2554 = vld [vmem:[%s2553] sm:$0xff]
    %s2555 = scalar_lea.vmem [#allocation4], 56
    %v2556 = vld [vmem:[%s2555] sm:$0xff]
    %v2557 = vmax.f32 %v2554, %v2556
    %s2558 = scalar_lea.vmem [#allocation5], 24
    %2559 = vst.msk [vmem:[%s2558] sm:$0xff] %vm2469, %v2557
    %s2560 = scalar_lea.vmem [#allocation4], 64
    %v2561 = vld [vmem:[%s2560] sm:$0xff]
    %s2562 = scalar_lea.vmem [#allocation4], 72
    %v2563 = vld [vmem:[%s2562] sm:$0xff]
    %v2564 = vmax.f32 %v2561, %v2563
    %s2565 = scalar_lea.vmem [#allocation5], 32
    %2566 = vst.msk [vmem:[%s2565] sm:$0xff] %vm2469, %v2564
    %s2567 = scalar_lea.vmem [#allocation4], 80
    %v2568 = vld [vmem:[%s2567] sm:$0xff]
    %s2569 = scalar_lea.vmem [#allocation4], 88
    %v2570 = vld [vmem:[%s2569] sm:$0xff]
    %v2571 = vmax.f32 %v2568, %v2570
    %s2572 = scalar_lea.vmem [#allocation5], 40
    %2573 = vst.msk [vmem:[%s2572] sm:$0xff] %vm2469, %v2571
    %s2574 = scalar_lea.vmem [#allocation4], 96
    %v2575 = vld [vmem:[%s2574] sm:$0xff]
    %s2576 = scalar_lea.vmem [#allocation4], 104
    %v2577 = vld [vmem:[%s2576] sm:$0xff]
    %v2578 = vmax.f32 %v2575, %v2577
    %s2579 = scalar_lea.vmem [#allocation5], 48
    %2580 = vst.msk [vmem:[%s2579] sm:$0xff] %vm2469, %v2578
    %s2581 = scalar_lea.vmem [#allocation4], 112
    %v2582 = vld [vmem:[%s2581] sm:$0xff]
    %s2583 = scalar_lea.vmem [#allocation4], 120
    %v2584 = vld [vmem:[%s2583] sm:$0xff]
    %v2585 = vmax.f32 %v2582, %v2584
    %s2586 = scalar_lea.vmem [#allocation5], 56
    %2587 = vst.msk [vmem:[%s2586] sm:$0xff] %vm2469, %v2585
    %s2588 = scalar_lea.vmem [#allocation4], 128
    %v2589 = vld [vmem:[%s2588] sm:$0xff]
    %s2590 = scalar_lea.vmem [#allocation4], 136
    %v2591 = vld [vmem:[%s2590] sm:$0xff]
    %v2592 = vmax.f32 %v2589, %v2591
    %s2593 = scalar_lea.vmem [#allocation5], 64
    %2594 = vst.msk [vmem:[%s2593] sm:$0xff] %vm2469, %v2592
    %s2595 = scalar_lea.vmem [#allocation4], 144
    %v2596 = vld [vmem:[%s2595] sm:$0xff]
    %s2597 = scalar_lea.vmem [#allocation4], 152
    %v2598 = vld [vmem:[%s2597] sm:$0xff]
    %v2599 = vmax.f32 %v2596, %v2598
    %s2600 = scalar_lea.vmem [#allocation5], 72
    %2601 = vst.msk [vmem:[%s2600] sm:$0xff] %vm2469, %v2599
    %s2602 = scalar_lea.vmem [#allocation4], 160
    %v2603 = vld [vmem:[%s2602] sm:$0xff]
    %s2604 = scalar_lea.vmem [#allocation4], 168
    %v2605 = vld [vmem:[%s2604] sm:$0xff]
    %v2606 = vmax.f32 %v2603, %v2605
    %s2607 = scalar_lea.vmem [#allocation5], 80
    %2608 = vst.msk [vmem:[%s2607] sm:$0xff] %vm2469, %v2606
    %s2609 = scalar_lea.vmem [#allocation4], 176
    %v2610 = vld [vmem:[%s2609] sm:$0xff]
    %s2611 = scalar_lea.vmem [#allocation4], 184
    %v2612 = vld [vmem:[%s2611] sm:$0xff]
    %v2613 = vmax.f32 %v2610, %v2612
    %s2614 = scalar_lea.vmem [#allocation5], 88
    %2615 = vst.msk [vmem:[%s2614] sm:$0xff] %vm2469, %v2613
    %s2616 = scalar_lea.vmem [#allocation4], 192
    %v2617 = vld [vmem:[%s2616] sm:$0xff]
    %s2618 = scalar_lea.vmem [#allocation4], 200
    %v2619 = vld [vmem:[%s2618] sm:$0xff]
    %v2620 = vmax.f32 %v2617, %v2619
    %s2621 = scalar_lea.vmem [#allocation5], 96
    %2622 = vst.msk [vmem:[%s2621] sm:$0xff] %vm2469, %v2620
    %s2623 = scalar_lea.vmem [#allocation4], 208
    %v2624 = vld [vmem:[%s2623] sm:$0xff]
    %s2625 = scalar_lea.vmem [#allocation4], 216
    %v2626 = vld [vmem:[%s2625] sm:$0xff]
    %v2627 = vmax.f32 %v2624, %v2626
    %s2628 = scalar_lea.vmem [#allocation5], 104
    %2629 = vst.msk [vmem:[%s2628] sm:$0xff] %vm2469, %v2627
    %s2630 = scalar_lea.vmem [#allocation4], 224
    %v2631 = vld [vmem:[%s2630] sm:$0xff]
    %s2632 = scalar_lea.vmem [#allocation4], 232
    %v2633 = vld [vmem:[%s2632] sm:$0xff]
    %v2634 = vmax.f32 %v2631, %v2633
    %s2635 = scalar_lea.vmem [#allocation5], 112
    %2636 = vst.msk [vmem:[%s2635] sm:$0xff] %vm2469, %v2634
    %s2637 = scalar_lea.vmem [#allocation4], 240
    %v2638 = vld [vmem:[%s2637] sm:$0xff]
    %s2639 = scalar_lea.vmem [#allocation4], 248
    %v2640 = vld [vmem:[%s2639] sm:$0xff]
    %v2641 = vmax.f32 %v2638, %v2640
    %s2642 = scalar_lea.vmem [#allocation5], 120
    %2643 = vst.msk [vmem:[%s2642] sm:$0xff] %vm2469, %v2641
    %s2644 = scalar_lea.vmem [#allocation4], 256
    %v2645 = vld [vmem:[%s2644] sm:$0xff]
    %s2646 = scalar_lea.vmem [#allocation4], 264
    %v2647 = vld [vmem:[%s2646] sm:$0xff]
    %v2648 = vmax.f32 %v2645, %v2647
    %s2649 = scalar_lea.vmem [#allocation5], 128
    %2650 = vst.msk [vmem:[%s2649] sm:$0xff] %vm2469, %v2648
    %s2651 = scalar_lea.vmem [#allocation4], 272
    %v2652 = vld [vmem:[%s2651] sm:$0xff]
    %s2653 = scalar_lea.vmem [#allocation4], 280
    %v2654 = vld [vmem:[%s2653] sm:$0xff]
    %v2655 = vmax.f32 %v2652, %v2654
    %s2656 = scalar_lea.vmem [#allocation5], 136
    %2657 = vst.msk [vmem:[%s2656] sm:$0xff] %vm2469, %v2655
    %s2658 = scalar_lea.vmem [#allocation4], 288
    %v2659 = vld [vmem:[%s2658] sm:$0xff]
    %s2660 = scalar_lea.vmem [#allocation4], 296
    %v2661 = vld [vmem:[%s2660] sm:$0xff]
    %v2662 = vmax.f32 %v2659, %v2661
    %s2663 = scalar_lea.vmem [#allocation5], 144
    %2664 = vst.msk [vmem:[%s2663] sm:$0xff] %vm2469, %v2662
    %s2665 = scalar_lea.vmem [#allocation4], 304
    %v2666 = vld [vmem:[%s2665] sm:$0xff]
    %s2667 = scalar_lea.vmem [#allocation4], 312
    %v2668 = vld [vmem:[%s2667] sm:$0xff]
    %v2669 = vmax.f32 %v2666, %v2668
    %s2670 = scalar_lea.vmem [#allocation5], 152
    %2671 = vst.msk [vmem:[%s2670] sm:$0xff] %vm2469, %v2669
    %s2672 = scalar_lea.vmem [#allocation4], 320
    %v2673 = vld [vmem:[%s2672] sm:$0xff]
    %s2674 = scalar_lea.vmem [#allocation4], 328
    %v2675 = vld [vmem:[%s2674] sm:$0xff]
    %v2676 = vmax.f32 %v2673, %v2675
    %s2677 = scalar_lea.vmem [#allocation5], 160
    %2678 = vst.msk [vmem:[%s2677] sm:$0xff] %vm2469, %v2676
    %s2679 = scalar_lea.vmem [#allocation4], 336
    %v2680 = vld [vmem:[%s2679] sm:$0xff]
    %s2681 = scalar_lea.vmem [#allocation4], 344
    %v2682 = vld [vmem:[%s2681] sm:$0xff]
    %v2683 = vmax.f32 %v2680, %v2682
    %s2684 = scalar_lea.vmem [#allocation5], 168
    %2685 = vst.msk [vmem:[%s2684] sm:$0xff] %vm2469, %v2683
    %v2686 = vld [vmem:[#allocation5] sm:$0xff]
    %v2687 = vld [vmem:[#allocation5 + $0x8] sm:$0xff]
    %v2688 = vld [vmem:[#allocation5 + $0x10] sm:$0xff]
    %v2689 = vld [vmem:[#allocation5 + $0x18] sm:$0xff]
    %v2690 = vld [vmem:[#allocation5 + $0x20] sm:$0xff]
    %v2691 = vld [vmem:[#allocation5 + $0x28] sm:$0xff]
    %v2692 = vld [vmem:[#allocation5 + $0x30] sm:$0xff]
    %v2693 = vld [vmem:[#allocation5 + $0x38] sm:$0xff]
    %v2694 = vld [vmem:[#allocation5 + $0x40] sm:$0xff]
    %v2695 = vld [vmem:[#allocation5 + $0x48] sm:$0xff]
    %v2696 = vld [vmem:[#allocation5 + $0x50] sm:$0xff]
    %v2697 = vld [vmem:[#allocation5 + $0x58] sm:$0xff]
    %v2698 = vld [vmem:[#allocation5 + $0x60] sm:$0xff]
    %v2699 = vld [vmem:[#allocation5 + $0x68] sm:$0xff]
    %v2700 = vld [vmem:[#allocation5 + $0x70] sm:$0xff]
    %v2701 = vld [vmem:[#allocation5 + $0x78] sm:$0xff]
    %v2702 = vld [vmem:[#allocation5 + $0x80] sm:$0xff]
    %v2703 = vld [vmem:[#allocation5 + $0x88] sm:$0xff]
    %2704 = vst.msk [vmem:[#allocation6] sm:$0xff] %vm2469, %v2686
    %2705 = vst.msk [vmem:[#allocation6 + $0x8] sm:$0xff] %vm2469, %v2687
    %2706 = vst.msk [vmem:[#allocation6 + $0x10] sm:$0xff] %vm2469, %v2688
    %2707 = vst.msk [vmem:[#allocation6 + $0x18] sm:$0xff] %vm2469, %v2689
    %2708 = vst.msk [vmem:[#allocation6 + $0x20] sm:$0xff] %vm2469, %v2690
    %2709 = vst.msk [vmem:[#allocation6 + $0x28] sm:$0xff] %vm2469, %v2691
    %2710 = vst.msk [vmem:[#allocation6 + $0x30] sm:$0xff] %vm2469, %v2692
    %2711 = vst.msk [vmem:[#allocation6 + $0x38] sm:$0xff] %vm2469, %v2693
    %2712 = vst.msk [vmem:[#allocation6 + $0x40] sm:$0xff] %vm2469, %v2694
    %2713 = vst.msk [vmem:[#allocation6 + $0x48] sm:$0xff] %vm2469, %v2695
    %2714 = vst.msk [vmem:[#allocation6 + $0x50] sm:$0xff] %vm2469, %v2696
    %2715 = vst.msk [vmem:[#allocation6 + $0x58] sm:$0xff] %vm2469, %v2697
    %2716 = vst.msk [vmem:[#allocation6 + $0x60] sm:$0xff] %vm2469, %v2698
    %2717 = vst.msk [vmem:[#allocation6 + $0x68] sm:$0xff] %vm2469, %v2699
    %2718 = vst.msk [vmem:[#allocation6 + $0x70] sm:$0xff] %vm2469, %v2700
    %2719 = vst.msk [vmem:[#allocation6 + $0x78] sm:$0xff] %vm2469, %v2701
    %2720 = vst.msk [vmem:[#allocation6 + $0x80] sm:$0xff] %vm2469, %v2702
    %2721 = vst.msk [vmem:[#allocation6 + $0x88] sm:$0xff] %vm2469, %v2703
    %v2722 = vld [vmem:[%s2544] sm:$0xff]
    %v2723 = vld [vmem:[%s2544 + $0x8] sm:$0xff]
    %v2724 = vld [vmem:[%s2544 + $0x10] sm:$0xff]
    %v2725 = vld [vmem:[%s2544 + $0x18] sm:$0xff]
    %v2726 = vld [vmem:[%s2544 + $0x20] sm:$0xff]
    %v2727 = vld [vmem:[%s2544 + $0x28] sm:$0xff]
    %v2728 = vld [vmem:[%s2544 + $0x30] sm:$0xff]
    %v2729 = vld [vmem:[%s2544 + $0x38] sm:$0xff]
    %v2730 = vld [vmem:[%s2544 + $0x40] sm:$0xff]
    %v2731 = vld [vmem:[%s2544 + $0x48] sm:$0xff]
    %v2732 = vld [vmem:[%s2544 + $0x50] sm:$0xff]
    %v2733 = vld [vmem:[%s2544 + $0x58] sm:$0xff]
    %v2734 = vld [vmem:[%s2544 + $0x60] sm:$0xff]
    %v2735 = vld [vmem:[%s2544 + $0x68] sm:$0xff]
    %v2736 = vld [vmem:[%s2544 + $0x70] sm:$0xff]
    %v2737 = vld [vmem:[%s2544 + $0x78] sm:$0xff]
    %v2738 = vld [vmem:[%s2544 + $0x80] sm:$0xff]
    %v2739 = vld [vmem:[%s2544 + $0x88] sm:$0xff]
    %2758 = vrot.lane.b32.xlu0 %v2722, 16
    %v2759 = vpop.permute.xlu0 %2758
    %2760 = vrot.lane.b32.xlu0 %v2723, 16
    %v2761 = vpop.permute.xlu0 %2760
    %2762 = vrot.lane.b32.xlu0 %v2724, 16
    %v2763 = vpop.permute.xlu0 %2762
    %2764 = vrot.lane.b32.xlu0 %v2725, 16
    %v2765 = vpop.permute.xlu0 %2764
    %2766 = vrot.lane.b32.xlu0 %v2726, 16
    %v2767 = vpop.permute.xlu0 %2766
    %2768 = vrot.lane.b32.xlu0 %v2727, 16
    %v2769 = vpop.permute.xlu0 %2768
    %2770 = vrot.lane.b32.xlu0 %v2728, 16
    %v2771 = vpop.permute.xlu0 %2770
    %2772 = vrot.lane.b32.xlu0 %v2729, 16
    %v2773 = vpop.permute.xlu0 %2772
    %2774 = vrot.lane.b32.xlu0 %v2730, 16
    %v2775 = vpop.permute.xlu0 %2774
    %2776 = vrot.lane.b32.xlu0 %v2731, 16
    %v2777 = vpop.permute.xlu0 %2776
    %2778 = vrot.lane.b32.xlu0 %v2732, 16
    %v2779 = vpop.permute.xlu0 %2778
    %2780 = vrot.lane.b32.xlu0 %v2733, 16
    %v2781 = vpop.permute.xlu0 %2780
    %2782 = vrot.lane.b32.xlu0 %v2734, 16
    %v2783 = vpop.permute.xlu0 %2782
    %2784 = vrot.lane.b32.xlu0 %v2735, 16
    %v2785 = vpop.permute.xlu0 %2784
    %2786 = vrot.lane.b32.xlu0 %v2736, 16
    %v2787 = vpop.permute.xlu0 %2786
    %2788 = vrot.lane.b32.xlu0 %v2737, 16
    %v2789 = vpop.permute.xlu0 %2788
    %2790 = vrot.lane.b32.xlu0 %v2738, 16
    %v2791 = vpop.permute.xlu0 %2790
    %2792 = vrot.lane.b32.xlu0 %v2739, 16
    %v2793 = vpop.permute.xlu0 %2792
    %vm2812 = vcmask 261248
    %2813 = vst.msk [vmem:[#allocation6] sm:$0xff] %vm2812, %v2759
    %2814 = vst.msk [vmem:[#allocation6 + $0x8] sm:$0xff] %vm2812, %v2761
    %2815 = vst.msk [vmem:[#allocation6 + $0x10] sm:$0xff] %vm2812, %v2763
    %2816 = vst.msk [vmem:[#allocation6 + $0x18] sm:$0xff] %vm2812, %v2765
    %2817 = vst.msk [vmem:[#allocation6 + $0x20] sm:$0xff] %vm2812, %v2767
    %2818 = vst.msk [vmem:[#allocation6 + $0x28] sm:$0xff] %vm2812, %v2769
    %2819 = vst.msk [vmem:[#allocation6 + $0x30] sm:$0xff] %vm2812, %v2771
    %2820 = vst.msk [vmem:[#allocation6 + $0x38] sm:$0xff] %vm2812, %v2773
    %2821 = vst.msk [vmem:[#allocation6 + $0x40] sm:$0xff] %vm2812, %v2775
    %2822 = vst.msk [vmem:[#allocation6 + $0x48] sm:$0xff] %vm2812, %v2777
    %2823 = vst.msk [vmem:[#allocation6 + $0x50] sm:$0xff] %vm2812, %v2779
    %2824 = vst.msk [vmem:[#allocation6 + $0x58] sm:$0xff] %vm2812, %v2781
    %2825 = vst.msk [vmem:[#allocation6 + $0x60] sm:$0xff] %vm2812, %v2783
    %2826 = vst.msk [vmem:[#allocation6 + $0x68] sm:$0xff] %vm2812, %v2785
    %2827 = vst.msk [vmem:[#allocation6 + $0x70] sm:$0xff] %vm2812, %v2787
    %2828 = vst.msk [vmem:[#allocation6 + $0x78] sm:$0xff] %vm2812, %v2789
    %2829 = vst.msk [vmem:[#allocation6 + $0x80] sm:$0xff] %vm2812, %v2791
    %2830 = vst.msk [vmem:[#allocation6 + $0x88] sm:$0xff] %vm2812, %v2793
    %v2831 = vld [vmem:[%s2551] sm:$0xff]
    %v2832 = vld [vmem:[%s2551 + $0x8] sm:$0xff]
    %v2833 = vld [vmem:[%s2551 + $0x10] sm:$0xff]
    %v2834 = vld [vmem:[%s2551 + $0x18] sm:$0xff]
    %v2835 = vld [vmem:[%s2551 + $0x20] sm:$0xff]
    %v2836 = vld [vmem:[%s2551 + $0x28] sm:$0xff]
    %v2837 = vld [vmem:[%s2551 + $0x30] sm:$0xff]
    %v2838 = vld [vmem:[%s2551 + $0x38] sm:$0xff]
    %v2839 = vld [vmem:[%s2551 + $0x40] sm:$0xff]
    %v2840 = vld [vmem:[%s2551 + $0x48] sm:$0xff]
    %v2841 = vld [vmem:[%s2551 + $0x50] sm:$0xff]
    %v2842 = vld [vmem:[%s2551 + $0x58] sm:$0xff]
    %v2843 = vld [vmem:[%s2551 + $0x60] sm:$0xff]
    %v2844 = vld [vmem:[%s2551 + $0x68] sm:$0xff]
    %v2845 = vld [vmem:[%s2551 + $0x70] sm:$0xff]
    %v2846 = vld [vmem:[%s2551 + $0x78] sm:$0xff]
    %v2847 = vld [vmem:[%s2551 + $0x80] sm:$0xff]
    %v2848 = vld [vmem:[%s2551 + $0x88] sm:$0xff]
    %2867 = vrot.lane.b32.xlu0 %v2831, 32
    %v2868 = vpop.permute.xlu0 %2867
    %2869 = vrot.lane.b32.xlu0 %v2832, 32
    %v2870 = vpop.permute.xlu0 %2869
    %2871 = vrot.lane.b32.xlu0 %v2833, 32
    %v2872 = vpop.permute.xlu0 %2871
    %2873 = vrot.lane.b32.xlu0 %v2834, 32
    %v2874 = vpop.permute.xlu0 %2873
    %2875 = vrot.lane.b32.xlu0 %v2835, 32
    %v2876 = vpop.permute.xlu0 %2875
    %2877 = vrot.lane.b32.xlu0 %v2836, 32
    %v2878 = vpop.permute.xlu0 %2877
    %2879 = vrot.lane.b32.xlu0 %v2837, 32
    %v2880 = vpop.permute.xlu0 %2879
    %2881 = vrot.lane.b32.xlu0 %v2838, 32
    %v2882 = vpop.permute.xlu0 %2881
    %2883 = vrot.lane.b32.xlu0 %v2839, 32
    %v2884 = vpop.permute.xlu0 %2883
    %2885 = vrot.lane.b32.xlu0 %v2840, 32
    %v2886 = vpop.permute.xlu0 %2885
    %2887 = vrot.lane.b32.xlu0 %v2841, 32
    %v2888 = vpop.permute.xlu0 %2887
    %2889 = vrot.lane.b32.xlu0 %v2842, 32
    %v2890 = vpop.permute.xlu0 %2889
    %2891 = vrot.lane.b32.xlu0 %v2843, 32
    %v2892 = vpop.permute.xlu0 %2891
    %2893 = vrot.lane.b32.xlu0 %v2844, 32
    %v2894 = vpop.permute.xlu0 %2893
    %2895 = vrot.lane.b32.xlu0 %v2845, 32
    %v2896 = vpop.permute.xlu0 %2895
    %2897 = vrot.lane.b32.xlu0 %v2846, 32
    %v2898 = vpop.permute.xlu0 %2897
    %2899 = vrot.lane.b32.xlu0 %v2847, 32
    %v2900 = vpop.permute.xlu0 %2899
    %2901 = vrot.lane.b32.xlu0 %v2848, 32
    %v2902 = vpop.permute.xlu0 %2901
    %vm2921 = vcmask 392448
    %2922 = vst.msk [vmem:[#allocation6] sm:$0xff] %vm2921, %v2868
    %2923 = vst.msk [vmem:[#allocation6 + $0x8] sm:$0xff] %vm2921, %v2870
    %2924 = vst.msk [vmem:[#allocation6 + $0x10] sm:$0xff] %vm2921, %v2872
    %2925 = vst.msk [vmem:[#allocation6 + $0x18] sm:$0xff] %vm2921, %v2874
    %2926 = vst.msk [vmem:[#allocation6 + $0x20] sm:$0xff] %vm2921, %v2876
    %2927 = vst.msk [vmem:[#allocation6 + $0x28] sm:$0xff] %vm2921, %v2878
    %2928 = vst.msk [vmem:[#allocation6 + $0x30] sm:$0xff] %vm2921, %v2880
    %2929 = vst.msk [vmem:[#allocation6 + $0x38] sm:$0xff] %vm2921, %v2882
    %2930 = vst.msk [vmem:[#allocation6 + $0x40] sm:$0xff] %vm2921, %v2884
    %2931 = vst.msk [vmem:[#allocation6 + $0x48] sm:$0xff] %vm2921, %v2886
    %2932 = vst.msk [vmem:[#allocation6 + $0x50] sm:$0xff] %vm2921, %v2888
    %2933 = vst.msk [vmem:[#allocation6 + $0x58] sm:$0xff] %vm2921, %v2890
    %2934 = vst.msk [vmem:[#allocation6 + $0x60] sm:$0xff] %vm2921, %v2892
    %2935 = vst.msk [vmem:[#allocation6 + $0x68] sm:$0xff] %vm2921, %v2894
    %2936 = vst.msk [vmem:[#allocation6 + $0x70] sm:$0xff] %vm2921, %v2896
    %2937 = vst.msk [vmem:[#allocation6 + $0x78] sm:$0xff] %vm2921, %v2898
    %2938 = vst.msk [vmem:[#allocation6 + $0x80] sm:$0xff] %vm2921, %v2900
    %2939 = vst.msk [vmem:[#allocation6 + $0x88] sm:$0xff] %vm2921, %v2902
    %v2940 = vld [vmem:[%s2558] sm:$0xff]
    %v2941 = vld [vmem:[%s2558 + $0x8] sm:$0xff]
    %v2942 = vld [vmem:[%s2558 + $0x10] sm:$0xff]
    %v2943 = vld [vmem:[%s2558 + $0x18] sm:$0xff]
    %v2944 = vld [vmem:[%s2558 + $0x20] sm:$0xff]
    %v2945 = vld [vmem:[%s2558 + $0x28] sm:$0xff]
    %v2946 = vld [vmem:[%s2558 + $0x30] sm:$0xff]
    %v2947 = vld [vmem:[%s2558 + $0x38] sm:$0xff]
    %v2948 = vld [vmem:[%s2558 + $0x40] sm:$0xff]
    %v2949 = vld [vmem:[%s2558 + $0x48] sm:$0xff]
    %v2950 = vld [vmem:[%s2558 + $0x50] sm:$0xff]
    %v2951 = vld [vmem:[%s2558 + $0x58] sm:$0xff]
    %v2952 = vld [vmem:[%s2558 + $0x60] sm:$0xff]
    %v2953 = vld [vmem:[%s2558 + $0x68] sm:$0xff]
    %v2954 = vld [vmem:[%s2558 + $0x70] sm:$0xff]
    %v2955 = vld [vmem:[%s2558 + $0x78] sm:$0xff]
    %v2956 = vld [vmem:[%s2558 + $0x80] sm:$0xff]
    %v2957 = vld [vmem:[%s2558 + $0x88] sm:$0xff]
    %2976 = vrot.lane.b32.xlu0 %v2940, 48
    %v2977 = vpop.permute.xlu0 %2976
    %2978 = vrot.lane.b32.xlu0 %v2941, 48
    %v2979 = vpop.permute.xlu0 %2978
    %2980 = vrot.lane.b32.xlu0 %v2942, 48
    %v2981 = vpop.permute.xlu0 %2980
    %2982 = vrot.lane.b32.xlu0 %v2943, 48
    %v2983 = vpop.permute.xlu0 %2982
    %2984 = vrot.lane.b32.xlu0 %v2944, 48
    %v2985 = vpop.permute.xlu0 %2984
    %2986 = vrot.lane.b32.xlu0 %v2945, 48
    %v2987 = vpop.permute.xlu0 %2986
    %2988 = vrot.lane.b32.xlu0 %v2946, 48
    %v2989 = vpop.permute.xlu0 %2988
    %2990 = vrot.lane.b32.xlu0 %v2947, 48
    %v2991 = vpop.permute.xlu0 %2990
    %2992 = vrot.lane.b32.xlu0 %v2948, 48
    %v2993 = vpop.permute.xlu0 %2992
    %2994 = vrot.lane.b32.xlu0 %v2949, 48
    %v2995 = vpop.permute.xlu0 %2994
    %2996 = vrot.lane.b32.xlu0 %v2950, 48
    %v2997 = vpop.permute.xlu0 %2996
    %2998 = vrot.lane.b32.xlu0 %v2951, 48
    %v2999 = vpop.permute.xlu0 %2998
    %3000 = vrot.lane.b32.xlu0 %v2952, 48
    %v3001 = vpop.permute.xlu0 %3000
    %3002 = vrot.lane.b32.xlu0 %v2953, 48
    %v3003 = vpop.permute.xlu0 %3002
    %3004 = vrot.lane.b32.xlu0 %v2954, 48
    %v3005 = vpop.permute.xlu0 %3004
    %3006 = vrot.lane.b32.xlu0 %v2955, 48
    %v3007 = vpop.permute.xlu0 %3006
    %3008 = vrot.lane.b32.xlu0 %v2956, 48
    %v3009 = vpop.permute.xlu0 %3008
    %3010 = vrot.lane.b32.xlu0 %v2957, 48
    %v3011 = vpop.permute.xlu0 %3010
    %vm3030 = vcmask 523648
    %3031 = vst.msk [vmem:[#allocation6] sm:$0xff] %vm3030, %v2977
    %3032 = vst.msk [vmem:[#allocation6 + $0x8] sm:$0xff] %vm3030, %v2979
    %3033 = vst.msk [vmem:[#allocation6 + $0x10] sm:$0xff] %vm3030, %v2981
    %3034 = vst.msk [vmem:[#allocation6 + $0x18] sm:$0xff] %vm3030, %v2983
    %3035 = vst.msk [vmem:[#allocation6 + $0x20] sm:$0xff] %vm3030, %v2985
    %3036 = vst.msk [vmem:[#allocation6 + $0x28] sm:$0xff] %vm3030, %v2987
    %3037 = vst.msk [vmem:[#allocation6 + $0x30] sm:$0xff] %vm3030, %v2989
    %3038 = vst.msk [vmem:[#allocation6 + $0x38] sm:$0xff] %vm3030, %v2991
    %3039 = vst.msk [vmem:[#allocation6 + $0x40] sm:$0xff] %vm3030, %v2993
    %3040 = vst.msk [vmem:[#allocation6 + $0x48] sm:$0xff] %vm3030, %v2995
    %3041 = vst.msk [vmem:[#allocation6 + $0x50] sm:$0xff] %vm3030, %v2997
    %3042 = vst.msk [vmem:[#allocation6 + $0x58] sm:$0xff] %vm3030, %v2999
    %3043 = vst.msk [vmem:[#allocation6 + $0x60] sm:$0xff] %vm3030, %v3001
    %3044 = vst.msk [vmem:[#allocation6 + $0x68] sm:$0xff] %vm3030, %v3003
    %3045 = vst.msk [vmem:[#allocation6 + $0x70] sm:$0xff] %vm3030, %v3005
    %3046 = vst.msk [vmem:[#allocation6 + $0x78] sm:$0xff] %vm3030, %v3007
    %3047 = vst.msk [vmem:[#allocation6 + $0x80] sm:$0xff] %vm3030, %v3009
    %3048 = vst.msk [vmem:[#allocation6 + $0x88] sm:$0xff] %vm3030, %v3011
    %v3049 = vld [vmem:[%s2565] sm:$0xff]
    %v3050 = vld [vmem:[%s2565 + $0x8] sm:$0xff]
    %v3051 = vld [vmem:[%s2565 + $0x10] sm:$0xff]
    %v3052 = vld [vmem:[%s2565 + $0x18] sm:$0xff]
    %v3053 = vld [vmem:[%s2565 + $0x20] sm:$0xff]
    %v3054 = vld [vmem:[%s2565 + $0x28] sm:$0xff]
    %v3055 = vld [vmem:[%s2565 + $0x30] sm:$0xff]
    %v3056 = vld [vmem:[%s2565 + $0x38] sm:$0xff]
    %v3057 = vld [vmem:[%s2565 + $0x40] sm:$0xff]
    %v3058 = vld [vmem:[%s2565 + $0x48] sm:$0xff]
    %v3059 = vld [vmem:[%s2565 + $0x50] sm:$0xff]
    %v3060 = vld [vmem:[%s2565 + $0x58] sm:$0xff]
    %v3061 = vld [vmem:[%s2565 + $0x60] sm:$0xff]
    %v3062 = vld [vmem:[%s2565 + $0x68] sm:$0xff]
    %v3063 = vld [vmem:[%s2565 + $0x70] sm:$0xff]
    %v3064 = vld [vmem:[%s2565 + $0x78] sm:$0xff]
    %v3065 = vld [vmem:[%s2565 + $0x80] sm:$0xff]
    %v3066 = vld [vmem:[%s2565 + $0x88] sm:$0xff]
    %3085 = vrot.lane.b32.xlu0 %v3049, 64
    %v3086 = vpop.permute.xlu0 %3085
    %3087 = vrot.lane.b32.xlu0 %v3050, 64
    %v3088 = vpop.permute.xlu0 %3087
    %3089 = vrot.lane.b32.xlu0 %v3051, 64
    %v3090 = vpop.permute.xlu0 %3089
    %3091 = vrot.lane.b32.xlu0 %v3052, 64
    %v3092 = vpop.permute.xlu0 %3091
    %3093 = vrot.lane.b32.xlu0 %v3053, 64
    %v3094 = vpop.permute.xlu0 %3093
    %3095 = vrot.lane.b32.xlu0 %v3054, 64
    %v3096 = vpop.permute.xlu0 %3095
    %3097 = vrot.lane.b32.xlu0 %v3055, 64
    %v3098 = vpop.permute.xlu0 %3097
    %3099 = vrot.lane.b32.xlu0 %v3056, 64
    %v3100 = vpop.permute.xlu0 %3099
    %3101 = vrot.lane.b32.xlu0 %v3057, 64
    %v3102 = vpop.permute.xlu0 %3101
    %3103 = vrot.lane.b32.xlu0 %v3058, 64
    %v3104 = vpop.permute.xlu0 %3103
    %3105 = vrot.lane.b32.xlu0 %v3059, 64
    %v3106 = vpop.permute.xlu0 %3105
    %3107 = vrot.lane.b32.xlu0 %v3060, 64
    %v3108 = vpop.permute.xlu0 %3107
    %3109 = vrot.lane.b32.xlu0 %v3061, 64
    %v3110 = vpop.permute.xlu0 %3109
    %3111 = vrot.lane.b32.xlu0 %v3062, 64
    %v3112 = vpop.permute.xlu0 %3111
    %3113 = vrot.lane.b32.xlu0 %v3063, 64
    %v3114 = vpop.permute.xlu0 %3113
    %3115 = vrot.lane.b32.xlu0 %v3064, 64
    %v3116 = vpop.permute.xlu0 %3115
    %3117 = vrot.lane.b32.xlu0 %v3065, 64
    %v3118 = vpop.permute.xlu0 %3117
    %3119 = vrot.lane.b32.xlu0 %v3066, 64
    %v3120 = vpop.permute.xlu0 %3119
    %vm3139 = vcmask 654848
    %3140 = vst.msk [vmem:[#allocation6] sm:$0xff] %vm3139, %v3086
    %3141 = vst.msk [vmem:[#allocation6 + $0x8] sm:$0xff] %vm3139, %v3088
    %3142 = vst.msk [vmem:[#allocation6 + $0x10] sm:$0xff] %vm3139, %v3090
    %3143 = vst.msk [vmem:[#allocation6 + $0x18] sm:$0xff] %vm3139, %v3092
    %3144 = vst.msk [vmem:[#allocation6 + $0x20] sm:$0xff] %vm3139, %v3094
    %3145 = vst.msk [vmem:[#allocation6 + $0x28] sm:$0xff] %vm3139, %v3096
    %3146 = vst.msk [vmem:[#allocation6 + $0x30] sm:$0xff] %vm3139, %v3098
    %3147 = vst.msk [vmem:[#allocation6 + $0x38] sm:$0xff] %vm3139, %v3100
    %3148 = vst.msk [vmem:[#allocation6 + $0x40] sm:$0xff] %vm3139, %v3102
    %3149 = vst.msk [vmem:[#allocation6 + $0x48] sm:$0xff] %vm3139, %v3104
    %3150 = vst.msk [vmem:[#allocation6 + $0x50] sm:$0xff] %vm3139, %v3106
    %3151 = vst.msk [vmem:[#allocation6 + $0x58] sm:$0xff] %vm3139, %v3108
    %3152 = vst.msk [vmem:[#allocation6 + $0x60] sm:$0xff] %vm3139, %v3110
    %3153 = vst.msk [vmem:[#allocation6 + $0x68] sm:$0xff] %vm3139, %v3112
    %3154 = vst.msk [vmem:[#allocation6 + $0x70] sm:$0xff] %vm3139, %v3114
    %3155 = vst.msk [vmem:[#allocation6 + $0x78] sm:$0xff] %vm3139, %v3116
    %3156 = vst.msk [vmem:[#allocation6 + $0x80] sm:$0xff] %vm3139, %v3118
    %3157 = vst.msk [vmem:[#allocation6 + $0x88] sm:$0xff] %vm3139, %v3120
    %s3158 = scalar_lea.vmem [#allocation4], 352
    %v3159 = vld [vmem:[%s3158] sm:$0xff]
    %s3160 = scalar_lea.vmem [#allocation4], 360
    %v3161 = vld [vmem:[%s3160] sm:$0xff]
    %v3162 = vmax.f32 %v3159, %v3161
    %s3163 = scalar_lea.vmem [#allocation5], 176
    %3164 = vst.msk [vmem:[%s3163] sm:$0xff] %vm2469, %v3162
    %s3165 = scalar_lea.vmem [#allocation4], 368
    %v3166 = vld [vmem:[%s3165] sm:$0xff]
    %s3167 = scalar_lea.vmem [#allocation4], 376
    %v3168 = vld [vmem:[%s3167] sm:$0xff]
    %v3169 = vmax.f32 %v3166, %v3168
    %s3170 = scalar_lea.vmem [#allocation5], 184
    %3171 = vst.msk [vmem:[%s3170] sm:$0xff] %vm2469, %v3169
    %s3172 = scalar_lea.vmem [#allocation4], 384
    %v3173 = vld [vmem:[%s3172] sm:$0xff]
    %s3174 = scalar_lea.vmem [#allocation4], 392
    %v3175 = vld [vmem:[%s3174] sm:$0xff]
    %v3176 = vmax.f32 %v3173, %v3175
    %s3177 = scalar_lea.vmem [#allocation5], 192
    %3178 = vst.msk [vmem:[%s3177] sm:$0xff] %vm2469, %v3176
    %s3179 = scalar_lea.vmem [#allocation4], 400
    %v3180 = vld [vmem:[%s3179] sm:$0xff]
    %s3181 = scalar_lea.vmem [#allocation4], 408
    %v3182 = vld [vmem:[%s3181] sm:$0xff]
    %v3183 = vmax.f32 %v3180, %v3182
    %s3184 = scalar_lea.vmem [#allocation5], 200
    %3185 = vst.msk [vmem:[%s3184] sm:$0xff] %vm2469, %v3183
    %s3186 = scalar_lea.vmem [#allocation4], 416
    %v3187 = vld [vmem:[%s3186] sm:$0xff]
    %s3188 = scalar_lea.vmem [#allocation4], 424
    %v3189 = vld [vmem:[%s3188] sm:$0xff]
    %v3190 = vmax.f32 %v3187, %v3189
    %s3191 = scalar_lea.vmem [#allocation5], 208
    %3192 = vst.msk [vmem:[%s3191] sm:$0xff] %vm2469, %v3190
    %s3193 = scalar_lea.vmem [#allocation4], 432
    %v3194 = vld [vmem:[%s3193] sm:$0xff]
    %s3195 = scalar_lea.vmem [#allocation4], 440
    %v3196 = vld [vmem:[%s3195] sm:$0xff]
    %v3197 = vmax.f32 %v3194, %v3196
    %s3198 = scalar_lea.vmem [#allocation5], 216
    %3199 = vst.msk [vmem:[%s3198] sm:$0xff] %vm2469, %v3197
    %s3200 = scalar_lea.vmem [#allocation4], 448
    %v3201 = vld [vmem:[%s3200] sm:$0xff]
    %s3202 = scalar_lea.vmem [#allocation4], 456
    %v3203 = vld [vmem:[%s3202] sm:$0xff]
    %v3204 = vmax.f32 %v3201, %v3203
    %s3205 = scalar_lea.vmem [#allocation5], 224
    %3206 = vst.msk [vmem:[%s3205] sm:$0xff] %vm2469, %v3204
    %s3207 = scalar_lea.vmem [#allocation4], 464
    %v3208 = vld [vmem:[%s3207] sm:$0xff]
    %s3209 = scalar_lea.vmem [#allocation4], 472
    %v3210 = vld [vmem:[%s3209] sm:$0xff]
    %v3211 = vmax.f32 %v3208, %v3210
    %s3212 = scalar_lea.vmem [#allocation5], 232
    %3213 = vst.msk [vmem:[%s3212] sm:$0xff] %vm2469, %v3211
    %s3214 = scalar_lea.vmem [#allocation4], 480
    %v3215 = vld [vmem:[%s3214] sm:$0xff]
    %s3216 = scalar_lea.vmem [#allocation4], 488
    %v3217 = vld [vmem:[%s3216] sm:$0xff]
    %v3218 = vmax.f32 %v3215, %v3217
    %s3219 = scalar_lea.vmem [#allocation5], 240
    %3220 = vst.msk [vmem:[%s3219] sm:$0xff] %vm2469, %v3218
    %s3221 = scalar_lea.vmem [#allocation4], 496
    %v3222 = vld [vmem:[%s3221] sm:$0xff]
    %s3223 = scalar_lea.vmem [#allocation4], 504
    %v3224 = vld [vmem:[%s3223] sm:$0xff]
    %v3225 = vmax.f32 %v3222, %v3224
    %s3226 = scalar_lea.vmem [#allocation5], 248
    %3227 = vst.msk [vmem:[%s3226] sm:$0xff] %vm2469, %v3225
    %v3228 = vld [vmem:[%s3163] sm:$0xff]
    %v3229 = vld [vmem:[%s3163 + $0x8] sm:$0xff]
    %v3230 = vld [vmem:[%s3163 + $0x10] sm:$0xff]
    %v3231 = vld [vmem:[%s3163 + $0x18] sm:$0xff]
    %v3232 = vld [vmem:[%s3163 + $0x20] sm:$0xff]
    %v3233 = vld [vmem:[%s3163 + $0x28] sm:$0xff]
    %s3234 = scalar_lea.vmem [#allocation6], 144
    %3235 = vst.msk [vmem:[%s3234] sm:$0xff] %vm2469, %v3228
    %3236 = vst.msk [vmem:[%s3234 + $0x8] sm:$0xff] %vm2469, %v3229
    %3237 = vst.msk [vmem:[%s3234 + $0x10] sm:$0xff] %vm2469, %v3230
    %3238 = vst.msk [vmem:[%s3234 + $0x18] sm:$0xff] %vm2469, %v3231
    %3239 = vst.msk [vmem:[%s3234 + $0x20] sm:$0xff] %vm2469, %v3232
    %3240 = vst.msk [vmem:[%s3234 + $0x28] sm:$0xff] %vm2469, %v3233
    %v3241 = vld [vmem:[%s3170] sm:$0xff]
    %v3242 = vld [vmem:[%s3170 + $0x8] sm:$0xff]
    %v3243 = vld [vmem:[%s3170 + $0x10] sm:$0xff]
    %v3244 = vld [vmem:[%s3170 + $0x18] sm:$0xff]
    %v3245 = vld [vmem:[%s3170 + $0x20] sm:$0xff]
    %v3246 = vld [vmem:[%s3170 + $0x28] sm:$0xff]
    %3253 = vrot.lane.b32.xlu0 %v3241, 16
    %v3254 = vpop.permute.xlu0 %3253
    %3255 = vrot.lane.b32.xlu0 %v3242, 16
    %v3256 = vpop.permute.xlu0 %3255
    %3257 = vrot.lane.b32.xlu0 %v3243, 16
    %v3258 = vpop.permute.xlu0 %3257
    %3259 = vrot.lane.b32.xlu0 %v3244, 16
    %v3260 = vpop.permute.xlu0 %3259
    %3261 = vrot.lane.b32.xlu0 %v3245, 16
    %v3262 = vpop.permute.xlu0 %3261
    %3263 = vrot.lane.b32.xlu0 %v3246, 16
    %v3264 = vpop.permute.xlu0 %3263
    %3271 = vst.msk [vmem:[%s3234] sm:$0xff] %vm2812, %v3254
    %3272 = vst.msk [vmem:[%s3234 + $0x8] sm:$0xff] %vm2812, %v3256
    %3273 = vst.msk [vmem:[%s3234 + $0x10] sm:$0xff] %vm2812, %v3258
    %3274 = vst.msk [vmem:[%s3234 + $0x18] sm:$0xff] %vm2812, %v3260
    %3275 = vst.msk [vmem:[%s3234 + $0x20] sm:$0xff] %vm2812, %v3262
    %3276 = vst.msk [vmem:[%s3234 + $0x28] sm:$0xff] %vm2812, %v3264
    %v3277 = vld [vmem:[%s3177] sm:$0xff]
    %v3278 = vld [vmem:[%s3177 + $0x8] sm:$0xff]
    %v3279 = vld [vmem:[%s3177 + $0x10] sm:$0xff]
    %v3280 = vld [vmem:[%s3177 + $0x18] sm:$0xff]
    %v3281 = vld [vmem:[%s3177 + $0x20] sm:$0xff]
    %v3282 = vld [vmem:[%s3177 + $0x28] sm:$0xff]
    %3289 = vrot.lane.b32.xlu0 %v3277, 32
    %v3290 = vpop.permute.xlu0 %3289
    %3291 = vrot.lane.b32.xlu0 %v3278, 32
    %v3292 = vpop.permute.xlu0 %3291
    %3293 = vrot.lane.b32.xlu0 %v3279, 32
    %v3294 = vpop.permute.xlu0 %3293
    %3295 = vrot.lane.b32.xlu0 %v3280, 32
    %v3296 = vpop.permute.xlu0 %3295
    %3297 = vrot.lane.b32.xlu0 %v3281, 32
    %v3298 = vpop.permute.xlu0 %3297
    %3299 = vrot.lane.b32.xlu0 %v3282, 32
    %v3300 = vpop.permute.xlu0 %3299
    %3307 = vst.msk [vmem:[%s3234] sm:$0xff] %vm2921, %v3290
    %3308 = vst.msk [vmem:[%s3234 + $0x8] sm:$0xff] %vm2921, %v3292
    %3309 = vst.msk [vmem:[%s3234 + $0x10] sm:$0xff] %vm2921, %v3294
    %3310 = vst.msk [vmem:[%s3234 + $0x18] sm:$0xff] %vm2921, %v3296
    %3311 = vst.msk [vmem:[%s3234 + $0x20] sm:$0xff] %vm2921, %v3298
    %3312 = vst.msk [vmem:[%s3234 + $0x28] sm:$0xff] %vm2921, %v3300
    %v3313 = vld [vmem:[%s3184] sm:$0xff]
    %v3314 = vld [vmem:[%s3184 + $0x8] sm:$0xff]
    %v3315 = vld [vmem:[%s3184 + $0x10] sm:$0xff]
    %v3316 = vld [vmem:[%s3184 + $0x18] sm:$0xff]
    %v3317 = vld [vmem:[%s3184 + $0x20] sm:$0xff]
    %v3318 = vld [vmem:[%s3184 + $0x28] sm:$0xff]
    %3325 = vrot.lane.b32.xlu0 %v3313, 48
    %v3326 = vpop.permute.xlu0 %3325
    %3327 = vrot.lane.b32.xlu0 %v3314, 48
    %v3328 = vpop.permute.xlu0 %3327
    %3329 = vrot.lane.b32.xlu0 %v3315, 48
    %v3330 = vpop.permute.xlu0 %3329
    %3331 = vrot.lane.b32.xlu0 %v3316, 48
    %v3332 = vpop.permute.xlu0 %3331
    %3333 = vrot.lane.b32.xlu0 %v3317, 48
    %v3334 = vpop.permute.xlu0 %3333
    %3335 = vrot.lane.b32.xlu0 %v3318, 48
    %v3336 = vpop.permute.xlu0 %3335
    %3343 = vst.msk [vmem:[%s3234] sm:$0xff] %vm3030, %v3326
    %3344 = vst.msk [vmem:[%s3234 + $0x8] sm:$0xff] %vm3030, %v3328
    %3345 = vst.msk [vmem:[%s3234 + $0x10] sm:$0xff] %vm3030, %v3330
    %3346 = vst.msk [vmem:[%s3234 + $0x18] sm:$0xff] %vm3030, %v3332
    %3347 = vst.msk [vmem:[%s3234 + $0x20] sm:$0xff] %vm3030, %v3334
    %3348 = vst.msk [vmem:[%s3234 + $0x28] sm:$0xff] %vm3030, %v3336
    %v3349 = vld [vmem:[%s3191] sm:$0xff]
    %v3350 = vld [vmem:[%s3191 + $0x8] sm:$0xff]
    %v3351 = vld [vmem:[%s3191 + $0x10] sm:$0xff]
    %v3352 = vld [vmem:[%s3191 + $0x18] sm:$0xff]
    %v3353 = vld [vmem:[%s3191 + $0x20] sm:$0xff]
    %v3354 = vld [vmem:[%s3191 + $0x28] sm:$0xff]
    %3361 = vrot.lane.b32.xlu0 %v3349, 64
    %v3362 = vpop.permute.xlu0 %3361
    %3363 = vrot.lane.b32.xlu0 %v3350, 64
    %v3364 = vpop.permute.xlu0 %3363
    %3365 = vrot.lane.b32.xlu0 %v3351, 64
    %v3366 = vpop.permute.xlu0 %3365
    %3367 = vrot.lane.b32.xlu0 %v3352, 64
    %v3368 = vpop.permute.xlu0 %3367
    %3369 = vrot.lane.b32.xlu0 %v3353, 64
    %v3370 = vpop.permute.xlu0 %3369
    %3371 = vrot.lane.b32.xlu0 %v3354, 64
    %v3372 = vpop.permute.xlu0 %3371
    %3379 = vst.msk [vmem:[%s3234] sm:$0xff] %vm3139, %v3362
    %3380 = vst.msk [vmem:[%s3234 + $0x8] sm:$0xff] %vm3139, %v3364
    %3381 = vst.msk [vmem:[%s3234 + $0x10] sm:$0xff] %vm3139, %v3366
    %3382 = vst.msk [vmem:[%s3234 + $0x18] sm:$0xff] %vm3139, %v3368
    %3383 = vst.msk [vmem:[%s3234 + $0x20] sm:$0xff] %vm3139, %v3370
    %3384 = vst.msk [vmem:[%s3234 + $0x28] sm:$0xff] %vm3139, %v3372
    %v3385 = vld [vmem:[#allocation6] sm:$0xff]
    %v3386 = vld [vmem:[#allocation6 + $0x8] sm:$0xff]
    %v3387 = vld [vmem:[#allocation6 + $0x10] sm:$0xff]
    %v3388 = vld [vmem:[#allocation6 + $0x18] sm:$0xff]
    %v3389 = vld [vmem:[#allocation6 + $0x20] sm:$0xff]
    %v3390 = vld [vmem:[#allocation6 + $0x28] sm:$0xff]
    %v3391 = vld [vmem:[#allocation6 + $0x30] sm:$0xff]
    %v3392 = vld [vmem:[#allocation6 + $0x38] sm:$0xff]
    %v3393 = vld [vmem:[#allocation6 + $0x40] sm:$0xff]
    %v3394 = vld [vmem:[#allocation6 + $0x48] sm:$0xff]
    %v3395 = vld [vmem:[#allocation6 + $0x50] sm:$0xff]
    %v3396 = vld [vmem:[#allocation6 + $0x58] sm:$0xff]
    %v3397 = vld [vmem:[#allocation6 + $0x60] sm:$0xff]
    %v3398 = vld [vmem:[#allocation6 + $0x68] sm:$0xff]
    %v3399 = vld [vmem:[#allocation6 + $0x70] sm:$0xff]
    %v3400 = vld [vmem:[#allocation6 + $0x78] sm:$0xff]
    %v3401 = vld [vmem:[#allocation6 + $0x80] sm:$0xff]
    %v3402 = vld [vmem:[#allocation6 + $0x88] sm:$0xff]
    %v3403 = vld [vmem:[#allocation6 + $0x90] sm:$0xff]
    %v3404 = vld [vmem:[#allocation6 + $0x98] sm:$0xff]
    %v3405 = vld [vmem:[#allocation6 + $0xa0] sm:$0xff]
    %v3406 = vld [vmem:[#allocation6 + $0xa8] sm:$0xff]
    %v3407 = vld [vmem:[#allocation6 + $0xb0] sm:$0xff]
    %v3408 = vld [vmem:[#allocation6 + $0xb8] sm:$0xff]
    %v3409 = vld [vmem:[%s3] sm:$0xff]
    %v3410 = vld [vmem:[%s3 + $0x8] sm:$0xff]
    %v3411 = vld [vmem:[%s3 + $0x10] sm:$0xff]
    %v3412 = vld [vmem:[%s3 + $0x18] sm:$0xff]
    %v3413 = vld [vmem:[%s3 + $0x20] sm:$0xff]
    %v3414 = vld [vmem:[%s3 + $0x28] sm:$0xff]
    %v3415 = vld [vmem:[%s3 + $0x30] sm:$0xff]
    %v3416 = vld [vmem:[%s3 + $0x38] sm:$0xff]
    %v3417 = vld [vmem:[%s3 + $0x40] sm:$0xff]
    %v3418 = vld [vmem:[%s3 + $0x48] sm:$0xff]
    %v3419 = vld [vmem:[%s4] sm:$0x1]
    %v3421 = vperm.slane %v3419, 0
    %vm3423 = vcmask 654336
    %v3425 = vsel %vm3423, %v3385, 0
    %v3428 = vsel %vm3423, %v3386, 0
    %v3431 = vsel %vm3423, %v3387, 0
    %v3434 = vsel %vm3423, %v3388, 0
    %v3437 = vsel %vm3423, %v3389, 0
    %v3440 = vsel %vm3423, %v3390, 0
    %v3443 = vsel %vm3423, %v3391, 0
    %v3446 = vsel %vm3423, %v3392, 0
    %v3449 = vsel %vm3423, %v3393, 0
    %v3452 = vsel %vm3423, %v3394, 0
    %v3455 = vsel %vm3423, %v3395, 0
    %v3458 = vsel %vm3423, %v3396, 0
    %v3461 = vsel %vm3423, %v3397, 0
    %v3464 = vsel %vm3423, %v3398, 0
    %v3467 = vsel %vm3423, %v3399, 0
    %v3470 = vsel %vm3423, %v3400, 0
    %v3473 = vsel %vm3423, %v3401, 0
    %v3476 = vsel %vm3423, %v3402, 0
    %v3479 = vsel %vm3423, %v3403, 0
    %v3482 = vsel %vm3423, %v3404, 0
    %v3485 = vsel %vm3423, %v3405, 0
    %v3488 = vsel %vm3423, %v3406, 0
    %v3491 = vsel %vm3423, %v3407, 0
    %v3494 = vsel %vm3423, %v3408, 0
    %3496 = vmatpush.msra.mxu0 0.0
    %3497 = vmatpush.msra.mxu0 0.0
    %3498 = vmatpush.msra.mxu0 0.0
    %3499 = vmatpush.msra.mxu0 0.0
    %3500 = vmatpush.msra.mxu0 0.0
    %3501 = vmatpush.msra.mxu0 0.0
    %3502 = vmatpush.msra.mxu0 %v3418
    %3503 = vmatpush.msra.mxu0 %v3417
    %3504 = vmatpush.msra.mxu0 %v3416
    %3505 = vmatpush.msra.mxu0 %v3415
    %3506 = vmatpush.msra.mxu0 %v3414
    %3507 = vmatpush.msra.mxu0 %v3413
    %3508 = vmatpush.msra.mxu0 %v3412
    %3509 = vmatpush.msra.mxu0 %v3411
    %3510 = vmatpush.msra.mxu0 %v3410
    %3511 = vmatpush.msra.mxu0 %v3409
    %3512 = vmatmul.f32.gmra.mxu0 %v3425
    %v3513 = vpop.f32.mrf.mxu0
    %v3514 = vadd.f32 %v3421, %v3513
    %3515 = vmatmul.f32.gmra.mxu0 %v3428
    %v3516 = vpop.f32.mrf.mxu0
    %v3517 = vadd.f32 %v3421, %v3516
    %3518 = vmatmul.f32.gmra.mxu0 %v3431
    %v3519 = vpop.f32.mrf.mxu0
    %v3520 = vadd.f32 %v3421, %v3519
    %3521 = vmatmul.f32.gmra.mxu0 %v3434
    %v3522 = vpop.f32.mrf.mxu0
    %v3523 = vadd.f32 %v3421, %v3522
    %3524 = vmatmul.f32.gmra.mxu0 %v3437
    %v3525 = vpop.f32.mrf.mxu0
    %v3526 = vadd.f32 %v3421, %v3525
    %3527 = vmatmul.f32.gmra.mxu0 %v3440
    %v3528 = vpop.f32.mrf.mxu0
    %v3529 = vadd.f32 %v3421, %v3528
    %3530 = vmatmul.f32.gmra.mxu0 %v3443
    %v3531 = vpop.f32.mrf.mxu0
    %v3532 = vadd.f32 %v3421, %v3531
    %3533 = vmatmul.f32.gmra.mxu0 %v3446
    %v3534 = vpop.f32.mrf.mxu0
    %v3535 = vadd.f32 %v3421, %v3534
    %3536 = vmatmul.f32.gmra.mxu0 %v3449
    %v3537 = vpop.f32.mrf.mxu0
    %v3538 = vadd.f32 %v3421, %v3537
    %3539 = vmatmul.f32.gmra.mxu0 %v3452
    %v3540 = vpop.f32.mrf.mxu0
    %v3541 = vadd.f32 %v3421, %v3540
    %3542 = vmatmul.f32.gmra.mxu0 %v3455
    %v3543 = vpop.f32.mrf.mxu0
    %v3544 = vadd.f32 %v3421, %v3543
    %3545 = vmatmul.f32.gmra.mxu0 %v3458
    %v3546 = vpop.f32.mrf.mxu0
    %v3547 = vadd.f32 %v3421, %v3546
    %3548 = vmatmul.f32.gmra.mxu0 %v3461
    %v3549 = vpop.f32.mrf.mxu0
    %v3550 = vadd.f32 %v3421, %v3549
    %3551 = vmatmul.f32.gmra.mxu0 %v3464
    %v3552 = vpop.f32.mrf.mxu0
    %v3553 = vadd.f32 %v3421, %v3552
    %3554 = vmatmul.f32.gmra.mxu0 %v3467
    %v3555 = vpop.f32.mrf.mxu0
    %v3556 = vadd.f32 %v3421, %v3555
    %3557 = vmatmul.f32.gmra.mxu0 %v3470
    %v3558 = vpop.f32.mrf.mxu0
    %v3559 = vadd.f32 %v3421, %v3558
    %3560 = vmatmul.f32.gmra.mxu0 %v3473
    %v3561 = vpop.f32.mrf.mxu0
    %v3562 = vadd.f32 %v3421, %v3561
    %3563 = vmatmul.f32.gmra.mxu0 %v3476
    %v3564 = vpop.f32.mrf.mxu0
    %v3565 = vadd.f32 %v3421, %v3564
    %3566 = vmatmul.f32.gmra.mxu0 %v3479
    %v3567 = vpop.f32.mrf.mxu0
    %v3568 = vadd.f32 %v3421, %v3567
    %3569 = vmatmul.f32.gmra.mxu0 %v3482
    %v3570 = vpop.f32.mrf.mxu0
    %v3571 = vadd.f32 %v3421, %v3570
    %3572 = vmatmul.f32.gmra.mxu0 %v3485
    %v3573 = vpop.f32.mrf.mxu0
    %v3574 = vadd.f32 %v3421, %v3573
    %3575 = vmatmul.f32.gmra.mxu0 %v3488
    %v3576 = vpop.f32.mrf.mxu0
    %v3577 = vadd.f32 %v3421, %v3576
    %3578 = vmatmul.f32.gmra.mxu0 %v3491
    %v3579 = vpop.f32.mrf.mxu0
    %v3580 = vadd.f32 %v3421, %v3579
    %3581 = vmatmul.f32.gmra.mxu0 %v3494
    %v3582 = vpop.f32.mrf.mxu0
    %v3583 = vadd.f32 %v3421, %v3582
    %3584 = vdwg.mxu0
    %v3585 = vmax.f32 %v3514, 0.0
    %v3586 = vmax.f32 %v3517, 0.0
    %v3587 = vmax.f32 %v3520, 0.0
    %v3588 = vmax.f32 %v3523, 0.0
    %v3589 = vmax.f32 %v3526, 0.0
    %v3590 = vmax.f32 %v3529, 0.0
    %v3591 = vmax.f32 %v3532, 0.0
    %v3592 = vmax.f32 %v3535, 0.0
    %v3593 = vmax.f32 %v3538, 0.0
    %v3594 = vmax.f32 %v3541, 0.0
    %v3595 = vmax.f32 %v3544, 0.0
    %v3596 = vmax.f32 %v3547, 0.0
    %v3597 = vmax.f32 %v3550, 0.0
    %v3598 = vmax.f32 %v3553, 0.0
    %v3599 = vmax.f32 %v3556, 0.0
    %v3600 = vmax.f32 %v3559, 0.0
    %v3601 = vmax.f32 %v3562, 0.0
    %v3602 = vmax.f32 %v3565, 0.0
    %v3603 = vmax.f32 %v3568, 0.0
    %v3604 = vmax.f32 %v3571, 0.0
    %v3605 = vmax.f32 %v3574, 0.0
    %v3606 = vmax.f32 %v3577, 0.0
    %v3607 = vmax.f32 %v3580, 0.0
    %v3608 = vmax.f32 %v3583, 0.0
    %vm3609 = vcmask 261120
    %3610 = vst.msk [vmem:[#allocation7] sm:$0xff] %vm3609, %v3585
    %3611 = vst.msk [vmem:[#allocation7 + $0x8] sm:$0xff] %vm3609, %v3586
    %3612 = vst.msk [vmem:[#allocation7 + $0x10] sm:$0xff] %vm3609, %v3587
    %3613 = vst.msk [vmem:[#allocation7 + $0x18] sm:$0xff] %vm3609, %v3588
    %3614 = vst.msk [vmem:[#allocation7 + $0x20] sm:$0xff] %vm3609, %v3589
    %3615 = vst.msk [vmem:[#allocation7 + $0x28] sm:$0xff] %vm3609, %v3590
    %3616 = vst.msk [vmem:[#allocation7 + $0x30] sm:$0xff] %vm3609, %v3591
    %3617 = vst.msk [vmem:[#allocation7 + $0x38] sm:$0xff] %vm3609, %v3592
    %3618 = vst.msk [vmem:[#allocation7 + $0x40] sm:$0xff] %vm3609, %v3593
    %3619 = vst.msk [vmem:[#allocation7 + $0x48] sm:$0xff] %vm3609, %v3594
    %3620 = vst.msk [vmem:[#allocation7 + $0x50] sm:$0xff] %vm3609, %v3595
    %3621 = vst.msk [vmem:[#allocation7 + $0x58] sm:$0xff] %vm3609, %v3596
    %3622 = vst.msk [vmem:[#allocation7 + $0x60] sm:$0xff] %vm3609, %v3597
    %3623 = vst.msk [vmem:[#allocation7 + $0x68] sm:$0xff] %vm3609, %v3598
    %3624 = vst.msk [vmem:[#allocation7 + $0x70] sm:$0xff] %vm3609, %v3599
    %3625 = vst.msk [vmem:[#allocation7 + $0x78] sm:$0xff] %vm3609, %v3600
    %3626 = vst.msk [vmem:[#allocation7 + $0x80] sm:$0xff] %vm3609, %v3601
    %3627 = vst.msk [vmem:[#allocation7 + $0x88] sm:$0xff] %vm3609, %v3602
    %3628 = vst.msk [vmem:[#allocation7 + $0x90] sm:$0xff] %vm3609, %v3603
    %3629 = vst.msk [vmem:[#allocation7 + $0x98] sm:$0xff] %vm3609, %v3604
    %3630 = vst.msk [vmem:[#allocation7 + $0xa0] sm:$0xff] %vm3609, %v3605
    %3631 = vst.msk [vmem:[#allocation7 + $0xa8] sm:$0xff] %vm3609, %v3606
    %3632 = vst.msk [vmem:[#allocation7 + $0xb0] sm:$0xff] %vm3609, %v3607
    %3633 = vst.msk [vmem:[#allocation7 + $0xb8] sm:$0xff] %vm3609, %v3608
    %v3634 = vld [vmem:[#allocation7] sm:$0xff]
    %s3635 = scalar_lea.vmem [#allocation7], 8
    %v3636 = vld [vmem:[%s3635] sm:$0xff]
    %v3637 = vmax.f32 %v3634, %v3636
    %3638 = vst.msk [vmem:[#allocation8] sm:$0xff] %vm3609, %v3637
    %s3639 = scalar_lea.vmem [#allocation7], 16
    %v3640 = vld [vmem:[%s3639] sm:$0xff]
    %s3641 = scalar_lea.vmem [#allocation7], 24
    %v3642 = vld [vmem:[%s3641] sm:$0xff]
    %v3643 = vmax.f32 %v3640, %v3642
    %3645 = vrot.lane.b32.xlu0 %v3643, 32
    %v3646 = vpop.permute.xlu0 %3645
    %vm3648 = vcmask 523520
    %3649 = vst.msk [vmem:[#allocation8] sm:$0xff] %vm3648, %v3646
    %s3650 = scalar_lea.vmem [#allocation7], 32
    %v3651 = vld [vmem:[%s3650] sm:$0xff]
    %s3652 = scalar_lea.vmem [#allocation7], 40
    %v3653 = vld [vmem:[%s3652] sm:$0xff]
    %v3654 = vmax.f32 %v3651, %v3653
    %3656 = vrot.lane.b32.xlu0 %v3654, 64
    %v3657 = vpop.permute.xlu0 %3656
    %vm3659 = vcmask 785920
    %3660 = vst.msk [vmem:[#allocation8] sm:$0xff] %vm3659, %v3657
    %s3661 = scalar_lea.vmem [#allocation7], 48
    %v3662 = vld [vmem:[%s3661] sm:$0xff]
    %s3663 = scalar_lea.vmem [#allocation7], 56
    %v3664 = vld [vmem:[%s3663] sm:$0xff]
    %v3665 = vmax.f32 %v3662, %v3664
    %3667 = vrot.lane.b32.xlu0 %v3665, 96
    %v3668 = vpop.permute.xlu0 %3667
    %vm3670 = vcmask 1048320
    %3671 = vst.msk [vmem:[#allocation8] sm:$0xff] %vm3670, %v3668
    %s3672 = scalar_lea.vmem [#allocation7], 64
    %v3673 = vld [vmem:[%s3672] sm:$0xff]
    %s3674 = scalar_lea.vmem [#allocation7], 72
    %v3675 = vld [vmem:[%s3674] sm:$0xff]
    %v3676 = vmax.f32 %v3673, %v3675
    %3677 = vst.msk [vmem:[#allocation8 + $0x8] sm:$0xff] %vm3609, %v3676
    %s3678 = scalar_lea.vmem [#allocation7], 80
    %v3679 = vld [vmem:[%s3678] sm:$0xff]
    %s3680 = scalar_lea.vmem [#allocation7], 88
    %v3681 = vld [vmem:[%s3680] sm:$0xff]
    %v3682 = vmax.f32 %v3679, %v3681
    %3684 = vrot.lane.b32.xlu0 %v3682, 32
    %v3685 = vpop.permute.xlu0 %3684
    %3687 = vst.msk [vmem:[#allocation8 + $0x8] sm:$0xff] %vm3648, %v3685
    %s3688 = scalar_lea.vmem [#allocation7], 96
    %v3689 = vld [vmem:[%s3688] sm:$0xff]
    %s3690 = scalar_lea.vmem [#allocation7], 104
    %v3691 = vld [vmem:[%s3690] sm:$0xff]
    %v3692 = vmax.f32 %v3689, %v3691
    %3694 = vrot.lane.b32.xlu0 %v3692, 64
    %v3695 = vpop.permute.xlu0 %3694
    %3697 = vst.msk [vmem:[#allocation8 + $0x8] sm:$0xff] %vm3659, %v3695
    %s3698 = scalar_lea.vmem [#allocation7], 112
    %v3699 = vld [vmem:[%s3698] sm:$0xff]
    %s3700 = scalar_lea.vmem [#allocation7], 120
    %v3701 = vld [vmem:[%s3700] sm:$0xff]
    %v3702 = vmax.f32 %v3699, %v3701
    %3704 = vrot.lane.b32.xlu0 %v3702, 96
    %v3705 = vpop.permute.xlu0 %3704
    %3707 = vst.msk [vmem:[#allocation8 + $0x8] sm:$0xff] %vm3670, %v3705
    %s3708 = scalar_lea.vmem [#allocation7], 128
    %v3709 = vld [vmem:[%s3708] sm:$0xff]
    %s3710 = scalar_lea.vmem [#allocation7], 136
    %v3711 = vld [vmem:[%s3710] sm:$0xff]
    %v3712 = vmax.f32 %v3709, %v3711
    %3713 = vst.msk [vmem:[#allocation8 + $0x10] sm:$0xff] %vm3609, %v3712
    %s3714 = scalar_lea.vmem [#allocation7], 144
    %v3715 = vld [vmem:[%s3714] sm:$0xff]
    %s3716 = scalar_lea.vmem [#allocation7], 152
    %v3717 = vld [vmem:[%s3716] sm:$0xff]
    %v3718 = vmax.f32 %v3715, %v3717
    %3720 = vrot.lane.b32.xlu0 %v3718, 32
    %v3721 = vpop.permute.xlu0 %3720
    %3723 = vst.msk [vmem:[#allocation8 + $0x10] sm:$0xff] %vm3648, %v3721
    %s3724 = scalar_lea.vmem [#allocation7], 160
    %v3725 = vld [vmem:[%s3724] sm:$0xff]
    %s3726 = scalar_lea.vmem [#allocation7], 168
    %v3727 = vld [vmem:[%s3726] sm:$0xff]
    %v3728 = vmax.f32 %v3725, %v3727
    %3730 = vrot.lane.b32.xlu0 %v3728, 64
    %v3731 = vpop.permute.xlu0 %3730
    %3733 = vst.msk [vmem:[#allocation8 + $0x10] sm:$0xff] %vm3659, %v3731
    %s3734 = scalar_lea.vmem [#allocation7], 176
    %v3735 = vld [vmem:[%s3734] sm:$0xff]
    %s3736 = scalar_lea.vmem [#allocation7], 184
    %v3737 = vld [vmem:[%s3736] sm:$0xff]
    %v3738 = vmax.f32 %v3735, %v3737
    %3740 = vrot.lane.b32.xlu0 %v3738, 96
    %v3741 = vpop.permute.xlu0 %3740
    %3743 = vst.msk [vmem:[#allocation8 + $0x10] sm:$0xff] %vm3670, %v3741
    %v3744 = vld [vmem:[%s7] sm:$0x7]
    %v3745 = vld [vmem:[#allocation8] sm:$0xff]
    %v3746 = vld [vmem:[#allocation8 + $0x8] sm:$0xff]
    %v3747 = vld [vmem:[#allocation8 + $0x10] sm:$0xff]
    %v3748 = vld [vmem:[#allocation9] sm:$0xff]
    %v3749 = vld [vmem:[#allocation9 + $0x8] sm:$0xff]
    %v3750 = vld [vmem:[#allocation9 + $0x10] sm:$0xff]
    %v3751 = vld [vmem:[#allocation9 + $0x18] sm:$0xff]
    %v3752 = vld [vmem:[#allocation9 + $0x20] sm:$0xff]
    %v3753 = vld [vmem:[#allocation9 + $0x28] sm:$0xff]
    %v3754 = vld [vmem:[#allocation9 + $0x30] sm:$0xff]
    %v3755 = vld [vmem:[#allocation9 + $0x38] sm:$0xff]
    %v3756 = vld [vmem:[#allocation9 + $0x40] sm:$0xff]
    %v3757 = vld [vmem:[#allocation9 + $0x48] sm:$0xff]
    %v3758 = vld [vmem:[#allocation9 + $0x50] sm:$0xff]
    %v3759 = vld [vmem:[#allocation9 + $0x58] sm:$0xff]
    %v3760 = vld [vmem:[#allocation9 + $0x60] sm:$0xff]
    %v3761 = vld [vmem:[#allocation9 + $0x68] sm:$0xff]
    %v3762 = vld [vmem:[#allocation9 + $0x70] sm:$0xff]
    %v3763 = vld [vmem:[#allocation9 + $0x78] sm:$0xff]
    %v3764 = vld [vmem:[#allocation9 + $0x80] sm:$0xff]
    %v3765 = vld [vmem:[#allocation9 + $0x88] sm:$0xff]
    %v3766 = vld [vmem:[#allocation9 + $0x90] sm:$0xff]
    %v3767 = vld [vmem:[#allocation9 + $0x98] sm:$0xff]
    %v3768 = vld [vmem:[#allocation9 + $0xa0] sm:$0xff]
    %v3769 = vld [vmem:[#allocation9 + $0xa8] sm:$0xff]
    %v3770 = vld [vmem:[#allocation9 + $0xb0] sm:$0xff]
    %v3771 = vld [vmem:[#allocation9 + $0xb8] sm:$0xff]
    %v3772 = vld [vmem:[#allocation9 + $0xc0] sm:$0xff]
    %v3773 = vld [vmem:[#allocation9 + $0xc8] sm:$0xff]
    %v3774 = vld [vmem:[#allocation9 + $0xd0] sm:$0xff]
    %v3775 = vld [vmem:[#allocation9 + $0xd8] sm:$0xff]
    %v3776 = vld [vmem:[#allocation9 + $0xe0] sm:$0xff]
    %v3777 = vld [vmem:[#allocation9 + $0xe8] sm:$0xff]
    %v3778 = vld [vmem:[#allocation9 + $0xf0] sm:$0xff]
    %v3779 = vld [vmem:[#allocation9 + $0xf8] sm:$0xff]
    %v3780 = vld [vmem:[#allocation9 + $0x100] sm:$0xff]
    %v3781 = vld [vmem:[#allocation9 + $0x108] sm:$0xff]
    %v3782 = vld [vmem:[#allocation9 + $0x110] sm:$0xff]
    %v3783 = vld [vmem:[#allocation9 + $0x118] sm:$0xff]
    %v3784 = vld [vmem:[#allocation9 + $0x120] sm:$0xff]
    %v3785 = vld [vmem:[#allocation9 + $0x128] sm:$0xff]
    %v3786 = vld [vmem:[#allocation9 + $0x130] sm:$0xff]
    %v3787 = vld [vmem:[#allocation9 + $0x138] sm:$0xff]
    %v3788 = vld [vmem:[#allocation9 + $0x140] sm:$0xff]
    %v3789 = vld [vmem:[#allocation9 + $0x148] sm:$0xff]
    %v3790 = vld [vmem:[#allocation9 + $0x150] sm:$0xff]
    %v3791 = vld [vmem:[#allocation9 + $0x158] sm:$0xff]
    %v3792 = vld [vmem:[#allocation9 + $0x160] sm:$0xff]
    %v3793 = vld [vmem:[#allocation9 + $0x168] sm:$0xff]
    %v3794 = vld [vmem:[#allocation9 + $0x170] sm:$0xff]
    %v3795 = vld [vmem:[#allocation9 + $0x178] sm:$0xff]
    %v3796 = vld [vmem:[#allocation9 + $0x180] sm:$0xff]
    %v3797 = vld [vmem:[#allocation9 + $0x188] sm:$0xff]
    %v3798 = vld [vmem:[#allocation9 + $0x190] sm:$0xff]
    %v3799 = vld [vmem:[#allocation9 + $0x198] sm:$0xff]
    %v3800 = vld [vmem:[#allocation9 + $0x1a0] sm:$0xff]
    %v3801 = vld [vmem:[#allocation9 + $0x1a8] sm:$0xff]
    %v3802 = vld [vmem:[#allocation9 + $0x1b0] sm:$0xff]
    %v3803 = vld [vmem:[#allocation9 + $0x1b8] sm:$0xff]
    %v3804 = vld [vmem:[#allocation9 + $0x1c0] sm:$0xff]
    %v3805 = vld [vmem:[#allocation9 + $0x1c8] sm:$0xff]
    %v3806 = vld [vmem:[#allocation9 + $0x1d0] sm:$0xff]
    %v3807 = vld [vmem:[#allocation9 + $0x1d8] sm:$0xff]
    %v3808 = vld [vmem:[#allocation9 + $0x1e0] sm:$0xff]
    %v3809 = vld [vmem:[#allocation9 + $0x1e8] sm:$0xff]
    %v3810 = vld [vmem:[#allocation9 + $0x1f0] sm:$0xff]
    %v3811 = vld [vmem:[#allocation9 + $0x1f8] sm:$0xff]
    %v3812 = vld [vmem:[#allocation9 + $0x200] sm:$0xff]
    %v3813 = vld [vmem:[#allocation9 + $0x208] sm:$0xff]
    %v3814 = vld [vmem:[#allocation9 + $0x210] sm:$0xff]
    %v3815 = vld [vmem:[#allocation9 + $0x218] sm:$0xff]
    %v3816 = vld [vmem:[#allocation9 + $0x220] sm:$0xff]
    %v3817 = vld [vmem:[#allocation9 + $0x228] sm:$0xff]
    %v3818 = vld [vmem:[#allocation9 + $0x230] sm:$0xff]
    %v3819 = vld [vmem:[#allocation9 + $0x238] sm:$0xff]
    %v3820 = vld [vmem:[#allocation9 + $0x240] sm:$0xff]
    %v3821 = vld [vmem:[#allocation9 + $0x248] sm:$0xff]
    %v3822 = vld [vmem:[#allocation9 + $0x250] sm:$0xff]
    %v3823 = vld [vmem:[#allocation9 + $0x258] sm:$0xff]
    %v3824 = vld [vmem:[#allocation9 + $0x260] sm:$0xff]
    %v3825 = vld [vmem:[#allocation9 + $0x268] sm:$0xff]
    %v3826 = vld [vmem:[#allocation9 + $0x270] sm:$0xff]
    %v3827 = vld [vmem:[#allocation9 + $0x278] sm:$0xff]
    %v3828 = vld [vmem:[#allocation9 + $0x280] sm:$0xff]
    %v3829 = vld [vmem:[#allocation9 + $0x288] sm:$0xff]
    %v3830 = vld [vmem:[#allocation9 + $0x290] sm:$0xff]
    %v3831 = vld [vmem:[#allocation9 + $0x298] sm:$0xff]
    %v3832 = vld [vmem:[#allocation9 + $0x2a0] sm:$0xff]
    %v3833 = vld [vmem:[#allocation9 + $0x2a8] sm:$0xff]
    %v3834 = vld [vmem:[#allocation9 + $0x2b0] sm:$0xff]
    %v3835 = vld [vmem:[#allocation9 + $0x2b8] sm:$0xff]
    %v3836 = vld [vmem:[#allocation9 + $0x2c0] sm:$0xff]
    %v3837 = vld [vmem:[#allocation9 + $0x2c8] sm:$0xff]
    %v3838 = vld [vmem:[#allocation9 + $0x2d0] sm:$0xff]
    %v3839 = vld [vmem:[#allocation9 + $0x2d8] sm:$0xff]
    %v3840 = vld [vmem:[#allocation9 + $0x2e0] sm:$0xff]
    %v3841 = vld [vmem:[#allocation9 + $0x2e8] sm:$0xff]
    %v3842 = vld [vmem:[#allocation9 + $0x2f0] sm:$0xff]
    %v3843 = vld [vmem:[#allocation9 + $0x2f8] sm:$0xff]
    %v3844 = vld [vmem:[#allocation9 + $0x300] sm:$0xff]
    %v3845 = vld [vmem:[#allocation9 + $0x308] sm:$0xff]
    %v3846 = vld [vmem:[#allocation9 + $0x310] sm:$0xff]
    %v3847 = vld [vmem:[#allocation9 + $0x318] sm:$0xff]
    %v3848 = vld [vmem:[#allocation9 + $0x320] sm:$0xff]
    %v3849 = vld [vmem:[#allocation9 + $0x328] sm:$0xff]
    %v3850 = vld [vmem:[#allocation9 + $0x330] sm:$0xff]
    %v3851 = vld [vmem:[#allocation9 + $0x338] sm:$0xff]
    %v3852 = vld [vmem:[#allocation9 + $0x340] sm:$0xff]
    %v3853 = vld [vmem:[#allocation9 + $0x348] sm:$0xff]
    %v3854 = vld [vmem:[#allocation9 + $0x350] sm:$0xff]
    %v3855 = vld [vmem:[#allocation9 + $0x358] sm:$0xff]
    %v3856 = vld [vmem:[#allocation9 + $0x360] sm:$0xff]
    %v3857 = vld [vmem:[#allocation9 + $0x368] sm:$0xff]
    %v3858 = vld [vmem:[#allocation9 + $0x370] sm:$0xff]
    %v3859 = vld [vmem:[#allocation9 + $0x378] sm:$0xff]
    %v3860 = vld [vmem:[#allocation9 + $0x380] sm:$0xff]
    %v3861 = vld [vmem:[#allocation9 + $0x388] sm:$0xff]
    %v3862 = vld [vmem:[#allocation9 + $0x390] sm:$0xff]
    %v3863 = vld [vmem:[#allocation9 + $0x398] sm:$0xff]
    %v3864 = vld [vmem:[#allocation9 + $0x3a0] sm:$0xff]
    %v3865 = vld [vmem:[#allocation9 + $0x3a8] sm:$0xff]
    %v3866 = vld [vmem:[#allocation9 + $0x3b0] sm:$0xff]
    %v3867 = vld [vmem:[#allocation9 + $0x3b8] sm:$0xff]
    %v3868 = vld [vmem:[#allocation9 + $0x3c0] sm:$0xff]
    %v3869 = vld [vmem:[#allocation9 + $0x3c8] sm:$0xff]
    %v3870 = vld [vmem:[#allocation9 + $0x3d0] sm:$0xff]
    %v3871 = vld [vmem:[#allocation9 + $0x3d8] sm:$0xff]
    %v3872 = vld [vmem:[#allocation9 + $0x3e0] sm:$0xff]
    %v3873 = vld [vmem:[#allocation9 + $0x3e8] sm:$0xff]
    %v3874 = vld [vmem:[#allocation9 + $0x3f0] sm:$0xff]
    %v3875 = vld [vmem:[#allocation9 + $0x3f8] sm:$0xff]
    %v3876 = vld [vmem:[#allocation9 + $0x400] sm:$0xff]
    %v3877 = vld [vmem:[#allocation9 + $0x408] sm:$0xff]
    %v3878 = vld [vmem:[#allocation9 + $0x410] sm:$0xff]
    %v3879 = vld [vmem:[#allocation9 + $0x418] sm:$0xff]
    %v3880 = vld [vmem:[#allocation9 + $0x420] sm:$0xff]
    %v3881 = vld [vmem:[#allocation9 + $0x428] sm:$0xff]
    %v3882 = vld [vmem:[#allocation9 + $0x430] sm:$0xff]
    %v3883 = vld [vmem:[#allocation9 + $0x438] sm:$0xff]
    %v3884 = vld [vmem:[#allocation9 + $0x440] sm:$0xff]
    %v3885 = vld [vmem:[#allocation9 + $0x448] sm:$0xff]
    %v3886 = vld [vmem:[#allocation9 + $0x450] sm:$0xff]
    %v3887 = vld [vmem:[#allocation9 + $0x458] sm:$0xff]
    %v3888 = vld [vmem:[#allocation9 + $0x460] sm:$0xff]
    %v3889 = vld [vmem:[#allocation9 + $0x468] sm:$0xff]
    %v3890 = vld [vmem:[#allocation9 + $0x470] sm:$0xff]
    %v3891 = vld [vmem:[#allocation9 + $0x478] sm:$0xff]
    %v3893 = vperm.slane %v3744, 0
    %v3894 = vperm.slane %v3744, 1
    %v3895 = vperm.slane %v3744, 2
    %3899 = vmatpush.msra.mxu0 %v3793
    %3900 = vmatpush.msra.mxu0 %v3790
    %3901 = vmatpush.msra.mxu0 %v3787
    %3902 = vmatpush.msra.mxu0 %v3784
    %3903 = vmatpush.msra.mxu0 %v3781
    %3904 = vmatpush.msra.mxu0 %v3778
    %3905 = vmatpush.msra.mxu0 %v3775
    %3906 = vmatpush.msra.mxu0 %v3772
    %3907 = vmatpush.msra.mxu0 %v3769
    %3908 = vmatpush.msra.mxu0 %v3766
    %3909 = vmatpush.msra.mxu0 %v3763
    %3910 = vmatpush.msra.mxu0 %v3760
    %3911 = vmatpush.msra.mxu0 %v3757
    %3912 = vmatpush.msra.mxu0 %v3754
    %3913 = vmatpush.msra.mxu0 %v3751
    %3914 = vmatpush.msra.mxu0 %v3748
    %3915 = vmatmul.f32.gmra.mxu0 %v3745
    %v3916 = vpop.f32.mrf.mxu0
    %v3917 = vadd.f32 %v3893, %v3916
    %3918 = vdwg.mxu0
    %3919 = vmatpush.msra.mxu0 %v3841
    %3920 = vmatpush.msra.mxu0 %v3838
    %3921 = vmatpush.msra.mxu0 %v3835
    %3922 = vmatpush.msra.mxu0 %v3832
    %3923 = vmatpush.msra.mxu0 %v3829
    %3924 = vmatpush.msra.mxu0 %v3826
    %3925 = vmatpush.msra.mxu0 %v3823
    %3926 = vmatpush.msra.mxu0 %v3820
    %3927 = vmatpush.msra.mxu0 %v3817
    %3928 = vmatpush.msra.mxu0 %v3814
    %3929 = vmatpush.msra.mxu0 %v3811
    %3930 = vmatpush.msra.mxu0 %v3808
    %3931 = vmatpush.msra.mxu0 %v3805
    %3932 = vmatpush.msra.mxu0 %v3802
    %3933 = vmatpush.msra.mxu0 %v3799
    %3934 = vmatpush.msra.mxu0 %v3796
    %3935 = vmatmul.f32.gmra.mxu0 %v3746
    %v3936 = vpop.f32.mrf.mxu0
    %v3937 = vadd.f32 %v3917, %v3936
    %3938 = vdwg.mxu0
    %3939 = vmatpush.msra.mxu0 %v3889
    %3940 = vmatpush.msra.mxu0 %v3886
    %3941 = vmatpush.msra.mxu0 %v3883
    %3942 = vmatpush.msra.mxu0 %v3880
    %3943 = vmatpush.msra.mxu0 %v3877
    %3944 = vmatpush.msra.mxu0 %v3874
    %3945 = vmatpush.msra.mxu0 %v3871
    %3946 = vmatpush.msra.mxu0 %v3868
    %3947 = vmatpush.msra.mxu0 %v3865
    %3948 = vmatpush.msra.mxu0 %v3862
    %3949 = vmatpush.msra.mxu0 %v3859
    %3950 = vmatpush.msra.mxu0 %v3856
    %3951 = vmatpush.msra.mxu0 %v3853
    %3952 = vmatpush.msra.mxu0 %v3850
    %3953 = vmatpush.msra.mxu0 %v3847
    %3954 = vmatpush.msra.mxu0 %v3844
    %3955 = vmatmul.f32.gmra.mxu0 %v3747
    %v3956 = vpop.f32.mrf.mxu0
    %v3957 = vadd.f32 %v3937, %v3956
    %3958 = vdwg.mxu0
    %3959 = vmatpush.msra.mxu0 %v3794
    %3960 = vmatpush.msra.mxu0 %v3791
    %3961 = vmatpush.msra.mxu0 %v3788
    %3962 = vmatpush.msra.mxu0 %v3785
    %3963 = vmatpush.msra.mxu0 %v3782
    %3964 = vmatpush.msra.mxu0 %v3779
    %3965 = vmatpush.msra.mxu0 %v3776
    %3966 = vmatpush.msra.mxu0 %v3773
    %3967 = vmatpush.msra.mxu0 %v3770
    %3968 = vmatpush.msra.mxu0 %v3767
    %3969 = vmatpush.msra.mxu0 %v3764
    %3970 = vmatpush.msra.mxu0 %v3761
    %3971 = vmatpush.msra.mxu0 %v3758
    %3972 = vmatpush.msra.mxu0 %v3755
    %3973 = vmatpush.msra.mxu0 %v3752
    %3974 = vmatpush.msra.mxu0 %v3749
    %3975 = vmatmul.f32.gmra.mxu0 %v3745
    %v3976 = vpop.f32.mrf.mxu0
    %v3977 = vadd.f32 %v3894, %v3976
    %3978 = vdwg.mxu0
    %3979 = vmatpush.msra.mxu0 %v3842
    %3980 = vmatpush.msra.mxu0 %v3839
    %3981 = vmatpush.msra.mxu0 %v3836
    %3982 = vmatpush.msra.mxu0 %v3833
    %3983 = vmatpush.msra.mxu0 %v3830
    %3984 = vmatpush.msra.mxu0 %v3827
    %3985 = vmatpush.msra.mxu0 %v3824
    %3986 = vmatpush.msra.mxu0 %v3821
    %3987 = vmatpush.msra.mxu0 %v3818
    %3988 = vmatpush.msra.mxu0 %v3815
    %3989 = vmatpush.msra.mxu0 %v3812
    %3990 = vmatpush.msra.mxu0 %v3809
    %3991 = vmatpush.msra.mxu0 %v3806
    %3992 = vmatpush.msra.mxu0 %v3803
    %3993 = vmatpush.msra.mxu0 %v3800
    %3994 = vmatpush.msra.mxu0 %v3797
    %3995 = vmatmul.f32.gmra.mxu0 %v3746
    %v3996 = vpop.f32.mrf.mxu0
    %v3997 = vadd.f32 %v3977, %v3996
    %3998 = vdwg.mxu0
    %3999 = vmatpush.msra.mxu0 %v3890
    %4000 = vmatpush.msra.mxu0 %v3887
    %4001 = vmatpush.msra.mxu0 %v3884
    %4002 = vmatpush.msra.mxu0 %v3881
    %4003 = vmatpush.msra.mxu0 %v3878
    %4004 = vmatpush.msra.mxu0 %v3875
    %4005 = vmatpush.msra.mxu0 %v3872
    %4006 = vmatpush.msra.mxu0 %v3869
    %4007 = vmatpush.msra.mxu0 %v3866
    %4008 = vmatpush.msra.mxu0 %v3863
    %4009 = vmatpush.msra.mxu0 %v3860
    %4010 = vmatpush.msra.mxu0 %v3857
    %4011 = vmatpush.msra.mxu0 %v3854
    %4012 = vmatpush.msra.mxu0 %v3851
    %4013 = vmatpush.msra.mxu0 %v3848
    %4014 = vmatpush.msra.mxu0 %v3845
    %4015 = vmatmul.f32.gmra.mxu0 %v3747
    %v4016 = vpop.f32.mrf.mxu0
    %v4017 = vadd.f32 %v3997, %v4016
    %4018 = vdwg.mxu0
    %4019 = vmatpush.msra.mxu0 %v3795
    %4020 = vmatpush.msra.mxu0 %v3792
    %4021 = vmatpush.msra.mxu0 %v3789
    %4022 = vmatpush.msra.mxu0 %v3786
    %4023 = vmatpush.msra.mxu0 %v3783
    %4024 = vmatpush.msra.mxu0 %v3780
    %4025 = vmatpush.msra.mxu0 %v3777
    %4026 = vmatpush.msra.mxu0 %v3774
    %4027 = vmatpush.msra.mxu0 %v3771
    %4028 = vmatpush.msra.mxu0 %v3768
    %4029 = vmatpush.msra.mxu0 %v3765
    %4030 = vmatpush.msra.mxu0 %v3762
    %4031 = vmatpush.msra.mxu0 %v3759
    %4032 = vmatpush.msra.mxu0 %v3756
    %4033 = vmatpush.msra.mxu0 %v3753
    %4034 = vmatpush.msra.mxu0 %v3750
    %4035 = vmatmul.f32.gmra.mxu0 %v3745
    %v4036 = vpop.f32.mrf.mxu0
    %v4037 = vadd.f32 %v3895, %v4036
    %4038 = vdwg.mxu0
    %4039 = vmatpush.msra.mxu0 %v3843
    %4040 = vmatpush.msra.mxu0 %v3840
    %4041 = vmatpush.msra.mxu0 %v3837
    %4042 = vmatpush.msra.mxu0 %v3834
    %4043 = vmatpush.msra.mxu0 %v3831
    %4044 = vmatpush.msra.mxu0 %v3828
    %4045 = vmatpush.msra.mxu0 %v3825
    %4046 = vmatpush.msra.mxu0 %v3822
    %4047 = vmatpush.msra.mxu0 %v3819
    %4048 = vmatpush.msra.mxu0 %v3816
    %4049 = vmatpush.msra.mxu0 %v3813
    %4050 = vmatpush.msra.mxu0 %v3810
    %4051 = vmatpush.msra.mxu0 %v3807
    %4052 = vmatpush.msra.mxu0 %v3804
    %4053 = vmatpush.msra.mxu0 %v3801
    %4054 = vmatpush.msra.mxu0 %v3798
    %4055 = vmatmul.f32.gmra.mxu0 %v3746
    %v4056 = vpop.f32.mrf.mxu0
    %v4057 = vadd.f32 %v4037, %v4056
    %4058 = vdwg.mxu0
    %4059 = vmatpush.msra.mxu0 %v3891
    %4060 = vmatpush.msra.mxu0 %v3888
    %4061 = vmatpush.msra.mxu0 %v3885
    %4062 = vmatpush.msra.mxu0 %v3882
    %4063 = vmatpush.msra.mxu0 %v3879
    %4064 = vmatpush.msra.mxu0 %v3876
    %4065 = vmatpush.msra.mxu0 %v3873
    %4066 = vmatpush.msra.mxu0 %v3870
    %4067 = vmatpush.msra.mxu0 %v3867
    %4068 = vmatpush.msra.mxu0 %v3864
    %4069 = vmatpush.msra.mxu0 %v3861
    %4070 = vmatpush.msra.mxu0 %v3858
    %4071 = vmatpush.msra.mxu0 %v3855
    %4072 = vmatpush.msra.mxu0 %v3852
    %4073 = vmatpush.msra.mxu0 %v3849
    %4074 = vmatpush.msra.mxu0 %v3846
    %4075 = vmatmul.f32.gmra.mxu0 %v3747
    %v4076 = vpop.f32.mrf.mxu0
    %v4077 = vadd.f32 %v4057, %v4076
    %4078 = vdwg.mxu0
    %v4079 = vmax.f32 %v3957, 0.0
    %v4080 = vmax.f32 %v4017, 0.0
    %v4081 = vmax.f32 %v4077, 0.0
    %v4082 = vld [vmem:[#allocation12] sm:$0xff]
    %v4083 = vld [vmem:[#allocation12 + $0x8] sm:$0xff]
    %v4084 = vld [vmem:[#allocation12 + $0x10] sm:$0xff]
    %v4085 = vld [vmem:[#allocation12 + $0x18] sm:$0xff]
    %v4086 = vld [vmem:[#allocation12 + $0x20] sm:$0xff]
    %v4087 = vld [vmem:[#allocation12 + $0x28] sm:$0xff]
    %v4088 = vld [vmem:[#allocation12 + $0x30] sm:$0xff]
    %v4089 = vld [vmem:[#allocation12 + $0x38] sm:$0xff]
    %v4090 = vld [vmem:[#allocation12 + $0x40] sm:$0xff]
    %v4091 = vld [vmem:[#allocation12 + $0x48] sm:$0xff]
    %v4092 = vld [vmem:[#allocation12 + $0x50] sm:$0xff]
    %v4093 = vld [vmem:[#allocation12 + $0x58] sm:$0xff]
    %v4094 = vld [vmem:[#allocation12 + $0x60] sm:$0xff]
    %v4095 = vld [vmem:[#allocation12 + $0x68] sm:$0xff]
    %v4096 = vld [vmem:[#allocation12 + $0x70] sm:$0xff]
    %v4097 = vld [vmem:[#allocation12 + $0x78] sm:$0xff]
    %v4098 = vld [vmem:[#allocation12 + $0x80] sm:$0xff]
    %v4099 = vld [vmem:[#allocation12 + $0x88] sm:$0xff]
    %v4100 = vld [vmem:[#allocation12 + $0x90] sm:$0xff]
    %v4101 = vld [vmem:[#allocation12 + $0x98] sm:$0xff]
    %v4102 = vld [vmem:[#allocation12 + $0xa0] sm:$0xff]
    %v4103 = vld [vmem:[#allocation12 + $0xa8] sm:$0xff]
    %v4104 = vld [vmem:[#allocation12 + $0xb0] sm:$0xff]
    %v4105 = vld [vmem:[#allocation12 + $0xb8] sm:$0xff]
    %v4106 = vld [vmem:[#allocation12 + $0xc0] sm:$0xff]
    %v4107 = vld [vmem:[#allocation12 + $0xc8] sm:$0xff]
    %v4108 = vld [vmem:[#allocation12 + $0xd0] sm:$0xff]
    %v4109 = vld [vmem:[#allocation12 + $0xd8] sm:$0xff]
    %v4110 = vld [vmem:[#allocation12 + $0xe0] sm:$0xff]
    %v4111 = vld [vmem:[#allocation12 + $0xe8] sm:$0xff]
    %v4112 = vld [vmem:[#allocation12 + $0xf0] sm:$0xff]
    %v4113 = vld [vmem:[#allocation12 + $0xf8] sm:$0xff]
    %v4114 = vld [vmem:[#allocation12 + $0x100] sm:$0xff]
    %v4115 = vld [vmem:[#allocation12 + $0x108] sm:$0xff]
    %v4116 = vld [vmem:[#allocation12 + $0x110] sm:$0xff]
    %v4117 = vld [vmem:[#allocation12 + $0x118] sm:$0xff]
    %v4118 = vld [vmem:[#allocation12 + $0x120] sm:$0xff]
    %v4119 = vld [vmem:[#allocation12 + $0x128] sm:$0xff]
    %v4120 = vld [vmem:[#allocation12 + $0x130] sm:$0xff]
    %v4121 = vld [vmem:[#allocation12 + $0x138] sm:$0xff]
    %v4122 = vld [vmem:[#allocation12 + $0x140] sm:$0xff]
    %v4123 = vld [vmem:[#allocation12 + $0x148] sm:$0xff]
    %v4124 = vld [vmem:[#allocation12 + $0x150] sm:$0xff]
    %v4125 = vld [vmem:[#allocation12 + $0x158] sm:$0xff]
    %v4126 = vld [vmem:[#allocation12 + $0x160] sm:$0xff]
    %v4127 = vld [vmem:[#allocation12 + $0x168] sm:$0xff]
    %v4128 = vld [vmem:[#allocation12 + $0x170] sm:$0xff]
    %v4129 = vld [vmem:[#allocation12 + $0x178] sm:$0xff]
    %v4130 = vld [vmem:[#allocation12 + $0x180] sm:$0xff]
    %v4131 = vld [vmem:[#allocation12 + $0x188] sm:$0xff]
    %v4132 = vld [vmem:[#allocation12 + $0x190] sm:$0xff]
    %v4133 = vld [vmem:[#allocation12 + $0x198] sm:$0xff]
    %v4134 = vld [vmem:[#allocation12 + $0x1a0] sm:$0xff]
    %v4135 = vld [vmem:[#allocation12 + $0x1a8] sm:$0xff]
    %v4136 = vld [vmem:[#allocation12 + $0x1b0] sm:$0xff]
    %v4137 = vld [vmem:[#allocation12 + $0x1b8] sm:$0xff]
    %v4138 = vld [vmem:[#allocation12 + $0x1c0] sm:$0xff]
    %v4139 = vld [vmem:[#allocation12 + $0x1c8] sm:$0xff]
    %v4140 = vld [vmem:[#allocation12 + $0x1d0] sm:$0xff]
    %v4141 = vld [vmem:[#allocation12 + $0x1d8] sm:$0xff]
    %v4142 = vld [vmem:[#allocation12 + $0x1e0] sm:$0xff]
    %v4143 = vld [vmem:[#allocation12 + $0x1e8] sm:$0xff]
    %v4144 = vld [vmem:[#allocation12 + $0x1f0] sm:$0xff]
    %v4145 = vld [vmem:[#allocation12 + $0x1f8] sm:$0xff]
    %v4146 = vld [vmem:[#allocation12 + $0x200] sm:$0xff]
    %v4147 = vld [vmem:[#allocation12 + $0x208] sm:$0xff]
    %v4148 = vld [vmem:[#allocation12 + $0x210] sm:$0xff]
    %v4149 = vld [vmem:[#allocation12 + $0x218] sm:$0xff]
    %v4150 = vld [vmem:[#allocation12 + $0x220] sm:$0xff]
    %v4151 = vld [vmem:[#allocation12 + $0x228] sm:$0xff]
    %v4152 = vld [vmem:[#allocation12 + $0x230] sm:$0xff]
    %v4153 = vld [vmem:[#allocation12 + $0x238] sm:$0xff]
    %v4154 = vld [vmem:[#allocation12 + $0x240] sm:$0xff]
    %v4155 = vld [vmem:[#allocation12 + $0x248] sm:$0xff]
    %v4156 = vld [vmem:[#allocation12 + $0x250] sm:$0xff]
    %v4157 = vld [vmem:[#allocation12 + $0x258] sm:$0xff]
    %v4158 = vld [vmem:[#allocation12 + $0x260] sm:$0xff]
    %v4159 = vld [vmem:[#allocation12 + $0x268] sm:$0xff]
    %v4160 = vld [vmem:[#allocation12 + $0x270] sm:$0xff]
    %v4161 = vld [vmem:[#allocation12 + $0x278] sm:$0xff]
    %v4162 = vld [vmem:[#allocation12 + $0x280] sm:$0xff]
    %v4163 = vld [vmem:[#allocation12 + $0x288] sm:$0xff]
    %v4164 = vld [vmem:[#allocation12 + $0x290] sm:$0xff]
    %v4165 = vld [vmem:[#allocation12 + $0x298] sm:$0xff]
    %v4166 = vld [vmem:[#allocation12 + $0x2a0] sm:$0xff]
    %v4167 = vld [vmem:[#allocation12 + $0x2a8] sm:$0xff]
    %v4168 = vld [vmem:[#allocation12 + $0x2b0] sm:$0xff]
    %v4169 = vld [vmem:[#allocation12 + $0x2b8] sm:$0xff]
    %v4170 = vld [vmem:[#allocation12 + $0x2c0] sm:$0xff]
    %v4171 = vld [vmem:[#allocation12 + $0x2c8] sm:$0xff]
    %v4172 = vld [vmem:[#allocation12 + $0x2d0] sm:$0xff]
    %v4173 = vld [vmem:[#allocation12 + $0x2d8] sm:$0xff]
    %v4174 = vld [vmem:[#allocation12 + $0x2e0] sm:$0xff]
    %v4175 = vld [vmem:[#allocation12 + $0x2e8] sm:$0xff]
    %v4176 = vld [vmem:[#allocation12 + $0x2f0] sm:$0xff]
    %v4177 = vld [vmem:[#allocation12 + $0x2f8] sm:$0xff]
    %v4178 = vld [vmem:[#allocation12 + $0x300] sm:$0xff]
    %v4179 = vld [vmem:[#allocation12 + $0x308] sm:$0xff]
    %v4180 = vld [vmem:[#allocation12 + $0x310] sm:$0xff]
    %v4181 = vld [vmem:[#allocation12 + $0x318] sm:$0xff]
    %v4182 = vld [vmem:[#allocation12 + $0x320] sm:$0xff]
    %v4183 = vld [vmem:[#allocation12 + $0x328] sm:$0xff]
    %v4184 = vld [vmem:[#allocation12 + $0x330] sm:$0xff]
    %v4185 = vld [vmem:[#allocation12 + $0x338] sm:$0xff]
    %v4186 = vld [vmem:[#allocation12 + $0x340] sm:$0xff]
    %v4187 = vld [vmem:[#allocation12 + $0x348] sm:$0xff]
    %v4188 = vld [vmem:[#allocation12 + $0x350] sm:$0xff]
    %v4189 = vld [vmem:[#allocation12 + $0x358] sm:$0xff]
    %v4190 = vld [vmem:[#allocation12 + $0x360] sm:$0xff]
    %v4191 = vld [vmem:[#allocation12 + $0x368] sm:$0xff]
    %v4192 = vld [vmem:[#allocation12 + $0x370] sm:$0xff]
    %v4193 = vld [vmem:[#allocation12 + $0x378] sm:$0xff]
    %v4194 = vld [vmem:[#allocation12 + $0x380] sm:$0xff]
    %v4195 = vld [vmem:[#allocation12 + $0x388] sm:$0xff]
    %v4196 = vld [vmem:[#allocation12 + $0x390] sm:$0xff]
    %v4197 = vld [vmem:[#allocation12 + $0x398] sm:$0xff]
    %v4198 = vld [vmem:[#allocation12 + $0x3a0] sm:$0xff]
    %v4199 = vld [vmem:[#allocation12 + $0x3a8] sm:$0xff]
    %v4200 = vld [vmem:[#allocation12 + $0x3b0] sm:$0xff]
    %v4201 = vld [vmem:[#allocation12 + $0x3b8] sm:$0xff]
    %v4202 = vld [vmem:[#allocation12 + $0x3c0] sm:$0xff]
    %v4203 = vld [vmem:[#allocation12 + $0x3c8] sm:$0xff]
    %v4204 = vld [vmem:[#allocation12 + $0x3d0] sm:$0xff]
    %v4205 = vld [vmem:[#allocation12 + $0x3d8] sm:$0xff]
    %v4206 = vld [vmem:[#allocation12 + $0x3e0] sm:$0xff]
    %v4207 = vld [vmem:[#allocation12 + $0x3e8] sm:$0xff]
    %v4208 = vld [vmem:[#allocation12 + $0x3f0] sm:$0xff]
    %v4209 = vld [vmem:[#allocation12 + $0x3f8] sm:$0xff]
    %v4210 = vld [vmem:[#allocation12 + $0x400] sm:$0xff]
    %v4211 = vld [vmem:[#allocation12 + $0x408] sm:$0xff]
    %v4212 = vld [vmem:[#allocation12 + $0x410] sm:$0xff]
    %v4213 = vld [vmem:[#allocation12 + $0x418] sm:$0xff]
    %v4214 = vld [vmem:[#allocation12 + $0x420] sm:$0xff]
    %v4215 = vld [vmem:[#allocation12 + $0x428] sm:$0xff]
    %v4216 = vld [vmem:[#allocation12 + $0x430] sm:$0xff]
    %v4217 = vld [vmem:[#allocation12 + $0x438] sm:$0xff]
    %v4218 = vld [vmem:[#allocation12 + $0x440] sm:$0xff]
    %v4219 = vld [vmem:[#allocation12 + $0x448] sm:$0xff]
    %v4220 = vld [vmem:[#allocation12 + $0x450] sm:$0xff]
    %v4221 = vld [vmem:[#allocation12 + $0x458] sm:$0xff]
    %v4222 = vld [vmem:[#allocation12 + $0x460] sm:$0xff]
    %v4223 = vld [vmem:[#allocation12 + $0x468] sm:$0xff]
    %v4224 = vld [vmem:[#allocation12 + $0x470] sm:$0xff]
    %v4225 = vld [vmem:[#allocation12 + $0x478] sm:$0xff]
    %4226 = vmatpush.msra.mxu0 %v4127
    %4227 = vmatpush.msra.mxu0 %v4124
    %4228 = vmatpush.msra.mxu0 %v4121
    %4229 = vmatpush.msra.mxu0 %v4118
    %4230 = vmatpush.msra.mxu0 %v4115
    %4231 = vmatpush.msra.mxu0 %v4112
    %4232 = vmatpush.msra.mxu0 %v4109
    %4233 = vmatpush.msra.mxu0 %v4106
    %4234 = vmatpush.msra.mxu0 %v4103
    %4235 = vmatpush.msra.mxu0 %v4100
    %4236 = vmatpush.msra.mxu0 %v4097
    %4237 = vmatpush.msra.mxu0 %v4094
    %4238 = vmatpush.msra.mxu0 %v4091
    %4239 = vmatpush.msra.mxu0 %v4088
    %4240 = vmatpush.msra.mxu0 %v4085
    %4241 = vmatpush.msra.mxu0 %v4082
    %4242 = vmatmul.f32.gmra.mxu0 %v4079
    %v4243 = vpop.f32.mrf.mxu0
    %v4244 = vadd.f32 %v3893, %v4243
    %4245 = vdwg.mxu0
    %4246 = vmatpush.msra.mxu0 %v4175
    %4247 = vmatpush.msra.mxu0 %v4172
    %4248 = vmatpush.msra.mxu0 %v4169
    %4249 = vmatpush.msra.mxu0 %v4166
    %4250 = vmatpush.msra.mxu0 %v4163
    %4251 = vmatpush.msra.mxu0 %v4160
    %4252 = vmatpush.msra.mxu0 %v4157
    %4253 = vmatpush.msra.mxu0 %v4154
    %4254 = vmatpush.msra.mxu0 %v4151
    %4255 = vmatpush.msra.mxu0 %v4148
    %4256 = vmatpush.msra.mxu0 %v4145
    %4257 = vmatpush.msra.mxu0 %v4142
    %4258 = vmatpush.msra.mxu0 %v4139
    %4259 = vmatpush.msra.mxu0 %v4136
    %4260 = vmatpush.msra.mxu0 %v4133
    %4261 = vmatpush.msra.mxu0 %v4130
    %4262 = vmatmul.f32.gmra.mxu0 %v4080
    %v4263 = vpop.f32.mrf.mxu0
    %v4264 = vadd.f32 %v4244, %v4263
    %4265 = vdwg.mxu0
    %4266 = vmatpush.msra.mxu0 %v4223
    %4267 = vmatpush.msra.mxu0 %v4220
    %4268 = vmatpush.msra.mxu0 %v4217
    %4269 = vmatpush.msra.mxu0 %v4214
    %4270 = vmatpush.msra.mxu0 %v4211
    %4271 = vmatpush.msra.mxu0 %v4208
    %4272 = vmatpush.msra.mxu0 %v4205
    %4273 = vmatpush.msra.mxu0 %v4202
    %4274 = vmatpush.msra.mxu0 %v4199
    %4275 = vmatpush.msra.mxu0 %v4196
    %4276 = vmatpush.msra.mxu0 %v4193
    %4277 = vmatpush.msra.mxu0 %v4190
    %4278 = vmatpush.msra.mxu0 %v4187
    %4279 = vmatpush.msra.mxu0 %v4184
    %4280 = vmatpush.msra.mxu0 %v4181
    %4281 = vmatpush.msra.mxu0 %v4178
    %4282 = vmatmul.f32.gmra.mxu0 %v4081
    %v4283 = vpop.f32.mrf.mxu0
    %v4284 = vadd.f32 %v4264, %v4283
    %4285 = vdwg.mxu0
    %4286 = vmatpush.msra.mxu0 %v4128
    %4287 = vmatpush.msra.mxu0 %v4125
    %4288 = vmatpush.msra.mxu0 %v4122
    %4289 = vmatpush.msra.mxu0 %v4119
    %4290 = vmatpush.msra.mxu0 %v4116
    %4291 = vmatpush.msra.mxu0 %v4113
    %4292 = vmatpush.msra.mxu0 %v4110
    %4293 = vmatpush.msra.mxu0 %v4107
    %4294 = vmatpush.msra.mxu0 %v4104
    %4295 = vmatpush.msra.mxu0 %v4101
    %4296 = vmatpush.msra.mxu0 %v4098
    %4297 = vmatpush.msra.mxu0 %v4095
    %4298 = vmatpush.msra.mxu0 %v4092
    %4299 = vmatpush.msra.mxu0 %v4089
    %4300 = vmatpush.msra.mxu0 %v4086
    %4301 = vmatpush.msra.mxu0 %v4083
    %4302 = vmatmul.f32.gmra.mxu0 %v4079
    %v4303 = vpop.f32.mrf.mxu0
    %v4304 = vadd.f32 %v3894, %v4303
    %4305 = vdwg.mxu0
    %4306 = vmatpush.msra.mxu0 %v4176
    %4307 = vmatpush.msra.mxu0 %v4173
    %4308 = vmatpush.msra.mxu0 %v4170
    %4309 = vmatpush.msra.mxu0 %v4167
    %4310 = vmatpush.msra.mxu0 %v4164
    %4311 = vmatpush.msra.mxu0 %v4161
    %4312 = vmatpush.msra.mxu0 %v4158
    %4313 = vmatpush.msra.mxu0 %v4155
    %4314 = vmatpush.msra.mxu0 %v4152
    %4315 = vmatpush.msra.mxu0 %v4149
    %4316 = vmatpush.msra.mxu0 %v4146
    %4317 = vmatpush.msra.mxu0 %v4143
    %4318 = vmatpush.msra.mxu0 %v4140
    %4319 = vmatpush.msra.mxu0 %v4137
    %4320 = vmatpush.msra.mxu0 %v4134
    %4321 = vmatpush.msra.mxu0 %v4131
    %4322 = vmatmul.f32.gmra.mxu0 %v4080
    %v4323 = vpop.f32.mrf.mxu0
    %v4324 = vadd.f32 %v4304, %v4323
    %4325 = vdwg.mxu0
    %4326 = vmatpush.msra.mxu0 %v4224
    %4327 = vmatpush.msra.mxu0 %v4221
    %4328 = vmatpush.msra.mxu0 %v4218
    %4329 = vmatpush.msra.mxu0 %v4215
    %4330 = vmatpush.msra.mxu0 %v4212
    %4331 = vmatpush.msra.mxu0 %v4209
    %4332 = vmatpush.msra.mxu0 %v4206
    %4333 = vmatpush.msra.mxu0 %v4203
    %4334 = vmatpush.msra.mxu0 %v4200
    %4335 = vmatpush.msra.mxu0 %v4197
    %4336 = vmatpush.msra.mxu0 %v4194
    %4337 = vmatpush.msra.mxu0 %v4191
    %4338 = vmatpush.msra.mxu0 %v4188
    %4339 = vmatpush.msra.mxu0 %v4185
    %4340 = vmatpush.msra.mxu0 %v4182
    %4341 = vmatpush.msra.mxu0 %v4179
    %4342 = vmatmul.f32.gmra.mxu0 %v4081
    %v4343 = vpop.f32.mrf.mxu0
    %v4344 = vadd.f32 %v4324, %v4343
    %4345 = vdwg.mxu0
    %4346 = vmatpush.msra.mxu0 %v4129
    %4347 = vmatpush.msra.mxu0 %v4126
    %4348 = vmatpush.msra.mxu0 %v4123
    %4349 = vmatpush.msra.mxu0 %v4120
    %4350 = vmatpush.msra.mxu0 %v4117
    %4351 = vmatpush.msra.mxu0 %v4114
    %4352 = vmatpush.msra.mxu0 %v4111
    %4353 = vmatpush.msra.mxu0 %v4108
    %4354 = vmatpush.msra.mxu0 %v4105
    %4355 = vmatpush.msra.mxu0 %v4102
    %4356 = vmatpush.msra.mxu0 %v4099
    %4357 = vmatpush.msra.mxu0 %v4096
    %4358 = vmatpush.msra.mxu0 %v4093
    %4359 = vmatpush.msra.mxu0 %v4090
    %4360 = vmatpush.msra.mxu0 %v4087
    %4361 = vmatpush.msra.mxu0 %v4084
    %4362 = vmatmul.f32.gmra.mxu0 %v4079
    %v4363 = vpop.f32.mrf.mxu0
    %v4364 = vadd.f32 %v3895, %v4363
    %4365 = vdwg.mxu0
    %4366 = vmatpush.msra.mxu0 %v4177
    %4367 = vmatpush.msra.mxu0 %v4174
    %4368 = vmatpush.msra.mxu0 %v4171
    %4369 = vmatpush.msra.mxu0 %v4168
    %4370 = vmatpush.msra.mxu0 %v4165
    %4371 = vmatpush.msra.mxu0 %v4162
    %4372 = vmatpush.msra.mxu0 %v4159
    %4373 = vmatpush.msra.mxu0 %v4156
    %4374 = vmatpush.msra.mxu0 %v4153
    %4375 = vmatpush.msra.mxu0 %v4150
    %4376 = vmatpush.msra.mxu0 %v4147
    %4377 = vmatpush.msra.mxu0 %v4144
    %4378 = vmatpush.msra.mxu0 %v4141
    %4379 = vmatpush.msra.mxu0 %v4138
    %4380 = vmatpush.msra.mxu0 %v4135
    %4381 = vmatpush.msra.mxu0 %v4132
    %4382 = vmatmul.f32.gmra.mxu0 %v4080
    %v4383 = vpop.f32.mrf.mxu0
    %v4384 = vadd.f32 %v4364, %v4383
    %4385 = vdwg.mxu0
    %4386 = vmatpush.msra.mxu0 %v4225
    %4387 = vmatpush.msra.mxu0 %v4222
    %4388 = vmatpush.msra.mxu0 %v4219
    %4389 = vmatpush.msra.mxu0 %v4216
    %4390 = vmatpush.msra.mxu0 %v4213
    %4391 = vmatpush.msra.mxu0 %v4210
    %4392 = vmatpush.msra.mxu0 %v4207
    %4393 = vmatpush.msra.mxu0 %v4204
    %4394 = vmatpush.msra.mxu0 %v4201
    %4395 = vmatpush.msra.mxu0 %v4198
    %4396 = vmatpush.msra.mxu0 %v4195
    %4397 = vmatpush.msra.mxu0 %v4192
    %4398 = vmatpush.msra.mxu0 %v4189
    %4399 = vmatpush.msra.mxu0 %v4186
    %4400 = vmatpush.msra.mxu0 %v4183
    %4401 = vmatpush.msra.mxu0 %v4180
    %4402 = vmatmul.f32.gmra.mxu0 %v4081
    %v4403 = vpop.f32.mrf.mxu0
    %v4404 = vadd.f32 %v4384, %v4403
    %4405 = vdwg.mxu0
    %v4406 = vmax.f32 %v4284, 0.0
    %v4407 = vmax.f32 %v4344, 0.0
    %v4408 = vmax.f32 %v4404, 0.0
    %4409 = vmatpush.msra.mxu0 %v4127
    %4410 = vmatpush.msra.mxu0 %v4124
    %4411 = vmatpush.msra.mxu0 %v4121
    %4412 = vmatpush.msra.mxu0 %v4118
    %4413 = vmatpush.msra.mxu0 %v4115
    %4414 = vmatpush.msra.mxu0 %v4112
    %4415 = vmatpush.msra.mxu0 %v4109
    %4416 = vmatpush.msra.mxu0 %v4106
    %4417 = vmatpush.msra.mxu0 %v4103
    %4418 = vmatpush.msra.mxu0 %v4100
    %4419 = vmatpush.msra.mxu0 %v4097
    %4420 = vmatpush.msra.mxu0 %v4094
    %4421 = vmatpush.msra.mxu0 %v4091
    %4422 = vmatpush.msra.mxu0 %v4088
    %4423 = vmatpush.msra.mxu0 %v4085
    %4424 = vmatpush.msra.mxu0 %v4082
    %4425 = vmatmul.f32.gmra.mxu0 %v4406
    %v4426 = vpop.f32.mrf.mxu0
    %v4427 = vadd.f32 %v3893, %v4426
    %4428 = vdwg.mxu0
    %4429 = vmatpush.msra.mxu0 %v4175
    %4430 = vmatpush.msra.mxu0 %v4172
    %4431 = vmatpush.msra.mxu0 %v4169
    %4432 = vmatpush.msra.mxu0 %v4166
    %4433 = vmatpush.msra.mxu0 %v4163
    %4434 = vmatpush.msra.mxu0 %v4160
    %4435 = vmatpush.msra.mxu0 %v4157
    %4436 = vmatpush.msra.mxu0 %v4154
    %4437 = vmatpush.msra.mxu0 %v4151
    %4438 = vmatpush.msra.mxu0 %v4148
    %4439 = vmatpush.msra.mxu0 %v4145
    %4440 = vmatpush.msra.mxu0 %v4142
    %4441 = vmatpush.msra.mxu0 %v4139
    %4442 = vmatpush.msra.mxu0 %v4136
    %4443 = vmatpush.msra.mxu0 %v4133
    %4444 = vmatpush.msra.mxu0 %v4130
    %4445 = vmatmul.f32.gmra.mxu0 %v4407
    %v4446 = vpop.f32.mrf.mxu0
    %v4447 = vadd.f32 %v4427, %v4446
    %4448 = vdwg.mxu0
    %4449 = vmatpush.msra.mxu0 %v4223
    %4450 = vmatpush.msra.mxu0 %v4220
    %4451 = vmatpush.msra.mxu0 %v4217
    %4452 = vmatpush.msra.mxu0 %v4214
    %4453 = vmatpush.msra.mxu0 %v4211
    %4454 = vmatpush.msra.mxu0 %v4208
    %4455 = vmatpush.msra.mxu0 %v4205
    %4456 = vmatpush.msra.mxu0 %v4202
    %4457 = vmatpush.msra.mxu0 %v4199
    %4458 = vmatpush.msra.mxu0 %v4196
    %4459 = vmatpush.msra.mxu0 %v4193
    %4460 = vmatpush.msra.mxu0 %v4190
    %4461 = vmatpush.msra.mxu0 %v4187
    %4462 = vmatpush.msra.mxu0 %v4184
    %4463 = vmatpush.msra.mxu0 %v4181
    %4464 = vmatpush.msra.mxu0 %v4178
    %4465 = vmatmul.f32.gmra.mxu0 %v4408
    %v4466 = vpop.f32.mrf.mxu0
    %v4467 = vadd.f32 %v4447, %v4466
    %4468 = vdwg.mxu0
    %4469 = vmatpush.msra.mxu0 %v4128
    %4470 = vmatpush.msra.mxu0 %v4125
    %4471 = vmatpush.msra.mxu0 %v4122
    %4472 = vmatpush.msra.mxu0 %v4119
    %4473 = vmatpush.msra.mxu0 %v4116
    %4474 = vmatpush.msra.mxu0 %v4113
    %4475 = vmatpush.msra.mxu0 %v4110
    %4476 = vmatpush.msra.mxu0 %v4107
    %4477 = vmatpush.msra.mxu0 %v4104
    %4478 = vmatpush.msra.mxu0 %v4101
    %4479 = vmatpush.msra.mxu0 %v4098
    %4480 = vmatpush.msra.mxu0 %v4095
    %4481 = vmatpush.msra.mxu0 %v4092
    %4482 = vmatpush.msra.mxu0 %v4089
    %4483 = vmatpush.msra.mxu0 %v4086
    %4484 = vmatpush.msra.mxu0 %v4083
    %4485 = vmatmul.f32.gmra.mxu0 %v4406
    %v4486 = vpop.f32.mrf.mxu0
    %v4487 = vadd.f32 %v3894, %v4486
    %4488 = vdwg.mxu0
    %4489 = vmatpush.msra.mxu0 %v4176
    %4490 = vmatpush.msra.mxu0 %v4173
    %4491 = vmatpush.msra.mxu0 %v4170
    %4492 = vmatpush.msra.mxu0 %v4167
    %4493 = vmatpush.msra.mxu0 %v4164
    %4494 = vmatpush.msra.mxu0 %v4161
    %4495 = vmatpush.msra.mxu0 %v4158
    %4496 = vmatpush.msra.mxu0 %v4155
    %4497 = vmatpush.msra.mxu0 %v4152
    %4498 = vmatpush.msra.mxu0 %v4149
    %4499 = vmatpush.msra.mxu0 %v4146
    %4500 = vmatpush.msra.mxu0 %v4143
    %4501 = vmatpush.msra.mxu0 %v4140
    %4502 = vmatpush.msra.mxu0 %v4137
    %4503 = vmatpush.msra.mxu0 %v4134
    %4504 = vmatpush.msra.mxu0 %v4131
    %4505 = vmatmul.f32.gmra.mxu0 %v4407
    %v4506 = vpop.f32.mrf.mxu0
    %v4507 = vadd.f32 %v4487, %v4506
    %4508 = vdwg.mxu0
    %4509 = vmatpush.msra.mxu0 %v4224
    %4510 = vmatpush.msra.mxu0 %v4221
    %4511 = vmatpush.msra.mxu0 %v4218
    %4512 = vmatpush.msra.mxu0 %v4215
    %4513 = vmatpush.msra.mxu0 %v4212
    %4514 = vmatpush.msra.mxu0 %v4209
    %4515 = vmatpush.msra.mxu0 %v4206
    %4516 = vmatpush.msra.mxu0 %v4203
    %4517 = vmatpush.msra.mxu0 %v4200
    %4518 = vmatpush.msra.mxu0 %v4197
    %4519 = vmatpush.msra.mxu0 %v4194
    %4520 = vmatpush.msra.mxu0 %v4191
    %4521 = vmatpush.msra.mxu0 %v4188
    %4522 = vmatpush.msra.mxu0 %v4185
    %4523 = vmatpush.msra.mxu0 %v4182
    %4524 = vmatpush.msra.mxu0 %v4179
    %4525 = vmatmul.f32.gmra.mxu0 %v4408
    %v4526 = vpop.f32.mrf.mxu0
    %v4527 = vadd.f32 %v4507, %v4526
    %4528 = vdwg.mxu0
    %4529 = vmatpush.msra.mxu0 %v4129
    %4530 = vmatpush.msra.mxu0 %v4126
    %4531 = vmatpush.msra.mxu0 %v4123
    %4532 = vmatpush.msra.mxu0 %v4120
    %4533 = vmatpush.msra.mxu0 %v4117
    %4534 = vmatpush.msra.mxu0 %v4114
    %4535 = vmatpush.msra.mxu0 %v4111
    %4536 = vmatpush.msra.mxu0 %v4108
    %4537 = vmatpush.msra.mxu0 %v4105
    %4538 = vmatpush.msra.mxu0 %v4102
    %4539 = vmatpush.msra.mxu0 %v4099
    %4540 = vmatpush.msra.mxu0 %v4096
    %4541 = vmatpush.msra.mxu0 %v4093
    %4542 = vmatpush.msra.mxu0 %v4090
    %4543 = vmatpush.msra.mxu0 %v4087
    %4544 = vmatpush.msra.mxu0 %v4084
    %4545 = vmatmul.f32.gmra.mxu0 %v4406
    %v4546 = vpop.f32.mrf.mxu0
    %v4547 = vadd.f32 %v3895, %v4546
    %4548 = vdwg.mxu0
    %4549 = vmatpush.msra.mxu0 %v4177
    %4550 = vmatpush.msra.mxu0 %v4174
    %4551 = vmatpush.msra.mxu0 %v4171
    %4552 = vmatpush.msra.mxu0 %v4168
    %4553 = vmatpush.msra.mxu0 %v4165
    %4554 = vmatpush.msra.mxu0 %v4162
    %4555 = vmatpush.msra.mxu0 %v4159
    %4556 = vmatpush.msra.mxu0 %v4156
    %4557 = vmatpush.msra.mxu0 %v4153
    %4558 = vmatpush.msra.mxu0 %v4150
    %4559 = vmatpush.msra.mxu0 %v4147
    %4560 = vmatpush.msra.mxu0 %v4144
    %4561 = vmatpush.msra.mxu0 %v4141
    %4562 = vmatpush.msra.mxu0 %v4138
    %4563 = vmatpush.msra.mxu0 %v4135
    %4564 = vmatpush.msra.mxu0 %v4132
    %4565 = vmatmul.f32.gmra.mxu0 %v4407
    %v4566 = vpop.f32.mrf.mxu0
    %v4567 = vadd.f32 %v4547, %v4566
    %4568 = vdwg.mxu0
    %4569 = vmatpush.msra.mxu0 %v4225
    %4570 = vmatpush.msra.mxu0 %v4222
    %4571 = vmatpush.msra.mxu0 %v4219
    %4572 = vmatpush.msra.mxu0 %v4216
    %4573 = vmatpush.msra.mxu0 %v4213
    %4574 = vmatpush.msra.mxu0 %v4210
    %4575 = vmatpush.msra.mxu0 %v4207
    %4576 = vmatpush.msra.mxu0 %v4204
    %4577 = vmatpush.msra.mxu0 %v4201
    %4578 = vmatpush.msra.mxu0 %v4198
    %4579 = vmatpush.msra.mxu0 %v4195
    %4580 = vmatpush.msra.mxu0 %v4192
    %4581 = vmatpush.msra.mxu0 %v4189
    %4582 = vmatpush.msra.mxu0 %v4186
    %4583 = vmatpush.msra.mxu0 %v4183
    %4584 = vmatpush.msra.mxu0 %v4180
    %4585 = vmatmul.f32.gmra.mxu0 %v4408
    %v4586 = vpop.f32.mrf.mxu0
    %v4587 = vadd.f32 %v4567, %v4586
    %4588 = vdwg.mxu0
    %v4589 = vmax.f32 %v4467, 0.0
    %v4590 = vmax.f32 %v4527, 0.0
    %v4591 = vmax.f32 %v4587, 0.0
    %4592 = vmatpush.msra.mxu0 %v4127
    %4593 = vmatpush.msra.mxu0 %v4124
    %4594 = vmatpush.msra.mxu0 %v4121
    %4595 = vmatpush.msra.mxu0 %v4118
    %4596 = vmatpush.msra.mxu0 %v4115
    %4597 = vmatpush.msra.mxu0 %v4112
    %4598 = vmatpush.msra.mxu0 %v4109
    %4599 = vmatpush.msra.mxu0 %v4106
    %4600 = vmatpush.msra.mxu0 %v4103
    %4601 = vmatpush.msra.mxu0 %v4100
    %4602 = vmatpush.msra.mxu0 %v4097
    %4603 = vmatpush.msra.mxu0 %v4094
    %4604 = vmatpush.msra.mxu0 %v4091
    %4605 = vmatpush.msra.mxu0 %v4088
    %4606 = vmatpush.msra.mxu0 %v4085
    %4607 = vmatpush.msra.mxu0 %v4082
    %4608 = vmatmul.f32.gmra.mxu0 %v4589
    %v4609 = vpop.f32.mrf.mxu0
    %v4610 = vadd.f32 %v3893, %v4609
    %4611 = vdwg.mxu0
    %4612 = vmatpush.msra.mxu0 %v4175
    %4613 = vmatpush.msra.mxu0 %v4172
    %4614 = vmatpush.msra.mxu0 %v4169
    %4615 = vmatpush.msra.mxu0 %v4166
    %4616 = vmatpush.msra.mxu0 %v4163
    %4617 = vmatpush.msra.mxu0 %v4160
    %4618 = vmatpush.msra.mxu0 %v4157
    %4619 = vmatpush.msra.mxu0 %v4154
    %4620 = vmatpush.msra.mxu0 %v4151
    %4621 = vmatpush.msra.mxu0 %v4148
    %4622 = vmatpush.msra.mxu0 %v4145
    %4623 = vmatpush.msra.mxu0 %v4142
    %4624 = vmatpush.msra.mxu0 %v4139
    %4625 = vmatpush.msra.mxu0 %v4136
    %4626 = vmatpush.msra.mxu0 %v4133
    %4627 = vmatpush.msra.mxu0 %v4130
    %4628 = vmatmul.f32.gmra.mxu0 %v4590
    %v4629 = vpop.f32.mrf.mxu0
    %v4630 = vadd.f32 %v4610, %v4629
    %4631 = vdwg.mxu0
    %4632 = vmatpush.msra.mxu0 %v4223
    %4633 = vmatpush.msra.mxu0 %v4220
    %4634 = vmatpush.msra.mxu0 %v4217
    %4635 = vmatpush.msra.mxu0 %v4214
    %4636 = vmatpush.msra.mxu0 %v4211
    %4637 = vmatpush.msra.mxu0 %v4208
    %4638 = vmatpush.msra.mxu0 %v4205
    %4639 = vmatpush.msra.mxu0 %v4202
    %4640 = vmatpush.msra.mxu0 %v4199
    %4641 = vmatpush.msra.mxu0 %v4196
    %4642 = vmatpush.msra.mxu0 %v4193
    %4643 = vmatpush.msra.mxu0 %v4190
    %4644 = vmatpush.msra.mxu0 %v4187
    %4645 = vmatpush.msra.mxu0 %v4184
    %4646 = vmatpush.msra.mxu0 %v4181
    %4647 = vmatpush.msra.mxu0 %v4178
    %4648 = vmatmul.f32.gmra.mxu0 %v4591
    %v4649 = vpop.f32.mrf.mxu0
    %v4650 = vadd.f32 %v4630, %v4649
    %4651 = vdwg.mxu0
    %4652 = vmatpush.msra.mxu0 %v4128
    %4653 = vmatpush.msra.mxu0 %v4125
    %4654 = vmatpush.msra.mxu0 %v4122
    %4655 = vmatpush.msra.mxu0 %v4119
    %4656 = vmatpush.msra.mxu0 %v4116
    %4657 = vmatpush.msra.mxu0 %v4113
    %4658 = vmatpush.msra.mxu0 %v4110
    %4659 = vmatpush.msra.mxu0 %v4107
    %4660 = vmatpush.msra.mxu0 %v4104
    %4661 = vmatpush.msra.mxu0 %v4101
    %4662 = vmatpush.msra.mxu0 %v4098
    %4663 = vmatpush.msra.mxu0 %v4095
    %4664 = vmatpush.msra.mxu0 %v4092
    %4665 = vmatpush.msra.mxu0 %v4089
    %4666 = vmatpush.msra.mxu0 %v4086
    %4667 = vmatpush.msra.mxu0 %v4083
    %4668 = vmatmul.f32.gmra.mxu0 %v4589
    %v4669 = vpop.f32.mrf.mxu0
    %v4670 = vadd.f32 %v3894, %v4669
    %4671 = vdwg.mxu0
    %4672 = vmatpush.msra.mxu0 %v4176
    %4673 = vmatpush.msra.mxu0 %v4173
    %4674 = vmatpush.msra.mxu0 %v4170
    %4675 = vmatpush.msra.mxu0 %v4167
    %4676 = vmatpush.msra.mxu0 %v4164
    %4677 = vmatpush.msra.mxu0 %v4161
    %4678 = vmatpush.msra.mxu0 %v4158
    %4679 = vmatpush.msra.mxu0 %v4155
    %4680 = vmatpush.msra.mxu0 %v4152
    %4681 = vmatpush.msra.mxu0 %v4149
    %4682 = vmatpush.msra.mxu0 %v4146
    %4683 = vmatpush.msra.mxu0 %v4143
    %4684 = vmatpush.msra.mxu0 %v4140
    %4685 = vmatpush.msra.mxu0 %v4137
    %4686 = vmatpush.msra.mxu0 %v4134
    %4687 = vmatpush.msra.mxu0 %v4131
    %4688 = vmatmul.f32.gmra.mxu0 %v4590
    %v4689 = vpop.f32.mrf.mxu0
    %v4690 = vadd.f32 %v4670, %v4689
    %4691 = vdwg.mxu0
    %4692 = vmatpush.msra.mxu0 %v4224
    %4693 = vmatpush.msra.mxu0 %v4221
    %4694 = vmatpush.msra.mxu0 %v4218
    %4695 = vmatpush.msra.mxu0 %v4215
    %4696 = vmatpush.msra.mxu0 %v4212
    %4697 = vmatpush.msra.mxu0 %v4209
    %4698 = vmatpush.msra.mxu0 %v4206
    %4699 = vmatpush.msra.mxu0 %v4203
    %4700 = vmatpush.msra.mxu0 %v4200
    %4701 = vmatpush.msra.mxu0 %v4197
    %4702 = vmatpush.msra.mxu0 %v4194
    %4703 = vmatpush.msra.mxu0 %v4191
    %4704 = vmatpush.msra.mxu0 %v4188
    %4705 = vmatpush.msra.mxu0 %v4185
    %4706 = vmatpush.msra.mxu0 %v4182
    %4707 = vmatpush.msra.mxu0 %v4179
    %4708 = vmatmul.f32.gmra.mxu0 %v4591
    %v4709 = vpop.f32.mrf.mxu0
    %v4710 = vadd.f32 %v4690, %v4709
    %4711 = vdwg.mxu0
    %4712 = vmatpush.msra.mxu0 %v4129
    %4713 = vmatpush.msra.mxu0 %v4126
    %4714 = vmatpush.msra.mxu0 %v4123
    %4715 = vmatpush.msra.mxu0 %v4120
    %4716 = vmatpush.msra.mxu0 %v4117
    %4717 = vmatpush.msra.mxu0 %v4114
    %4718 = vmatpush.msra.mxu0 %v4111
    %4719 = vmatpush.msra.mxu0 %v4108
    %4720 = vmatpush.msra.mxu0 %v4105
    %4721 = vmatpush.msra.mxu0 %v4102
    %4722 = vmatpush.msra.mxu0 %v4099
    %4723 = vmatpush.msra.mxu0 %v4096
    %4724 = vmatpush.msra.mxu0 %v4093
    %4725 = vmatpush.msra.mxu0 %v4090
    %4726 = vmatpush.msra.mxu0 %v4087
    %4727 = vmatpush.msra.mxu0 %v4084
    %4728 = vmatmul.f32.gmra.mxu0 %v4589
    %v4729 = vpop.f32.mrf.mxu0
    %v4730 = vadd.f32 %v3895, %v4729
    %4731 = vdwg.mxu0
    %4732 = vmatpush.msra.mxu0 %v4177
    %4733 = vmatpush.msra.mxu0 %v4174
    %4734 = vmatpush.msra.mxu0 %v4171
    %4735 = vmatpush.msra.mxu0 %v4168
    %4736 = vmatpush.msra.mxu0 %v4165
    %4737 = vmatpush.msra.mxu0 %v4162
    %4738 = vmatpush.msra.mxu0 %v4159
    %4739 = vmatpush.msra.mxu0 %v4156
    %4740 = vmatpush.msra.mxu0 %v4153
    %4741 = vmatpush.msra.mxu0 %v4150
    %4742 = vmatpush.msra.mxu0 %v4147
    %4743 = vmatpush.msra.mxu0 %v4144
    %4744 = vmatpush.msra.mxu0 %v4141
    %4745 = vmatpush.msra.mxu0 %v4138
    %4746 = vmatpush.msra.mxu0 %v4135
    %4747 = vmatpush.msra.mxu0 %v4132
    %4748 = vmatmul.f32.gmra.mxu0 %v4590
    %v4749 = vpop.f32.mrf.mxu0
    %v4750 = vadd.f32 %v4730, %v4749
    %4751 = vdwg.mxu0
    %4752 = vmatpush.msra.mxu0 %v4225
    %4753 = vmatpush.msra.mxu0 %v4222
    %4754 = vmatpush.msra.mxu0 %v4219
    %4755 = vmatpush.msra.mxu0 %v4216
    %4756 = vmatpush.msra.mxu0 %v4213
    %4757 = vmatpush.msra.mxu0 %v4210
    %4758 = vmatpush.msra.mxu0 %v4207
    %4759 = vmatpush.msra.mxu0 %v4204
    %4760 = vmatpush.msra.mxu0 %v4201
    %4761 = vmatpush.msra.mxu0 %v4198
    %4762 = vmatpush.msra.mxu0 %v4195
    %4763 = vmatpush.msra.mxu0 %v4192
    %4764 = vmatpush.msra.mxu0 %v4189
    %4765 = vmatpush.msra.mxu0 %v4186
    %4766 = vmatpush.msra.mxu0 %v4183
    %4767 = vmatpush.msra.mxu0 %v4180
    %4768 = vmatmul.f32.gmra.mxu0 %v4591
    %v4769 = vpop.f32.mrf.mxu0
    %v4770 = vadd.f32 %v4750, %v4769
    %4771 = vdwg.mxu0
    %v4772 = vmax.f32 %v4650, 0.0
    %v4773 = vmax.f32 %v4710, 0.0
    %v4774 = vmax.f32 %v4770, 0.0
    %v4775 = vld [vmem:[%s8] sm:$0xff]
    %v4776 = vld [vmem:[%s8 + $0x8] sm:$0xff]
    %v4777 = vld [vmem:[%s8 + $0x10] sm:$0xff]
    %v4778 = vld [vmem:[%s8 + $0x18] sm:$0xff]
    %v4779 = vld [vmem:[%s8 + $0x20] sm:$0xff]
    %v4780 = vld [vmem:[%s8 + $0x28] sm:$0xff]
    %v4781 = vld [vmem:[%s8 + $0x30] sm:$0xff]
    %v4782 = vld [vmem:[%s8 + $0x38] sm:$0xff]
    %v4783 = vld [vmem:[%s8 + $0x40] sm:$0xff]
    %v4784 = vld [vmem:[%s8 + $0x48] sm:$0xff]
    %v4785 = vld [vmem:[%s8 + $0x50] sm:$0xff]
    %v4786 = vld [vmem:[%s8 + $0x58] sm:$0xff]
    %v4787 = vld [vmem:[%s8 + $0x60] sm:$0xff]
    %v4788 = vld [vmem:[%s8 + $0x68] sm:$0xff]
    %v4789 = vld [vmem:[%s8 + $0x70] sm:$0xff]
    %v4790 = vld [vmem:[%s8 + $0x78] sm:$0xff]
    %v4791 = vld [vmem:[%s8 + $0x80] sm:$0xff]
    %v4792 = vld [vmem:[%s8 + $0x88] sm:$0xff]
    %v4793 = vld [vmem:[%s8 + $0x90] sm:$0xff]
    %v4794 = vld [vmem:[%s8 + $0x98] sm:$0xff]
    %v4795 = vld [vmem:[%s8 + $0xa0] sm:$0xff]
    %v4796 = vld [vmem:[%s8 + $0xa8] sm:$0xff]
    %v4797 = vld [vmem:[%s8 + $0xb0] sm:$0xff]
    %v4798 = vld [vmem:[%s8 + $0xb8] sm:$0xff]
    %v4799 = vld [vmem:[%s8 + $0xc0] sm:$0xff]
    %v4800 = vld [vmem:[%s8 + $0xc8] sm:$0xff]
    %v4801 = vld [vmem:[%s8 + $0xd0] sm:$0xff]
    %v4802 = vld [vmem:[%s8 + $0xd8] sm:$0xff]
    %v4803 = vld [vmem:[%s8 + $0xe0] sm:$0xff]
    %v4804 = vld [vmem:[%s8 + $0xe8] sm:$0xff]
    %v4805 = vld [vmem:[%s8 + $0xf0] sm:$0xff]
    %v4806 = vld [vmem:[%s8 + $0xf8] sm:$0xff]
    %v4807 = vld [vmem:[%s8 + $0x100] sm:$0xff]
    %v4808 = vld [vmem:[%s8 + $0x108] sm:$0xff]
    %v4809 = vld [vmem:[%s8 + $0x110] sm:$0xff]
    %v4810 = vld [vmem:[%s8 + $0x118] sm:$0xff]
    %v4811 = vld [vmem:[%s8 + $0x120] sm:$0xff]
    %v4812 = vld [vmem:[%s8 + $0x128] sm:$0xff]
    %v4813 = vld [vmem:[%s8 + $0x130] sm:$0xff]
    %v4814 = vld [vmem:[%s8 + $0x138] sm:$0xff]
    %v4815 = vld [vmem:[%s8 + $0x140] sm:$0xff]
    %v4816 = vld [vmem:[%s8 + $0x148] sm:$0xff]
    %v4817 = vld [vmem:[%s8 + $0x150] sm:$0xff]
    %v4818 = vld [vmem:[%s8 + $0x158] sm:$0xff]
    %v4819 = vld [vmem:[%s8 + $0x160] sm:$0xff]
    %v4820 = vld [vmem:[%s8 + $0x168] sm:$0xff]
    %v4821 = vld [vmem:[%s8 + $0x170] sm:$0xff]
    %v4822 = vld [vmem:[%s8 + $0x178] sm:$0xff]
    %v4823 = vld [vmem:[%s9] sm:$0x1]
    %v4825 = vperm.slane %v4823, 0
    %4827 = vmatpush.msra.mxu0 %v4790
    %4828 = vmatpush.msra.mxu0 %v4789
    %4829 = vmatpush.msra.mxu0 %v4788
    %4830 = vmatpush.msra.mxu0 %v4787
    %4831 = vmatpush.msra.mxu0 %v4786
    %4832 = vmatpush.msra.mxu0 %v4785
    %4833 = vmatpush.msra.mxu0 %v4784
    %4834 = vmatpush.msra.mxu0 %v4783
    %4835 = vmatpush.msra.mxu0 %v4782
    %4836 = vmatpush.msra.mxu0 %v4781
    %4837 = vmatpush.msra.mxu0 %v4780
    %4838 = vmatpush.msra.mxu0 %v4779
    %4839 = vmatpush.msra.mxu0 %v4778
    %4840 = vmatpush.msra.mxu0 %v4777
    %4841 = vmatpush.msra.mxu0 %v4776
    %4842 = vmatpush.msra.mxu0 %v4775
    %4843 = vmatmul.f32.gmra.mxu0 %v4772
    %v4844 = vpop.f32.mrf.mxu0
    %v4845 = vadd.f32 %v4825, %v4844
    %4846 = vdwg.mxu0
    %4847 = vmatpush.msra.mxu0 %v4806
    %4848 = vmatpush.msra.mxu0 %v4805
    %4849 = vmatpush.msra.mxu0 %v4804
    %4850 = vmatpush.msra.mxu0 %v4803
    %4851 = vmatpush.msra.mxu0 %v4802
    %4852 = vmatpush.msra.mxu0 %v4801
    %4853 = vmatpush.msra.mxu0 %v4800
    %4854 = vmatpush.msra.mxu0 %v4799
    %4855 = vmatpush.msra.mxu0 %v4798
    %4856 = vmatpush.msra.mxu0 %v4797
    %4857 = vmatpush.msra.mxu0 %v4796
    %4858 = vmatpush.msra.mxu0 %v4795
    %4859 = vmatpush.msra.mxu0 %v4794
    %4860 = vmatpush.msra.mxu0 %v4793
    %4861 = vmatpush.msra.mxu0 %v4792
    %4862 = vmatpush.msra.mxu0 %v4791
    %4863 = vmatmul.f32.gmra.mxu0 %v4773
    %v4864 = vpop.f32.mrf.mxu0
    %v4865 = vadd.f32 %v4845, %v4864
    %4866 = vdwg.mxu0
    %4867 = vmatpush.msra.mxu0 %v4822
    %4868 = vmatpush.msra.mxu0 %v4821
    %4869 = vmatpush.msra.mxu0 %v4820
    %4870 = vmatpush.msra.mxu0 %v4819
    %4871 = vmatpush.msra.mxu0 %v4818
    %4872 = vmatpush.msra.mxu0 %v4817
    %4873 = vmatpush.msra.mxu0 %v4816
    %4874 = vmatpush.msra.mxu0 %v4815
    %4875 = vmatpush.msra.mxu0 %v4814
    %4876 = vmatpush.msra.mxu0 %v4813
    %4877 = vmatpush.msra.mxu0 %v4812
    %4878 = vmatpush.msra.mxu0 %v4811
    %4879 = vmatpush.msra.mxu0 %v4810
    %4880 = vmatpush.msra.mxu0 %v4809
    %4881 = vmatpush.msra.mxu0 %v4808
    %4882 = vmatpush.msra.mxu0 %v4807
    %4883 = vmatmul.f32.gmra.mxu0 %v4774
    %v4884 = vpop.f32.mrf.mxu0
    %v4885 = vadd.f32 %v4865, %v4884
    %4886 = vdwg.mxu0
    %4887 = vst [vmem:[#allocation14] sm:$0xff] %v4885
    // Predicated region
    $region50: #{tpu_custom_call.1} parent=1 // pred_check
      _
    $region51: #{tpu_custom_call.1} parent=1 // pred_check_branch
      %4889 = sbr.rel (0) target = $region53
    $region52: #{tpu_custom_call.1} parent=1 // pred_region
      %4891 = vsyncadd [#allocation11], 0
      %s4893 = sshll.u32 [#allocation14], 4
      %s4894 = int_to_ptr.vmem [resolvable:$true] %s4893
      %s4895 = sshll.u32 %s10, 4
      %s4896 = int_to_ptr.hbm [resolvable:$true] %s4895
      %4898 = dma.vmem_to_hbm [thread:$0]  %s4894, 128, %s4896, [#allocation11]
    $region53: #{tpu_custom_call.1} parent=1 // pred_fallthru
      _
    // Predicated region
    $region54: #{tpu_custom_call.1} parent=1 // pred_check
      _
    $region55: #{tpu_custom_call.1} parent=1 // pred_check_branch
      %4900 = sbr.rel (0) target = $region57
    $region56: #{tpu_custom_call.1} parent=1 // pred_region
      %4902 = dma.done [#allocation11], 128
    $region57: #{tpu_custom_call.1} parent=1 // pred_fallthru
      _
    %4903 = vsyncpa [#allocation10], 1
    %4904 = vsyncpa [#allocation13], 1
    %4905 = vsyncpa [#allocation11], 1

</llo_original>
